<compile_context>
chip_gen: v5e
topology: v5e:2x2
jax: 0.10.0
libtpu: 0.0.40
codegen_flags: <defaults>
</compile_context>

<pallas_src>
import jax
import jax.numpy as jnp
from jax.experimental import pallas as pl
from jax.experimental.pallas import tpu as pltpu

EPS = 1e-5


# ----------------------------------------------------------------------------
# In-kernel helpers
# ----------------------------------------------------------------------------
def _conv3x3(x, band_ref, shift_ref, relu):
    """x: [H_in, W_in*Cin] f32 (lane layout: w-major, channel-minor).
    band_ref: [3, W_in*Cin, (W_in-2)*Cout] bf16, BN scale already folded in.
    Valid 3x3 conv == sum over the 3 tap rows of (shifted rows of x) @ band[ki]."""
    h_out = x.shape[0] - 2
    acc = jnp.dot(x[0:h_out, :].astype(jnp.bfloat16), band_ref[0],
                  preferred_element_type=jnp.float32)
    acc = acc + jnp.dot(x[1:h_out + 1, :].astype(jnp.bfloat16), band_ref[1],
                        preferred_element_type=jnp.float32)
    acc = acc + jnp.dot(x[2:h_out + 2, :].astype(jnp.bfloat16), band_ref[2],
                        preferred_element_type=jnp.float32)
    if shift_ref is not None:
        acc = acc + shift_ref[...]          # folded BatchNorm shift (per channel, tiled over W)
    if relu:
        acc = jnp.maximum(acc, 0.0)
    return acc


def _critic_kernel(img_ref, sva_ref,
                   cb1, cb2, cb3, cb4, cb5, cb6,
                   cs1, cs2, cs3, cs4, cs5,
                   re_ref, ro_ref, pe_ref, po_ref,
                   w1_ref, b1_ref, w2_ref, b2_ref, w3_ref, b3_ref,
                   out_ref):
    """One grid step == one critic branch; all activations stay in VMEM/vregs."""
    n_batch = img_ref.shape[0]
    c = 16
    feats = []
    for i in range(n_batch):                                  # tiny static batch loop
        x = img_ref[i]                                        # [H, W]   (Cin == 1)
        x = _conv3x3(x, cb1, cs1, relu=True)                  # conv_*_1 + BN + ReLU
        x = _conv3x3(x, cb2, cs2, relu=True)                  # conv_*_2 + BN + ReLU
        # MaxPool2d(2, 2): row-pair max via 0/1 row-selection matmuls, then column-pair max
        # via 0/1 column-selection matmuls (avoids strided slices / reshapes in-kernel).
        y = jnp.maximum(jnp.dot(re_ref[...], x, preferred_element_type=jnp.float32),
                        jnp.dot(ro_ref[...], x, preferred_element_type=jnp.float32))
        x = jnp.maximum(jnp.dot(y, pe_ref[...], preferred_element_type=jnp.float32),
                        jnp.dot(y, po_ref[...], preferred_element_type=jnp.float32))
        x = _conv3x3(x, cb3, cs3, relu=True)                  # conv_*_3
        x = _conv3x3(x, cb4, cs4, relu=True)                  # conv_*_4
        x = _conv3x3(x, cb5, cs5, relu=True)                  # conv_*_5
        x = _conv3x3(x, cb6, None, relu=False)                # conv_*_6 (no BN / no ReLU)
        # AdaptiveAvgPool2d((1,1)): mean over the remaining (h, w) grid.  Lane layout is
        # w-major / channel-minor, so fold the W blocks with static lane slices.
        s = jnp.sum(x, axis=0, keepdims=True)                 # [1, W6*C]
        w6 = x.shape[1] // c
        g = s[:, 0:c]
        for w in range(1, w6):
            g = g + s[:, w * c:(w + 1) * c]
        feats.append(g * (1.0 / (x.shape[0] * w6)))           # [1, 16]

    g_all = jnp.concatenate(feats, axis=0)                    # [N, 16]
    h = jnp.concatenate([g_all, sva_ref[...]], axis=1)        # [N, 16 + (state_dim-1) + action_dim]
    h = jnp.dot(h.astype(jnp.bfloat16), w1_ref[...],
                preferred_element_type=jnp.float32) + b1_ref[...]
    h = jnp.maximum(h, 0.0)                                   # fc_*_1 + ReLU
    h = jnp.dot(h.astype(jnp.bfloat16), w2_ref[...],
                preferred_element_type=jnp.float32) + b2_ref[...]
    h = jnp.maximum(h, 0.0)                                   # fc_*_2 + ReLU
    q = jnp.dot(h.astype(jnp.bfloat16), w3_ref[...],
                preferred_element_type=jnp.float32) + b3_ref[...]   # fc_*_3  [N, 1]
    # Lane-dense store: broadcast q across the 128-lane output block (column 0 holds q).
    out_ref[...] = jnp.broadcast_to(q, out_ref.shape)


# ----------------------------------------------------------------------------
# BlockSpec helpers (grid axis = branch)
# ----------------------------------------------------------------------------
def _shared_spec(shape):
    zeros = (0,) * len(shape)
    return pl.BlockSpec(tuple(shape), lambda b, _z=zeros: _z)


def _branch_spec(shape):
    block = (None,) + tuple(shape[1:])
    zeros = (0,) * (len(shape) - 1)
    return pl.BlockSpec(block, lambda b, _z=zeros: (b,) + _z)


# ----------------------------------------------------------------------------
# Parameter preparation (done once, outside the hot path)
# ----------------------------------------------------------------------------
def _banded_weight(w, scale, w_in):
    """w: [3, 3, Cin, Cout], scale: [Cout] (folded BN scale).  Returns
    B: [3, w_in*Cin, (w_in-2)*Cout] with
        B[ki, (wo+kj)*Cin + ci, wo*Cout + co] = w[ki, kj, ci, co] * scale[co]
    so that a valid 3x3 conv is out[ho] = sum_ki x2d[ho+ki] @ B[ki] for activations
    laid out as x2d[h, w*Cin + ci]."""
    kh, kw, cin, cout = w.shape
    w_out = w_in - 2
    ws = w * scale[None, None, None, :]
    pos = jnp.arange(w_in)
    wo = jnp.arange(w_out)
    bands = []
    for ki in range(kh):
        acc = jnp.zeros((w_in, cin, w_out, cout), jnp.float32)
        for kj in range(kw):
            ind = (pos[:, None] == wo[None, :] + kj).astype(jnp.float32)   # [w_in, w_out]
            acc = acc + ind[:, None, :, None] * ws[ki, kj][None, :, None, :]
        bands.append(acc.reshape(w_in * cin, w_out * cout))
    return jnp.stack(bands, axis=0)


def _pool_matrices(h_in, w_in, c):
    """0/1 selection matrices so MaxPool2d(2,2) = max over {Re,Ro} @ x @ {Pe,Po}."""
    h_out, w_out = h_in // 2, w_in // 2
    r = jnp.arange(h_out)
    rows = jnp.arange(h_in)
    re = (rows[None, :] == 2 * r[:, None]).astype(jnp.float32)        # [h_out, h_in]
    ro = (rows[None, :] == 2 * r[:, None] + 1).astype(jnp.float32)
    j = jnp.arange(w_in * c)
    k = jnp.arange(w_out * c)
    even_src = 2 * (k // c) * c + (k % c)
    pe = (j[:, None] == even_src[None, :]).astype(jnp.float32)        # [w_in*c, w_out*c]
    po = (j[:, None] == even_src[None, :] + c).astype(jnp.float32)
    return re, ro, pe, po


def make_critic_params(key, state_dim, action_dim):
    """Deterministic synthetic parameters in PyTorch layouts
    (Conv2d: [Cout, Cin, kh, kw], Linear: [out, in])."""
    fc_in = state_dim - 1 + 16 + action_dim
    keys = iter(jax.random.split(key, 128))
    params = {}
    for br in (1, 2):
        convs = []
        cin = 1
        for layer in range(6):
            entry = {"w": 0.1 * jax.random.normal(next(keys), (16, cin, 3, 3), jnp.float32)}
            if layer < 5:                                     # conv_*_6 has no BatchNorm
                entry["gamma"] = 1.0 + 0.05 * jax.random.normal(next(keys), (16,), jnp.float32)
                entry["beta"] = 0.05 * jax.random.normal(next(keys), (16,), jnp.float32)
                entry["mean"] = 0.05 * jax.random.normal(next(keys), (16,), jnp.float32)
                entry["var"] = 1.0 + 0.05 * jax.random.uniform(next(keys), (16,), jnp.float32)
            convs.append(entry)
            cin = 16
        params[f"convs{br}"] = convs
        for name, (fin, fout) in (("fc1", (fc_in, 400)), ("fc2", (400, 300)), ("fc3", (300, 1))):
            bound = 1.0 / (fin ** 0.5)
            params[f"{name}_{br}"] = {
                "w": jax.random.uniform(next(keys), (fout, fin), jnp.float32, -bound, bound),
                "b": jax.random.uniform(next(keys), (fout,), jnp.float32, -bound, bound),
            }
    return params


def prepare_kernel_params(params, height, width):
    """Fold BN (eval mode) into the conv weights, build per-tap banded matrices, pool
    selection matrices and transposed FC weights; stack branch 1 / branch 2 along a
    leading axis of size 2 so the kernel's grid axis can pick the branch."""
    c = 16
    assert height >= 22 and width >= 22 and (height - 4) % 2 == 0 and (width - 4) % 2 == 0
    widths = [width, width - 2, (width - 4) // 2]
    widths += [widths[2] - 2, widths[2] - 4, widths[2] - 6]
    cins = [1, c, c, c, c, c]
    del cins  # (documented: layer 0 has Cin=1, the rest Cin=16; encoded in the raw weights)

    conv_b, conv_shift = [], []
    for l in range(6):
        bands, shifts = [], []
        for br in (1, 2):
            e = params[f"convs{br}"][l]
            # PyTorch Conv2d weight layout is [Cout, Cin, kh, kw] -> [kh, kw, Cin, Cout].
            w = jnp.transpose(e["w"], (2, 3, 1, 0))
            if l < 5:
                scale = e["gamma"] / jnp.sqrt(e["var"] + EPS)     # BatchNorm eval mode
                shift = e["beta"] - e["mean"] * scale
                shifts.append(jnp.tile(shift, widths[l] - 2)[None, :])
            else:
                scale = jnp.ones((c,), jnp.float32)               # conv_*_6 has no BN
            bands.append(_banded_weight(w, scale, widths[l]))
        conv_b.append(jnp.stack(bands).astype(jnp.bfloat16))      # [2, 3, Win*Cin, Wout*C]
        if l < 5:
            conv_shift.append(jnp.stack(shifts))                  # [2, 1, Wout*C] (f32)

    re, ro, pe, po = _pool_matrices(height - 4, width - 4, c)

    fc = {}
    for name in ("fc1", "fc2", "fc3"):
        # PyTorch Linear stores [out, in]; the kernel wants [in, out].
        w = jnp.stack([jnp.transpose(params[f"{name}_{br}"]["w"]) for br in (1, 2)])
        b = jnp.stack([params[f"{name}_{br}"]["b"][None, :] for br in (1, 2)])
        fc[name] = (w.astype(jnp.bfloat16), b.astype(jnp.float32))

    return {"conv_b": conv_b, "conv_shift": conv_shift,
            "pool": (re, ro, pe, po), "fc": fc}


# ----------------------------------------------------------------------------
# Forward pass: a single pallas_call, grid=(2,) over the twin branches
# ----------------------------------------------------------------------------
@jax.jit
def critic_forward(kparams, state_img_nchw, state_val, action):
    """state_img_nchw: [N, 1, H, W] (PyTorch layout).  Returns (q1, q2), each [N, 1]."""
    img = state_img_nchw[:, 0, :, :].astype(jnp.float32)          # [N, H, W]  (C == 1)
    sva = jnp.concatenate([state_val, action], axis=1).astype(jnp.float32)
    n = img.shape[0]

    re, ro, pe, po = kparams["pool"]
    w1, b1 = kparams["fc"]["fc1"]
    w2, b2 = kparams["fc"]["fc2"]
    w3, b3 = kparams["fc"]["fc3"]

    arrays = ([img, sva] + list(kparams["conv_b"]) + list(kparams["conv_shift"])
              + [re, ro, pe, po, w1, b1, w2, b2, w3, b3])
    specs = ([_shared_spec(img.shape), _shared_spec(sva.shape)]
             + [_branch_spec(a.shape) for a in kparams["conv_b"]]
             + [_branch_spec(a.shape) for a in kparams["conv_shift"]]
             + [_shared_spec(a.shape) for a in (re, ro, pe, po)]
             + [_branch_spec(a.shape) for a in (w1, b1, w2, b2, w3, b3)])

    out = pl.pallas_call(
        _critic_kernel,
        grid=(2,),                                    # branch axis: q1 / q2
        in_specs=specs,
        out_specs=pl.BlockSpec((None, n, 128), lambda b: (b, 0, 0)),
        out_shape=jax.ShapeDtypeStruct((2, n, 128), jnp.float32),
        compiler_params=pltpu.CompilerParams(
            dimension_semantics=("parallel",),        # each branch on its own TC on v7x
            vmem_limit_bytes=32 * 1024 * 1024,
        ),
    )(*arrays)

    return out[0, :, 0:1], out[1, :, 0:1]


# ----------------------------------------------------------------------------
# Pure-JAX reference (same BN folding / bf16 weight rounding as the kernel)
# ----------------------------------------------------------------------------
def _reference_forward(params, state_img, state_val, action):
    def conv_block(x, e, with_bn, relu):
        w = jnp.transpose(e["w"], (2, 3, 1, 0))               # -> [3, 3, Cin, Cout]
        cout = w.shape[-1]
        if with_bn:
            scale = e["gamma"] / jnp.sqrt(e["var"] + EPS)
            shift = e["beta"] - e["mean"] * scale
        else:
            scale = jnp.ones((cout,), jnp.float32)
            shift = jnp.zeros((cout,), jnp.float32)
        wf = (w * scale).astype(jnp.bfloat16).astype(jnp.float32)
        bn, hi, wi, cin = x.shape
        ho, wo = hi - 2, wi - 2
        patches = [x[:, di:di + ho, dj:dj + wo, :] for di in range(3) for dj in range(3)]
        pm = jnp.concatenate(patches, axis=-1).reshape(bn * ho * wo, 9 * cin)
        y = (pm @ wf.reshape(9 * cin, cout)).reshape(bn, ho, wo, cout) + shift
        return jnp.maximum(y, 0.0) if relu else y

    def branch(br, img_nhwc):
        x = img_nhwc
        convs = params[f"convs{br}"]
        for l in range(2):
            x = conv_block(x, convs[l], True, True)
        bn, hi, wi, cc = x.shape
        x = x.reshape(bn, hi // 2, 2, wi // 2, 2, cc).max(axis=(2, 4))
        for l in range(2, 5):
            x = conv_block(x, convs[l], True, True)
        x = conv_block(x, convs[5], False, False)
        feat = jnp.concatenate([x.mean(axis=(1, 2)), state_val, action], axis=1)
        for name, relu in (("fc1", True), ("fc2", True), ("fc3", False)):
            lw = params[f"{name}_{br}"]
            wt = jnp.transpose(lw["w"]).astype(jnp.bfloat16).astype(jnp.float32)
            feat = feat @ wt + lw["b"][None, :]
            if relu:
                feat = jnp.maximum(feat, 0.0)
        return feat

    img = jnp.transpose(state_img, (0, 2, 3, 1)).astype(jnp.float32)
    return branch(1, img), branch(2, img)


# ----------------------------------------------------------------------------
if __name__ == "__main__":
    key = jax.random.PRNGKey(0)
    k_params, k_img, k_sv, k_act = jax.random.split(key, 4)

    batch, state_dim, action_dim = 2, 5, 2
    height = width = 24   # smallest convenient even size >= 22 for this conv stack

    state_img = jax.random.normal(k_img, (batch, 1, height, width), jnp.float32)   # NCHW
    state_val = jax.random.normal(k_sv, (batch, state_dim - 1), jnp.float32)
    action = jax.random.normal(k_act, (batch, action_dim), jnp.float32)

    raw_params = make_critic_params(k_params, state_dim, action_dim)
    kparams = prepare_kernel_params(raw_params, height, width)

    q1, q2 = critic_forward(kparams, state_img, state_val, action)
    jax.block_until_ready((q1, q2))
    assert q1.shape == (batch, 1) and q2.shape == (batch, 1)
    assert bool(jnp.all(jnp.isfinite(q1))) and bool(jnp.all(jnp.isfinite(q2)))

    r1, r2 = _reference_forward(raw_params, state_img, state_val, action)
    assert jnp.allclose(q1, r1, rtol=5e-2, atol=5e-2), (q1, r1)
    assert jnp.allclose(q2, r2, rtol=5e-2, atol=5e-2), (q2, r2)

    print("KERNEL_OK")
</pallas_src>

<mosaic_0001>
module attributes {stable_mosaic.version = 11 : i64} {
  func.func @_critic_kernel(%arg0: i32, %arg1: memref<2x24x24xf32, #tpu.memory_space<vmem>>, %arg2: memref<2x6xf32, #tpu.memory_space<vmem>>, %arg3: memref<1x3x24x352xbf16, #tpu.memory_space<vmem>>, %arg4: memref<1x3x352x320xbf16, #tpu.memory_space<vmem>>, %arg5: memref<1x3x160x128xbf16, #tpu.memory_space<vmem>>, %arg6: memref<1x3x128x96xbf16, #tpu.memory_space<vmem>>, %arg7: memref<1x3x96x64xbf16, #tpu.memory_space<vmem>>, %arg8: memref<1x3x64x32xbf16, #tpu.memory_space<vmem>>, %arg9: memref<1x1x352xf32, #tpu.memory_space<vmem>>, %arg10: memref<1x1x320xf32, #tpu.memory_space<vmem>>, %arg11: memref<1x1x128xf32, #tpu.memory_space<vmem>>, %arg12: memref<1x1x96xf32, #tpu.memory_space<vmem>>, %arg13: memref<1x1x64xf32, #tpu.memory_space<vmem>>, %arg14: memref<10x20xf32, #tpu.memory_space<vmem>>, %arg15: memref<10x20xf32, #tpu.memory_space<vmem>>, %arg16: memref<320x160xf32, #tpu.memory_space<vmem>>, %arg17: memref<320x160xf32, #tpu.memory_space<vmem>>, %arg18: memref<1x22x400xbf16, #tpu.memory_space<vmem>>, %arg19: memref<1x1x400xf32, #tpu.memory_space<vmem>>, %arg20: memref<1x400x300xbf16, #tpu.memory_space<vmem>>, %arg21: memref<1x1x300xf32, #tpu.memory_space<vmem>>, %arg22: memref<1x300x1xbf16, #tpu.memory_space<vmem>>, %arg23: memref<1x1x1xf32, #tpu.memory_space<vmem>>, %arg24: memref<1x2x128xf32, #tpu.memory_space<vmem>>) attributes {dimension_semantics = [#tpu.dimension_semantics<parallel>], iteration_bounds = array<i64: 2>, scalar_prefetch = 0 : i64, scratch_operands = 0 : i64, tpu.core_type = #tpu.core_type<tc>, window_params = [{pipeline_mode = #tpu.pipeline_mode<synchronous>, transform_indices = @transform_0, window_bounds = array<i64: 2, 24, 24>}, {pipeline_mode = #tpu.pipeline_mode<synchronous>, transform_indices = @transform_1, window_bounds = array<i64: 2, 6>}, {transform_indices = @transform_2, window_bounds = array<i64: 1, 3, 24, 352>}, {transform_indices = @transform_3, window_bounds = array<i64: 1, 3, 352, 320>}, {transform_indices = @transform_4, window_bounds = array<i64: 1, 3, 160, 128>}, {transform_indices = @transform_5, window_bounds = array<i64: 1, 3, 128, 96>}, {transform_indices = @transform_6, window_bounds = array<i64: 1, 3, 96, 64>}, {transform_indices = @transform_7, window_bounds = array<i64: 1, 3, 64, 32>}, {transform_indices = @transform_8, window_bounds = array<i64: 1, 1, 352>}, {transform_indices = @transform_9, window_bounds = array<i64: 1, 1, 320>}, {transform_indices = @transform_10, window_bounds = array<i64: 1, 1, 128>}, {transform_indices = @transform_11, window_bounds = array<i64: 1, 1, 96>}, {transform_indices = @transform_12, window_bounds = array<i64: 1, 1, 64>}, {pipeline_mode = #tpu.pipeline_mode<synchronous>, transform_indices = @transform_13, window_bounds = array<i64: 10, 20>}, {pipeline_mode = #tpu.pipeline_mode<synchronous>, transform_indices = @transform_14, window_bounds = array<i64: 10, 20>}, {pipeline_mode = #tpu.pipeline_mode<synchronous>, transform_indices = @transform_15, window_bounds = array<i64: 320, 160>}, {pipeline_mode = #tpu.pipeline_mode<synchronous>, transform_indices = @transform_16, window_bounds = array<i64: 320, 160>}, {transform_indices = @transform_17, window_bounds = array<i64: 1, 22, 400>}, {transform_indices = @transform_18, window_bounds = array<i64: 1, 1, 400>}, {transform_indices = @transform_19, window_bounds = array<i64: 1, 400, 300>}, {transform_indices = @transform_20, window_bounds = array<i64: 1, 1, 300>}, {transform_indices = @transform_21, window_bounds = array<i64: 1, 300, 1>}, {transform_indices = @transform_22, window_bounds = array<i64: 1, 1, 1>}, {transform_indices = @transform_23, window_bounds = array<i64: 1, 2, 128>}]} {
    %c0 = arith.constant 0 : index
    %c0_0 = arith.constant 0 : index
    %c0_1 = arith.constant 0 : index
    %0 = vector.load %arg1[%c0, %c0_0, %c0_1] : memref<2x24x24xf32, #tpu.memory_space<vmem>>, vector<1x24x24xf32>
    %1 = vector.shape_cast %0 : vector<1x24x24xf32> to vector<24x24xf32>
    %2 = vector.extract_strided_slice %1 {offsets = [0, 0], sizes = [22, 24], strides = [1, 1]} : vector<24x24xf32> to vector<22x24xf32>
    %3 = arith.truncf %2 : vector<22x24xf32> to vector<22x24xbf16>
    %c0_2 = arith.constant 0 : index
    %c0_3 = arith.constant 0 : index
    %c0_4 = arith.constant 0 : index
    %c0_5 = arith.constant 0 : index
    %4 = vector.load %arg3[%c0_2, %c0_3, %c0_4, %c0_5] : memref<1x3x24x352xbf16, #tpu.memory_space<vmem>>, vector<1x1x24x352xbf16>
    %5 = vector.shape_cast %4 : vector<1x1x24x352xbf16> to vector<24x352xbf16>
    %cst = arith.constant dense<0.000000e+00> : vector<22x352xf32>
    %6 = tpu.matmul %3, %5, %cst {dimension_numbers = #tpu.dot_dimension_numbers<[1], [0], [0], [1], [0, 0, 1, 1], [], []>} : vector<22x24xbf16>, vector<24x352xbf16>, vector<22x352xf32> -> vector<22x352xf32>
    %7 = vector.extract_strided_slice %1 {offsets = [1, 0], sizes = [22, 24], strides = [1, 1]} : vector<24x24xf32> to vector<22x24xf32>
    %8 = arith.truncf %7 : vector<22x24xf32> to vector<22x24xbf16>
    %c0_6 = arith.constant 0 : index
    %c1 = arith.constant 1 : index
    %c0_7 = arith.constant 0 : index
    %c0_8 = arith.constant 0 : index
    %9 = vector.load %arg3[%c0_6, %c1, %c0_7, %c0_8] : memref<1x3x24x352xbf16, #tpu.memory_space<vmem>>, vector<1x1x24x352xbf16>
    %10 = vector.shape_cast %9 : vector<1x1x24x352xbf16> to vector<24x352xbf16>
    %cst_9 = arith.constant dense<0.000000e+00> : vector<22x352xf32>
    %11 = tpu.matmul %8, %10, %cst_9 {dimension_numbers = #tpu.dot_dimension_numbers<[1], [0], [0], [1], [0, 0, 1, 1], [], []>} : vector<22x24xbf16>, vector<24x352xbf16>, vector<22x352xf32> -> vector<22x352xf32>
    %12 = arith.addf %6, %11 : vector<22x352xf32>
    %13 = vector.extract_strided_slice %1 {offsets = [2, 0], sizes = [22, 24], strides = [1, 1]} : vector<24x24xf32> to vector<22x24xf32>
    %14 = arith.truncf %13 : vector<22x24xf32> to vector<22x24xbf16>
    %c0_10 = arith.constant 0 : index
    %c2 = arith.constant 2 : index
    %c0_11 = arith.constant 0 : index
    %c0_12 = arith.constant 0 : index
    %15 = vector.load %arg3[%c0_10, %c2, %c0_11, %c0_12] : memref<1x3x24x352xbf16, #tpu.memory_space<vmem>>, vector<1x1x24x352xbf16>
    %16 = vector.shape_cast %15 : vector<1x1x24x352xbf16> to vector<24x352xbf16>
    %cst_13 = arith.constant dense<0.000000e+00> : vector<22x352xf32>
    %17 = tpu.matmul %14, %16, %cst_13 {dimension_numbers = #tpu.dot_dimension_numbers<[1], [0], [0], [1], [0, 0, 1, 1], [], []>} : vector<22x24xbf16>, vector<24x352xbf16>, vector<22x352xf32> -> vector<22x352xf32>
    %18 = arith.addf %12, %17 : vector<22x352xf32>
    %c0_14 = arith.constant 0 : index
    %c0_15 = arith.constant 0 : index
    %c0_16 = arith.constant 0 : index
    %19 = vector.load %arg9[%c0_14, %c0_15, %c0_16] : memref<1x1x352xf32, #tpu.memory_space<vmem>>, vector<1x1x352xf32>
    %20 = vector.shape_cast %19 : vector<1x1x352xf32> to vector<1x352xf32>
    %21 = vector.broadcast %20 : vector<1x352xf32> to vector<22x352xf32>
    %22 = arith.addf %18, %21 : vector<22x352xf32>
    %cst_17 = arith.constant 0.000000e+00 : f32
    %23 = vector.broadcast %cst_17 : f32 to vector<22x352xf32>
    %24 = arith.maximumf %22, %23 : vector<22x352xf32>
    %25 = vector.extract_strided_slice %24 {offsets = [0, 0], sizes = [20, 352], strides = [1, 1]} : vector<22x352xf32> to vector<20x352xf32>
    %26 = arith.truncf %25 : vector<20x352xf32> to vector<20x352xbf16>
    %c0_18 = arith.constant 0 : index
    %c0_19 = arith.constant 0 : index
    %c0_20 = arith.constant 0 : index
    %c0_21 = arith.constant 0 : index
    %27 = vector.load %arg4[%c0_18, %c0_19, %c0_20, %c0_21] : memref<1x3x352x320xbf16, #tpu.memory_space<vmem>>, vector<1x1x352x320xbf16>
    %28 = vector.shape_cast %27 : vector<1x1x352x320xbf16> to vector<352x320xbf16>
    %cst_22 = arith.constant dense<0.000000e+00> : vector<20x320xf32>
    %29 = tpu.matmul %26, %28, %cst_22 {dimension_numbers = #tpu.dot_dimension_numbers<[1], [0], [0], [1], [0, 0, 1, 1], [], []>} : vector<20x352xbf16>, vector<352x320xbf16>, vector<20x320xf32> -> vector<20x320xf32>
    %30 = vector.extract_strided_slice %24 {offsets = [1, 0], sizes = [20, 352], strides = [1, 1]} : vector<22x352xf32> to vector<20x352xf32>
    %31 = arith.truncf %30 : vector<20x352xf32> to vector<20x352xbf16>
    %c0_23 = arith.constant 0 : index
    %c1_24 = arith.constant 1 : index
    %c0_25 = arith.constant 0 : index
    %c0_26 = arith.constant 0 : index
    %32 = vector.load %arg4[%c0_23, %c1_24, %c0_25, %c0_26] : memref<1x3x352x320xbf16, #tpu.memory_space<vmem>>, vector<1x1x352x320xbf16>
    %33 = vector.shape_cast %32 : vector<1x1x352x320xbf16> to vector<352x320xbf16>
    %cst_27 = arith.constant dense<0.000000e+00> : vector<20x320xf32>
    %34 = tpu.matmul %31, %33, %cst_27 {dimension_numbers = #tpu.dot_dimension_numbers<[1], [0], [0], [1], [0, 0, 1, 1], [], []>} : vector<20x352xbf16>, vector<352x320xbf16>, vector<20x320xf32> -> vector<20x320xf32>
    %35 = arith.addf %29, %34 : vector<20x320xf32>
    %36 = vector.extract_strided_slice %24 {offsets = [2, 0], sizes = [20, 352], strides = [1, 1]} : vector<22x352xf32> to vector<20x352xf32>
    %37 = arith.truncf %36 : vector<20x352xf32> to vector<20x352xbf16>
    %c0_28 = arith.constant 0 : index
    %c2_29 = arith.constant 2 : index
    %c0_30 = arith.constant 0 : index
    %c0_31 = arith.constant 0 : index
    %38 = vector.load %arg4[%c0_28, %c2_29, %c0_30, %c0_31] : memref<1x3x352x320xbf16, #tpu.memory_space<vmem>>, vector<1x1x352x320xbf16>
    %39 = vector.shape_cast %38 : vector<1x1x352x320xbf16> to vector<352x320xbf16>
    %cst_32 = arith.constant dense<0.000000e+00> : vector<20x320xf32>
    %40 = tpu.matmul %37, %39, %cst_32 {dimension_numbers = #tpu.dot_dimension_numbers<[1], [0], [0], [1], [0, 0, 1, 1], [], []>} : vector<20x352xbf16>, vector<352x320xbf16>, vector<20x320xf32> -> vector<20x320xf32>
    %41 = arith.addf %35, %40 : vector<20x320xf32>
    %c0_33 = arith.constant 0 : index
    %c0_34 = arith.constant 0 : index
    %c0_35 = arith.constant 0 : index
    %42 = vector.load %arg10[%c0_33, %c0_34, %c0_35] : memref<1x1x320xf32, #tpu.memory_space<vmem>>, vector<1x1x320xf32>
    %43 = vector.shape_cast %42 : vector<1x1x320xf32> to vector<1x320xf32>
    %44 = vector.broadcast %43 : vector<1x320xf32> to vector<20x320xf32>
    %45 = arith.addf %41, %44 : vector<20x320xf32>
    %cst_36 = arith.constant 0.000000e+00 : f32
    %46 = vector.broadcast %cst_36 : f32 to vector<20x320xf32>
    %47 = arith.maximumf %45, %46 : vector<20x320xf32>
    %c0_37 = arith.constant 0 : index
    %c0_38 = arith.constant 0 : index
    %48 = vector.load %arg14[%c0_37, %c0_38] : memref<10x20xf32, #tpu.memory_space<vmem>>, vector<10x20xf32>
    %cst_39 = arith.constant dense<0.000000e+00> : vector<10x320xf32>
    %49 = tpu.matmul %48, %47, %cst_39 {dimension_numbers = #tpu.dot_dimension_numbers<[1], [0], [0], [1], [0, 0, 1, 1], [], []>} : vector<10x20xf32>, vector<20x320xf32>, vector<10x320xf32> -> vector<10x320xf32>
    %c0_40 = arith.constant 0 : index
    %c0_41 = arith.constant 0 : index
    %50 = vector.load %arg15[%c0_40, %c0_41] : memref<10x20xf32, #tpu.memory_space<vmem>>, vector<10x20xf32>
    %cst_42 = arith.constant dense<0.000000e+00> : vector<10x320xf32>
    %51 = tpu.matmul %50, %47, %cst_42 {dimension_numbers = #tpu.dot_dimension_numbers<[1], [0], [0], [1], [0, 0, 1, 1], [], []>} : vector<10x20xf32>, vector<20x320xf32>, vector<10x320xf32> -> vector<10x320xf32>
    %52 = arith.maximumf %49, %51 : vector<10x320xf32>
    %c0_43 = arith.constant 0 : index
    %c0_44 = arith.constant 0 : index
    %53 = vector.load %arg16[%c0_43, %c0_44] : memref<320x160xf32, #tpu.memory_space<vmem>>, vector<320x160xf32>
    %cst_45 = arith.constant dense<0.000000e+00> : vector<10x160xf32>
    %54 = tpu.matmul %52, %53, %cst_45 {dimension_numbers = #tpu.dot_dimension_numbers<[1], [0], [0], [1], [0, 0, 1, 1], [], []>} : vector<10x320xf32>, vector<320x160xf32>, vector<10x160xf32> -> vector<10x160xf32>
    %c0_46 = arith.constant 0 : index
    %c0_47 = arith.constant 0 : index
    %55 = vector.load %arg17[%c0_46, %c0_47] : memref<320x160xf32, #tpu.memory_space<vmem>>, vector<320x160xf32>
    %cst_48 = arith.constant dense<0.000000e+00> : vector<10x160xf32>
    %56 = tpu.matmul %52, %55, %cst_48 {dimension_numbers = #tpu.dot_dimension_numbers<[1], [0], [0], [1], [0, 0, 1, 1], [], []>} : vector<10x320xf32>, vector<320x160xf32>, vector<10x160xf32> -> vector<10x160xf32>
    %57 = arith.maximumf %54, %56 : vector<10x160xf32>
    %58 = vector.extract_strided_slice %57 {offsets = [0, 0], sizes = [8, 160], strides = [1, 1]} : vector<10x160xf32> to vector<8x160xf32>
    %59 = arith.truncf %58 : vector<8x160xf32> to vector<8x160xbf16>
    %c0_49 = arith.constant 0 : index
    %c0_50 = arith.constant 0 : index
    %c0_51 = arith.constant 0 : index
    %c0_52 = arith.constant 0 : index
    %60 = vector.load %arg5[%c0_49, %c0_50, %c0_51, %c0_52] : memref<1x3x160x128xbf16, #tpu.memory_space<vmem>>, vector<1x1x160x128xbf16>
    %61 = vector.shape_cast %60 : vector<1x1x160x128xbf16> to vector<160x128xbf16>
    %cst_53 = arith.constant dense<0.000000e+00> : vector<8x128xf32>
    %62 = tpu.matmul %59, %61, %cst_53 {dimension_numbers = #tpu.dot_dimension_numbers<[1], [0], [0], [1], [0, 0, 1, 1], [], []>} : vector<8x160xbf16>, vector<160x128xbf16>, vector<8x128xf32> -> vector<8x128xf32>
    %63 = vector.extract_strided_slice %57 {offsets = [1, 0], sizes = [8, 160], strides = [1, 1]} : vector<10x160xf32> to vector<8x160xf32>
    %64 = arith.truncf %63 : vector<8x160xf32> to vector<8x160xbf16>
    %c0_54 = arith.constant 0 : index
    %c1_55 = arith.constant 1 : index
    %c0_56 = arith.constant 0 : index
    %c0_57 = arith.constant 0 : index
    %65 = vector.load %arg5[%c0_54, %c1_55, %c0_56, %c0_57] : memref<1x3x160x128xbf16, #tpu.memory_space<vmem>>, vector<1x1x160x128xbf16>
    %66 = vector.shape_cast %65 : vector<1x1x160x128xbf16> to vector<160x128xbf16>
    %cst_58 = arith.constant dense<0.000000e+00> : vector<8x128xf32>
    %67 = tpu.matmul %64, %66, %cst_58 {dimension_numbers = #tpu.dot_dimension_numbers<[1], [0], [0], [1], [0, 0, 1, 1], [], []>} : vector<8x160xbf16>, vector<160x128xbf16>, vector<8x128xf32> -> vector<8x128xf32>
    %68 = arith.addf %62, %67 : vector<8x128xf32>
    %69 = vector.extract_strided_slice %57 {offsets = [2, 0], sizes = [8, 160], strides = [1, 1]} : vector<10x160xf32> to vector<8x160xf32>
    %70 = arith.truncf %69 : vector<8x160xf32> to vector<8x160xbf16>
    %c0_59 = arith.constant 0 : index
    %c2_60 = arith.constant 2 : index
    %c0_61 = arith.constant 0 : index
    %c0_62 = arith.constant 0 : index
    %71 = vector.load %arg5[%c0_59, %c2_60, %c0_61, %c0_62] : memref<1x3x160x128xbf16, #tpu.memory_space<vmem>>, vector<1x1x160x128xbf16>
    %72 = vector.shape_cast %71 : vector<1x1x160x128xbf16> to vector<160x128xbf16>
    %cst_63 = arith.constant dense<0.000000e+00> : vector<8x128xf32>
    %73 = tpu.matmul %70, %72, %cst_63 {dimension_numbers = #tpu.dot_dimension_numbers<[1], [0], [0], [1], [0, 0, 1, 1], [], []>} : vector<8x160xbf16>, vector<160x128xbf16>, vector<8x128xf32> -> vector<8x128xf32>
    %74 = arith.addf %68, %73 : vector<8x128xf32>
    %c0_64 = arith.constant 0 : index
    %c0_65 = arith.constant 0 : index
    %c0_66 = arith.constant 0 : index
    %75 = vector.load %arg11[%c0_64, %c0_65, %c0_66] : memref<1x1x128xf32, #tpu.memory_space<vmem>>, vector<1x1x128xf32>
    %76 = vector.shape_cast %75 : vector<1x1x128xf32> to vector<1x128xf32>
    %77 = vector.broadcast %76 : vector<1x128xf32> to vector<8x128xf32>
    %78 = arith.addf %74, %77 : vector<8x128xf32>
    %cst_67 = arith.constant 0.000000e+00 : f32
    %79 = vector.broadcast %cst_67 : f32 to vector<8x128xf32>
    %80 = arith.maximumf %78, %79 : vector<8x128xf32>
    %81 = vector.extract_strided_slice %80 {offsets = [0, 0], sizes = [6, 128], strides = [1, 1]} : vector<8x128xf32> to vector<6x128xf32>
    %82 = arith.truncf %81 : vector<6x128xf32> to vector<6x128xbf16>
    %c0_68 = arith.constant 0 : index
    %c0_69 = arith.constant 0 : index
    %c0_70 = arith.constant 0 : index
    %c0_71 = arith.constant 0 : index
    %83 = vector.load %arg6[%c0_68, %c0_69, %c0_70, %c0_71] : memref<1x3x128x96xbf16, #tpu.memory_space<vmem>>, vector<1x1x128x96xbf16>
    %84 = vector.shape_cast %83 : vector<1x1x128x96xbf16> to vector<128x96xbf16>
    %cst_72 = arith.constant dense<0.000000e+00> : vector<6x96xf32>
    %85 = tpu.matmul %82, %84, %cst_72 {dimension_numbers = #tpu.dot_dimension_numbers<[1], [0], [0], [1], [0, 0, 1, 1], [], []>} : vector<6x128xbf16>, vector<128x96xbf16>, vector<6x96xf32> -> vector<6x96xf32>
    %86 = vector.extract_strided_slice %80 {offsets = [1, 0], sizes = [6, 128], strides = [1, 1]} : vector<8x128xf32> to vector<6x128xf32>
    %87 = arith.truncf %86 : vector<6x128xf32> to vector<6x128xbf16>
    %c0_73 = arith.constant 0 : index
    %c1_74 = arith.constant 1 : index
    %c0_75 = arith.constant 0 : index
    %c0_76 = arith.constant 0 : index
    %88 = vector.load %arg6[%c0_73, %c1_74, %c0_75, %c0_76] : memref<1x3x128x96xbf16, #tpu.memory_space<vmem>>, vector<1x1x128x96xbf16>
    %89 = vector.shape_cast %88 : vector<1x1x128x96xbf16> to vector<128x96xbf16>
    %cst_77 = arith.constant dense<0.000000e+00> : vector<6x96xf32>
    %90 = tpu.matmul %87, %89, %cst_77 {dimension_numbers = #tpu.dot_dimension_numbers<[1], [0], [0], [1], [0, 0, 1, 1], [], []>} : vector<6x128xbf16>, vector<128x96xbf16>, vector<6x96xf32> -> vector<6x96xf32>
    %91 = arith.addf %85, %90 : vector<6x96xf32>
    %92 = vector.extract_strided_slice %80 {offsets = [2, 0], sizes = [6, 128], strides = [1, 1]} : vector<8x128xf32> to vector<6x128xf32>
    %93 = arith.truncf %92 : vector<6x128xf32> to vector<6x128xbf16>
    %c0_78 = arith.constant 0 : index
    %c2_79 = arith.constant 2 : index
    %c0_80 = arith.constant 0 : index
    %c0_81 = arith.constant 0 : index
    %94 = vector.load %arg6[%c0_78, %c2_79, %c0_80, %c0_81] : memref<1x3x128x96xbf16, #tpu.memory_space<vmem>>, vector<1x1x128x96xbf16>
    %95 = vector.shape_cast %94 : vector<1x1x128x96xbf16> to vector<128x96xbf16>
    %cst_82 = arith.constant dense<0.000000e+00> : vector<6x96xf32>
    %96 = tpu.matmul %93, %95, %cst_82 {dimension_numbers = #tpu.dot_dimension_numbers<[1], [0], [0], [1], [0, 0, 1, 1], [], []>} : vector<6x128xbf16>, vector<128x96xbf16>, vector<6x96xf32> -> vector<6x96xf32>
    %97 = arith.addf %91, %96 : vector<6x96xf32>
    %c0_83 = arith.constant 0 : index
    %c0_84 = arith.constant 0 : index
    %c0_85 = arith.constant 0 : index
    %98 = vector.load %arg12[%c0_83, %c0_84, %c0_85] : memref<1x1x96xf32, #tpu.memory_space<vmem>>, vector<1x1x96xf32>
    %99 = vector.shape_cast %98 : vector<1x1x96xf32> to vector<1x96xf32>
    %100 = vector.broadcast %99 : vector<1x96xf32> to vector<6x96xf32>
    %101 = arith.addf %97, %100 : vector<6x96xf32>
    %cst_86 = arith.constant 0.000000e+00 : f32
    %102 = vector.broadcast %cst_86 : f32 to vector<6x96xf32>
    %103 = arith.maximumf %101, %102 : vector<6x96xf32>
    %104 = vector.extract_strided_slice %103 {offsets = [0, 0], sizes = [4, 96], strides = [1, 1]} : vector<6x96xf32> to vector<4x96xf32>
    %105 = arith.truncf %104 : vector<4x96xf32> to vector<4x96xbf16>
    %c0_87 = arith.constant 0 : index
    %c0_88 = arith.constant 0 : index
    %c0_89 = arith.constant 0 : index
    %c0_90 = arith.constant 0 : index
    %106 = vector.load %arg7[%c0_87, %c0_88, %c0_89, %c0_90] : memref<1x3x96x64xbf16, #tpu.memory_space<vmem>>, vector<1x1x96x64xbf16>
    %107 = vector.shape_cast %106 : vector<1x1x96x64xbf16> to vector<96x64xbf16>
    %cst_91 = arith.constant dense<0.000000e+00> : vector<4x64xf32>
    %108 = tpu.matmul %105, %107, %cst_91 {dimension_numbers = #tpu.dot_dimension_numbers<[1], [0], [0], [1], [0, 0, 1, 1], [], []>} : vector<4x96xbf16>, vector<96x64xbf16>, vector<4x64xf32> -> vector<4x64xf32>
    %109 = vector.extract_strided_slice %103 {offsets = [1, 0], sizes = [4, 96], strides = [1, 1]} : vector<6x96xf32> to vector<4x96xf32>
    %110 = arith.truncf %109 : vector<4x96xf32> to vector<4x96xbf16>
    %c0_92 = arith.constant 0 : index
    %c1_93 = arith.constant 1 : index
    %c0_94 = arith.constant 0 : index
    %c0_95 = arith.constant 0 : index
    %111 = vector.load %arg7[%c0_92, %c1_93, %c0_94, %c0_95] : memref<1x3x96x64xbf16, #tpu.memory_space<vmem>>, vector<1x1x96x64xbf16>
    %112 = vector.shape_cast %111 : vector<1x1x96x64xbf16> to vector<96x64xbf16>
    %cst_96 = arith.constant dense<0.000000e+00> : vector<4x64xf32>
    %113 = tpu.matmul %110, %112, %cst_96 {dimension_numbers = #tpu.dot_dimension_numbers<[1], [0], [0], [1], [0, 0, 1, 1], [], []>} : vector<4x96xbf16>, vector<96x64xbf16>, vector<4x64xf32> -> vector<4x64xf32>
    %114 = arith.addf %108, %113 : vector<4x64xf32>
    %115 = vector.extract_strided_slice %103 {offsets = [2, 0], sizes = [4, 96], strides = [1, 1]} : vector<6x96xf32> to vector<4x96xf32>
    %116 = arith.truncf %115 : vector<4x96xf32> to vector<4x96xbf16>
    %c0_97 = arith.constant 0 : index
    %c2_98 = arith.constant 2 : index
    %c0_99 = arith.constant 0 : index
    %c0_100 = arith.constant 0 : index
    %117 = vector.load %arg7[%c0_97, %c2_98, %c0_99, %c0_100] : memref<1x3x96x64xbf16, #tpu.memory_space<vmem>>, vector<1x1x96x64xbf16>
    %118 = vector.shape_cast %117 : vector<1x1x96x64xbf16> to vector<96x64xbf16>
    %cst_101 = arith.constant dense<0.000000e+00> : vector<4x64xf32>
    %119 = tpu.matmul %116, %118, %cst_101 {dimension_numbers = #tpu.dot_dimension_numbers<[1], [0], [0], [1], [0, 0, 1, 1], [], []>} : vector<4x96xbf16>, vector<96x64xbf16>, vector<4x64xf32> -> vector<4x64xf32>
    %120 = arith.addf %114, %119 : vector<4x64xf32>
    %c0_102 = arith.constant 0 : index
    %c0_103 = arith.constant 0 : index
    %c0_104 = arith.constant 0 : index
    %121 = vector.load %arg13[%c0_102, %c0_103, %c0_104] : memref<1x1x64xf32, #tpu.memory_space<vmem>>, vector<1x1x64xf32>
    %122 = vector.shape_cast %121 : vector<1x1x64xf32> to vector<1x64xf32>
    %123 = vector.broadcast %122 : vector<1x64xf32> to vector<4x64xf32>
    %124 = arith.addf %120, %123 : vector<4x64xf32>
    %cst_105 = arith.constant 0.000000e+00 : f32
    %125 = vector.broadcast %cst_105 : f32 to vector<4x64xf32>
    %126 = arith.maximumf %124, %125 : vector<4x64xf32>
    %127 = vector.extract_strided_slice %126 {offsets = [0, 0], sizes = [2, 64], strides = [1, 1]} : vector<4x64xf32> to vector<2x64xf32>
    %128 = arith.truncf %127 : vector<2x64xf32> to vector<2x64xbf16>
    %c0_106 = arith.constant 0 : index
    %c0_107 = arith.constant 0 : index
    %c0_108 = arith.constant 0 : index
    %c0_109 = arith.constant 0 : index
    %129 = vector.load %arg8[%c0_106, %c0_107, %c0_108, %c0_109] : memref<1x3x64x32xbf16, #tpu.memory_space<vmem>>, vector<1x1x64x32xbf16>
    %130 = vector.shape_cast %129 : vector<1x1x64x32xbf16> to vector<64x32xbf16>
    %cst_110 = arith.constant dense<0.000000e+00> : vector<2x32xf32>
    %131 = tpu.matmul %128, %130, %cst_110 {dimension_numbers = #tpu.dot_dimension_numbers<[1], [0], [0], [1], [0, 0, 1, 1], [], []>} : vector<2x64xbf16>, vector<64x32xbf16>, vector<2x32xf32> -> vector<2x32xf32>
    %132 = vector.extract_strided_slice %126 {offsets = [1, 0], sizes = [2, 64], strides = [1, 1]} : vector<4x64xf32> to vector<2x64xf32>
    %133 = arith.truncf %132 : vector<2x64xf32> to vector<2x64xbf16>
    %c0_111 = arith.constant 0 : index
    %c1_112 = arith.constant 1 : index
    %c0_113 = arith.constant 0 : index
    %c0_114 = arith.constant 0 : index
    %134 = vector.load %arg8[%c0_111, %c1_112, %c0_113, %c0_114] : memref<1x3x64x32xbf16, #tpu.memory_space<vmem>>, vector<1x1x64x32xbf16>
    %135 = vector.shape_cast %134 : vector<1x1x64x32xbf16> to vector<64x32xbf16>
    %cst_115 = arith.constant dense<0.000000e+00> : vector<2x32xf32>
    %136 = tpu.matmul %133, %135, %cst_115 {dimension_numbers = #tpu.dot_dimension_numbers<[1], [0], [0], [1], [0, 0, 1, 1], [], []>} : vector<2x64xbf16>, vector<64x32xbf16>, vector<2x32xf32> -> vector<2x32xf32>
    %137 = arith.addf %131, %136 : vector<2x32xf32>
    %138 = vector.extract_strided_slice %126 {offsets = [2, 0], sizes = [2, 64], strides = [1, 1]} : vector<4x64xf32> to vector<2x64xf32>
    %139 = arith.truncf %138 : vector<2x64xf32> to vector<2x64xbf16>
    %c0_116 = arith.constant 0 : index
    %c2_117 = arith.constant 2 : index
    %c0_118 = arith.constant 0 : index
    %c0_119 = arith.constant 0 : index
    %140 = vector.load %arg8[%c0_116, %c2_117, %c0_118, %c0_119] : memref<1x3x64x32xbf16, #tpu.memory_space<vmem>>, vector<1x1x64x32xbf16>
    %141 = vector.shape_cast %140 : vector<1x1x64x32xbf16> to vector<64x32xbf16>
    %cst_120 = arith.constant dense<0.000000e+00> : vector<2x32xf32>
    %142 = tpu.matmul %139, %141, %cst_120 {dimension_numbers = #tpu.dot_dimension_numbers<[1], [0], [0], [1], [0, 0, 1, 1], [], []>} : vector<2x64xbf16>, vector<64x32xbf16>, vector<2x32xf32> -> vector<2x32xf32>
    %143 = arith.addf %137, %142 : vector<2x32xf32>
    %cst_121 = arith.constant dense<0.000000e+00> : vector<32xf32>
    %144 = vector.multi_reduction <add>, %143, %cst_121 [0] : vector<2x32xf32> to vector<32xf32>
    %145 = vector.shape_cast %144 : vector<32xf32> to vector<1x32xf32>
    %146 = vector.extract_strided_slice %145 {offsets = [0, 0], sizes = [1, 16], strides = [1, 1]} : vector<1x32xf32> to vector<1x16xf32>
    %147 = vector.extract_strided_slice %145 {offsets = [0, 16], sizes = [1, 16], strides = [1, 1]} : vector<1x32xf32> to vector<1x16xf32>
    %148 = arith.addf %146, %147 : vector<1x16xf32>
    %cst_122 = arith.constant 2.500000e-01 : f32
    %149 = vector.broadcast %cst_122 : f32 to vector<1x16xf32>
    %150 = arith.mulf %148, %149 : vector<1x16xf32>
    %c1_123 = arith.constant 1 : index
    %c0_124 = arith.constant 0 : index
    %c0_125 = arith.constant 0 : index
    %151 = vector.load %arg1[%c1_123, %c0_124, %c0_125] : memref<2x24x24xf32, #tpu.memory_space<vmem>>, vector<1x24x24xf32>
    %152 = vector.shape_cast %151 : vector<1x24x24xf32> to vector<24x24xf32>
    %153 = vector.extract_strided_slice %152 {offsets = [0, 0], sizes = [22, 24], strides = [1, 1]} : vector<24x24xf32> to vector<22x24xf32>
    %154 = arith.truncf %153 : vector<22x24xf32> to vector<22x24xbf16>
    %c0_126 = arith.constant 0 : index
    %c0_127 = arith.constant 0 : index
    %c0_128 = arith.constant 0 : index
    %c0_129 = arith.constant 0 : index
    %155 = vector.load %arg3[%c0_126, %c0_127, %c0_128, %c0_129] : memref<1x3x24x352xbf16, #tpu.memory_space<vmem>>, vector<1x1x24x352xbf16>
    %156 = vector.shape_cast %155 : vector<1x1x24x352xbf16> to vector<24x352xbf16>
    %cst_130 = arith.constant dense<0.000000e+00> : vector<22x352xf32>
    %157 = tpu.matmul %154, %156, %cst_130 {dimension_numbers = #tpu.dot_dimension_numbers<[1], [0], [0], [1], [0, 0, 1, 1], [], []>} : vector<22x24xbf16>, vector<24x352xbf16>, vector<22x352xf32> -> vector<22x352xf32>
    %158 = vector.extract_strided_slice %152 {offsets = [1, 0], sizes = [22, 24], strides = [1, 1]} : vector<24x24xf32> to vector<22x24xf32>
    %159 = arith.truncf %158 : vector<22x24xf32> to vector<22x24xbf16>
    %c0_131 = arith.constant 0 : index
    %c1_132 = arith.constant 1 : index
    %c0_133 = arith.constant 0 : index
    %c0_134 = arith.constant 0 : index
    %160 = vector.load %arg3[%c0_131, %c1_132, %c0_133, %c0_134] : memref<1x3x24x352xbf16, #tpu.memory_space<vmem>>, vector<1x1x24x352xbf16>
    %161 = vector.shape_cast %160 : vector<1x1x24x352xbf16> to vector<24x352xbf16>
    %cst_135 = arith.constant dense<0.000000e+00> : vector<22x352xf32>
    %162 = tpu.matmul %159, %161, %cst_135 {dimension_numbers = #tpu.dot_dimension_numbers<[1], [0], [0], [1], [0, 0, 1, 1], [], []>} : vector<22x24xbf16>, vector<24x352xbf16>, vector<22x352xf32> -> vector<22x352xf32>
    %163 = arith.addf %157, %162 : vector<22x352xf32>
    %164 = vector.extract_strided_slice %152 {offsets = [2, 0], sizes = [22, 24], strides = [1, 1]} : vector<24x24xf32> to vector<22x24xf32>
    %165 = arith.truncf %164 : vector<22x24xf32> to vector<22x24xbf16>
    %c0_136 = arith.constant 0 : index
    %c2_137 = arith.constant 2 : index
    %c0_138 = arith.constant 0 : index
    %c0_139 = arith.constant 0 : index
    %166 = vector.load %arg3[%c0_136, %c2_137, %c0_138, %c0_139] : memref<1x3x24x352xbf16, #tpu.memory_space<vmem>>, vector<1x1x24x352xbf16>
    %167 = vector.shape_cast %166 : vector<1x1x24x352xbf16> to vector<24x352xbf16>
    %cst_140 = arith.constant dense<0.000000e+00> : vector<22x352xf32>
    %168 = tpu.matmul %165, %167, %cst_140 {dimension_numbers = #tpu.dot_dimension_numbers<[1], [0], [0], [1], [0, 0, 1, 1], [], []>} : vector<22x24xbf16>, vector<24x352xbf16>, vector<22x352xf32> -> vector<22x352xf32>
    %169 = arith.addf %163, %168 : vector<22x352xf32>
    %c0_141 = arith.constant 0 : index
    %c0_142 = arith.constant 0 : index
    %c0_143 = arith.constant 0 : index
    %170 = vector.load %arg9[%c0_141, %c0_142, %c0_143] : memref<1x1x352xf32, #tpu.memory_space<vmem>>, vector<1x1x352xf32>
    %171 = vector.shape_cast %170 : vector<1x1x352xf32> to vector<1x352xf32>
    %172 = vector.broadcast %171 : vector<1x352xf32> to vector<22x352xf32>
    %173 = arith.addf %169, %172 : vector<22x352xf32>
    %cst_144 = arith.constant 0.000000e+00 : f32
    %174 = vector.broadcast %cst_144 : f32 to vector<22x352xf32>
    %175 = arith.maximumf %173, %174 : vector<22x352xf32>
    %176 = vector.extract_strided_slice %175 {offsets = [0, 0], sizes = [20, 352], strides = [1, 1]} : vector<22x352xf32> to vector<20x352xf32>
    %177 = arith.truncf %176 : vector<20x352xf32> to vector<20x352xbf16>
    %c0_145 = arith.constant 0 : index
    %c0_146 = arith.constant 0 : index
    %c0_147 = arith.constant 0 : index
    %c0_148 = arith.constant 0 : index
    %178 = vector.load %arg4[%c0_145, %c0_146, %c0_147, %c0_148] : memref<1x3x352x320xbf16, #tpu.memory_space<vmem>>, vector<1x1x352x320xbf16>
    %179 = vector.shape_cast %178 : vector<1x1x352x320xbf16> to vector<352x320xbf16>
    %cst_149 = arith.constant dense<0.000000e+00> : vector<20x320xf32>
    %180 = tpu.matmul %177, %179, %cst_149 {dimension_numbers = #tpu.dot_dimension_numbers<[1], [0], [0], [1], [0, 0, 1, 1], [], []>} : vector<20x352xbf16>, vector<352x320xbf16>, vector<20x320xf32> -> vector<20x320xf32>
    %181 = vector.extract_strided_slice %175 {offsets = [1, 0], sizes = [20, 352], strides = [1, 1]} : vector<22x352xf32> to vector<20x352xf32>
    %182 = arith.truncf %181 : vector<20x352xf32> to vector<20x352xbf16>
    %c0_150 = arith.constant 0 : index
    %c1_151 = arith.constant 1 : index
    %c0_152 = arith.constant 0 : index
    %c0_153 = arith.constant 0 : index
    %183 = vector.load %arg4[%c0_150, %c1_151, %c0_152, %c0_153] : memref<1x3x352x320xbf16, #tpu.memory_space<vmem>>, vector<1x1x352x320xbf16>
    %184 = vector.shape_cast %183 : vector<1x1x352x320xbf16> to vector<352x320xbf16>
    %cst_154 = arith.constant dense<0.000000e+00> : vector<20x320xf32>
    %185 = tpu.matmul %182, %184, %cst_154 {dimension_numbers = #tpu.dot_dimension_numbers<[1], [0], [0], [1], [0, 0, 1, 1], [], []>} : vector<20x352xbf16>, vector<352x320xbf16>, vector<20x320xf32> -> vector<20x320xf32>
    %186 = arith.addf %180, %185 : vector<20x320xf32>
    %187 = vector.extract_strided_slice %175 {offsets = [2, 0], sizes = [20, 352], strides = [1, 1]} : vector<22x352xf32> to vector<20x352xf32>
    %188 = arith.truncf %187 : vector<20x352xf32> to vector<20x352xbf16>
    %c0_155 = arith.constant 0 : index
    %c2_156 = arith.constant 2 : index
    %c0_157 = arith.constant 0 : index
    %c0_158 = arith.constant 0 : index
    %189 = vector.load %arg4[%c0_155, %c2_156, %c0_157, %c0_158] : memref<1x3x352x320xbf16, #tpu.memory_space<vmem>>, vector<1x1x352x320xbf16>
    %190 = vector.shape_cast %189 : vector<1x1x352x320xbf16> to vector<352x320xbf16>
    %cst_159 = arith.constant dense<0.000000e+00> : vector<20x320xf32>
    %191 = tpu.matmul %188, %190, %cst_159 {dimension_numbers = #tpu.dot_dimension_numbers<[1], [0], [0], [1], [0, 0, 1, 1], [], []>} : vector<20x352xbf16>, vector<352x320xbf16>, vector<20x320xf32> -> vector<20x320xf32>
    %192 = arith.addf %186, %191 : vector<20x320xf32>
    %c0_160 = arith.constant 0 : index
    %c0_161 = arith.constant 0 : index
    %c0_162 = arith.constant 0 : index
    %193 = vector.load %arg10[%c0_160, %c0_161, %c0_162] : memref<1x1x320xf32, #tpu.memory_space<vmem>>, vector<1x1x320xf32>
    %194 = vector.shape_cast %193 : vector<1x1x320xf32> to vector<1x320xf32>
    %195 = vector.broadcast %194 : vector<1x320xf32> to vector<20x320xf32>
    %196 = arith.addf %192, %195 : vector<20x320xf32>
    %cst_163 = arith.constant 0.000000e+00 : f32
    %197 = vector.broadcast %cst_163 : f32 to vector<20x320xf32>
    %198 = arith.maximumf %196, %197 : vector<20x320xf32>
    %c0_164 = arith.constant 0 : index
    %c0_165 = arith.constant 0 : index
    %199 = vector.load %arg14[%c0_164, %c0_165] : memref<10x20xf32, #tpu.memory_space<vmem>>, vector<10x20xf32>
    %cst_166 = arith.constant dense<0.000000e+00> : vector<10x320xf32>
    %200 = tpu.matmul %199, %198, %cst_166 {dimension_numbers = #tpu.dot_dimension_numbers<[1], [0], [0], [1], [0, 0, 1, 1], [], []>} : vector<10x20xf32>, vector<20x320xf32>, vector<10x320xf32> -> vector<10x320xf32>
    %c0_167 = arith.constant 0 : index
    %c0_168 = arith.constant 0 : index
    %201 = vector.load %arg15[%c0_167, %c0_168] : memref<10x20xf32, #tpu.memory_space<vmem>>, vector<10x20xf32>
    %cst_169 = arith.constant dense<0.000000e+00> : vector<10x320xf32>
    %202 = tpu.matmul %201, %198, %cst_169 {dimension_numbers = #tpu.dot_dimension_numbers<[1], [0], [0], [1], [0, 0, 1, 1], [], []>} : vector<10x20xf32>, vector<20x320xf32>, vector<10x320xf32> -> vector<10x320xf32>
    %203 = arith.maximumf %200, %202 : vector<10x320xf32>
    %c0_170 = arith.constant 0 : index
    %c0_171 = arith.constant 0 : index
    %204 = vector.load %arg16[%c0_170, %c0_171] : memref<320x160xf32, #tpu.memory_space<vmem>>, vector<320x160xf32>
    %cst_172 = arith.constant dense<0.000000e+00> : vector<10x160xf32>
    %205 = tpu.matmul %203, %204, %cst_172 {dimension_numbers = #tpu.dot_dimension_numbers<[1], [0], [0], [1], [0, 0, 1, 1], [], []>} : vector<10x320xf32>, vector<320x160xf32>, vector<10x160xf32> -> vector<10x160xf32>
    %c0_173 = arith.constant 0 : index
    %c0_174 = arith.constant 0 : index
    %206 = vector.load %arg17[%c0_173, %c0_174] : memref<320x160xf32, #tpu.memory_space<vmem>>, vector<320x160xf32>
    %cst_175 = arith.constant dense<0.000000e+00> : vector<10x160xf32>
    %207 = tpu.matmul %203, %206, %cst_175 {dimension_numbers = #tpu.dot_dimension_numbers<[1], [0], [0], [1], [0, 0, 1, 1], [], []>} : vector<10x320xf32>, vector<320x160xf32>, vector<10x160xf32> -> vector<10x160xf32>
    %208 = arith.maximumf %205, %207 : vector<10x160xf32>
    %209 = vector.extract_strided_slice %208 {offsets = [0, 0], sizes = [8, 160], strides = [1, 1]} : vector<10x160xf32> to vector<8x160xf32>
    %210 = arith.truncf %209 : vector<8x160xf32> to vector<8x160xbf16>
    %c0_176 = arith.constant 0 : index
    %c0_177 = arith.constant 0 : index
    %c0_178 = arith.constant 0 : index
    %c0_179 = arith.constant 0 : index
    %211 = vector.load %arg5[%c0_176, %c0_177, %c0_178, %c0_179] : memref<1x3x160x128xbf16, #tpu.memory_space<vmem>>, vector<1x1x160x128xbf16>
    %212 = vector.shape_cast %211 : vector<1x1x160x128xbf16> to vector<160x128xbf16>
    %cst_180 = arith.constant dense<0.000000e+00> : vector<8x128xf32>
    %213 = tpu.matmul %210, %212, %cst_180 {dimension_numbers = #tpu.dot_dimension_numbers<[1], [0], [0], [1], [0, 0, 1, 1], [], []>} : vector<8x160xbf16>, vector<160x128xbf16>, vector<8x128xf32> -> vector<8x128xf32>
    %214 = vector.extract_strided_slice %208 {offsets = [1, 0], sizes = [8, 160], strides = [1, 1]} : vector<10x160xf32> to vector<8x160xf32>
    %215 = arith.truncf %214 : vector<8x160xf32> to vector<8x160xbf16>
    %c0_181 = arith.constant 0 : index
    %c1_182 = arith.constant 1 : index
    %c0_183 = arith.constant 0 : index
    %c0_184 = arith.constant 0 : index
    %216 = vector.load %arg5[%c0_181, %c1_182, %c0_183, %c0_184] : memref<1x3x160x128xbf16, #tpu.memory_space<vmem>>, vector<1x1x160x128xbf16>
    %217 = vector.shape_cast %216 : vector<1x1x160x128xbf16> to vector<160x128xbf16>
    %cst_185 = arith.constant dense<0.000000e+00> : vector<8x128xf32>
    %218 = tpu.matmul %215, %217, %cst_185 {dimension_numbers = #tpu.dot_dimension_numbers<[1], [0], [0], [1], [0, 0, 1, 1], [], []>} : vector<8x160xbf16>, vector<160x128xbf16>, vector<8x128xf32> -> vector<8x128xf32>
    %219 = arith.addf %213, %218 : vector<8x128xf32>
    %220 = vector.extract_strided_slice %208 {offsets = [2, 0], sizes = [8, 160], strides = [1, 1]} : vector<10x160xf32> to vector<8x160xf32>
    %221 = arith.truncf %220 : vector<8x160xf32> to vector<8x160xbf16>
    %c0_186 = arith.constant 0 : index
    %c2_187 = arith.constant 2 : index
    %c0_188 = arith.constant 0 : index
    %c0_189 = arith.constant 0 : index
    %222 = vector.load %arg5[%c0_186, %c2_187, %c0_188, %c0_189] : memref<1x3x160x128xbf16, #tpu.memory_space<vmem>>, vector<1x1x160x128xbf16>
    %223 = vector.shape_cast %222 : vector<1x1x160x128xbf16> to vector<160x128xbf16>
    %cst_190 = arith.constant dense<0.000000e+00> : vector<8x128xf32>
    %224 = tpu.matmul %221, %223, %cst_190 {dimension_numbers = #tpu.dot_dimension_numbers<[1], [0], [0], [1], [0, 0, 1, 1], [], []>} : vector<8x160xbf16>, vector<160x128xbf16>, vector<8x128xf32> -> vector<8x128xf32>
    %225 = arith.addf %219, %224 : vector<8x128xf32>
    %c0_191 = arith.constant 0 : index
    %c0_192 = arith.constant 0 : index
    %c0_193 = arith.constant 0 : index
    %226 = vector.load %arg11[%c0_191, %c0_192, %c0_193] : memref<1x1x128xf32, #tpu.memory_space<vmem>>, vector<1x1x128xf32>
    %227 = vector.shape_cast %226 : vector<1x1x128xf32> to vector<1x128xf32>
    %228 = vector.broadcast %227 : vector<1x128xf32> to vector<8x128xf32>
    %229 = arith.addf %225, %228 : vector<8x128xf32>
    %cst_194 = arith.constant 0.000000e+00 : f32
    %230 = vector.broadcast %cst_194 : f32 to vector<8x128xf32>
    %231 = arith.maximumf %229, %230 : vector<8x128xf32>
    %232 = vector.extract_strided_slice %231 {offsets = [0, 0], sizes = [6, 128], strides = [1, 1]} : vector<8x128xf32> to vector<6x128xf32>
    %233 = arith.truncf %232 : vector<6x128xf32> to vector<6x128xbf16>
    %c0_195 = arith.constant 0 : index
    %c0_196 = arith.constant 0 : index
    %c0_197 = arith.constant 0 : index
    %c0_198 = arith.constant 0 : index
    %234 = vector.load %arg6[%c0_195, %c0_196, %c0_197, %c0_198] : memref<1x3x128x96xbf16, #tpu.memory_space<vmem>>, vector<1x1x128x96xbf16>
    %235 = vector.shape_cast %234 : vector<1x1x128x96xbf16> to vector<128x96xbf16>
    %cst_199 = arith.constant dense<0.000000e+00> : vector<6x96xf32>
    %236 = tpu.matmul %233, %235, %cst_199 {dimension_numbers = #tpu.dot_dimension_numbers<[1], [0], [0], [1], [0, 0, 1, 1], [], []>} : vector<6x128xbf16>, vector<128x96xbf16>, vector<6x96xf32> -> vector<6x96xf32>
    %237 = vector.extract_strided_slice %231 {offsets = [1, 0], sizes = [6, 128], strides = [1, 1]} : vector<8x128xf32> to vector<6x128xf32>
    %238 = arith.truncf %237 : vector<6x128xf32> to vector<6x128xbf16>
    %c0_200 = arith.constant 0 : index
    %c1_201 = arith.constant 1 : index
    %c0_202 = arith.constant 0 : index
    %c0_203 = arith.constant 0 : index
    %239 = vector.load %arg6[%c0_200, %c1_201, %c0_202, %c0_203] : memref<1x3x128x96xbf16, #tpu.memory_space<vmem>>, vector<1x1x128x96xbf16>
    %240 = vector.shape_cast %239 : vector<1x1x128x96xbf16> to vector<128x96xbf16>
    %cst_204 = arith.constant dense<0.000000e+00> : vector<6x96xf32>
    %241 = tpu.matmul %238, %240, %cst_204 {dimension_numbers = #tpu.dot_dimension_numbers<[1], [0], [0], [1], [0, 0, 1, 1], [], []>} : vector<6x128xbf16>, vector<128x96xbf16>, vector<6x96xf32> -> vector<6x96xf32>
    %242 = arith.addf %236, %241 : vector<6x96xf32>
    %243 = vector.extract_strided_slice %231 {offsets = [2, 0], sizes = [6, 128], strides = [1, 1]} : vector<8x128xf32> to vector<6x128xf32>
    %244 = arith.truncf %243 : vector<6x128xf32> to vector<6x128xbf16>
    %c0_205 = arith.constant 0 : index
    %c2_206 = arith.constant 2 : index
    %c0_207 = arith.constant 0 : index
    %c0_208 = arith.constant 0 : index
    %245 = vector.load %arg6[%c0_205, %c2_206, %c0_207, %c0_208] : memref<1x3x128x96xbf16, #tpu.memory_space<vmem>>, vector<1x1x128x96xbf16>
    %246 = vector.shape_cast %245 : vector<1x1x128x96xbf16> to vector<128x96xbf16>
    %cst_209 = arith.constant dense<0.000000e+00> : vector<6x96xf32>
    %247 = tpu.matmul %244, %246, %cst_209 {dimension_numbers = #tpu.dot_dimension_numbers<[1], [0], [0], [1], [0, 0, 1, 1], [], []>} : vector<6x128xbf16>, vector<128x96xbf16>, vector<6x96xf32> -> vector<6x96xf32>
    %248 = arith.addf %242, %247 : vector<6x96xf32>
    %c0_210 = arith.constant 0 : index
    %c0_211 = arith.constant 0 : index
    %c0_212 = arith.constant 0 : index
    %249 = vector.load %arg12[%c0_210, %c0_211, %c0_212] : memref<1x1x96xf32, #tpu.memory_space<vmem>>, vector<1x1x96xf32>
    %250 = vector.shape_cast %249 : vector<1x1x96xf32> to vector<1x96xf32>
    %251 = vector.broadcast %250 : vector<1x96xf32> to vector<6x96xf32>
    %252 = arith.addf %248, %251 : vector<6x96xf32>
    %cst_213 = arith.constant 0.000000e+00 : f32
    %253 = vector.broadcast %cst_213 : f32 to vector<6x96xf32>
    %254 = arith.maximumf %252, %253 : vector<6x96xf32>
    %255 = vector.extract_strided_slice %254 {offsets = [0, 0], sizes = [4, 96], strides = [1, 1]} : vector<6x96xf32> to vector<4x96xf32>
    %256 = arith.truncf %255 : vector<4x96xf32> to vector<4x96xbf16>
    %c0_214 = arith.constant 0 : index
    %c0_215 = arith.constant 0 : index
    %c0_216 = arith.constant 0 : index
    %c0_217 = arith.constant 0 : index
    %257 = vector.load %arg7[%c0_214, %c0_215, %c0_216, %c0_217] : memref<1x3x96x64xbf16, #tpu.memory_space<vmem>>, vector<1x1x96x64xbf16>
    %258 = vector.shape_cast %257 : vector<1x1x96x64xbf16> to vector<96x64xbf16>
    %cst_218 = arith.constant dense<0.000000e+00> : vector<4x64xf32>
    %259 = tpu.matmul %256, %258, %cst_218 {dimension_numbers = #tpu.dot_dimension_numbers<[1], [0], [0], [1], [0, 0, 1, 1], [], []>} : vector<4x96xbf16>, vector<96x64xbf16>, vector<4x64xf32> -> vector<4x64xf32>
    %260 = vector.extract_strided_slice %254 {offsets = [1, 0], sizes = [4, 96], strides = [1, 1]} : vector<6x96xf32> to vector<4x96xf32>
    %261 = arith.truncf %260 : vector<4x96xf32> to vector<4x96xbf16>
    %c0_219 = arith.constant 0 : index
    %c1_220 = arith.constant 1 : index
    %c0_221 = arith.constant 0 : index
    %c0_222 = arith.constant 0 : index
    %262 = vector.load %arg7[%c0_219, %c1_220, %c0_221, %c0_222] : memref<1x3x96x64xbf16, #tpu.memory_space<vmem>>, vector<1x1x96x64xbf16>
    %263 = vector.shape_cast %262 : vector<1x1x96x64xbf16> to vector<96x64xbf16>
    %cst_223 = arith.constant dense<0.000000e+00> : vector<4x64xf32>
    %264 = tpu.matmul %261, %263, %cst_223 {dimension_numbers = #tpu.dot_dimension_numbers<[1], [0], [0], [1], [0, 0, 1, 1], [], []>} : vector<4x96xbf16>, vector<96x64xbf16>, vector<4x64xf32> -> vector<4x64xf32>
    %265 = arith.addf %259, %264 : vector<4x64xf32>
    %266 = vector.extract_strided_slice %254 {offsets = [2, 0], sizes = [4, 96], strides = [1, 1]} : vector<6x96xf32> to vector<4x96xf32>
    %267 = arith.truncf %266 : vector<4x96xf32> to vector<4x96xbf16>
    %c0_224 = arith.constant 0 : index
    %c2_225 = arith.constant 2 : index
    %c0_226 = arith.constant 0 : index
    %c0_227 = arith.constant 0 : index
    %268 = vector.load %arg7[%c0_224, %c2_225, %c0_226, %c0_227] : memref<1x3x96x64xbf16, #tpu.memory_space<vmem>>, vector<1x1x96x64xbf16>
    %269 = vector.shape_cast %268 : vector<1x1x96x64xbf16> to vector<96x64xbf16>
    %cst_228 = arith.constant dense<0.000000e+00> : vector<4x64xf32>
    %270 = tpu.matmul %267, %269, %cst_228 {dimension_numbers = #tpu.dot_dimension_numbers<[1], [0], [0], [1], [0, 0, 1, 1], [], []>} : vector<4x96xbf16>, vector<96x64xbf16>, vector<4x64xf32> -> vector<4x64xf32>
    %271 = arith.addf %265, %270 : vector<4x64xf32>
    %c0_229 = arith.constant 0 : index
    %c0_230 = arith.constant 0 : index
    %c0_231 = arith.constant 0 : index
    %272 = vector.load %arg13[%c0_229, %c0_230, %c0_231] : memref<1x1x64xf32, #tpu.memory_space<vmem>>, vector<1x1x64xf32>
    %273 = vector.shape_cast %272 : vector<1x1x64xf32> to vector<1x64xf32>
    %274 = vector.broadcast %273 : vector<1x64xf32> to vector<4x64xf32>
    %275 = arith.addf %271, %274 : vector<4x64xf32>
    %cst_232 = arith.constant 0.000000e+00 : f32
    %276 = vector.broadcast %cst_232 : f32 to vector<4x64xf32>
    %277 = arith.maximumf %275, %276 : vector<4x64xf32>
    %278 = vector.extract_strided_slice %277 {offsets = [0, 0], sizes = [2, 64], strides = [1, 1]} : vector<4x64xf32> to vector<2x64xf32>
    %279 = arith.truncf %278 : vector<2x64xf32> to vector<2x64xbf16>
    %c0_233 = arith.constant 0 : index
    %c0_234 = arith.constant 0 : index
    %c0_235 = arith.constant 0 : index
    %c0_236 = arith.constant 0 : index
    %280 = vector.load %arg8[%c0_233, %c0_234, %c0_235, %c0_236] : memref<1x3x64x32xbf16, #tpu.memory_space<vmem>>, vector<1x1x64x32xbf16>
    %281 = vector.shape_cast %280 : vector<1x1x64x32xbf16> to vector<64x32xbf16>
    %cst_237 = arith.constant dense<0.000000e+00> : vector<2x32xf32>
    %282 = tpu.matmul %279, %281, %cst_237 {dimension_numbers = #tpu.dot_dimension_numbers<[1], [0], [0], [1], [0, 0, 1, 1], [], []>} : vector<2x64xbf16>, vector<64x32xbf16>, vector<2x32xf32> -> vector<2x32xf32>
    %283 = vector.extract_strided_slice %277 {offsets = [1, 0], sizes = [2, 64], strides = [1, 1]} : vector<4x64xf32> to vector<2x64xf32>
    %284 = arith.truncf %283 : vector<2x64xf32> to vector<2x64xbf16>
    %c0_238 = arith.constant 0 : index
    %c1_239 = arith.constant 1 : index
    %c0_240 = arith.constant 0 : index
    %c0_241 = arith.constant 0 : index
    %285 = vector.load %arg8[%c0_238, %c1_239, %c0_240, %c0_241] : memref<1x3x64x32xbf16, #tpu.memory_space<vmem>>, vector<1x1x64x32xbf16>
    %286 = vector.shape_cast %285 : vector<1x1x64x32xbf16> to vector<64x32xbf16>
    %cst_242 = arith.constant dense<0.000000e+00> : vector<2x32xf32>
    %287 = tpu.matmul %284, %286, %cst_242 {dimension_numbers = #tpu.dot_dimension_numbers<[1], [0], [0], [1], [0, 0, 1, 1], [], []>} : vector<2x64xbf16>, vector<64x32xbf16>, vector<2x32xf32> -> vector<2x32xf32>
    %288 = arith.addf %282, %287 : vector<2x32xf32>
    %289 = vector.extract_strided_slice %277 {offsets = [2, 0], sizes = [2, 64], strides = [1, 1]} : vector<4x64xf32> to vector<2x64xf32>
    %290 = arith.truncf %289 : vector<2x64xf32> to vector<2x64xbf16>
    %c0_243 = arith.constant 0 : index
    %c2_244 = arith.constant 2 : index
    %c0_245 = arith.constant 0 : index
    %c0_246 = arith.constant 0 : index
    %291 = vector.load %arg8[%c0_243, %c2_244, %c0_245, %c0_246] : memref<1x3x64x32xbf16, #tpu.memory_space<vmem>>, vector<1x1x64x32xbf16>
    %292 = vector.shape_cast %291 : vector<1x1x64x32xbf16> to vector<64x32xbf16>
    %cst_247 = arith.constant dense<0.000000e+00> : vector<2x32xf32>
    %293 = tpu.matmul %290, %292, %cst_247 {dimension_numbers = #tpu.dot_dimension_numbers<[1], [0], [0], [1], [0, 0, 1, 1], [], []>} : vector<2x64xbf16>, vector<64x32xbf16>, vector<2x32xf32> -> vector<2x32xf32>
    %294 = arith.addf %288, %293 : vector<2x32xf32>
    %cst_248 = arith.constant dense<0.000000e+00> : vector<32xf32>
    %295 = vector.multi_reduction <add>, %294, %cst_248 [0] : vector<2x32xf32> to vector<32xf32>
    %296 = vector.shape_cast %295 : vector<32xf32> to vector<1x32xf32>
    %297 = vector.extract_strided_slice %296 {offsets = [0, 0], sizes = [1, 16], strides = [1, 1]} : vector<1x32xf32> to vector<1x16xf32>
    %298 = vector.extract_strided_slice %296 {offsets = [0, 16], sizes = [1, 16], strides = [1, 1]} : vector<1x32xf32> to vector<1x16xf32>
    %299 = arith.addf %297, %298 : vector<1x16xf32>
    %cst_249 = arith.constant 2.500000e-01 : f32
    %300 = vector.broadcast %cst_249 : f32 to vector<1x16xf32>
    %301 = arith.mulf %299, %300 : vector<1x16xf32>
    %302 = tpu.concatenate %150, %301 in 0 : vector<1x16xf32>, vector<1x16xf32> -> vector<2x16xf32>
    %c0_250 = arith.constant 0 : index
    %c0_251 = arith.constant 0 : index
    %303 = vector.load %arg2[%c0_250, %c0_251] : memref<2x6xf32, #tpu.memory_space<vmem>>, vector<2x6xf32>
    %304 = tpu.concatenate %302, %303 in 1 : vector<2x16xf32>, vector<2x6xf32> -> vector<2x22xf32>
    %305 = arith.truncf %304 : vector<2x22xf32> to vector<2x22xbf16>
    %c0_252 = arith.constant 0 : index
    %c0_253 = arith.constant 0 : index
    %c0_254 = arith.constant 0 : index
    %306 = vector.load %arg18[%c0_252, %c0_253, %c0_254] : memref<1x22x400xbf16, #tpu.memory_space<vmem>>, vector<1x22x400xbf16>
    %307 = vector.shape_cast %306 : vector<1x22x400xbf16> to vector<22x400xbf16>
    %cst_255 = arith.constant dense<0.000000e+00> : vector<2x400xf32>
    %308 = tpu.matmul %305, %307, %cst_255 {dimension_numbers = #tpu.dot_dimension_numbers<[1], [0], [0], [1], [0, 0, 1, 1], [], []>} : vector<2x22xbf16>, vector<22x400xbf16>, vector<2x400xf32> -> vector<2x400xf32>
    %c0_256 = arith.constant 0 : index
    %c0_257 = arith.constant 0 : index
    %c0_258 = arith.constant 0 : index
    %309 = vector.load %arg19[%c0_256, %c0_257, %c0_258] : memref<1x1x400xf32, #tpu.memory_space<vmem>>, vector<1x1x400xf32>
    %310 = vector.shape_cast %309 : vector<1x1x400xf32> to vector<1x400xf32>
    %311 = vector.broadcast %310 : vector<1x400xf32> to vector<2x400xf32>
    %312 = arith.addf %308, %311 : vector<2x400xf32>
    %cst_259 = arith.constant 0.000000e+00 : f32
    %313 = vector.broadcast %cst_259 : f32 to vector<2x400xf32>
    %314 = arith.maximumf %312, %313 : vector<2x400xf32>
    %315 = arith.truncf %314 : vector<2x400xf32> to vector<2x400xbf16>
    %c0_260 = arith.constant 0 : index
    %c0_261 = arith.constant 0 : index
    %c0_262 = arith.constant 0 : index
    %316 = vector.load %arg20[%c0_260, %c0_261, %c0_262] : memref<1x400x300xbf16, #tpu.memory_space<vmem>>, vector<1x400x300xbf16>
    %317 = vector.shape_cast %316 : vector<1x400x300xbf16> to vector<400x300xbf16>
    %cst_263 = arith.constant dense<0.000000e+00> : vector<2x300xf32>
    %318 = tpu.matmul %315, %317, %cst_263 {dimension_numbers = #tpu.dot_dimension_numbers<[1], [0], [0], [1], [0, 0, 1, 1], [], []>} : vector<2x400xbf16>, vector<400x300xbf16>, vector<2x300xf32> -> vector<2x300xf32>
    %c0_264 = arith.constant 0 : index
    %c0_265 = arith.constant 0 : index
    %c0_266 = arith.constant 0 : index
    %319 = vector.load %arg21[%c0_264, %c0_265, %c0_266] : memref<1x1x300xf32, #tpu.memory_space<vmem>>, vector<1x1x300xf32>
    %320 = vector.shape_cast %319 : vector<1x1x300xf32> to vector<1x300xf32>
    %321 = vector.broadcast %320 : vector<1x300xf32> to vector<2x300xf32>
    %322 = arith.addf %318, %321 : vector<2x300xf32>
    %cst_267 = arith.constant 0.000000e+00 : f32
    %323 = vector.broadcast %cst_267 : f32 to vector<2x300xf32>
    %324 = arith.maximumf %322, %323 : vector<2x300xf32>
    %325 = arith.truncf %324 : vector<2x300xf32> to vector<2x300xbf16>
    %c0_268 = arith.constant 0 : index
    %c0_269 = arith.constant 0 : index
    %c0_270 = arith.constant 0 : index
    %326 = vector.load %arg22[%c0_268, %c0_269, %c0_270] : memref<1x300x1xbf16, #tpu.memory_space<vmem>>, vector<1x300x1xbf16>
    %327 = vector.shape_cast %326 : vector<1x300x1xbf16> to vector<300x1xbf16>
    %cst_271 = arith.constant dense<0.000000e+00> : vector<2x1xf32>
    %328 = tpu.matmul %325, %327, %cst_271 {dimension_numbers = #tpu.dot_dimension_numbers<[1], [0], [0], [1], [0, 0, 1, 1], [], []>} : vector<2x300xbf16>, vector<300x1xbf16>, vector<2x1xf32> -> vector<2x1xf32>
    %c0_272 = arith.constant 0 : index
    %c0_273 = arith.constant 0 : index
    %c0_274 = arith.constant 0 : index
    %329 = vector.load %arg23[%c0_272, %c0_273, %c0_274] : memref<1x1x1xf32, #tpu.memory_space<vmem>>, vector<1x1x1xf32>
    %330 = vector.shape_cast %329 : vector<1x1x1xf32> to vector<1x1xf32>
    %331 = vector.broadcast %330 : vector<1x1xf32> to vector<2x1xf32>
    %332 = arith.addf %328, %331 : vector<2x1xf32>
    %333 = vector.shape_cast %332 : vector<2x1xf32> to vector<2x1xf32>
    %334 = vector.broadcast %333 : vector<2x1xf32> to vector<2x128xf32>
    %c0_275 = arith.constant 0 : index
    %c0_276 = arith.constant 0 : index
    %c0_277 = arith.constant 0 : index
    %335 = vector.load %arg24[%c0_275, %c0_276, %c0_277] : memref<1x2x128xf32, #tpu.memory_space<vmem>>, vector<1x2x128xf32>
    %336 = vector.shape_cast %335 : vector<1x2x128xf32> to vector<2x128xf32>
    %337 = vector.shape_cast %334 : vector<2x128xf32> to vector<1x2x128xf32>
    tpu.vector_store %arg24[%c0_275, %c0_276, %c0_277], %337 {strides = array<i32>} : memref<1x2x128xf32, #tpu.memory_space<vmem>>, vector<1x2x128xf32>,
    return
  }
  func.func @transform_0(%arg0: i32) -> (i32, i32, i32) {
    %c0_i32 = arith.constant 0 : i32
    %c0_i32_0 = arith.constant 0 : i32
    %c0_i32_1 = arith.constant 0 : i32
    %c0_i32_2 = arith.constant 0 : i32
    return %c0_i32, %c0_i32_0, %c0_i32_1 : i32, i32, i32
  }
  func.func @transform_1(%arg0: i32) -> (i32, i32) {
    %c0_i32 = arith.constant 0 : i32
    %c0_i32_0 = arith.constant 0 : i32
    %c0_i32_1 = arith.constant 0 : i32
    return %c0_i32, %c0_i32_0 : i32, i32
  }
  func.func @transform_2(%arg0: i32) -> (i32, i32, i32, i32) {
    %c0_i32 = arith.constant 0 : i32
    %c0_i32_0 = arith.constant 0 : i32
    %c0_i32_1 = arith.constant 0 : i32
    %c0_i32_2 = arith.constant 0 : i32
    return %arg0, %c0_i32, %c0_i32_0, %c0_i32_1 : i32, i32, i32, i32
  }
  func.func @transform_3(%arg0: i32) -> (i32, i32, i32, i32) {
    %c0_i32 = arith.constant 0 : i32
    %c0_i32_0 = arith.constant 0 : i32
    %c0_i32_1 = arith.constant 0 : i32
    %c0_i32_2 = arith.constant 0 : i32
    return %arg0, %c0_i32, %c0_i32_0, %c0_i32_1 : i32, i32, i32, i32
  }
  func.func @transform_4(%arg0: i32) -> (i32, i32, i32, i32) {
    %c0_i32 = arith.constant 0 : i32
    %c0_i32_0 = arith.constant 0 : i32
    %c0_i32_1 = arith.constant 0 : i32
    %c0_i32_2 = arith.constant 0 : i32
    return %arg0, %c0_i32, %c0_i32_0, %c0_i32_1 : i32, i32, i32, i32
  }
  func.func @transform_5(%arg0: i32) -> (i32, i32, i32, i32) {
    %c0_i32 = arith.constant 0 : i32
    %c0_i32_0 = arith.constant 0 : i32
    %c0_i32_1 = arith.constant 0 : i32
    %c0_i32_2 = arith.constant 0 : i32
    return %arg0, %c0_i32, %c0_i32_0, %c0_i32_1 : i32, i32, i32, i32
  }
  func.func @transform_6(%arg0: i32) -> (i32, i32, i32, i32) {
    %c0_i32 = arith.constant 0 : i32
    %c0_i32_0 = arith.constant 0 : i32
    %c0_i32_1 = arith.constant 0 : i32
    %c0_i32_2 = arith.constant 0 : i32
    return %arg0, %c0_i32, %c0_i32_0, %c0_i32_1 : i32, i32, i32, i32
  }
  func.func @transform_7(%arg0: i32) -> (i32, i32, i32, i32) {
    %c0_i32 = arith.constant 0 : i32
    %c0_i32_0 = arith.constant 0 : i32
    %c0_i32_1 = arith.constant 0 : i32
    %c0_i32_2 = arith.constant 0 : i32
    return %arg0, %c0_i32, %c0_i32_0, %c0_i32_1 : i32, i32, i32, i32
  }
  func.func @transform_8(%arg0: i32) -> (i32, i32, i32) {
    %c0_i32 = arith.constant 0 : i32
    %c0_i32_0 = arith.constant 0 : i32
    %c0_i32_1 = arith.constant 0 : i32
    return %arg0, %c0_i32, %c0_i32_0 : i32, i32, i32
  }
  func.func @transform_9(%arg0: i32) -> (i32, i32, i32) {
    %c0_i32 = arith.constant 0 : i32
    %c0_i32_0 = arith.constant 0 : i32
    %c0_i32_1 = arith.constant 0 : i32
    return %arg0, %c0_i32, %c0_i32_0 : i32, i32, i32
  }
  func.func @transform_10(%arg0: i32) -> (i32, i32, i32) {
    %c0_i32 = arith.constant 0 : i32
    %c0_i32_0 = arith.constant 0 : i32
    %c0_i32_1 = arith.constant 0 : i32
    return %arg0, %c0_i32, %c0_i32_0 : i32, i32, i32
  }
  func.func @transform_11(%arg0: i32) -> (i32, i32, i32) {
    %c0_i32 = arith.constant 0 : i32
    %c0_i32_0 = arith.constant 0 : i32
    %c0_i32_1 = arith.constant 0 : i32
    return %arg0, %c0_i32, %c0_i32_0 : i32, i32, i32
  }
  func.func @transform_12(%arg0: i32) -> (i32, i32, i32) {
    %c0_i32 = arith.constant 0 : i32
    %c0_i32_0 = arith.constant 0 : i32
    %c0_i32_1 = arith.constant 0 : i32
    return %arg0, %c0_i32, %c0_i32_0 : i32, i32, i32
  }
  func.func @transform_13(%arg0: i32) -> (i32, i32) {
    %c0_i32 = arith.constant 0 : i32
    %c0_i32_0 = arith.constant 0 : i32
    %c0_i32_1 = arith.constant 0 : i32
    return %c0_i32, %c0_i32_0 : i32, i32
  }
  func.func @transform_14(%arg0: i32) -> (i32, i32) {
    %c0_i32 = arith.constant 0 : i32
    %c0_i32_0 = arith.constant 0 : i32
    %c0_i32_1 = arith.constant 0 : i32
    return %c0_i32, %c0_i32_0 : i32, i32
  }
  func.func @transform_15(%arg0: i32) -> (i32, i32) {
    %c0_i32 = arith.constant 0 : i32
    %c0_i32_0 = arith.constant 0 : i32
    %c0_i32_1 = arith.constant 0 : i32
    return %c0_i32, %c0_i32_0 : i32, i32
  }
  func.func @transform_16(%arg0: i32) -> (i32, i32) {
    %c0_i32 = arith.constant 0 : i32
    %c0_i32_0 = arith.constant 0 : i32
    %c0_i32_1 = arith.constant 0 : i32
    return %c0_i32, %c0_i32_0 : i32, i32
  }
  func.func @transform_17(%arg0: i32) -> (i32, i32, i32) {
    %c0_i32 = arith.constant 0 : i32
    %c0_i32_0 = arith.constant 0 : i32
    %c0_i32_1 = arith.constant 0 : i32
    return %arg0, %c0_i32, %c0_i32_0 : i32, i32, i32
  }
  func.func @transform_18(%arg0: i32) -> (i32, i32, i32) {
    %c0_i32 = arith.constant 0 : i32
    %c0_i32_0 = arith.constant 0 : i32
    %c0_i32_1 = arith.constant 0 : i32
    return %arg0, %c0_i32, %c0_i32_0 : i32, i32, i32
  }
  func.func @transform_19(%arg0: i32) -> (i32, i32, i32) {
    %c0_i32 = arith.constant 0 : i32
    %c0_i32_0 = arith.constant 0 : i32
    %c0_i32_1 = arith.constant 0 : i32
    return %arg0, %c0_i32, %c0_i32_0 : i32, i32, i32
  }
  func.func @transform_20(%arg0: i32) -> (i32, i32, i32) {
    %c0_i32 = arith.constant 0 : i32
    %c0_i32_0 = arith.constant 0 : i32
    %c0_i32_1 = arith.constant 0 : i32
    return %arg0, %c0_i32, %c0_i32_0 : i32, i32, i32
  }
  func.func @transform_21(%arg0: i32) -> (i32, i32, i32) {
    %c0_i32 = arith.constant 0 : i32
    %c0_i32_0 = arith.constant 0 : i32
    %c0_i32_1 = arith.constant 0 : i32
    return %arg0, %c0_i32, %c0_i32_0 : i32, i32, i32
  }
  func.func @transform_22(%arg0: i32) -> (i32, i32, i32) {
    %c0_i32 = arith.constant 0 : i32
    %c0_i32_0 = arith.constant 0 : i32
    %c0_i32_1 = arith.constant 0 : i32
    return %arg0, %c0_i32, %c0_i32_0 : i32, i32, i32
  }
  func.func @transform_23(%arg0: i32) -> (i32, i32, i32) {
    %c0_i32 = arith.constant 0 : i32
    %c0_i32_0 = arith.constant 0 : i32
    %c0_i32_1 = arith.constant 0 : i32
    return %arg0, %c0_i32, %c0_i32_0 : i32, i32, i32
  }
}

</mosaic_0001>

<llo_original>
// kernel: critic_forward.1
$region0: #{critic_forward.1}
  #allocation0 [shape = 'u32[]', space=smem, size = 0x4, offset = 0x4, fixed_abs, tag = 'smem constant byte address 0x4 - core index']
  #allocation1 [shape = 'u32[72,128]{1,0:T(1,128)}', space=vmem, size = 0x9000, scoped, tag = 'internal scratch']
  %s0 = inlined_call_operand.vmem [shape: f32[2,24,24], index: 0, kind: input, shape index: {}]
  %s1 = inlined_call_operand.vmem [shape: f32[2,6], index: 1, kind: input, shape index: {}]
  %s2 = inlined_call_operand.vmem [shape: bf16[2,3,24,352], index: 2, kind: input, shape index: {}]
  %s3 = inlined_call_operand.vmem [shape: bf16[2,3,352,320], index: 3, kind: input, shape index: {}]
  %s4 = inlined_call_operand.vmem [shape: bf16[2,3,160,128], index: 4, kind: input, shape index: {}]
  %s5 = inlined_call_operand.vmem [shape: bf16[2,3,128,96], index: 5, kind: input, shape index: {}]
  %s6 = inlined_call_operand.vmem [shape: bf16[2,3,96,64], index: 6, kind: input, shape index: {}]
  %s7 = inlined_call_operand.vmem [shape: bf16[2,3,64,32], index: 7, kind: input, shape index: {}]
  %s8 = inlined_call_operand.vmem [shape: f32[2,1,352], index: 8, kind: input, shape index: {}]
  %s9 = inlined_call_operand.vmem [shape: f32[2,1,320], index: 9, kind: input, shape index: {}]
  %s10 = inlined_call_operand.vmem [shape: f32[2,1,128], index: 10, kind: input, shape index: {}]
  %s11 = inlined_call_operand.vmem [shape: f32[2,1,96], index: 11, kind: input, shape index: {}]
  %s12 = inlined_call_operand.vmem [shape: f32[2,1,64], index: 12, kind: input, shape index: {}]
  %s13 = inlined_call_operand.vmem [shape: f32[10,20], index: 13, kind: input, shape index: {}]
  %s14 = inlined_call_operand.vmem [shape: f32[10,20], index: 14, kind: input, shape index: {}]
  %s15 = inlined_call_operand.vmem [shape: f32[320,160], index: 15, kind: input, shape index: {}]
  %s16 = inlined_call_operand.vmem [shape: f32[320,160], index: 16, kind: input, shape index: {}]
  %s17 = inlined_call_operand.vmem [shape: bf16[2,22,400], index: 17, kind: input, shape index: {}]
  %s18 = inlined_call_operand.vmem [shape: f32[2,1,400], index: 18, kind: input, shape index: {}]
  %s19 = inlined_call_operand.vmem [shape: bf16[2,400,300], index: 19, kind: input, shape index: {}]
  %s20 = inlined_call_operand.vmem [shape: f32[2,1,300], index: 20, kind: input, shape index: {}]
  %s21 = inlined_call_operand.vmem [shape: bf16[2,300,1], index: 21, kind: input, shape index: {}]
  %s22 = inlined_call_operand.vmem [shape: f32[2,1,1], index: 22, kind: input, shape index: {}]
  %s23 = inlined_call_operand.vmem [shape: f32[2,2,128], index: 23, kind: output, shape index: {}]
  %s24 = sld [smem:[#allocation0]]
  $region125: #{critic_forward.1} parent=0
    _
  %s26 = ssub.s32 1, %s24
  %s27 = scalar_select 0, %s26, %s24
  loop: start=0, step=1, limit=4
  $region2: #{critic_forward.1} parent=0 // loop_pre_header
    _
  $region3: #{critic_forward.1} parent=0 // loop_header
    %s29 = sphi 0, %s33
    %p30 = scmp.ge.s32.totalorder %s29, 4
    %s37 = sphi 0, %s37
    %s39 = sphi 0, %s37
    %s40 = sphi 0, %s39
    %s54 = sphi 0, %s40
    %s58 = sphi 0, %s58
    %s60 = sphi 0, %s58
    %s61 = sphi 0, %s60
    %s75 = sphi 0, %s61
    %s81 = sphi 0, %s83
    %s84 = sphi 0, %s81
    %s85 = sphi 0, %s84
    %s101 = sphi 0, %s85
    %s107 = sphi 0, %s109
    %s110 = sphi 0, %s107
    %s111 = sphi 0, %s110
    %s127 = sphi 0, %s111
    %s133 = sphi 0, %s135
    %s136 = sphi 0, %s133
    %s137 = sphi 0, %s136
    %s153 = sphi 0, %s137
    %s159 = sphi 0, %s161
    %s162 = sphi 0, %s159
    %s163 = sphi 0, %s162
    %s179 = sphi 0, %s163
    %s185 = sphi 0, %s187
    %s188 = sphi 0, %s185
    %s189 = sphi 0, %s188
    %s205 = sphi 0, %s189
    %s211 = sphi 0, %s213
    %s214 = sphi 0, %s211
    %s215 = sphi 0, %s214
    %s231 = sphi 0, %s215
    %s237 = sphi 0, %s239
    %s240 = sphi 0, %s237
    %s241 = sphi 0, %s240
    %s257 = sphi 0, %s241
    %s263 = sphi 0, %s265
    %s266 = sphi 0, %s263
    %s267 = sphi 0, %s266
    %s283 = sphi 0, %s267
    %s289 = sphi 0, %s291
    %s292 = sphi 0, %s289
    %s293 = sphi 0, %s292
    %s309 = sphi 0, %s293
    %s315 = sphi 0, %s317
    %s318 = sphi 0, %s315
    %s319 = sphi 0, %s318
    %s335 = sphi 0, %s319
    %s341 = sphi 0, %s343
    %s344 = sphi 0, %s341
    %s345 = sphi 0, %s344
    %s361 = sphi 0, %s345
    %s365 = sphi 0, %s365
    %s367 = sphi 0, %s365
    %s368 = sphi 0, %s367
    %s382 = sphi 0, %s368
    %s386 = sphi 0, %s386
    %s388 = sphi 0, %s386
    %s389 = sphi 0, %s388
    %s403 = sphi 0, %s389
    %s407 = sphi 0, %s407
    %s409 = sphi 0, %s407
    %s410 = sphi 0, %s409
    %s424 = sphi 0, %s410
    %s428 = sphi 0, %s428
    %s430 = sphi 0, %s428
    %s431 = sphi 0, %s430
    %s445 = sphi 0, %s431
    %s451 = sphi 0, %s453
    %s454 = sphi 0, %s451
    %s455 = sphi 0, %s454
    %s471 = sphi 0, %s455
    %s477 = sphi 0, %s479
    %s480 = sphi 0, %s477
    %s481 = sphi 0, %s480
    %s497 = sphi 0, %s481
    %s503 = sphi 0, %s505
    %s506 = sphi 0, %s503
    %s507 = sphi 0, %s506
    %s523 = sphi 0, %s507
    %s529 = sphi 0, %s531
    %s532 = sphi 0, %s529
    %s533 = sphi 0, %s532
    %s549 = sphi 0, %s533
    %s555 = sphi 0, %s557
    %s558 = sphi 0, %s555
    %s559 = sphi 0, %s558
    %s575 = sphi 0, %s559
    %s581 = sphi 0, %s583
    %s584 = sphi 0, %s581
    %s585 = sphi 0, %s584
    %s601 = sphi 0, %s585
    %s607 = sphi 0, %s609
    %s610 = sphi 0, %s607
    %s611 = sphi 0, %s610
    %s627 = sphi 0, %s611
  $region4: #{critic_forward.1} parent=0 // loop_header_branch
    %32 = sbr.rel (%p30) target = $region8
  $region5: #{critic_forward.1} parent=0 // loop_body
    %s34 = ssub.s32 %s29, 1
    %s35 = ssub.s32 %s29, 2
    %s36 = sadd.s32 %s29, 1
    %s38 = sadd.s32 %s37, 1
    %p41 = scmp.eq.s32.totalorder %s29, 1
    %p42 = scmp.ne.s32.totalorder %s37, %s39
    %p43 = scmp.eq.s32.totalorder %s29, 0
    %p44 = por %p42, %p43
    %p45 = scmp.ne.s32.totalorder %s37, %s39
    %p46 = scmp.eq.s32.totalorder %s34, 1
    %p47 = por %p45, %p46
    %p48 = scmp.ne.s32.totalorder %s39, %s40
    %p49 = scmp.eq.s32.totalorder %s34, 0
    %p50 = por %p48, %p49
    %p51 = scmp.ne.s32.totalorder %s39, %s40
    %p52 = scmp.eq.s32.totalorder %s35, 1
    %p53 = por %p51, %p52
    %p55 = scmp.ne.s32.totalorder %s40, %s54
    %p56 = scmp.eq.s32.totalorder %s35, 0
    %p57 = por %p55, %p56
    %s59 = sadd.s32 %s58, 1
    %p62 = scmp.eq.s32.totalorder %s29, 1
    %p63 = scmp.ne.s32.totalorder %s58, %s60
    %p64 = scmp.eq.s32.totalorder %s29, 0
    %p65 = por %p63, %p64
    %p66 = scmp.ne.s32.totalorder %s58, %s60
    %p67 = scmp.eq.s32.totalorder %s34, 1
    %p68 = por %p66, %p67
    %p69 = scmp.ne.s32.totalorder %s60, %s61
    %p70 = scmp.eq.s32.totalorder %s34, 0
    %p71 = por %p69, %p70
    %p72 = scmp.ne.s32.totalorder %s60, %s61
    %p73 = scmp.eq.s32.totalorder %s35, 1
    %p74 = por %p72, %p73
    %p76 = scmp.ne.s32.totalorder %s61, %s75
    %p77 = scmp.eq.s32.totalorder %s35, 0
    %p78 = por %p76, %p77
    %s79 = ssub.s32 %s29, %s36
    %p80 = scmp.eq.s32.totalorder %s79, 0
    %s82 = sadd.s32 %s81, 1
    %s83 = scalar_select %p80, %s81, %s82
    %p86 = pneg %p80
    %p87 = scmp.eq.s32.totalorder %s29, 1
    %p88 = por %p86, %p87
    %p89 = scmp.ne.s32.totalorder %s81, %s84
    %p90 = scmp.eq.s32.totalorder %s29, 0
    %p91 = por %p89, %p90
    %p92 = scmp.ne.s32.totalorder %s81, %s84
    %p93 = scmp.eq.s32.totalorder %s34, 1
    %p94 = por %p92, %p93
    %p95 = scmp.ne.s32.totalorder %s84, %s85
    %p96 = scmp.eq.s32.totalorder %s34, 0
    %p97 = por %p95, %p96
    %p98 = scmp.ne.s32.totalorder %s84, %s85
    %p99 = scmp.eq.s32.totalorder %s35, 1
    %p100 = por %p98, %p99
    %p102 = scmp.ne.s32.totalorder %s85, %s101
    %p103 = scmp.eq.s32.totalorder %s35, 0
    %p104 = por %p102, %p103
    %s105 = ssub.s32 %s29, %s36
    %p106 = scmp.eq.s32.totalorder %s105, 0
    %s108 = sadd.s32 %s107, 1
    %s109 = scalar_select %p106, %s107, %s108
    %p112 = pneg %p106
    %p113 = scmp.eq.s32.totalorder %s29, 1
    %p114 = por %p112, %p113
    %p115 = scmp.ne.s32.totalorder %s107, %s110
    %p116 = scmp.eq.s32.totalorder %s29, 0
    %p117 = por %p115, %p116
    %p118 = scmp.ne.s32.totalorder %s107, %s110
    %p119 = scmp.eq.s32.totalorder %s34, 1
    %p120 = por %p118, %p119
    %p121 = scmp.ne.s32.totalorder %s110, %s111
    %p122 = scmp.eq.s32.totalorder %s34, 0
    %p123 = por %p121, %p122
    %p124 = scmp.ne.s32.totalorder %s110, %s111
    %p125 = scmp.eq.s32.totalorder %s35, 1
    %p126 = por %p124, %p125
    %p128 = scmp.ne.s32.totalorder %s111, %s127
    %p129 = scmp.eq.s32.totalorder %s35, 0
    %p130 = por %p128, %p129
    %s131 = ssub.s32 %s29, %s36
    %p132 = scmp.eq.s32.totalorder %s131, 0
    %s134 = sadd.s32 %s133, 1
    %s135 = scalar_select %p132, %s133, %s134
    %p138 = pneg %p132
    %p139 = scmp.eq.s32.totalorder %s29, 1
    %p140 = por %p138, %p139
    %p141 = scmp.ne.s32.totalorder %s133, %s136
    %p142 = scmp.eq.s32.totalorder %s29, 0
    %p143 = por %p141, %p142
    %p144 = scmp.ne.s32.totalorder %s133, %s136
    %p145 = scmp.eq.s32.totalorder %s34, 1
    %p146 = por %p144, %p145
    %p147 = scmp.ne.s32.totalorder %s136, %s137
    %p148 = scmp.eq.s32.totalorder %s34, 0
    %p149 = por %p147, %p148
    %p150 = scmp.ne.s32.totalorder %s136, %s137
    %p151 = scmp.eq.s32.totalorder %s35, 1
    %p152 = por %p150, %p151
    %p154 = scmp.ne.s32.totalorder %s137, %s153
    %p155 = scmp.eq.s32.totalorder %s35, 0
    %p156 = por %p154, %p155
    %s157 = ssub.s32 %s29, %s36
    %p158 = scmp.eq.s32.totalorder %s157, 0
    %s160 = sadd.s32 %s159, 1
    %s161 = scalar_select %p158, %s159, %s160
    %p164 = pneg %p158
    %p165 = scmp.eq.s32.totalorder %s29, 1
    %p166 = por %p164, %p165
    %p167 = scmp.ne.s32.totalorder %s159, %s162
    %p168 = scmp.eq.s32.totalorder %s29, 0
    %p169 = por %p167, %p168
    %p170 = scmp.ne.s32.totalorder %s159, %s162
    %p171 = scmp.eq.s32.totalorder %s34, 1
    %p172 = por %p170, %p171
    %p173 = scmp.ne.s32.totalorder %s162, %s163
    %p174 = scmp.eq.s32.totalorder %s34, 0
    %p175 = por %p173, %p174
    %p176 = scmp.ne.s32.totalorder %s162, %s163
    %p177 = scmp.eq.s32.totalorder %s35, 1
    %p178 = por %p176, %p177
    %p180 = scmp.ne.s32.totalorder %s163, %s179
    %p181 = scmp.eq.s32.totalorder %s35, 0
    %p182 = por %p180, %p181
    %s183 = ssub.s32 %s29, %s36
    %p184 = scmp.eq.s32.totalorder %s183, 0
    %s186 = sadd.s32 %s185, 1
    %s187 = scalar_select %p184, %s185, %s186
    %p190 = pneg %p184
    %p191 = scmp.eq.s32.totalorder %s29, 1
    %p192 = por %p190, %p191
    %p193 = scmp.ne.s32.totalorder %s185, %s188
    %p194 = scmp.eq.s32.totalorder %s29, 0
    %p195 = por %p193, %p194
    %p196 = scmp.ne.s32.totalorder %s185, %s188
    %p197 = scmp.eq.s32.totalorder %s34, 1
    %p198 = por %p196, %p197
    %p199 = scmp.ne.s32.totalorder %s188, %s189
    %p200 = scmp.eq.s32.totalorder %s34, 0
    %p201 = por %p199, %p200
    %p202 = scmp.ne.s32.totalorder %s188, %s189
    %p203 = scmp.eq.s32.totalorder %s35, 1
    %p204 = por %p202, %p203
    %p206 = scmp.ne.s32.totalorder %s189, %s205
    %p207 = scmp.eq.s32.totalorder %s35, 0
    %p208 = por %p206, %p207
    %s209 = ssub.s32 %s29, %s36
    %p210 = scmp.eq.s32.totalorder %s209, 0
    %s212 = sadd.s32 %s211, 1
    %s213 = scalar_select %p210, %s211, %s212
    %p216 = pneg %p210
    %p217 = scmp.eq.s32.totalorder %s29, 1
    %p218 = por %p216, %p217
    %p219 = scmp.ne.s32.totalorder %s211, %s214
    %p220 = scmp.eq.s32.totalorder %s29, 0
    %p221 = por %p219, %p220
    %p222 = scmp.ne.s32.totalorder %s211, %s214
    %p223 = scmp.eq.s32.totalorder %s34, 1
    %p224 = por %p222, %p223
    %p225 = scmp.ne.s32.totalorder %s214, %s215
    %p226 = scmp.eq.s32.totalorder %s34, 0
    %p227 = por %p225, %p226
    %p228 = scmp.ne.s32.totalorder %s214, %s215
    %p229 = scmp.eq.s32.totalorder %s35, 1
    %p230 = por %p228, %p229
    %p232 = scmp.ne.s32.totalorder %s215, %s231
    %p233 = scmp.eq.s32.totalorder %s35, 0
    %p234 = por %p232, %p233
    %s235 = ssub.s32 %s29, %s36
    %p236 = scmp.eq.s32.totalorder %s235, 0
    %s238 = sadd.s32 %s237, 1
    %s239 = scalar_select %p236, %s237, %s238
    %p242 = pneg %p236
    %p243 = scmp.eq.s32.totalorder %s29, 1
    %p244 = por %p242, %p243
    %p245 = scmp.ne.s32.totalorder %s237, %s240
    %p246 = scmp.eq.s32.totalorder %s29, 0
    %p247 = por %p245, %p246
    %p248 = scmp.ne.s32.totalorder %s237, %s240
    %p249 = scmp.eq.s32.totalorder %s34, 1
    %p250 = por %p248, %p249
    %p251 = scmp.ne.s32.totalorder %s240, %s241
    %p252 = scmp.eq.s32.totalorder %s34, 0
    %p253 = por %p251, %p252
    %p254 = scmp.ne.s32.totalorder %s240, %s241
    %p255 = scmp.eq.s32.totalorder %s35, 1
    %p256 = por %p254, %p255
    %p258 = scmp.ne.s32.totalorder %s241, %s257
    %p259 = scmp.eq.s32.totalorder %s35, 0
    %p260 = por %p258, %p259
    %s261 = ssub.s32 %s29, %s36
    %p262 = scmp.eq.s32.totalorder %s261, 0
    %s264 = sadd.s32 %s263, 1
    %s265 = scalar_select %p262, %s263, %s264
    %p268 = pneg %p262
    %p269 = scmp.eq.s32.totalorder %s29, 1
    %p270 = por %p268, %p269
    %p271 = scmp.ne.s32.totalorder %s263, %s266
    %p272 = scmp.eq.s32.totalorder %s29, 0
    %p273 = por %p271, %p272
    %p274 = scmp.ne.s32.totalorder %s263, %s266
    %p275 = scmp.eq.s32.totalorder %s34, 1
    %p276 = por %p274, %p275
    %p277 = scmp.ne.s32.totalorder %s266, %s267
    %p278 = scmp.eq.s32.totalorder %s34, 0
    %p279 = por %p277, %p278
    %p280 = scmp.ne.s32.totalorder %s266, %s267
    %p281 = scmp.eq.s32.totalorder %s35, 1
    %p282 = por %p280, %p281
    %p284 = scmp.ne.s32.totalorder %s267, %s283
    %p285 = scmp.eq.s32.totalorder %s35, 0
    %p286 = por %p284, %p285
    %s287 = ssub.s32 %s29, %s36
    %p288 = scmp.eq.s32.totalorder %s287, 0
    %s290 = sadd.s32 %s289, 1
    %s291 = scalar_select %p288, %s289, %s290
    %p294 = pneg %p288
    %p295 = scmp.eq.s32.totalorder %s29, 1
    %p296 = por %p294, %p295
    %p297 = scmp.ne.s32.totalorder %s289, %s292
    %p298 = scmp.eq.s32.totalorder %s29, 0
    %p299 = por %p297, %p298
    %p300 = scmp.ne.s32.totalorder %s289, %s292
    %p301 = scmp.eq.s32.totalorder %s34, 1
    %p302 = por %p300, %p301
    %p303 = scmp.ne.s32.totalorder %s292, %s293
    %p304 = scmp.eq.s32.totalorder %s34, 0
    %p305 = por %p303, %p304
    %p306 = scmp.ne.s32.totalorder %s292, %s293
    %p307 = scmp.eq.s32.totalorder %s35, 1
    %p308 = por %p306, %p307
    %p310 = scmp.ne.s32.totalorder %s293, %s309
    %p311 = scmp.eq.s32.totalorder %s35, 0
    %p312 = por %p310, %p311
    %s313 = ssub.s32 %s29, %s36
    %p314 = scmp.eq.s32.totalorder %s313, 0
    %s316 = sadd.s32 %s315, 1
    %s317 = scalar_select %p314, %s315, %s316
    %p320 = pneg %p314
    %p321 = scmp.eq.s32.totalorder %s29, 1
    %p322 = por %p320, %p321
    %p323 = scmp.ne.s32.totalorder %s315, %s318
    %p324 = scmp.eq.s32.totalorder %s29, 0
    %p325 = por %p323, %p324
    %p326 = scmp.ne.s32.totalorder %s315, %s318
    %p327 = scmp.eq.s32.totalorder %s34, 1
    %p328 = por %p326, %p327
    %p329 = scmp.ne.s32.totalorder %s318, %s319
    %p330 = scmp.eq.s32.totalorder %s34, 0
    %p331 = por %p329, %p330
    %p332 = scmp.ne.s32.totalorder %s318, %s319
    %p333 = scmp.eq.s32.totalorder %s35, 1
    %p334 = por %p332, %p333
    %p336 = scmp.ne.s32.totalorder %s319, %s335
    %p337 = scmp.eq.s32.totalorder %s35, 0
    %p338 = por %p336, %p337
    %s339 = ssub.s32 %s29, %s36
    %p340 = scmp.eq.s32.totalorder %s339, 0
    %s342 = sadd.s32 %s341, 1
    %s343 = scalar_select %p340, %s341, %s342
    %p346 = pneg %p340
    %p347 = scmp.eq.s32.totalorder %s29, 1
    %p348 = por %p346, %p347
    %p349 = scmp.ne.s32.totalorder %s341, %s344
    %p350 = scmp.eq.s32.totalorder %s29, 0
    %p351 = por %p349, %p350
    %p352 = scmp.ne.s32.totalorder %s341, %s344
    %p353 = scmp.eq.s32.totalorder %s34, 1
    %p354 = por %p352, %p353
    %p355 = scmp.ne.s32.totalorder %s344, %s345
    %p356 = scmp.eq.s32.totalorder %s34, 0
    %p357 = por %p355, %p356
    %p358 = scmp.ne.s32.totalorder %s344, %s345
    %p359 = scmp.eq.s32.totalorder %s35, 1
    %p360 = por %p358, %p359
    %p362 = scmp.ne.s32.totalorder %s345, %s361
    %p363 = scmp.eq.s32.totalorder %s35, 0
    %p364 = por %p362, %p363
    %s366 = sadd.s32 %s365, 1
    %p369 = scmp.eq.s32.totalorder %s29, 1
    %p370 = scmp.ne.s32.totalorder %s365, %s367
    %p371 = scmp.eq.s32.totalorder %s29, 0
    %p372 = por %p370, %p371
    %p373 = scmp.ne.s32.totalorder %s365, %s367
    %p374 = scmp.eq.s32.totalorder %s34, 1
    %p375 = por %p373, %p374
    %p376 = scmp.ne.s32.totalorder %s367, %s368
    %p377 = scmp.eq.s32.totalorder %s34, 0
    %p378 = por %p376, %p377
    %p379 = scmp.ne.s32.totalorder %s367, %s368
    %p380 = scmp.eq.s32.totalorder %s35, 1
    %p381 = por %p379, %p380
    %p383 = scmp.ne.s32.totalorder %s368, %s382
    %p384 = scmp.eq.s32.totalorder %s35, 0
    %p385 = por %p383, %p384
    %s387 = sadd.s32 %s386, 1
    %p390 = scmp.eq.s32.totalorder %s29, 1
    %p391 = scmp.ne.s32.totalorder %s386, %s388
    %p392 = scmp.eq.s32.totalorder %s29, 0
    %p393 = por %p391, %p392
    %p394 = scmp.ne.s32.totalorder %s386, %s388
    %p395 = scmp.eq.s32.totalorder %s34, 1
    %p396 = por %p394, %p395
    %p397 = scmp.ne.s32.totalorder %s388, %s389
    %p398 = scmp.eq.s32.totalorder %s34, 0
    %p399 = por %p397, %p398
    %p400 = scmp.ne.s32.totalorder %s388, %s389
    %p401 = scmp.eq.s32.totalorder %s35, 1
    %p402 = por %p400, %p401
    %p404 = scmp.ne.s32.totalorder %s389, %s403
    %p405 = scmp.eq.s32.totalorder %s35, 0
    %p406 = por %p404, %p405
    %s408 = sadd.s32 %s407, 1
    %p411 = scmp.eq.s32.totalorder %s29, 1
    %p412 = scmp.ne.s32.totalorder %s407, %s409
    %p413 = scmp.eq.s32.totalorder %s29, 0
    %p414 = por %p412, %p413
    %p415 = scmp.ne.s32.totalorder %s407, %s409
    %p416 = scmp.eq.s32.totalorder %s34, 1
    %p417 = por %p415, %p416
    %p418 = scmp.ne.s32.totalorder %s409, %s410
    %p419 = scmp.eq.s32.totalorder %s34, 0
    %p420 = por %p418, %p419
    %p421 = scmp.ne.s32.totalorder %s409, %s410
    %p422 = scmp.eq.s32.totalorder %s35, 1
    %p423 = por %p421, %p422
    %p425 = scmp.ne.s32.totalorder %s410, %s424
    %p426 = scmp.eq.s32.totalorder %s35, 0
    %p427 = por %p425, %p426
    %s429 = sadd.s32 %s428, 1
    %p432 = scmp.eq.s32.totalorder %s29, 1
    %p433 = scmp.ne.s32.totalorder %s428, %s430
    %p434 = scmp.eq.s32.totalorder %s29, 0
    %p435 = por %p433, %p434
    %p436 = scmp.ne.s32.totalorder %s428, %s430
    %p437 = scmp.eq.s32.totalorder %s34, 1
    %p438 = por %p436, %p437
    %p439 = scmp.ne.s32.totalorder %s430, %s431
    %p440 = scmp.eq.s32.totalorder %s34, 0
    %p441 = por %p439, %p440
    %p442 = scmp.ne.s32.totalorder %s430, %s431
    %p443 = scmp.eq.s32.totalorder %s35, 1
    %p444 = por %p442, %p443
    %p446 = scmp.ne.s32.totalorder %s431, %s445
    %p447 = scmp.eq.s32.totalorder %s35, 0
    %p448 = por %p446, %p447
    %s449 = ssub.s32 %s29, %s36
    %p450 = scmp.eq.s32.totalorder %s449, 0
    %s452 = sadd.s32 %s451, 1
    %s453 = scalar_select %p450, %s451, %s452
    %p456 = pneg %p450
    %p457 = scmp.eq.s32.totalorder %s29, 1
    %p458 = por %p456, %p457
    %p459 = scmp.ne.s32.totalorder %s451, %s454
    %p460 = scmp.eq.s32.totalorder %s29, 0
    %p461 = por %p459, %p460
    %p462 = scmp.ne.s32.totalorder %s451, %s454
    %p463 = scmp.eq.s32.totalorder %s34, 1
    %p464 = por %p462, %p463
    %p465 = scmp.ne.s32.totalorder %s454, %s455
    %p466 = scmp.eq.s32.totalorder %s34, 0
    %p467 = por %p465, %p466
    %p468 = scmp.ne.s32.totalorder %s454, %s455
    %p469 = scmp.eq.s32.totalorder %s35, 1
    %p470 = por %p468, %p469
    %p472 = scmp.ne.s32.totalorder %s455, %s471
    %p473 = scmp.eq.s32.totalorder %s35, 0
    %p474 = por %p472, %p473
    %s475 = ssub.s32 %s29, %s36
    %p476 = scmp.eq.s32.totalorder %s475, 0
    %s478 = sadd.s32 %s477, 1
    %s479 = scalar_select %p476, %s477, %s478
    %p482 = pneg %p476
    %p483 = scmp.eq.s32.totalorder %s29, 1
    %p484 = por %p482, %p483
    %p485 = scmp.ne.s32.totalorder %s477, %s480
    %p486 = scmp.eq.s32.totalorder %s29, 0
    %p487 = por %p485, %p486
    %p488 = scmp.ne.s32.totalorder %s477, %s480
    %p489 = scmp.eq.s32.totalorder %s34, 1
    %p490 = por %p488, %p489
    %p491 = scmp.ne.s32.totalorder %s480, %s481
    %p492 = scmp.eq.s32.totalorder %s34, 0
    %p493 = por %p491, %p492
    %p494 = scmp.ne.s32.totalorder %s480, %s481
    %p495 = scmp.eq.s32.totalorder %s35, 1
    %p496 = por %p494, %p495
    %p498 = scmp.ne.s32.totalorder %s481, %s497
    %p499 = scmp.eq.s32.totalorder %s35, 0
    %p500 = por %p498, %p499
    %s501 = ssub.s32 %s29, %s36
    %p502 = scmp.eq.s32.totalorder %s501, 0
    %s504 = sadd.s32 %s503, 1
    %s505 = scalar_select %p502, %s503, %s504
    %p508 = pneg %p502
    %p509 = scmp.eq.s32.totalorder %s29, 1
    %p510 = por %p508, %p509
    %p511 = scmp.ne.s32.totalorder %s503, %s506
    %p512 = scmp.eq.s32.totalorder %s29, 0
    %p513 = por %p511, %p512
    %p514 = scmp.ne.s32.totalorder %s503, %s506
    %p515 = scmp.eq.s32.totalorder %s34, 1
    %p516 = por %p514, %p515
    %p517 = scmp.ne.s32.totalorder %s506, %s507
    %p518 = scmp.eq.s32.totalorder %s34, 0
    %p519 = por %p517, %p518
    %p520 = scmp.ne.s32.totalorder %s506, %s507
    %p521 = scmp.eq.s32.totalorder %s35, 1
    %p522 = por %p520, %p521
    %p524 = scmp.ne.s32.totalorder %s507, %s523
    %p525 = scmp.eq.s32.totalorder %s35, 0
    %p526 = por %p524, %p525
    %s527 = ssub.s32 %s29, %s36
    %p528 = scmp.eq.s32.totalorder %s527, 0
    %s530 = sadd.s32 %s529, 1
    %s531 = scalar_select %p528, %s529, %s530
    %p534 = pneg %p528
    %p535 = scmp.eq.s32.totalorder %s29, 1
    %p536 = por %p534, %p535
    %p537 = scmp.ne.s32.totalorder %s529, %s532
    %p538 = scmp.eq.s32.totalorder %s29, 0
    %p539 = por %p537, %p538
    %p540 = scmp.ne.s32.totalorder %s529, %s532
    %p541 = scmp.eq.s32.totalorder %s34, 1
    %p542 = por %p540, %p541
    %p543 = scmp.ne.s32.totalorder %s532, %s533
    %p544 = scmp.eq.s32.totalorder %s34, 0
    %p545 = por %p543, %p544
    %p546 = scmp.ne.s32.totalorder %s532, %s533
    %p547 = scmp.eq.s32.totalorder %s35, 1
    %p548 = por %p546, %p547
    %p550 = scmp.ne.s32.totalorder %s533, %s549
    %p551 = scmp.eq.s32.totalorder %s35, 0
    %p552 = por %p550, %p551
    %s553 = ssub.s32 %s29, %s36
    %p554 = scmp.eq.s32.totalorder %s553, 0
    %s556 = sadd.s32 %s555, 1
    %s557 = scalar_select %p554, %s555, %s556
    %p560 = pneg %p554
    %p561 = scmp.eq.s32.totalorder %s29, 1
    %p562 = por %p560, %p561
    %p563 = scmp.ne.s32.totalorder %s555, %s558
    %p564 = scmp.eq.s32.totalorder %s29, 0
    %p565 = por %p563, %p564
    %p566 = scmp.ne.s32.totalorder %s555, %s558
    %p567 = scmp.eq.s32.totalorder %s34, 1
    %p568 = por %p566, %p567
    %p569 = scmp.ne.s32.totalorder %s558, %s559
    %p570 = scmp.eq.s32.totalorder %s34, 0
    %p571 = por %p569, %p570
    %p572 = scmp.ne.s32.totalorder %s558, %s559
    %p573 = scmp.eq.s32.totalorder %s35, 1
    %p574 = por %p572, %p573
    %p576 = scmp.ne.s32.totalorder %s559, %s575
    %p577 = scmp.eq.s32.totalorder %s35, 0
    %p578 = por %p576, %p577
    %s579 = ssub.s32 %s29, %s36
    %p580 = scmp.eq.s32.totalorder %s579, 0
    %s582 = sadd.s32 %s581, 1
    %s583 = scalar_select %p580, %s581, %s582
    %p586 = pneg %p580
    %p587 = scmp.eq.s32.totalorder %s29, 1
    %p588 = por %p586, %p587
    %p589 = scmp.ne.s32.totalorder %s581, %s584
    %p590 = scmp.eq.s32.totalorder %s29, 0
    %p591 = por %p589, %p590
    %p592 = scmp.ne.s32.totalorder %s581, %s584
    %p593 = scmp.eq.s32.totalorder %s34, 1
    %p594 = por %p592, %p593
    %p595 = scmp.ne.s32.totalorder %s584, %s585
    %p596 = scmp.eq.s32.totalorder %s34, 0
    %p597 = por %p595, %p596
    %p598 = scmp.ne.s32.totalorder %s584, %s585
    %p599 = scmp.eq.s32.totalorder %s35, 1
    %p600 = por %p598, %p599
    %p602 = scmp.ne.s32.totalorder %s585, %s601
    %p603 = scmp.eq.s32.totalorder %s35, 0
    %p604 = por %p602, %p603
    %s605 = ssub.s32 %s29, %s36
    %p606 = scmp.eq.s32.totalorder %s605, 0
    %s608 = sadd.s32 %s607, 1
    %s609 = scalar_select %p606, %s607, %s608
    %p612 = pneg %p606
    %p613 = scmp.eq.s32.totalorder %s29, 1
    %p614 = por %p612, %p613
    %p615 = scmp.ne.s32.totalorder %s607, %s610
    %p616 = scmp.eq.s32.totalorder %s29, 0
    %p617 = por %p615, %p616
    %p618 = scmp.ne.s32.totalorder %s607, %s610
    %p619 = scmp.eq.s32.totalorder %s34, 1
    %p620 = por %p618, %p619
    %p621 = scmp.ne.s32.totalorder %s610, %s611
    %p622 = scmp.eq.s32.totalorder %s34, 0
    %p623 = por %p621, %p622
    %p624 = scmp.ne.s32.totalorder %s610, %s611
    %p625 = scmp.eq.s32.totalorder %s35, 1
    %p626 = por %p624, %p625
    %p628 = scmp.ne.s32.totalorder %s611, %s627
    %p629 = scmp.eq.s32.totalorder %s35, 0
    %p630 = por %p628, %p629
    %p631 = scmp.le.s32.totalorder 1, %s29
    %p632 = scmp.lt.s32.totalorder %s29, 3
    %p633 = pnand %p631, %p632
    %p634 = pneg %p633
    // Predicated region
    $region9: #{critic_forward.1} parent=5 // pred_check
      _
    $region10: #{critic_forward.1} parent=5 // pred_check_branch
      %636 = sbr.rel (%p633) target = $region12
    $region11: #{critic_forward.1} parent=5 // pred_region
      %s637 = ssub.s32 %s29, 1
      // Predicated region
      $region13: #{critic_forward.1} parent=11 // pred_check
        %p638 = pneg %p50
      $region14: #{critic_forward.1} parent=11 // pred_check_branch
        %640 = sbr.rel (%p638) target = $region16
      $region15: #{critic_forward.1} parent=11 // pred_region
        _
      $region16: #{critic_forward.1} parent=11 // pred_fallthru
        _
      // Predicated region
      $region17: #{critic_forward.1} parent=11 // pred_check
        %p641 = pneg %p71
      $region18: #{critic_forward.1} parent=11 // pred_check_branch
        %643 = sbr.rel (%p641) target = $region20
      $region19: #{critic_forward.1} parent=11 // pred_region
        _
      $region20: #{critic_forward.1} parent=11 // pred_fallthru
        _
      // Predicated region
      $region21: #{critic_forward.1} parent=11 // pred_check
        %p644 = pneg %p378
      $region22: #{critic_forward.1} parent=11 // pred_check_branch
        %646 = sbr.rel (%p644) target = $region24
      $region23: #{critic_forward.1} parent=11 // pred_region
        _
      $region24: #{critic_forward.1} parent=11 // pred_fallthru
        _
      // Predicated region
      $region25: #{critic_forward.1} parent=11 // pred_check
        %p647 = pneg %p399
      $region26: #{critic_forward.1} parent=11 // pred_check_branch
        %649 = sbr.rel (%p647) target = $region28
      $region27: #{critic_forward.1} parent=11 // pred_region
        _
      $region28: #{critic_forward.1} parent=11 // pred_fallthru
        _
      // Predicated region
      $region29: #{critic_forward.1} parent=11 // pred_check
        %p650 = pneg %p420
      $region30: #{critic_forward.1} parent=11 // pred_check_branch
        %652 = sbr.rel (%p650) target = $region32
      $region31: #{critic_forward.1} parent=11 // pred_region
        _
      $region32: #{critic_forward.1} parent=11 // pred_fallthru
        _
      // Predicated region
      $region33: #{critic_forward.1} parent=11 // pred_check
        %p653 = pneg %p441
      $region34: #{critic_forward.1} parent=11 // pred_check_branch
        %655 = sbr.rel (%p653) target = $region36
      $region35: #{critic_forward.1} parent=11 // pred_region
        _
      $region36: #{critic_forward.1} parent=11 // pred_fallthru
        _
    $region12: #{critic_forward.1} parent=5 // pred_fallthru
      _
    %p656 = scmp.lt.s32.totalorder %s29, 2
    // Predicated region
    $region37: #{critic_forward.1} parent=5 // pred_check
      %p657 = pneg %p656
    $region38: #{critic_forward.1} parent=5 // pred_check_branch
      %659 = sbr.rel (%p657) target = $region40
    $region39: #{critic_forward.1} parent=5 // pred_region
      // Predicated region
      $region41: #{critic_forward.1} parent=39 // pred_check
        %p660 = pneg %p91
      $region42: #{critic_forward.1} parent=39 // pred_check_branch
        %662 = sbr.rel (%p660) target = $region44
      $region43: #{critic_forward.1} parent=39 // pred_region
        %p663 = scmp.lt.s32.totalorder %s29, 1
        %s664 = scalar_select %p663, %s29, 1
        %s665 = smul.addr %s664, 27
        %s666 = smul.addr %s665, 4
        %s667 = scalar_lea.vmem %s2, %s666
      $region44: #{critic_forward.1} parent=39 // pred_fallthru
        _
      // Predicated region
      $region45: #{critic_forward.1} parent=39 // pred_check
        %p668 = pneg %p117
      $region46: #{critic_forward.1} parent=39 // pred_check_branch
        %670 = sbr.rel (%p668) target = $region48
      $region47: #{critic_forward.1} parent=39 // pred_region
        %p671 = scmp.lt.s32.totalorder %s29, 1
        %s672 = scalar_select %p671, %s29, 1
        %s673 = smul.addr %s672, 396
        %s674 = smul.addr %s673, 4
        %s675 = scalar_lea.vmem %s3, %s674
      $region48: #{critic_forward.1} parent=39 // pred_fallthru
        _
      // Predicated region
      $region49: #{critic_forward.1} parent=39 // pred_check
        %p676 = pneg %p143
      $region50: #{critic_forward.1} parent=39 // pred_check_branch
        %678 = sbr.rel (%p676) target = $region52
      $region51: #{critic_forward.1} parent=39 // pred_region
        %p679 = scmp.lt.s32.totalorder %s29, 1
        %s680 = scalar_select %p679, %s29, 1
        %s681 = smul.addr %s680, 60
        %s682 = smul.addr %s681, 4
        %s683 = scalar_lea.vmem %s4, %s682
      $region52: #{critic_forward.1} parent=39 // pred_fallthru
        _
      // Predicated region
      $region53: #{critic_forward.1} parent=39 // pred_check
        %p684 = pneg %p169
      $region54: #{critic_forward.1} parent=39 // pred_check_branch
        %686 = sbr.rel (%p684) target = $region56
      $region55: #{critic_forward.1} parent=39 // pred_region
        %p687 = scmp.lt.s32.totalorder %s29, 1
        %s688 = scalar_select %p687, %s29, 1
        %s689 = smul.addr %s688, 48
        %s690 = smul.addr %s689, 4
        %s691 = scalar_lea.vmem %s5, %s690
      $region56: #{critic_forward.1} parent=39 // pred_fallthru
        _
      // Predicated region
      $region57: #{critic_forward.1} parent=39 // pred_check
        %p692 = pneg %p195
      $region58: #{critic_forward.1} parent=39 // pred_check_branch
        %694 = sbr.rel (%p692) target = $region60
      $region59: #{critic_forward.1} parent=39 // pred_region
        %p695 = scmp.lt.s32.totalorder %s29, 1
        %s696 = scalar_select %p695, %s29, 1
        %s697 = smul.addr %s696, 36
        %s698 = smul.addr %s697, 4
        %s699 = scalar_lea.vmem %s6, %s698
      $region60: #{critic_forward.1} parent=39 // pred_fallthru
        _
      // Predicated region
      $region61: #{critic_forward.1} parent=39 // pred_check
        %p700 = pneg %p221
      $region62: #{critic_forward.1} parent=39 // pred_check_branch
        %702 = sbr.rel (%p700) target = $region64
      $region63: #{critic_forward.1} parent=39 // pred_region
        %p703 = scmp.lt.s32.totalorder %s29, 1
        %s704 = scalar_select %p703, %s29, 1
        %s705 = smul.addr %s704, 24
        %s706 = smul.addr %s705, 4
        %s707 = scalar_lea.vmem %s7, %s706
      $region64: #{critic_forward.1} parent=39 // pred_fallthru
        _
      // Predicated region
      $region65: #{critic_forward.1} parent=39 // pred_check
        %p708 = pneg %p247
      $region66: #{critic_forward.1} parent=39 // pred_check_branch
        %710 = sbr.rel (%p708) target = $region68
      $region67: #{critic_forward.1} parent=39 // pred_region
        %p711 = scmp.lt.s32.totalorder %s29, 1
        %s712 = scalar_select %p711, %s29, 1
        %s713 = smul.addr %s712, 3
        %s714 = scalar_lea.vmem %s8, %s713
      $region68: #{critic_forward.1} parent=39 // pred_fallthru
        _
      // Predicated region
      $region69: #{critic_forward.1} parent=39 // pred_check
        %p715 = pneg %p273
      $region70: #{critic_forward.1} parent=39 // pred_check_branch
        %717 = sbr.rel (%p715) target = $region72
      $region71: #{critic_forward.1} parent=39 // pred_region
        %p718 = scmp.lt.s32.totalorder %s29, 1
        %s719 = scalar_select %p718, %s29, 1
        %s720 = smul.addr %s719, 3
        %s721 = scalar_lea.vmem %s9, %s720
      $region72: #{critic_forward.1} parent=39 // pred_fallthru
        _
      // Predicated region
      $region73: #{critic_forward.1} parent=39 // pred_check
        %p722 = pneg %p299
      $region74: #{critic_forward.1} parent=39 // pred_check_branch
        %724 = sbr.rel (%p722) target = $region76
      $region75: #{critic_forward.1} parent=39 // pred_region
        %p725 = scmp.lt.s32.totalorder %s29, 1
        %s726 = scalar_select %p725, %s29, 1
        %s727 = scalar_lea.vmem %s10, %s726
      $region76: #{critic_forward.1} parent=39 // pred_fallthru
        _
      // Predicated region
      $region77: #{critic_forward.1} parent=39 // pred_check
        %p728 = pneg %p325
      $region78: #{critic_forward.1} parent=39 // pred_check_branch
        %730 = sbr.rel (%p728) target = $region80
      $region79: #{critic_forward.1} parent=39 // pred_region
        %p731 = scmp.lt.s32.totalorder %s29, 1
        %s732 = scalar_select %p731, %s29, 1
        %s733 = scalar_lea.vmem %s11, %s732
      $region80: #{critic_forward.1} parent=39 // pred_fallthru
        _
      // Predicated region
      $region81: #{critic_forward.1} parent=39 // pred_check
        %p734 = pneg %p351
      $region82: #{critic_forward.1} parent=39 // pred_check_branch
        %736 = sbr.rel (%p734) target = $region84
      $region83: #{critic_forward.1} parent=39 // pred_region
        %p737 = scmp.lt.s32.totalorder %s29, 1
        %s738 = scalar_select %p737, %s29, 1
        %s739 = scalar_lea.vmem %s12, %s738
      $region84: #{critic_forward.1} parent=39 // pred_fallthru
        _
      // Predicated region
      $region85: #{critic_forward.1} parent=39 // pred_check
        %p740 = pneg %p461
      $region86: #{critic_forward.1} parent=39 // pred_check_branch
        %742 = sbr.rel (%p740) target = $region88
      $region87: #{critic_forward.1} parent=39 // pred_region
        %p743 = scmp.lt.s32.totalorder %s29, 1
        %s744 = scalar_select %p743, %s29, 1
        %s745 = smul.addr %s744, 12
        %s746 = smul.addr %s745, 4
        %s747 = scalar_lea.vmem %s17, %s746
      $region88: #{critic_forward.1} parent=39 // pred_fallthru
        _
      // Predicated region
      $region89: #{critic_forward.1} parent=39 // pred_check
        %p748 = pneg %p487
      $region90: #{critic_forward.1} parent=39 // pred_check_branch
        %750 = sbr.rel (%p748) target = $region92
      $region91: #{critic_forward.1} parent=39 // pred_region
        %p751 = scmp.lt.s32.totalorder %s29, 1
        %s752 = scalar_select %p751, %s29, 1
        %s753 = smul.addr %s752, 4
        %s754 = scalar_lea.vmem %s18, %s753
      $region92: #{critic_forward.1} parent=39 // pred_fallthru
        _
      // Predicated region
      $region93: #{critic_forward.1} parent=39 // pred_check
        %p755 = pneg %p513
      $region94: #{critic_forward.1} parent=39 // pred_check_branch
        %757 = sbr.rel (%p755) target = $region96
      $region95: #{critic_forward.1} parent=39 // pred_region
        %p758 = scmp.lt.s32.totalorder %s29, 1
        %s759 = scalar_select %p758, %s29, 1
        %s760 = smul.addr %s759, 150
        %s761 = smul.addr %s760, 4
        %s762 = scalar_lea.vmem %s19, %s761
      $region96: #{critic_forward.1} parent=39 // pred_fallthru
        _
      // Predicated region
      $region97: #{critic_forward.1} parent=39 // pred_check
        %p763 = pneg %p539
      $region98: #{critic_forward.1} parent=39 // pred_check_branch
        %765 = sbr.rel (%p763) target = $region100
      $region99: #{critic_forward.1} parent=39 // pred_region
        %p766 = scmp.lt.s32.totalorder %s29, 1
        %s767 = scalar_select %p766, %s29, 1
        %s768 = smul.addr %s767, 3
        %s769 = scalar_lea.vmem %s20, %s768
      $region100: #{critic_forward.1} parent=39 // pred_fallthru
        _
      // Predicated region
      $region101: #{critic_forward.1} parent=39 // pred_check
        %p770 = pneg %p565
      $region102: #{critic_forward.1} parent=39 // pred_check_branch
        %772 = sbr.rel (%p770) target = $region104
      $region103: #{critic_forward.1} parent=39 // pred_region
        %p773 = scmp.lt.s32.totalorder %s29, 1
        %s774 = scalar_select %p773, %s29, 1
        %s775 = smul.addr %s774, 38
        %s776 = smul.addr %s775, 4
        %s777 = scalar_lea.vmem %s21, %s776
      $region104: #{critic_forward.1} parent=39 // pred_fallthru
        _
      // Predicated region
      $region105: #{critic_forward.1} parent=39 // pred_check
        %p778 = pneg %p591
      $region106: #{critic_forward.1} parent=39 // pred_check_branch
        %780 = sbr.rel (%p778) target = $region108
      $region107: #{critic_forward.1} parent=39 // pred_region
        %p781 = scmp.lt.s32.totalorder %s29, 1
        %s782 = scalar_select %p781, %s29, 1
        %s783 = scalar_lea.vmem %s22, %s782
      $region108: #{critic_forward.1} parent=39 // pred_fallthru
        _
    $region40: #{critic_forward.1} parent=5 // pred_fallthru
      _
    %p784 = scmp.le.s32.totalorder 1, %s29
    %p785 = scmp.lt.s32.totalorder %s29, 3
    %p786 = pnand %p784, %p785
    %p787 = pneg %p786
    // Predicated region
    $region109: #{critic_forward.1} parent=5 // pred_check
      _
    $region110: #{critic_forward.1} parent=5 // pred_check_branch
      %789 = sbr.rel (%p786) target = $region112
    $region111: #{critic_forward.1} parent=5 // pred_region
      %s790 = ssub.s32 %s29, 1
      %p791 = pneg %p50
      %p792 = pneg %p47
      %p793 = pneg %p71
      %p794 = pneg %p68
      %p795 = scmp.lt.s32.totalorder %s34, 1
      %s796 = scalar_select %p795, %s34, 1
      %s797 = smul.addr %s796, 27
      %s798 = smul.addr %s797, 4
      %s799 = scalar_lea.vmem %s2, %s798
      %p800 = pneg %p97
      %p801 = pneg %p94
      %p802 = scmp.lt.s32.totalorder %s34, 1
      %s803 = scalar_select %p802, %s34, 1
      %s804 = smul.addr %s803, 396
      %s805 = smul.addr %s804, 4
      %s806 = scalar_lea.vmem %s3, %s805
      %p807 = pneg %p123
      %p808 = pneg %p120
      %p809 = scmp.lt.s32.totalorder %s34, 1
      %s810 = scalar_select %p809, %s34, 1
      %s811 = smul.addr %s810, 60
      %s812 = smul.addr %s811, 4
      %s813 = scalar_lea.vmem %s4, %s812
      %p814 = pneg %p149
      %p815 = pneg %p146
      %p816 = scmp.lt.s32.totalorder %s34, 1
      %s817 = scalar_select %p816, %s34, 1
      %s818 = smul.addr %s817, 48
      %s819 = smul.addr %s818, 4
      %s820 = scalar_lea.vmem %s5, %s819
      %p821 = pneg %p175
      %p822 = pneg %p172
      %p823 = scmp.lt.s32.totalorder %s34, 1
      %s824 = scalar_select %p823, %s34, 1
      %s825 = smul.addr %s824, 36
      %s826 = smul.addr %s825, 4
      %s827 = scalar_lea.vmem %s6, %s826
      %p828 = pneg %p201
      %p829 = pneg %p198
      %p830 = scmp.lt.s32.totalorder %s34, 1
      %s831 = scalar_select %p830, %s34, 1
      %s832 = smul.addr %s831, 24
      %s833 = smul.addr %s832, 4
      %s834 = scalar_lea.vmem %s7, %s833
      %p835 = pneg %p227
      %p836 = pneg %p224
      %p837 = scmp.lt.s32.totalorder %s34, 1
      %s838 = scalar_select %p837, %s34, 1
      %s839 = smul.addr %s838, 3
      %s840 = scalar_lea.vmem %s8, %s839
      %p841 = pneg %p253
      %p842 = pneg %p250
      %p843 = scmp.lt.s32.totalorder %s34, 1
      %s844 = scalar_select %p843, %s34, 1
      %s845 = smul.addr %s844, 3
      %s846 = scalar_lea.vmem %s9, %s845
      %p847 = pneg %p279
      %p848 = pneg %p276
      %p849 = scmp.lt.s32.totalorder %s34, 1
      %s850 = scalar_select %p849, %s34, 1
      %s851 = scalar_lea.vmem %s10, %s850
      %p852 = pneg %p305
      %p853 = pneg %p302
      %p854 = scmp.lt.s32.totalorder %s34, 1
      %s855 = scalar_select %p854, %s34, 1
      %s856 = scalar_lea.vmem %s11, %s855
      %p857 = pneg %p331
      %p858 = pneg %p328
      %p859 = scmp.lt.s32.totalorder %s34, 1
      %s860 = scalar_select %p859, %s34, 1
      %s861 = scalar_lea.vmem %s12, %s860
      %p862 = pneg %p357
      %p863 = pneg %p354
      %p864 = pneg %p378
      %p865 = pneg %p375
      %p866 = pneg %p399
      %p867 = pneg %p396
      %p868 = pneg %p420
      %p869 = pneg %p417
      %p870 = pneg %p441
      %p871 = pneg %p438
      %p872 = scmp.lt.s32.totalorder %s34, 1
      %s873 = scalar_select %p872, %s34, 1
      %s874 = smul.addr %s873, 12
      %s875 = smul.addr %s874, 4
      %s876 = scalar_lea.vmem %s17, %s875
      %p877 = pneg %p467
      %p878 = pneg %p464
      %p879 = scmp.lt.s32.totalorder %s34, 1
      %s880 = scalar_select %p879, %s34, 1
      %s881 = smul.addr %s880, 4
      %s882 = scalar_lea.vmem %s18, %s881
      %p883 = pneg %p493
      %p884 = pneg %p490
      %p885 = scmp.lt.s32.totalorder %s34, 1
      %s886 = scalar_select %p885, %s34, 1
      %s887 = smul.addr %s886, 150
      %s888 = smul.addr %s887, 4
      %s889 = scalar_lea.vmem %s19, %s888
      %p890 = pneg %p519
      %p891 = pneg %p516
      %p892 = scmp.lt.s32.totalorder %s34, 1
      %s893 = scalar_select %p892, %s34, 1
      %s894 = smul.addr %s893, 3
      %s895 = scalar_lea.vmem %s20, %s894
      %p896 = pneg %p545
      %p897 = pneg %p542
      %p898 = scmp.lt.s32.totalorder %s34, 1
      %s899 = scalar_select %p898, %s34, 1
      %s900 = smul.addr %s899, 38
      %s901 = smul.addr %s900, 4
      %s902 = scalar_lea.vmem %s21, %s901
      %p903 = pneg %p571
      %p904 = pneg %p568
      %p905 = scmp.lt.s32.totalorder %s34, 1
      %s906 = scalar_select %p905, %s34, 1
      %s907 = scalar_lea.vmem %s22, %s906
      %p908 = pneg %p597
      %p909 = pneg %p594
      %p910 = pneg %p623
      %p911 = pneg %p620
      %p912 = scmp.lt.s32.totalorder %s34, 1
      %s913 = scalar_select %p912, %s34, 1
      %s914 = smul.addr %s913, 2
      %s915 = scalar_lea.vmem %s23, %s914
      %p916 = scmp.lt.s32.totalorder %s34, 1
      %s917 = scalar_select %p916, %s34, 1
      %s918 = smul.addr %s917, 27
      %s919 = smul.addr %s918, 4
      %s920 = scalar_lea.vmem %s2, %s919
      %p921 = scmp.lt.s32.totalorder %s34, 1
      %s922 = scalar_select %p921, %s34, 1
      %s923 = smul.addr %s922, 396
      %s924 = smul.addr %s923, 4
      %s925 = scalar_lea.vmem %s3, %s924
      %p926 = scmp.lt.s32.totalorder %s34, 1
      %s927 = scalar_select %p926, %s34, 1
      %s928 = smul.addr %s927, 60
      %s929 = smul.addr %s928, 4
      %s930 = scalar_lea.vmem %s4, %s929
      %p931 = scmp.lt.s32.totalorder %s34, 1
      %s932 = scalar_select %p931, %s34, 1
      %s933 = smul.addr %s932, 48
      %s934 = smul.addr %s933, 4
      %s935 = scalar_lea.vmem %s5, %s934
      %p936 = scmp.lt.s32.totalorder %s34, 1
      %s937 = scalar_select %p936, %s34, 1
      %s938 = smul.addr %s937, 36
      %s939 = smul.addr %s938, 4
      %s940 = scalar_lea.vmem %s6, %s939
      %p941 = scmp.lt.s32.totalorder %s34, 1
      %s942 = scalar_select %p941, %s34, 1
      %s943 = smul.addr %s942, 24
      %s944 = smul.addr %s943, 4
      %s945 = scalar_lea.vmem %s7, %s944
      %p946 = scmp.lt.s32.totalorder %s34, 1
      %s947 = scalar_select %p946, %s34, 1
      %s948 = smul.addr %s947, 3
      %s949 = scalar_lea.vmem %s8, %s948
      %p950 = scmp.lt.s32.totalorder %s34, 1
      %s951 = scalar_select %p950, %s34, 1
      %s952 = smul.addr %s951, 3
      %s953 = scalar_lea.vmem %s9, %s952
      %p954 = scmp.lt.s32.totalorder %s34, 1
      %s955 = scalar_select %p954, %s34, 1
      %s956 = scalar_lea.vmem %s10, %s955
      %p957 = scmp.lt.s32.totalorder %s34, 1
      %s958 = scalar_select %p957, %s34, 1
      %s959 = scalar_lea.vmem %s11, %s958
      %p960 = scmp.lt.s32.totalorder %s34, 1
      %s961 = scalar_select %p960, %s34, 1
      %s962 = scalar_lea.vmem %s12, %s961
      %p963 = scmp.lt.s32.totalorder %s34, 1
      %s964 = scalar_select %p963, %s34, 1
      %s965 = smul.addr %s964, 12
      %s966 = smul.addr %s965, 4
      %s967 = scalar_lea.vmem %s17, %s966
      %p968 = scmp.lt.s32.totalorder %s34, 1
      %s969 = scalar_select %p968, %s34, 1
      %s970 = smul.addr %s969, 4
      %s971 = scalar_lea.vmem %s18, %s970
      %p972 = scmp.lt.s32.totalorder %s34, 1
      %s973 = scalar_select %p972, %s34, 1
      %s974 = smul.addr %s973, 150
      %s975 = smul.addr %s974, 4
      %s976 = scalar_lea.vmem %s19, %s975
      %p977 = scmp.lt.s32.totalorder %s34, 1
      %s978 = scalar_select %p977, %s34, 1
      %s979 = smul.addr %s978, 3
      %s980 = scalar_lea.vmem %s20, %s979
      %p981 = scmp.lt.s32.totalorder %s34, 1
      %s982 = scalar_select %p981, %s34, 1
      %s983 = smul.addr %s982, 38
      %s984 = smul.addr %s983, 4
      %s985 = scalar_lea.vmem %s21, %s984
      %p986 = scmp.lt.s32.totalorder %s34, 1
      %s987 = scalar_select %p986, %s34, 1
      %s988 = scalar_lea.vmem %s22, %s987
      %p989 = scmp.lt.s32.totalorder %s34, 1
      %s990 = scalar_select %p989, %s34, 1
      %s991 = smul.addr %s990, 2
      %s992 = scalar_lea.vmem %s23, %s991
      %v994 = vld [vmem:[%s0] sm:$0xff]
      %v995 = vld [vmem:[%s0 + $0x8] sm:$0xff]
      %v996 = vld [vmem:[%s0 + $0x10] sm:$0xff]
      %v997 = vpack.c.bf16 %v995, %v994
      %v998 = vpack.c.bf16 %v996, %v996
      %v999 = vld [vmem:[%s920] sm:$0xff]
      %v1000 = vld [vmem:[%s920 + $0x8] sm:$0xf]
      %v1001 = vld [vmem:[%s920 + $0xc] sm:$0xff]
      %v1002 = vld [vmem:[%s920 + $0x14] sm:$0xf]
      %v1003 = vld [vmem:[%s920 + $0x18] sm:$0xff]
      %v1004 = vld [vmem:[%s920 + $0x20] sm:$0xf]
      %s1005 = scalar_lea.vmem %s920, 36
      %v1006 = vld [vmem:[%s1005] sm:$0xff]
      %v1007 = vld [vmem:[%s1005 + $0x8] sm:$0xf]
      %v1008 = vld [vmem:[%s1005 + $0xc] sm:$0xff]
      %v1009 = vld [vmem:[%s1005 + $0x14] sm:$0xf]
      %v1010 = vld [vmem:[%s1005 + $0x18] sm:$0xff]
      %v1011 = vld [vmem:[%s1005 + $0x20] sm:$0xf]
      %vm1012 = vsmask.f32 7424
      %v1014 = vshrl.u32 %v997, 16
      %v1016 = vshll.u32 %v997, 16
      %v1018 = vrot.slane %v1016, 1
      %v1019 = vor.u32 %v1014, %v1018
      %v1021 = vshll.u32 %v998, 16
      %v1023 = vrot.slane %v1021, 1
      %v1024 = vsel %vm1012, %v1019, %v1023
      %v1025 = vshrl.u32 %v998, 16
      %v1027 = vor.u32 %v1025, %v1023
      %v1034 = vunpack.c.l.b16 %v1006
      %v1035 = vunpack.c.h.b16 %v1006
      %v1036 = vunpack.c.l.b16 %v1007
      %v1037 = vunpack.c.l.b16 %v1008
      %v1038 = vunpack.c.h.b16 %v1008
      %v1039 = vunpack.c.l.b16 %v1009
      %v1040 = vunpack.c.l.b16 %v1010
      %v1041 = vunpack.c.h.b16 %v1010
      %v1042 = vunpack.c.l.b16 %v1011
      %v1043 = vpack.c.b16 %v1037, %v1034
      %v1044 = vpack.c.b16 %v1038, %v1035
      %v1045 = vpack.c.b16 %v1039, %v1036
      %v1046 = vpack.c.b16 %v1040, %v1040
      %v1047 = vpack.c.b16 %v1041, %v1041
      %v1048 = vpack.c.b16 %v1042, %v1042
      %vm1052 = vcmask 195584
      %v1054 = vsel %vm1052, %v1024, 0
      %v1057 = vsel %vm1052, %v1027, 0
      %vm1059 = vcmask 1043456
      %v1061 = vsel %vm1059, %v1046, 0
      %v1064 = vsel %vm1059, %v1047, 0
      %v1067 = vsel %vm1059, %v1048, 0
      %1069 = vmatpush.bf16.msra.mxu0 0
      %1070 = vmatpush.bf16.msra.mxu0 0
      %1071 = vmatpush.bf16.msra.mxu0 0
      %1072 = vmatpush.bf16.msra.mxu0 0
      %1073 = vmatpush.bf16.msra.mxu0 0
      %1074 = vmatpush.bf16.msra.mxu0 0
      %1075 = vmatpush.bf16.msra.mxu0 %v1061
      %1076 = vmatpush.bf16.msra.mxu0 %v1043
      %1077 = vmatmul.bf16.gmra.mxu0 %v1054
      %v1078 = vpop.f32.mrf.mxu0
      %v1079 = vadd.f32 0.0, %v1078
      %v1080 = vpop.f32.mrf.mxu0
      %v1081 = vadd.f32 0.0, %v1080
      %1082 = vmatmul.bf16.gmra.mxu0 %v1057
      %v1083 = vpop.f32.mrf.mxu0
      %v1084 = vadd.f32 0.0, %v1083
      %v1085 = vpop.f32.mrf.mxu0
      %1086 = vdwg.mxu0
      %1087 = vmatpush.bf16.msra.mxu0 0
      %1088 = vmatpush.bf16.msra.mxu0 0
      %1089 = vmatpush.bf16.msra.mxu0 0
      %1090 = vmatpush.bf16.msra.mxu0 0
      %1091 = vmatpush.bf16.msra.mxu0 0
      %1092 = vmatpush.bf16.msra.mxu0 0
      %1093 = vmatpush.bf16.msra.mxu0 %v1064
      %1094 = vmatpush.bf16.msra.mxu0 %v1044
      %1095 = vmatmul.bf16.gmra.mxu0 %v1054
      %v1096 = vpop.f32.mrf.mxu0
      %v1097 = vadd.f32 0.0, %v1096
      %v1098 = vpop.f32.mrf.mxu0
      %v1099 = vadd.f32 0.0, %v1098
      %1100 = vmatmul.bf16.gmra.mxu0 %v1057
      %v1101 = vpop.f32.mrf.mxu0
      %v1102 = vadd.f32 0.0, %v1101
      %v1103 = vpop.f32.mrf.mxu0
      %1104 = vdwg.mxu0
      %1105 = vmatpush.bf16.msra.mxu0 0
      %1106 = vmatpush.bf16.msra.mxu0 0
      %1107 = vmatpush.bf16.msra.mxu0 0
      %1108 = vmatpush.bf16.msra.mxu0 0
      %1109 = vmatpush.bf16.msra.mxu0 0
      %1110 = vmatpush.bf16.msra.mxu0 0
      %1111 = vmatpush.bf16.msra.mxu0 %v1067
      %1112 = vmatpush.bf16.msra.mxu0 %v1045
      %1113 = vmatmul.bf16.gmra.mxu0 %v1054
      %v1114 = vpop.f32.mrf.mxu0
      %v1115 = vadd.f32 0.0, %v1114
      %v1116 = vpop.f32.mrf.mxu0
      %v1117 = vadd.f32 0.0, %v1116
      %1118 = vmatmul.bf16.gmra.mxu0 %v1057
      %v1119 = vpop.f32.mrf.mxu0
      %v1120 = vadd.f32 0.0, %v1119
      %v1121 = vpop.f32.mrf.mxu0
      %1122 = vdwg.mxu0
      %v1129 = vunpack.c.l.b16 %v999
      %v1130 = vunpack.c.h.b16 %v999
      %v1131 = vunpack.c.l.b16 %v1000
      %v1132 = vunpack.c.l.b16 %v1001
      %v1133 = vunpack.c.h.b16 %v1001
      %v1134 = vunpack.c.l.b16 %v1002
      %v1135 = vunpack.c.l.b16 %v1003
      %v1136 = vunpack.c.h.b16 %v1003
      %v1137 = vunpack.c.l.b16 %v1004
      %v1138 = vpack.c.b16 %v1132, %v1129
      %v1139 = vpack.c.b16 %v1133, %v1130
      %v1140 = vpack.c.b16 %v1134, %v1131
      %v1141 = vpack.c.b16 %v1135, %v1135
      %v1142 = vpack.c.b16 %v1136, %v1136
      %v1143 = vpack.c.b16 %v1137, %v1137
      %v1147 = vsel %vm1052, %v997, 0
      %v1149 = vsel %vm1052, %v998, 0
      %v1152 = vsel %vm1059, %v1141, 0
      %v1155 = vsel %vm1059, %v1142, 0
      %v1158 = vsel %vm1059, %v1143, 0
      %1160 = vmatpush.bf16.msra.mxu0 0
      %1161 = vmatpush.bf16.msra.mxu0 0
      %1162 = vmatpush.bf16.msra.mxu0 0
      %1163 = vmatpush.bf16.msra.mxu0 0
      %1164 = vmatpush.bf16.msra.mxu0 0
      %1165 = vmatpush.bf16.msra.mxu0 0
      %1166 = vmatpush.bf16.msra.mxu0 %v1152
      %1167 = vmatpush.bf16.msra.mxu0 %v1138
      %1168 = vmatmul.bf16.gmra.mxu0 %v1147
      %v1169 = vpop.f32.mrf.mxu0
      %v1170 = vadd.f32 %v1079, %v1169
      %v1171 = vpop.f32.mrf.mxu0
      %v1172 = vadd.f32 %v1081, %v1171
      %1173 = vmatmul.bf16.gmra.mxu0 %v1149
      %v1174 = vpop.f32.mrf.mxu0
      %v1175 = vadd.f32 %v1084, %v1174
      %v1176 = vpop.f32.mrf.mxu0
      %1177 = vdwg.mxu0
      %1178 = vmatpush.bf16.msra.mxu0 0
      %1179 = vmatpush.bf16.msra.mxu0 0
      %1180 = vmatpush.bf16.msra.mxu0 0
      %1181 = vmatpush.bf16.msra.mxu0 0
      %1182 = vmatpush.bf16.msra.mxu0 0
      %1183 = vmatpush.bf16.msra.mxu0 0
      %1184 = vmatpush.bf16.msra.mxu0 %v1155
      %1185 = vmatpush.bf16.msra.mxu0 %v1139
      %1186 = vmatmul.bf16.gmra.mxu0 %v1147
      %v1187 = vpop.f32.mrf.mxu0
      %v1188 = vadd.f32 %v1097, %v1187
      %v1189 = vpop.f32.mrf.mxu0
      %v1190 = vadd.f32 %v1099, %v1189
      %1191 = vmatmul.bf16.gmra.mxu0 %v1149
      %v1192 = vpop.f32.mrf.mxu0
      %v1193 = vadd.f32 %v1102, %v1192
      %v1194 = vpop.f32.mrf.mxu0
      %1195 = vdwg.mxu0
      %1196 = vmatpush.bf16.msra.mxu0 0
      %1197 = vmatpush.bf16.msra.mxu0 0
      %1198 = vmatpush.bf16.msra.mxu0 0
      %1199 = vmatpush.bf16.msra.mxu0 0
      %1200 = vmatpush.bf16.msra.mxu0 0
      %1201 = vmatpush.bf16.msra.mxu0 0
      %1202 = vmatpush.bf16.msra.mxu0 %v1158
      %1203 = vmatpush.bf16.msra.mxu0 %v1140
      %1204 = vmatmul.bf16.gmra.mxu0 %v1147
      %v1205 = vpop.f32.mrf.mxu0
      %v1206 = vadd.f32 %v1115, %v1205
      %v1207 = vpop.f32.mrf.mxu0
      %v1208 = vadd.f32 %v1117, %v1207
      %1209 = vmatmul.bf16.gmra.mxu0 %v1149
      %v1210 = vpop.f32.mrf.mxu0
      %v1211 = vadd.f32 %v1120, %v1210
      %v1212 = vpop.f32.mrf.mxu0
      %1213 = vdwg.mxu0
      %s1214 = scalar_lea.vmem %s920, 72
      %v1215 = vld [vmem:[%s1214] sm:$0xff]
      %v1216 = vld [vmem:[%s1214 + $0x8] sm:$0xf]
      %v1217 = vld [vmem:[%s1214 + $0xc] sm:$0xff]
      %v1218 = vld [vmem:[%s1214 + $0x14] sm:$0xf]
      %v1219 = vld [vmem:[%s1214 + $0x18] sm:$0xff]
      %v1220 = vld [vmem:[%s1214 + $0x20] sm:$0xf]
      %vm1223 = vcmask 1046528
      %v1224 = vrot.slane %v997, 1
      %v1225 = vrot.slane %v998, 1
      %v1226 = vsel %vm1223, %v1224, %v1225
      %v1233 = vunpack.c.l.b16 %v1215
      %v1234 = vunpack.c.h.b16 %v1215
      %v1235 = vunpack.c.l.b16 %v1216
      %v1236 = vunpack.c.l.b16 %v1217
      %v1237 = vunpack.c.h.b16 %v1217
      %v1238 = vunpack.c.l.b16 %v1218
      %v1239 = vunpack.c.l.b16 %v1219
      %v1240 = vunpack.c.h.b16 %v1219
      %v1241 = vunpack.c.l.b16 %v1220
      %v1242 = vpack.c.b16 %v1236, %v1233
      %v1243 = vpack.c.b16 %v1237, %v1234
      %v1244 = vpack.c.b16 %v1238, %v1235
      %v1245 = vpack.c.b16 %v1239, %v1239
      %v1246 = vpack.c.b16 %v1240, %v1240
      %v1247 = vpack.c.b16 %v1241, %v1241
      %v1252 = vsel %vm1052, %v1226, 0
      %v1255 = vsel %vm1052, %v1225, 0
      %v1258 = vsel %vm1059, %v1245, 0
      %v1261 = vsel %vm1059, %v1246, 0
      %v1264 = vsel %vm1059, %v1247, 0
      %1266 = vmatpush.bf16.msra.mxu0 0
      %1267 = vmatpush.bf16.msra.mxu0 0
      %1268 = vmatpush.bf16.msra.mxu0 0
      %1269 = vmatpush.bf16.msra.mxu0 0
      %1270 = vmatpush.bf16.msra.mxu0 0
      %1271 = vmatpush.bf16.msra.mxu0 0
      %1272 = vmatpush.bf16.msra.mxu0 %v1258
      %1273 = vmatpush.bf16.msra.mxu0 %v1242
      %1274 = vmatmul.bf16.gmra.mxu0 %v1252
      %v1275 = vpop.f32.mrf.mxu0
      %v1276 = vadd.f32 0.0, %v1275
      %v1277 = vpop.f32.mrf.mxu0
      %v1278 = vadd.f32 0.0, %v1277
      %1279 = vmatmul.bf16.gmra.mxu0 %v1255
      %v1280 = vpop.f32.mrf.mxu0
      %v1281 = vadd.f32 0.0, %v1280
      %v1282 = vpop.f32.mrf.mxu0
      %1283 = vdwg.mxu0
      %1284 = vmatpush.bf16.msra.mxu0 0
      %1285 = vmatpush.bf16.msra.mxu0 0
      %1286 = vmatpush.bf16.msra.mxu0 0
      %1287 = vmatpush.bf16.msra.mxu0 0
      %1288 = vmatpush.bf16.msra.mxu0 0
      %1289 = vmatpush.bf16.msra.mxu0 0
      %1290 = vmatpush.bf16.msra.mxu0 %v1261
      %1291 = vmatpush.bf16.msra.mxu0 %v1243
      %1292 = vmatmul.bf16.gmra.mxu0 %v1252
      %v1293 = vpop.f32.mrf.mxu0
      %v1294 = vadd.f32 0.0, %v1293
      %v1295 = vpop.f32.mrf.mxu0
      %v1296 = vadd.f32 0.0, %v1295
      %1297 = vmatmul.bf16.gmra.mxu0 %v1255
      %v1298 = vpop.f32.mrf.mxu0
      %v1299 = vadd.f32 0.0, %v1298
      %v1300 = vpop.f32.mrf.mxu0
      %1301 = vdwg.mxu0
      %1302 = vmatpush.bf16.msra.mxu0 0
      %1303 = vmatpush.bf16.msra.mxu0 0
      %1304 = vmatpush.bf16.msra.mxu0 0
      %1305 = vmatpush.bf16.msra.mxu0 0
      %1306 = vmatpush.bf16.msra.mxu0 0
      %1307 = vmatpush.bf16.msra.mxu0 0
      %1308 = vmatpush.bf16.msra.mxu0 %v1264
      %1309 = vmatpush.bf16.msra.mxu0 %v1244
      %1310 = vmatmul.bf16.gmra.mxu0 %v1252
      %v1311 = vpop.f32.mrf.mxu0
      %v1312 = vadd.f32 0.0, %v1311
      %v1313 = vpop.f32.mrf.mxu0
      %v1314 = vadd.f32 0.0, %v1313
      %1315 = vmatmul.bf16.gmra.mxu0 %v1255
      %v1316 = vpop.f32.mrf.mxu0
      %v1317 = vadd.f32 0.0, %v1316
      %v1318 = vpop.f32.mrf.mxu0
      %1319 = vdwg.mxu0
      %v1320 = vadd.f32 %v1170, %v1276
      %v1321 = vadd.f32 %v1188, %v1294
      %v1322 = vadd.f32 %v1206, %v1312
      %v1323 = vadd.f32 %v1172, %v1278
      %v1324 = vadd.f32 %v1190, %v1296
      %v1325 = vadd.f32 %v1208, %v1314
      %v1326 = vadd.f32 %v1175, %v1281
      %v1327 = vadd.f32 %v1193, %v1299
      %v1328 = vadd.f32 %v1211, %v1317
      %v1329 = vld [vmem:[%s949] sm:$0x7]
      %v1331 = vperm.slane %v1329, 0
      %v1332 = vperm.slane %v1329, 1
      %v1333 = vperm.slane %v1329, 2
      %v1337 = vadd.f32 %v1320, %v1331
      %v1338 = vadd.f32 %v1321, %v1332
      %v1339 = vadd.f32 %v1322, %v1333
      %v1340 = vadd.f32 %v1323, %v1331
      %v1341 = vadd.f32 %v1324, %v1332
      %v1342 = vadd.f32 %v1325, %v1333
      %v1343 = vadd.f32 %v1326, %v1331
      %v1344 = vadd.f32 %v1327, %v1332
      %v1345 = vadd.f32 %v1328, %v1333
      %v1346 = vmax.f32 %v1337, 0.0
      %v1347 = vmax.f32 %v1338, 0.0
      %v1348 = vmax.f32 %v1339, 0.0
      %v1349 = vmax.f32 %v1340, 0.0
      %v1350 = vmax.f32 %v1341, 0.0
      %v1351 = vmax.f32 %v1342, 0.0
      %v1352 = vmax.f32 %v1343, 0.0
      %v1353 = vmax.f32 %v1344, 0.0
      %v1354 = vmax.f32 %v1345, 0.0
      %v1355 = vpack.c.bf16 %v1349, %v1346
      %v1356 = vpack.c.bf16 %v1350, %v1347
      %v1357 = vpack.c.bf16 %v1351, %v1348
      %v1358 = vpack.c.bf16 %v1352, %v1352
      %v1359 = vpack.c.bf16 %v1353, %v1353
      %v1360 = vpack.c.bf16 %v1354, %v1354
      %v1361 = vld [vmem:[%s925] sm:$0xff]
      %v1362 = vld [vmem:[%s925 + $0x8] sm:$0xf]
      %v1363 = vld [vmem:[%s925 + $0xc] sm:$0xff]
      %v1364 = vld [vmem:[%s925 + $0x14] sm:$0xf]
      %v1365 = vld [vmem:[%s925 + $0x18] sm:$0xff]
      %v1366 = vld [vmem:[%s925 + $0x20] sm:$0xf]
      %v1367 = vld [vmem:[%s925 + $0x24] sm:$0xff]
      %v1368 = vld [vmem:[%s925 + $0x2c] sm:$0xf]
      %v1369 = vld [vmem:[%s925 + $0x30] sm:$0xff]
      %v1370 = vld [vmem:[%s925 + $0x38] sm:$0xf]
      %v1371 = vld [vmem:[%s925 + $0x3c] sm:$0xff]
      %v1372 = vld [vmem:[%s925 + $0x44] sm:$0xf]
      %v1373 = vld [vmem:[%s925 + $0x48] sm:$0xff]
      %v1374 = vld [vmem:[%s925 + $0x50] sm:$0xf]
      %v1375 = vld [vmem:[%s925 + $0x54] sm:$0xff]
      %v1376 = vld [vmem:[%s925 + $0x5c] sm:$0xf]
      %v1377 = vld [vmem:[%s925 + $0x60] sm:$0xff]
      %v1378 = vld [vmem:[%s925 + $0x68] sm:$0xf]
      %v1379 = vld [vmem:[%s925 + $0x6c] sm:$0xff]
      %v1380 = vld [vmem:[%s925 + $0x74] sm:$0xf]
      %v1381 = vld [vmem:[%s925 + $0x78] sm:$0xff]
      %v1382 = vld [vmem:[%s925 + $0x80] sm:$0xf]
      %v1383 = vld [vmem:[%s925 + $0x84] sm:$0xff]
      %v1384 = vld [vmem:[%s925 + $0x8c] sm:$0xf]
      %v1385 = vld [vmem:[%s925 + $0x90] sm:$0xff]
      %v1386 = vld [vmem:[%s925 + $0x98] sm:$0xf]
      %v1387 = vld [vmem:[%s925 + $0x9c] sm:$0xff]
      %v1388 = vld [vmem:[%s925 + $0xa4] sm:$0xf]
      %v1389 = vld [vmem:[%s925 + $0xa8] sm:$0xff]
      %v1390 = vld [vmem:[%s925 + $0xb0] sm:$0xf]
      %v1391 = vld [vmem:[%s925 + $0xb4] sm:$0xff]
      %v1392 = vld [vmem:[%s925 + $0xbc] sm:$0xf]
      %v1393 = vld [vmem:[%s925 + $0xc0] sm:$0xff]
      %v1394 = vld [vmem:[%s925 + $0xc8] sm:$0xf]
      %v1395 = vld [vmem:[%s925 + $0xcc] sm:$0xff]
      %v1396 = vld [vmem:[%s925 + $0xd4] sm:$0xf]
      %v1397 = vld [vmem:[%s925 + $0xd8] sm:$0xff]
      %v1398 = vld [vmem:[%s925 + $0xe0] sm:$0xf]
      %v1399 = vld [vmem:[%s925 + $0xe4] sm:$0xff]
      %v1400 = vld [vmem:[%s925 + $0xec] sm:$0xf]
      %v1401 = vld [vmem:[%s925 + $0xf0] sm:$0xff]
      %v1402 = vld [vmem:[%s925 + $0xf8] sm:$0xf]
      %v1403 = vld [vmem:[%s925 + $0xfc] sm:$0xff]
      %v1404 = vld [vmem:[%s925 + $0x104] sm:$0xf]
      %v1405 = vld [vmem:[%s925 + $0x108] sm:$0xff]
      %v1406 = vld [vmem:[%s925 + $0x110] sm:$0xf]
      %v1407 = vld [vmem:[%s925 + $0x114] sm:$0xff]
      %v1408 = vld [vmem:[%s925 + $0x11c] sm:$0xf]
      %v1409 = vld [vmem:[%s925 + $0x120] sm:$0xff]
      %v1410 = vld [vmem:[%s925 + $0x128] sm:$0xf]
      %v1411 = vld [vmem:[%s925 + $0x12c] sm:$0xff]
      %v1412 = vld [vmem:[%s925 + $0x134] sm:$0xf]
      %v1413 = vld [vmem:[%s925 + $0x138] sm:$0xff]
      %v1414 = vld [vmem:[%s925 + $0x140] sm:$0xf]
      %v1415 = vld [vmem:[%s925 + $0x144] sm:$0xff]
      %v1416 = vld [vmem:[%s925 + $0x14c] sm:$0xf]
      %v1417 = vld [vmem:[%s925 + $0x150] sm:$0xff]
      %v1418 = vld [vmem:[%s925 + $0x158] sm:$0xf]
      %v1419 = vld [vmem:[%s925 + $0x15c] sm:$0xff]
      %v1420 = vld [vmem:[%s925 + $0x164] sm:$0xf]
      %v1421 = vld [vmem:[%s925 + $0x168] sm:$0xff]
      %v1422 = vld [vmem:[%s925 + $0x170] sm:$0xf]
      %v1423 = vld [vmem:[%s925 + $0x174] sm:$0xff]
      %v1424 = vld [vmem:[%s925 + $0x17c] sm:$0xf]
      %v1425 = vld [vmem:[%s925 + $0x180] sm:$0xff]
      %v1426 = vld [vmem:[%s925 + $0x188] sm:$0xf]
      %v1427 = vld [vmem:[%s925 + $0x18c] sm:$0xff]
      %v1428 = vld [vmem:[%s925 + $0x194] sm:$0xf]
      %v1429 = vld [vmem:[%s925 + $0x198] sm:$0xff]
      %v1430 = vld [vmem:[%s925 + $0x1a0] sm:$0xf]
      %v1431 = vld [vmem:[%s925 + $0x1a4] sm:$0xff]
      %v1432 = vld [vmem:[%s925 + $0x1ac] sm:$0xf]
      %v1433 = vld [vmem:[%s925 + $0x1b0] sm:$0xff]
      %v1434 = vld [vmem:[%s925 + $0x1b8] sm:$0xf]
      %v1435 = vld [vmem:[%s925 + $0x1bc] sm:$0xff]
      %v1436 = vld [vmem:[%s925 + $0x1c4] sm:$0xf]
      %v1437 = vld [vmem:[%s925 + $0x1c8] sm:$0xff]
      %v1438 = vld [vmem:[%s925 + $0x1d0] sm:$0xf]
      %v1439 = vld [vmem:[%s925 + $0x1d4] sm:$0xff]
      %v1440 = vld [vmem:[%s925 + $0x1dc] sm:$0xf]
      %v1441 = vld [vmem:[%s925 + $0x1e0] sm:$0xff]
      %v1442 = vld [vmem:[%s925 + $0x1e8] sm:$0xf]
      %v1443 = vld [vmem:[%s925 + $0x1ec] sm:$0xff]
      %v1444 = vld [vmem:[%s925 + $0x1f4] sm:$0xf]
      %v1445 = vld [vmem:[%s925 + $0x1f8] sm:$0xff]
      %v1446 = vld [vmem:[%s925 + $0x200] sm:$0xf]
      %v1447 = vld [vmem:[%s925 + $0x204] sm:$0xff]
      %v1448 = vld [vmem:[%s925 + $0x20c] sm:$0xf]
      %s1449 = scalar_lea.vmem %s925, 528
      %v1450 = vld [vmem:[%s1449] sm:$0xff]
      %v1451 = vld [vmem:[%s1449 + $0x8] sm:$0xf]
      %v1452 = vld [vmem:[%s1449 + $0xc] sm:$0xff]
      %v1453 = vld [vmem:[%s1449 + $0x14] sm:$0xf]
      %v1454 = vld [vmem:[%s1449 + $0x18] sm:$0xff]
      %v1455 = vld [vmem:[%s1449 + $0x20] sm:$0xf]
      %v1456 = vld [vmem:[%s1449 + $0x24] sm:$0xff]
      %v1457 = vld [vmem:[%s1449 + $0x2c] sm:$0xf]
      %v1458 = vld [vmem:[%s1449 + $0x30] sm:$0xff]
      %v1459 = vld [vmem:[%s1449 + $0x38] sm:$0xf]
      %v1460 = vld [vmem:[%s1449 + $0x3c] sm:$0xff]
      %v1461 = vld [vmem:[%s1449 + $0x44] sm:$0xf]
      %v1462 = vld [vmem:[%s1449 + $0x48] sm:$0xff]
      %v1463 = vld [vmem:[%s1449 + $0x50] sm:$0xf]
      %v1464 = vld [vmem:[%s1449 + $0x54] sm:$0xff]
      %v1465 = vld [vmem:[%s1449 + $0x5c] sm:$0xf]
      %v1466 = vld [vmem:[%s1449 + $0x60] sm:$0xff]
      %v1467 = vld [vmem:[%s1449 + $0x68] sm:$0xf]
      %v1468 = vld [vmem:[%s1449 + $0x6c] sm:$0xff]
      %v1469 = vld [vmem:[%s1449 + $0x74] sm:$0xf]
      %v1470 = vld [vmem:[%s1449 + $0x78] sm:$0xff]
      %v1471 = vld [vmem:[%s1449 + $0x80] sm:$0xf]
      %v1472 = vld [vmem:[%s1449 + $0x84] sm:$0xff]
      %v1473 = vld [vmem:[%s1449 + $0x8c] sm:$0xf]
      %v1474 = vld [vmem:[%s1449 + $0x90] sm:$0xff]
      %v1475 = vld [vmem:[%s1449 + $0x98] sm:$0xf]
      %v1476 = vld [vmem:[%s1449 + $0x9c] sm:$0xff]
      %v1477 = vld [vmem:[%s1449 + $0xa4] sm:$0xf]
      %v1478 = vld [vmem:[%s1449 + $0xa8] sm:$0xff]
      %v1479 = vld [vmem:[%s1449 + $0xb0] sm:$0xf]
      %v1480 = vld [vmem:[%s1449 + $0xb4] sm:$0xff]
      %v1481 = vld [vmem:[%s1449 + $0xbc] sm:$0xf]
      %v1482 = vld [vmem:[%s1449 + $0xc0] sm:$0xff]
      %v1483 = vld [vmem:[%s1449 + $0xc8] sm:$0xf]
      %v1484 = vld [vmem:[%s1449 + $0xcc] sm:$0xff]
      %v1485 = vld [vmem:[%s1449 + $0xd4] sm:$0xf]
      %v1486 = vld [vmem:[%s1449 + $0xd8] sm:$0xff]
      %v1487 = vld [vmem:[%s1449 + $0xe0] sm:$0xf]
      %v1488 = vld [vmem:[%s1449 + $0xe4] sm:$0xff]
      %v1489 = vld [vmem:[%s1449 + $0xec] sm:$0xf]
      %v1490 = vld [vmem:[%s1449 + $0xf0] sm:$0xff]
      %v1491 = vld [vmem:[%s1449 + $0xf8] sm:$0xf]
      %v1492 = vld [vmem:[%s1449 + $0xfc] sm:$0xff]
      %v1493 = vld [vmem:[%s1449 + $0x104] sm:$0xf]
      %v1494 = vld [vmem:[%s1449 + $0x108] sm:$0xff]
      %v1495 = vld [vmem:[%s1449 + $0x110] sm:$0xf]
      %v1496 = vld [vmem:[%s1449 + $0x114] sm:$0xff]
      %v1497 = vld [vmem:[%s1449 + $0x11c] sm:$0xf]
      %v1498 = vld [vmem:[%s1449 + $0x120] sm:$0xff]
      %v1499 = vld [vmem:[%s1449 + $0x128] sm:$0xf]
      %v1500 = vld [vmem:[%s1449 + $0x12c] sm:$0xff]
      %v1501 = vld [vmem:[%s1449 + $0x134] sm:$0xf]
      %v1502 = vld [vmem:[%s1449 + $0x138] sm:$0xff]
      %v1503 = vld [vmem:[%s1449 + $0x140] sm:$0xf]
      %v1504 = vld [vmem:[%s1449 + $0x144] sm:$0xff]
      %v1505 = vld [vmem:[%s1449 + $0x14c] sm:$0xf]
      %v1506 = vld [vmem:[%s1449 + $0x150] sm:$0xff]
      %v1507 = vld [vmem:[%s1449 + $0x158] sm:$0xf]
      %v1508 = vld [vmem:[%s1449 + $0x15c] sm:$0xff]
      %v1509 = vld [vmem:[%s1449 + $0x164] sm:$0xf]
      %v1510 = vld [vmem:[%s1449 + $0x168] sm:$0xff]
      %v1511 = vld [vmem:[%s1449 + $0x170] sm:$0xf]
      %v1512 = vld [vmem:[%s1449 + $0x174] sm:$0xff]
      %v1513 = vld [vmem:[%s1449 + $0x17c] sm:$0xf]
      %v1514 = vld [vmem:[%s1449 + $0x180] sm:$0xff]
      %v1515 = vld [vmem:[%s1449 + $0x188] sm:$0xf]
      %v1516 = vld [vmem:[%s1449 + $0x18c] sm:$0xff]
      %v1517 = vld [vmem:[%s1449 + $0x194] sm:$0xf]
      %v1518 = vld [vmem:[%s1449 + $0x198] sm:$0xff]
      %v1519 = vld [vmem:[%s1449 + $0x1a0] sm:$0xf]
      %v1520 = vld [vmem:[%s1449 + $0x1a4] sm:$0xff]
      %v1521 = vld [vmem:[%s1449 + $0x1ac] sm:$0xf]
      %v1522 = vld [vmem:[%s1449 + $0x1b0] sm:$0xff]
      %v1523 = vld [vmem:[%s1449 + $0x1b8] sm:$0xf]
      %v1524 = vld [vmem:[%s1449 + $0x1bc] sm:$0xff]
      %v1525 = vld [vmem:[%s1449 + $0x1c4] sm:$0xf]
      %v1526 = vld [vmem:[%s1449 + $0x1c8] sm:$0xff]
      %v1527 = vld [vmem:[%s1449 + $0x1d0] sm:$0xf]
      %v1528 = vld [vmem:[%s1449 + $0x1d4] sm:$0xff]
      %v1529 = vld [vmem:[%s1449 + $0x1dc] sm:$0xf]
      %v1530 = vld [vmem:[%s1449 + $0x1e0] sm:$0xff]
      %v1531 = vld [vmem:[%s1449 + $0x1e8] sm:$0xf]
      %v1532 = vld [vmem:[%s1449 + $0x1ec] sm:$0xff]
      %v1533 = vld [vmem:[%s1449 + $0x1f4] sm:$0xf]
      %v1534 = vld [vmem:[%s1449 + $0x1f8] sm:$0xff]
      %v1535 = vld [vmem:[%s1449 + $0x200] sm:$0xf]
      %v1536 = vld [vmem:[%s1449 + $0x204] sm:$0xff]
      %v1537 = vld [vmem:[%s1449 + $0x20c] sm:$0xf]
      %v1539 = vshrl.u32 %v1355, 16
      %v1541 = vshll.u32 %v1355, 16
      %v1543 = vrot.slane %v1541, 1
      %v1544 = vor.u32 %v1539, %v1543
      %v1546 = vshll.u32 %v1358, 16
      %v1548 = vrot.slane %v1546, 1
      %v1549 = vsel %vm1012, %v1544, %v1548
      %v1551 = vshrl.u32 %v1356, 16
      %v1553 = vshll.u32 %v1356, 16
      %v1555 = vrot.slane %v1553, 1
      %v1556 = vor.u32 %v1551, %v1555
      %v1558 = vshll.u32 %v1359, 16
      %v1560 = vrot.slane %v1558, 1
      %v1561 = vsel %vm1012, %v1556, %v1560
      %v1563 = vshrl.u32 %v1357, 16
      %v1565 = vshll.u32 %v1357, 16
      %v1567 = vrot.slane %v1565, 1
      %v1568 = vor.u32 %v1563, %v1567
      %v1570 = vshll.u32 %v1360, 16
      %v1572 = vrot.slane %v1570, 1
      %v1573 = vsel %vm1012, %v1568, %v1572
      %v1574 = vshrl.u32 %v1358, 16
      %v1576 = vor.u32 %v1574, %v1548
      %v1577 = vshrl.u32 %v1359, 16
      %v1579 = vor.u32 %v1577, %v1560
      %v1580 = vshrl.u32 %v1360, 16
      %v1582 = vor.u32 %v1580, %v1572
      %v1675 = vunpack.c.l.b16 %v1450
      %v1676 = vunpack.c.h.b16 %v1450
      %v1677 = vunpack.c.l.b16 %v1451
      %v1678 = vunpack.c.l.b16 %v1452
      %v1679 = vunpack.c.h.b16 %v1452
      %v1680 = vunpack.c.l.b16 %v1453
      %v1681 = vunpack.c.l.b16 %v1454
      %v1682 = vunpack.c.h.b16 %v1454
      %v1683 = vunpack.c.l.b16 %v1455
      %v1684 = vunpack.c.l.b16 %v1456
      %v1685 = vunpack.c.h.b16 %v1456
      %v1686 = vunpack.c.l.b16 %v1457
      %v1687 = vunpack.c.l.b16 %v1458
      %v1688 = vunpack.c.h.b16 %v1458
      %v1689 = vunpack.c.l.b16 %v1459
      %v1690 = vunpack.c.l.b16 %v1460
      %v1691 = vunpack.c.h.b16 %v1460
      %v1692 = vunpack.c.l.b16 %v1461
      %v1693 = vunpack.c.l.b16 %v1462
      %v1694 = vunpack.c.h.b16 %v1462
      %v1695 = vunpack.c.l.b16 %v1463
      %v1696 = vunpack.c.l.b16 %v1464
      %v1697 = vunpack.c.h.b16 %v1464
      %v1698 = vunpack.c.l.b16 %v1465
      %v1699 = vunpack.c.l.b16 %v1466
      %v1700 = vunpack.c.h.b16 %v1466
      %v1701 = vunpack.c.l.b16 %v1467
      %v1702 = vunpack.c.l.b16 %v1468
      %v1703 = vunpack.c.h.b16 %v1468
      %v1704 = vunpack.c.l.b16 %v1469
      %v1705 = vunpack.c.l.b16 %v1470
      %v1706 = vunpack.c.h.b16 %v1470
      %v1707 = vunpack.c.l.b16 %v1471
      %v1708 = vunpack.c.l.b16 %v1472
      %v1709 = vunpack.c.h.b16 %v1472
      %v1710 = vunpack.c.l.b16 %v1473
      %v1711 = vunpack.c.l.b16 %v1474
      %v1712 = vunpack.c.h.b16 %v1474
      %v1713 = vunpack.c.l.b16 %v1475
      %v1714 = vunpack.c.l.b16 %v1476
      %v1715 = vunpack.c.h.b16 %v1476
      %v1716 = vunpack.c.l.b16 %v1477
      %v1717 = vunpack.c.l.b16 %v1478
      %v1718 = vunpack.c.h.b16 %v1478
      %v1719 = vunpack.c.l.b16 %v1479
      %v1720 = vunpack.c.l.b16 %v1480
      %v1721 = vunpack.c.h.b16 %v1480
      %v1722 = vunpack.c.l.b16 %v1481
      %v1723 = vunpack.c.l.b16 %v1482
      %v1724 = vunpack.c.h.b16 %v1482
      %v1725 = vunpack.c.l.b16 %v1483
      %v1726 = vunpack.c.l.b16 %v1484
      %v1727 = vunpack.c.h.b16 %v1484
      %v1728 = vunpack.c.l.b16 %v1485
      %v1729 = vunpack.c.l.b16 %v1486
      %v1730 = vunpack.c.h.b16 %v1486
      %v1731 = vunpack.c.l.b16 %v1487
      %v1732 = vunpack.c.l.b16 %v1488
      %v1733 = vunpack.c.h.b16 %v1488
      %v1734 = vunpack.c.l.b16 %v1489
      %v1735 = vunpack.c.l.b16 %v1490
      %v1736 = vunpack.c.h.b16 %v1490
      %v1737 = vunpack.c.l.b16 %v1491
      %v1738 = vunpack.c.l.b16 %v1492
      %v1739 = vunpack.c.h.b16 %v1492
      %v1740 = vunpack.c.l.b16 %v1493
      %v1741 = vunpack.c.l.b16 %v1494
      %v1742 = vunpack.c.h.b16 %v1494
      %v1743 = vunpack.c.l.b16 %v1495
      %v1744 = vunpack.c.l.b16 %v1496
      %v1745 = vunpack.c.h.b16 %v1496
      %v1746 = vunpack.c.l.b16 %v1497
      %v1747 = vunpack.c.l.b16 %v1498
      %v1748 = vunpack.c.h.b16 %v1498
      %v1749 = vunpack.c.l.b16 %v1499
      %v1750 = vunpack.c.l.b16 %v1500
      %v1751 = vunpack.c.h.b16 %v1500
      %v1752 = vunpack.c.l.b16 %v1501
      %v1753 = vunpack.c.l.b16 %v1502
      %v1754 = vunpack.c.h.b16 %v1502
      %v1755 = vunpack.c.l.b16 %v1503
      %v1756 = vunpack.c.l.b16 %v1504
      %v1757 = vunpack.c.h.b16 %v1504
      %v1758 = vunpack.c.l.b16 %v1505
      %v1759 = vunpack.c.l.b16 %v1506
      %v1760 = vunpack.c.h.b16 %v1506
      %v1761 = vunpack.c.l.b16 %v1507
      %v1762 = vunpack.c.l.b16 %v1508
      %v1763 = vunpack.c.h.b16 %v1508
      %v1764 = vunpack.c.l.b16 %v1509
      %v1765 = vunpack.c.l.b16 %v1510
      %v1766 = vunpack.c.h.b16 %v1510
      %v1767 = vunpack.c.l.b16 %v1511
      %v1768 = vunpack.c.l.b16 %v1512
      %v1769 = vunpack.c.h.b16 %v1512
      %v1770 = vunpack.c.l.b16 %v1513
      %v1771 = vunpack.c.l.b16 %v1514
      %v1772 = vunpack.c.h.b16 %v1514
      %v1773 = vunpack.c.l.b16 %v1515
      %v1774 = vunpack.c.l.b16 %v1516
      %v1775 = vunpack.c.h.b16 %v1516
      %v1776 = vunpack.c.l.b16 %v1517
      %v1777 = vunpack.c.l.b16 %v1518
      %v1778 = vunpack.c.h.b16 %v1518
      %v1779 = vunpack.c.l.b16 %v1519
      %v1780 = vunpack.c.l.b16 %v1520
      %v1781 = vunpack.c.h.b16 %v1520
      %v1782 = vunpack.c.l.b16 %v1521
      %v1783 = vunpack.c.l.b16 %v1522
      %v1784 = vunpack.c.h.b16 %v1522
      %v1785 = vunpack.c.l.b16 %v1523
      %v1786 = vunpack.c.l.b16 %v1524
      %v1787 = vunpack.c.h.b16 %v1524
      %v1788 = vunpack.c.l.b16 %v1525
      %v1789 = vunpack.c.l.b16 %v1526
      %v1790 = vunpack.c.h.b16 %v1526
      %v1791 = vunpack.c.l.b16 %v1527
      %v1792 = vunpack.c.l.b16 %v1528
      %v1793 = vunpack.c.h.b16 %v1528
      %v1794 = vunpack.c.l.b16 %v1529
      %v1795 = vunpack.c.l.b16 %v1530
      %v1796 = vunpack.c.h.b16 %v1530
      %v1797 = vunpack.c.l.b16 %v1531
      %v1798 = vunpack.c.l.b16 %v1532
      %v1799 = vunpack.c.h.b16 %v1532
      %v1800 = vunpack.c.l.b16 %v1533
      %v1801 = vunpack.c.l.b16 %v1534
      %v1802 = vunpack.c.h.b16 %v1534
      %v1803 = vunpack.c.l.b16 %v1535
      %v1804 = vunpack.c.l.b16 %v1536
      %v1805 = vunpack.c.h.b16 %v1536
      %v1806 = vunpack.c.l.b16 %v1537
      %v1807 = vpack.c.b16 %v1678, %v1675
      %v1808 = vpack.c.b16 %v1679, %v1676
      %v1809 = vpack.c.b16 %v1680, %v1677
      %v1810 = vpack.c.b16 %v1684, %v1681
      %v1811 = vpack.c.b16 %v1685, %v1682
      %v1812 = vpack.c.b16 %v1686, %v1683
      %v1813 = vpack.c.b16 %v1690, %v1687
      %v1814 = vpack.c.b16 %v1691, %v1688
      %v1815 = vpack.c.b16 %v1692, %v1689
      %v1816 = vpack.c.b16 %v1696, %v1693
      %v1817 = vpack.c.b16 %v1697, %v1694
      %v1818 = vpack.c.b16 %v1698, %v1695
      %v1819 = vpack.c.b16 %v1702, %v1699
      %v1820 = vpack.c.b16 %v1703, %v1700
      %v1821 = vpack.c.b16 %v1704, %v1701
      %v1822 = vpack.c.b16 %v1708, %v1705
      %v1823 = vpack.c.b16 %v1709, %v1706
      %v1824 = vpack.c.b16 %v1710, %v1707
      %v1825 = vpack.c.b16 %v1714, %v1711
      %v1826 = vpack.c.b16 %v1715, %v1712
      %v1827 = vpack.c.b16 %v1716, %v1713
      %v1828 = vpack.c.b16 %v1720, %v1717
      %v1829 = vpack.c.b16 %v1721, %v1718
      %v1830 = vpack.c.b16 %v1722, %v1719
      %v1831 = vpack.c.b16 %v1726, %v1723
      %v1832 = vpack.c.b16 %v1727, %v1724
      %v1833 = vpack.c.b16 %v1728, %v1725
      %v1834 = vpack.c.b16 %v1732, %v1729
      %v1835 = vpack.c.b16 %v1733, %v1730
      %v1836 = vpack.c.b16 %v1734, %v1731
      %v1837 = vpack.c.b16 %v1738, %v1735
      %v1838 = vpack.c.b16 %v1739, %v1736
      %v1839 = vpack.c.b16 %v1740, %v1737
      %v1840 = vpack.c.b16 %v1744, %v1741
      %v1841 = vpack.c.b16 %v1745, %v1742
      %v1842 = vpack.c.b16 %v1746, %v1743
      %v1843 = vpack.c.b16 %v1750, %v1747
      %v1844 = vpack.c.b16 %v1751, %v1748
      %v1845 = vpack.c.b16 %v1752, %v1749
      %v1846 = vpack.c.b16 %v1756, %v1753
      %v1847 = vpack.c.b16 %v1757, %v1754
      %v1848 = vpack.c.b16 %v1758, %v1755
      %v1849 = vpack.c.b16 %v1762, %v1759
      %v1850 = vpack.c.b16 %v1763, %v1760
      %v1851 = vpack.c.b16 %v1764, %v1761
      %v1852 = vpack.c.b16 %v1768, %v1765
      %v1853 = vpack.c.b16 %v1769, %v1766
      %v1854 = vpack.c.b16 %v1770, %v1767
      %v1855 = vpack.c.b16 %v1774, %v1771
      %v1856 = vpack.c.b16 %v1775, %v1772
      %v1857 = vpack.c.b16 %v1776, %v1773
      %v1858 = vpack.c.b16 %v1780, %v1777
      %v1859 = vpack.c.b16 %v1781, %v1778
      %v1860 = vpack.c.b16 %v1782, %v1779
      %v1861 = vpack.c.b16 %v1786, %v1783
      %v1862 = vpack.c.b16 %v1787, %v1784
      %v1863 = vpack.c.b16 %v1788, %v1785
      %v1864 = vpack.c.b16 %v1792, %v1789
      %v1865 = vpack.c.b16 %v1793, %v1790
      %v1866 = vpack.c.b16 %v1794, %v1791
      %v1867 = vpack.c.b16 %v1798, %v1795
      %v1868 = vpack.c.b16 %v1799, %v1796
      %v1869 = vpack.c.b16 %v1800, %v1797
      %v1870 = vpack.c.b16 %v1804, %v1801
      %v1871 = vpack.c.b16 %v1805, %v1802
      %v1872 = vpack.c.b16 %v1806, %v1803
      %vm1939 = vcmask 785408
      %v1941 = vsel %vm1939, %v1573, 0
      %v1944 = vsel %vm1939, %v1582, 0
      %1946 = vmatpush.bf16.msra.mxu0 %v1828
      %1947 = vmatpush.bf16.msra.mxu0 %v1825
      %1948 = vmatpush.bf16.msra.mxu0 %v1822
      %1949 = vmatpush.bf16.msra.mxu0 %v1819
      %1950 = vmatpush.bf16.msra.mxu0 %v1816
      %1951 = vmatpush.bf16.msra.mxu0 %v1813
      %1952 = vmatpush.bf16.msra.mxu0 %v1810
      %1953 = vmatpush.bf16.msra.mxu0 %v1807
      %1954 = vmatmul.bf16.gmra.mxu0 %v1549
      %v1955 = vpop.f32.mrf.mxu0
      %v1956 = vadd.f32 0.0, %v1955
      %v1957 = vpop.f32.mrf.mxu0
      %v1958 = vadd.f32 0.0, %v1957
      %1959 = vmatmul.bf16.gmra.mxu0 %v1576
      %v1960 = vpop.f32.mrf.mxu0
      %v1961 = vadd.f32 0.0, %v1960
      %v1962 = vpop.f32.mrf.mxu0
      %1963 = vdwg.mxu0
      %1964 = vmatpush.bf16.msra.mxu0 %v1852
      %1965 = vmatpush.bf16.msra.mxu0 %v1849
      %1966 = vmatpush.bf16.msra.mxu0 %v1846
      %1967 = vmatpush.bf16.msra.mxu0 %v1843
      %1968 = vmatpush.bf16.msra.mxu0 %v1840
      %1969 = vmatpush.bf16.msra.mxu0 %v1837
      %1970 = vmatpush.bf16.msra.mxu0 %v1834
      %1971 = vmatpush.bf16.msra.mxu0 %v1831
      %1972 = vmatmul.bf16.gmra.mxu0 %v1561
      %v1973 = vpop.f32.mrf.mxu0
      %v1974 = vadd.f32 %v1956, %v1973
      %v1975 = vpop.f32.mrf.mxu0
      %v1976 = vadd.f32 %v1958, %v1975
      %1977 = vmatmul.bf16.gmra.mxu0 %v1579
      %v1978 = vpop.f32.mrf.mxu0
      %v1979 = vadd.f32 %v1961, %v1978
      %v1980 = vpop.f32.mrf.mxu0
      %1981 = vdwg.mxu0
      %1982 = vmatpush.bf16.msra.mxu0 0
      %1983 = vmatpush.bf16.msra.mxu0 0
      %1984 = vmatpush.bf16.msra.mxu0 %v1870
      %1985 = vmatpush.bf16.msra.mxu0 %v1867
      %1986 = vmatpush.bf16.msra.mxu0 %v1864
      %1987 = vmatpush.bf16.msra.mxu0 %v1861
      %1988 = vmatpush.bf16.msra.mxu0 %v1858
      %1989 = vmatpush.bf16.msra.mxu0 %v1855
      %1990 = vmatmul.bf16.gmra.mxu0 %v1941
      %v1991 = vpop.f32.mrf.mxu0
      %v1992 = vadd.f32 %v1974, %v1991
      %v1993 = vpop.f32.mrf.mxu0
      %v1994 = vadd.f32 %v1976, %v1993
      %1995 = vmatmul.bf16.gmra.mxu0 %v1944
      %v1996 = vpop.f32.mrf.mxu0
      %v1997 = vadd.f32 %v1979, %v1996
      %v1998 = vpop.f32.mrf.mxu0
      %1999 = vdwg.mxu0
      %2000 = vmatpush.bf16.msra.mxu0 %v1829
      %2001 = vmatpush.bf16.msra.mxu0 %v1826
      %2002 = vmatpush.bf16.msra.mxu0 %v1823
      %2003 = vmatpush.bf16.msra.mxu0 %v1820
      %2004 = vmatpush.bf16.msra.mxu0 %v1817
      %2005 = vmatpush.bf16.msra.mxu0 %v1814
      %2006 = vmatpush.bf16.msra.mxu0 %v1811
      %2007 = vmatpush.bf16.msra.mxu0 %v1808
      %2008 = vmatmul.bf16.gmra.mxu0 %v1549
      %v2009 = vpop.f32.mrf.mxu0
      %v2010 = vadd.f32 0.0, %v2009
      %v2011 = vpop.f32.mrf.mxu0
      %v2012 = vadd.f32 0.0, %v2011
      %2013 = vmatmul.bf16.gmra.mxu0 %v1576
      %v2014 = vpop.f32.mrf.mxu0
      %v2015 = vadd.f32 0.0, %v2014
      %v2016 = vpop.f32.mrf.mxu0
      %2017 = vdwg.mxu0
      %2018 = vmatpush.bf16.msra.mxu0 %v1853
      %2019 = vmatpush.bf16.msra.mxu0 %v1850
      %2020 = vmatpush.bf16.msra.mxu0 %v1847
      %2021 = vmatpush.bf16.msra.mxu0 %v1844
      %2022 = vmatpush.bf16.msra.mxu0 %v1841
      %2023 = vmatpush.bf16.msra.mxu0 %v1838
      %2024 = vmatpush.bf16.msra.mxu0 %v1835
      %2025 = vmatpush.bf16.msra.mxu0 %v1832
      %2026 = vmatmul.bf16.gmra.mxu0 %v1561
      %v2027 = vpop.f32.mrf.mxu0
      %v2028 = vadd.f32 %v2010, %v2027
      %v2029 = vpop.f32.mrf.mxu0
      %v2030 = vadd.f32 %v2012, %v2029
      %2031 = vmatmul.bf16.gmra.mxu0 %v1579
      %v2032 = vpop.f32.mrf.mxu0
      %v2033 = vadd.f32 %v2015, %v2032
      %v2034 = vpop.f32.mrf.mxu0
      %2035 = vdwg.mxu0
      %2036 = vmatpush.bf16.msra.mxu0 0
      %2037 = vmatpush.bf16.msra.mxu0 0
      %2038 = vmatpush.bf16.msra.mxu0 %v1871
      %2039 = vmatpush.bf16.msra.mxu0 %v1868
      %2040 = vmatpush.bf16.msra.mxu0 %v1865
      %2041 = vmatpush.bf16.msra.mxu0 %v1862
      %2042 = vmatpush.bf16.msra.mxu0 %v1859
      %2043 = vmatpush.bf16.msra.mxu0 %v1856
      %2044 = vmatmul.bf16.gmra.mxu0 %v1941
      %v2045 = vpop.f32.mrf.mxu0
      %v2046 = vadd.f32 %v2028, %v2045
      %v2047 = vpop.f32.mrf.mxu0
      %v2048 = vadd.f32 %v2030, %v2047
      %2049 = vmatmul.bf16.gmra.mxu0 %v1944
      %v2050 = vpop.f32.mrf.mxu0
      %v2051 = vadd.f32 %v2033, %v2050
      %v2052 = vpop.f32.mrf.mxu0
      %2053 = vdwg.mxu0
      %2054 = vmatpush.bf16.msra.mxu0 %v1830
      %2055 = vmatpush.bf16.msra.mxu0 %v1827
      %2056 = vmatpush.bf16.msra.mxu0 %v1824
      %2057 = vmatpush.bf16.msra.mxu0 %v1821
      %2058 = vmatpush.bf16.msra.mxu0 %v1818
      %2059 = vmatpush.bf16.msra.mxu0 %v1815
      %2060 = vmatpush.bf16.msra.mxu0 %v1812
      %2061 = vmatpush.bf16.msra.mxu0 %v1809
      %2062 = vmatmul.bf16.gmra.mxu0 %v1549
      %v2063 = vpop.f32.mrf.mxu0
      %v2064 = vadd.f32 0.0, %v2063
      %v2065 = vpop.f32.mrf.mxu0
      %v2066 = vadd.f32 0.0, %v2065
      %2067 = vmatmul.bf16.gmra.mxu0 %v1576
      %v2068 = vpop.f32.mrf.mxu0
      %v2069 = vadd.f32 0.0, %v2068
      %v2070 = vpop.f32.mrf.mxu0
      %2071 = vdwg.mxu0
      %2072 = vmatpush.bf16.msra.mxu0 %v1854
      %2073 = vmatpush.bf16.msra.mxu0 %v1851
      %2074 = vmatpush.bf16.msra.mxu0 %v1848
      %2075 = vmatpush.bf16.msra.mxu0 %v1845
      %2076 = vmatpush.bf16.msra.mxu0 %v1842
      %2077 = vmatpush.bf16.msra.mxu0 %v1839
      %2078 = vmatpush.bf16.msra.mxu0 %v1836
      %2079 = vmatpush.bf16.msra.mxu0 %v1833
      %2080 = vmatmul.bf16.gmra.mxu0 %v1561
      %v2081 = vpop.f32.mrf.mxu0
      %v2082 = vadd.f32 %v2064, %v2081
      %v2083 = vpop.f32.mrf.mxu0
      %v2084 = vadd.f32 %v2066, %v2083
      %2085 = vmatmul.bf16.gmra.mxu0 %v1579
      %v2086 = vpop.f32.mrf.mxu0
      %v2087 = vadd.f32 %v2069, %v2086
      %v2088 = vpop.f32.mrf.mxu0
      %2089 = vdwg.mxu0
      %2090 = vmatpush.bf16.msra.mxu0 0
      %2091 = vmatpush.bf16.msra.mxu0 0
      %2092 = vmatpush.bf16.msra.mxu0 %v1872
      %2093 = vmatpush.bf16.msra.mxu0 %v1869
      %2094 = vmatpush.bf16.msra.mxu0 %v1866
      %2095 = vmatpush.bf16.msra.mxu0 %v1863
      %2096 = vmatpush.bf16.msra.mxu0 %v1860
      %2097 = vmatpush.bf16.msra.mxu0 %v1857
      %2098 = vmatmul.bf16.gmra.mxu0 %v1941
      %v2099 = vpop.f32.mrf.mxu0
      %v2100 = vadd.f32 %v2082, %v2099
      %v2101 = vpop.f32.mrf.mxu0
      %v2102 = vadd.f32 %v2084, %v2101
      %2103 = vmatmul.bf16.gmra.mxu0 %v1944
      %v2104 = vpop.f32.mrf.mxu0
      %v2105 = vadd.f32 %v2087, %v2104
      %v2106 = vpop.f32.mrf.mxu0
      %2107 = vdwg.mxu0
      %v2196 = vunpack.c.l.b16 %v1361
      %v2197 = vunpack.c.h.b16 %v1361
      %v2198 = vunpack.c.l.b16 %v1362
      %v2199 = vunpack.c.l.b16 %v1363
      %v2200 = vunpack.c.h.b16 %v1363
      %v2201 = vunpack.c.l.b16 %v1364
      %v2202 = vunpack.c.l.b16 %v1365
      %v2203 = vunpack.c.h.b16 %v1365
      %v2204 = vunpack.c.l.b16 %v1366
      %v2205 = vunpack.c.l.b16 %v1367
      %v2206 = vunpack.c.h.b16 %v1367
      %v2207 = vunpack.c.l.b16 %v1368
      %v2208 = vunpack.c.l.b16 %v1369
      %v2209 = vunpack.c.h.b16 %v1369
      %v2210 = vunpack.c.l.b16 %v1370
      %v2211 = vunpack.c.l.b16 %v1371
      %v2212 = vunpack.c.h.b16 %v1371
      %v2213 = vunpack.c.l.b16 %v1372
      %v2214 = vunpack.c.l.b16 %v1373
      %v2215 = vunpack.c.h.b16 %v1373
      %v2216 = vunpack.c.l.b16 %v1374
      %v2217 = vunpack.c.l.b16 %v1375
      %v2218 = vunpack.c.h.b16 %v1375
      %v2219 = vunpack.c.l.b16 %v1376
      %v2220 = vunpack.c.l.b16 %v1377
      %v2221 = vunpack.c.h.b16 %v1377
      %v2222 = vunpack.c.l.b16 %v1378
      %v2223 = vunpack.c.l.b16 %v1379
      %v2224 = vunpack.c.h.b16 %v1379
      %v2225 = vunpack.c.l.b16 %v1380
      %v2226 = vunpack.c.l.b16 %v1381
      %v2227 = vunpack.c.h.b16 %v1381
      %v2228 = vunpack.c.l.b16 %v1382
      %v2229 = vunpack.c.l.b16 %v1383
      %v2230 = vunpack.c.h.b16 %v1383
      %v2231 = vunpack.c.l.b16 %v1384
      %v2232 = vunpack.c.l.b16 %v1385
      %v2233 = vunpack.c.h.b16 %v1385
      %v2234 = vunpack.c.l.b16 %v1386
      %v2235 = vunpack.c.l.b16 %v1387
      %v2236 = vunpack.c.h.b16 %v1387
      %v2237 = vunpack.c.l.b16 %v1388
      %v2238 = vunpack.c.l.b16 %v1389
      %v2239 = vunpack.c.h.b16 %v1389
      %v2240 = vunpack.c.l.b16 %v1390
      %v2241 = vunpack.c.l.b16 %v1391
      %v2242 = vunpack.c.h.b16 %v1391
      %v2243 = vunpack.c.l.b16 %v1392
      %v2244 = vunpack.c.l.b16 %v1393
      %v2245 = vunpack.c.h.b16 %v1393
      %v2246 = vunpack.c.l.b16 %v1394
      %v2247 = vunpack.c.l.b16 %v1395
      %v2248 = vunpack.c.h.b16 %v1395
      %v2249 = vunpack.c.l.b16 %v1396
      %v2250 = vunpack.c.l.b16 %v1397
      %v2251 = vunpack.c.h.b16 %v1397
      %v2252 = vunpack.c.l.b16 %v1398
      %v2253 = vunpack.c.l.b16 %v1399
      %v2254 = vunpack.c.h.b16 %v1399
      %v2255 = vunpack.c.l.b16 %v1400
      %v2256 = vunpack.c.l.b16 %v1401
      %v2257 = vunpack.c.h.b16 %v1401
      %v2258 = vunpack.c.l.b16 %v1402
      %v2259 = vunpack.c.l.b16 %v1403
      %v2260 = vunpack.c.h.b16 %v1403
      %v2261 = vunpack.c.l.b16 %v1404
      %v2262 = vunpack.c.l.b16 %v1405
      %v2263 = vunpack.c.h.b16 %v1405
      %v2264 = vunpack.c.l.b16 %v1406
      %v2265 = vunpack.c.l.b16 %v1407
      %v2266 = vunpack.c.h.b16 %v1407
      %v2267 = vunpack.c.l.b16 %v1408
      %v2268 = vunpack.c.l.b16 %v1409
      %v2269 = vunpack.c.h.b16 %v1409
      %v2270 = vunpack.c.l.b16 %v1410
      %v2271 = vunpack.c.l.b16 %v1411
      %v2272 = vunpack.c.h.b16 %v1411
      %v2273 = vunpack.c.l.b16 %v1412
      %v2274 = vunpack.c.l.b16 %v1413
      %v2275 = vunpack.c.h.b16 %v1413
      %v2276 = vunpack.c.l.b16 %v1414
      %v2277 = vunpack.c.l.b16 %v1415
      %v2278 = vunpack.c.h.b16 %v1415
      %v2279 = vunpack.c.l.b16 %v1416
      %v2280 = vunpack.c.l.b16 %v1417
      %v2281 = vunpack.c.h.b16 %v1417
      %v2282 = vunpack.c.l.b16 %v1418
      %v2283 = vunpack.c.l.b16 %v1419
      %v2284 = vunpack.c.h.b16 %v1419
      %v2285 = vunpack.c.l.b16 %v1420
      %v2286 = vunpack.c.l.b16 %v1421
      %v2287 = vunpack.c.h.b16 %v1421
      %v2288 = vunpack.c.l.b16 %v1422
      %v2289 = vunpack.c.l.b16 %v1423
      %v2290 = vunpack.c.h.b16 %v1423
      %v2291 = vunpack.c.l.b16 %v1424
      %v2292 = vunpack.c.l.b16 %v1425
      %v2293 = vunpack.c.h.b16 %v1425
      %v2294 = vunpack.c.l.b16 %v1426
      %v2295 = vunpack.c.l.b16 %v1427
      %v2296 = vunpack.c.h.b16 %v1427
      %v2297 = vunpack.c.l.b16 %v1428
      %v2298 = vunpack.c.l.b16 %v1429
      %v2299 = vunpack.c.h.b16 %v1429
      %v2300 = vunpack.c.l.b16 %v1430
      %v2301 = vunpack.c.l.b16 %v1431
      %v2302 = vunpack.c.h.b16 %v1431
      %v2303 = vunpack.c.l.b16 %v1432
      %v2304 = vunpack.c.l.b16 %v1433
      %v2305 = vunpack.c.h.b16 %v1433
      %v2306 = vunpack.c.l.b16 %v1434
      %v2307 = vunpack.c.l.b16 %v1435
      %v2308 = vunpack.c.h.b16 %v1435
      %v2309 = vunpack.c.l.b16 %v1436
      %v2310 = vunpack.c.l.b16 %v1437
      %v2311 = vunpack.c.h.b16 %v1437
      %v2312 = vunpack.c.l.b16 %v1438
      %v2313 = vunpack.c.l.b16 %v1439
      %v2314 = vunpack.c.h.b16 %v1439
      %v2315 = vunpack.c.l.b16 %v1440
      %v2316 = vunpack.c.l.b16 %v1441
      %v2317 = vunpack.c.h.b16 %v1441
      %v2318 = vunpack.c.l.b16 %v1442
      %v2319 = vunpack.c.l.b16 %v1443
      %v2320 = vunpack.c.h.b16 %v1443
      %v2321 = vunpack.c.l.b16 %v1444
      %v2322 = vunpack.c.l.b16 %v1445
      %v2323 = vunpack.c.h.b16 %v1445
      %v2324 = vunpack.c.l.b16 %v1446
      %v2325 = vunpack.c.l.b16 %v1447
      %v2326 = vunpack.c.h.b16 %v1447
      %v2327 = vunpack.c.l.b16 %v1448
      %v2328 = vpack.c.b16 %v2199, %v2196
      %v2329 = vpack.c.b16 %v2200, %v2197
      %v2330 = vpack.c.b16 %v2201, %v2198
      %v2331 = vpack.c.b16 %v2205, %v2202
      %v2332 = vpack.c.b16 %v2206, %v2203
      %v2333 = vpack.c.b16 %v2207, %v2204
      %v2334 = vpack.c.b16 %v2211, %v2208
      %v2335 = vpack.c.b16 %v2212, %v2209
      %v2336 = vpack.c.b16 %v2213, %v2210
      %v2337 = vpack.c.b16 %v2217, %v2214
      %v2338 = vpack.c.b16 %v2218, %v2215
      %v2339 = vpack.c.b16 %v2219, %v2216
      %v2340 = vpack.c.b16 %v2223, %v2220
      %v2341 = vpack.c.b16 %v2224, %v2221
      %v2342 = vpack.c.b16 %v2225, %v2222
      %v2343 = vpack.c.b16 %v2229, %v2226
      %v2344 = vpack.c.b16 %v2230, %v2227
      %v2345 = vpack.c.b16 %v2231, %v2228
      %v2346 = vpack.c.b16 %v2235, %v2232
      %v2347 = vpack.c.b16 %v2236, %v2233
      %v2348 = vpack.c.b16 %v2237, %v2234
      %v2349 = vpack.c.b16 %v2241, %v2238
      %v2350 = vpack.c.b16 %v2242, %v2239
      %v2351 = vpack.c.b16 %v2243, %v2240
      %v2352 = vpack.c.b16 %v2247, %v2244
      %v2353 = vpack.c.b16 %v2248, %v2245
      %v2354 = vpack.c.b16 %v2249, %v2246
      %v2355 = vpack.c.b16 %v2253, %v2250
      %v2356 = vpack.c.b16 %v2254, %v2251
      %v2357 = vpack.c.b16 %v2255, %v2252
      %v2358 = vpack.c.b16 %v2259, %v2256
      %v2359 = vpack.c.b16 %v2260, %v2257
      %v2360 = vpack.c.b16 %v2261, %v2258
      %v2361 = vpack.c.b16 %v2265, %v2262
      %v2362 = vpack.c.b16 %v2266, %v2263
      %v2363 = vpack.c.b16 %v2267, %v2264
      %v2364 = vpack.c.b16 %v2271, %v2268
      %v2365 = vpack.c.b16 %v2272, %v2269
      %v2366 = vpack.c.b16 %v2273, %v2270
      %v2367 = vpack.c.b16 %v2277, %v2274
      %v2368 = vpack.c.b16 %v2278, %v2275
      %v2369 = vpack.c.b16 %v2279, %v2276
      %v2370 = vpack.c.b16 %v2283, %v2280
      %v2371 = vpack.c.b16 %v2284, %v2281
      %v2372 = vpack.c.b16 %v2285, %v2282
      %v2373 = vpack.c.b16 %v2289, %v2286
      %v2374 = vpack.c.b16 %v2290, %v2287
      %v2375 = vpack.c.b16 %v2291, %v2288
      %v2376 = vpack.c.b16 %v2295, %v2292
      %v2377 = vpack.c.b16 %v2296, %v2293
      %v2378 = vpack.c.b16 %v2297, %v2294
      %v2379 = vpack.c.b16 %v2301, %v2298
      %v2380 = vpack.c.b16 %v2302, %v2299
      %v2381 = vpack.c.b16 %v2303, %v2300
      %v2382 = vpack.c.b16 %v2307, %v2304
      %v2383 = vpack.c.b16 %v2308, %v2305
      %v2384 = vpack.c.b16 %v2309, %v2306
      %v2385 = vpack.c.b16 %v2313, %v2310
      %v2386 = vpack.c.b16 %v2314, %v2311
      %v2387 = vpack.c.b16 %v2315, %v2312
      %v2388 = vpack.c.b16 %v2319, %v2316
      %v2389 = vpack.c.b16 %v2320, %v2317
      %v2390 = vpack.c.b16 %v2321, %v2318
      %v2391 = vpack.c.b16 %v2325, %v2322
      %v2392 = vpack.c.b16 %v2326, %v2323
      %v2393 = vpack.c.b16 %v2327, %v2324
      %v2460 = vsel %vm1939, %v1357, 0
      %v2462 = vsel %vm1939, %v1360, 0
      %2464 = vmatpush.bf16.msra.mxu0 %v2349
      %2465 = vmatpush.bf16.msra.mxu0 %v2346
      %2466 = vmatpush.bf16.msra.mxu0 %v2343
      %2467 = vmatpush.bf16.msra.mxu0 %v2340
      %2468 = vmatpush.bf16.msra.mxu0 %v2337
      %2469 = vmatpush.bf16.msra.mxu0 %v2334
      %2470 = vmatpush.bf16.msra.mxu0 %v2331
      %2471 = vmatpush.bf16.msra.mxu0 %v2328
      %2472 = vmatmul.bf16.gmra.mxu0 %v1355
      %v2473 = vpop.f32.mrf.mxu0
      %v2474 = vadd.f32 %v1992, %v2473
      %v2475 = vpop.f32.mrf.mxu0
      %v2476 = vadd.f32 %v1994, %v2475
      %2477 = vmatmul.bf16.gmra.mxu0 %v1358
      %v2478 = vpop.f32.mrf.mxu0
      %v2479 = vadd.f32 %v1997, %v2478
      %v2480 = vpop.f32.mrf.mxu0
      %2481 = vdwg.mxu0
      %2482 = vmatpush.bf16.msra.mxu0 %v2373
      %2483 = vmatpush.bf16.msra.mxu0 %v2370
      %2484 = vmatpush.bf16.msra.mxu0 %v2367
      %2485 = vmatpush.bf16.msra.mxu0 %v2364
      %2486 = vmatpush.bf16.msra.mxu0 %v2361
      %2487 = vmatpush.bf16.msra.mxu0 %v2358
      %2488 = vmatpush.bf16.msra.mxu0 %v2355
      %2489 = vmatpush.bf16.msra.mxu0 %v2352
      %2490 = vmatmul.bf16.gmra.mxu0 %v1356
      %v2491 = vpop.f32.mrf.mxu0
      %v2492 = vadd.f32 %v2474, %v2491
      %v2493 = vpop.f32.mrf.mxu0
      %v2494 = vadd.f32 %v2476, %v2493
      %2495 = vmatmul.bf16.gmra.mxu0 %v1359
      %v2496 = vpop.f32.mrf.mxu0
      %v2497 = vadd.f32 %v2479, %v2496
      %v2498 = vpop.f32.mrf.mxu0
      %2499 = vdwg.mxu0
      %2500 = vmatpush.bf16.msra.mxu0 0
      %2501 = vmatpush.bf16.msra.mxu0 0
      %2502 = vmatpush.bf16.msra.mxu0 %v2391
      %2503 = vmatpush.bf16.msra.mxu0 %v2388
      %2504 = vmatpush.bf16.msra.mxu0 %v2385
      %2505 = vmatpush.bf16.msra.mxu0 %v2382
      %2506 = vmatpush.bf16.msra.mxu0 %v2379
      %2507 = vmatpush.bf16.msra.mxu0 %v2376
      %2508 = vmatmul.bf16.gmra.mxu0 %v2460
      %v2509 = vpop.f32.mrf.mxu0
      %v2510 = vadd.f32 %v2492, %v2509
      %v2511 = vpop.f32.mrf.mxu0
      %v2512 = vadd.f32 %v2494, %v2511
      %2513 = vmatmul.bf16.gmra.mxu0 %v2462
      %v2514 = vpop.f32.mrf.mxu0
      %v2515 = vadd.f32 %v2497, %v2514
      %v2516 = vpop.f32.mrf.mxu0
      %2517 = vdwg.mxu0
      %2518 = vmatpush.bf16.msra.mxu0 %v2350
      %2519 = vmatpush.bf16.msra.mxu0 %v2347
      %2520 = vmatpush.bf16.msra.mxu0 %v2344
      %2521 = vmatpush.bf16.msra.mxu0 %v2341
      %2522 = vmatpush.bf16.msra.mxu0 %v2338
      %2523 = vmatpush.bf16.msra.mxu0 %v2335
      %2524 = vmatpush.bf16.msra.mxu0 %v2332
      %2525 = vmatpush.bf16.msra.mxu0 %v2329
      %2526 = vmatmul.bf16.gmra.mxu0 %v1355
      %v2527 = vpop.f32.mrf.mxu0
      %v2528 = vadd.f32 %v2046, %v2527
      %v2529 = vpop.f32.mrf.mxu0
      %v2530 = vadd.f32 %v2048, %v2529
      %2531 = vmatmul.bf16.gmra.mxu0 %v1358
      %v2532 = vpop.f32.mrf.mxu0
      %v2533 = vadd.f32 %v2051, %v2532
      %v2534 = vpop.f32.mrf.mxu0
      %2535 = vdwg.mxu0
      %2536 = vmatpush.bf16.msra.mxu0 %v2374
      %2537 = vmatpush.bf16.msra.mxu0 %v2371
      %2538 = vmatpush.bf16.msra.mxu0 %v2368
      %2539 = vmatpush.bf16.msra.mxu0 %v2365
      %2540 = vmatpush.bf16.msra.mxu0 %v2362
      %2541 = vmatpush.bf16.msra.mxu0 %v2359
      %2542 = vmatpush.bf16.msra.mxu0 %v2356
      %2543 = vmatpush.bf16.msra.mxu0 %v2353
      %2544 = vmatmul.bf16.gmra.mxu0 %v1356
      %v2545 = vpop.f32.mrf.mxu0
      %v2546 = vadd.f32 %v2528, %v2545
      %v2547 = vpop.f32.mrf.mxu0
      %v2548 = vadd.f32 %v2530, %v2547
      %2549 = vmatmul.bf16.gmra.mxu0 %v1359
      %v2550 = vpop.f32.mrf.mxu0
      %v2551 = vadd.f32 %v2533, %v2550
      %v2552 = vpop.f32.mrf.mxu0
      %2553 = vdwg.mxu0
      %2554 = vmatpush.bf16.msra.mxu0 0
      %2555 = vmatpush.bf16.msra.mxu0 0
      %2556 = vmatpush.bf16.msra.mxu0 %v2392
      %2557 = vmatpush.bf16.msra.mxu0 %v2389
      %2558 = vmatpush.bf16.msra.mxu0 %v2386
      %2559 = vmatpush.bf16.msra.mxu0 %v2383
      %2560 = vmatpush.bf16.msra.mxu0 %v2380
      %2561 = vmatpush.bf16.msra.mxu0 %v2377
      %2562 = vmatmul.bf16.gmra.mxu0 %v2460
      %v2563 = vpop.f32.mrf.mxu0
      %v2564 = vadd.f32 %v2546, %v2563
      %v2565 = vpop.f32.mrf.mxu0
      %v2566 = vadd.f32 %v2548, %v2565
      %2567 = vmatmul.bf16.gmra.mxu0 %v2462
      %v2568 = vpop.f32.mrf.mxu0
      %v2569 = vadd.f32 %v2551, %v2568
      %v2570 = vpop.f32.mrf.mxu0
      %2571 = vdwg.mxu0
      %2572 = vmatpush.bf16.msra.mxu0 %v2351
      %2573 = vmatpush.bf16.msra.mxu0 %v2348
      %2574 = vmatpush.bf16.msra.mxu0 %v2345
      %2575 = vmatpush.bf16.msra.mxu0 %v2342
      %2576 = vmatpush.bf16.msra.mxu0 %v2339
      %2577 = vmatpush.bf16.msra.mxu0 %v2336
      %2578 = vmatpush.bf16.msra.mxu0 %v2333
      %2579 = vmatpush.bf16.msra.mxu0 %v2330
      %2580 = vmatmul.bf16.gmra.mxu0 %v1355
      %v2581 = vpop.f32.mrf.mxu0
      %v2582 = vadd.f32 %v2100, %v2581
      %v2583 = vpop.f32.mrf.mxu0
      %v2584 = vadd.f32 %v2102, %v2583
      %2585 = vmatmul.bf16.gmra.mxu0 %v1358
      %v2586 = vpop.f32.mrf.mxu0
      %v2587 = vadd.f32 %v2105, %v2586
      %v2588 = vpop.f32.mrf.mxu0
      %2589 = vdwg.mxu0
      %2590 = vmatpush.bf16.msra.mxu0 %v2375
      %2591 = vmatpush.bf16.msra.mxu0 %v2372
      %2592 = vmatpush.bf16.msra.mxu0 %v2369
      %2593 = vmatpush.bf16.msra.mxu0 %v2366
      %2594 = vmatpush.bf16.msra.mxu0 %v2363
      %2595 = vmatpush.bf16.msra.mxu0 %v2360
      %2596 = vmatpush.bf16.msra.mxu0 %v2357
      %2597 = vmatpush.bf16.msra.mxu0 %v2354
      %2598 = vmatmul.bf16.gmra.mxu0 %v1356
      %v2599 = vpop.f32.mrf.mxu0
      %v2600 = vadd.f32 %v2582, %v2599
      %v2601 = vpop.f32.mrf.mxu0
      %v2602 = vadd.f32 %v2584, %v2601
      %2603 = vmatmul.bf16.gmra.mxu0 %v1359
      %v2604 = vpop.f32.mrf.mxu0
      %v2605 = vadd.f32 %v2587, %v2604
      %v2606 = vpop.f32.mrf.mxu0
      %2607 = vdwg.mxu0
      %2608 = vmatpush.bf16.msra.mxu0 0
      %2609 = vmatpush.bf16.msra.mxu0 0
      %2610 = vmatpush.bf16.msra.mxu0 %v2393
      %2611 = vmatpush.bf16.msra.mxu0 %v2390
      %2612 = vmatpush.bf16.msra.mxu0 %v2387
      %2613 = vmatpush.bf16.msra.mxu0 %v2384
      %2614 = vmatpush.bf16.msra.mxu0 %v2381
      %2615 = vmatpush.bf16.msra.mxu0 %v2378
      %2616 = vmatmul.bf16.gmra.mxu0 %v2460
      %v2617 = vpop.f32.mrf.mxu0
      %v2618 = vadd.f32 %v2600, %v2617
      %v2619 = vpop.f32.mrf.mxu0
      %v2620 = vadd.f32 %v2602, %v2619
      %2621 = vmatmul.bf16.gmra.mxu0 %v2462
      %v2622 = vpop.f32.mrf.mxu0
      %v2623 = vadd.f32 %v2605, %v2622
      %v2624 = vpop.f32.mrf.mxu0
      %2625 = vdwg.mxu0
      %s2626 = scalar_lea.vmem %s925, 1056
      %v2627 = vld [vmem:[%s2626] sm:$0xff]
      %v2628 = vld [vmem:[%s2626 + $0x8] sm:$0xf]
      %v2629 = vld [vmem:[%s2626 + $0xc] sm:$0xff]
      %v2630 = vld [vmem:[%s2626 + $0x14] sm:$0xf]
      %v2631 = vld [vmem:[%s2626 + $0x18] sm:$0xff]
      %v2632 = vld [vmem:[%s2626 + $0x20] sm:$0xf]
      %v2633 = vld [vmem:[%s2626 + $0x24] sm:$0xff]
      %v2634 = vld [vmem:[%s2626 + $0x2c] sm:$0xf]
      %v2635 = vld [vmem:[%s2626 + $0x30] sm:$0xff]
      %v2636 = vld [vmem:[%s2626 + $0x38] sm:$0xf]
      %v2637 = vld [vmem:[%s2626 + $0x3c] sm:$0xff]
      %v2638 = vld [vmem:[%s2626 + $0x44] sm:$0xf]
      %v2639 = vld [vmem:[%s2626 + $0x48] sm:$0xff]
      %v2640 = vld [vmem:[%s2626 + $0x50] sm:$0xf]
      %v2641 = vld [vmem:[%s2626 + $0x54] sm:$0xff]
      %v2642 = vld [vmem:[%s2626 + $0x5c] sm:$0xf]
      %v2643 = vld [vmem:[%s2626 + $0x60] sm:$0xff]
      %v2644 = vld [vmem:[%s2626 + $0x68] sm:$0xf]
      %v2645 = vld [vmem:[%s2626 + $0x6c] sm:$0xff]
      %v2646 = vld [vmem:[%s2626 + $0x74] sm:$0xf]
      %v2647 = vld [vmem:[%s2626 + $0x78] sm:$0xff]
      %v2648 = vld [vmem:[%s2626 + $0x80] sm:$0xf]
      %v2649 = vld [vmem:[%s2626 + $0x84] sm:$0xff]
      %v2650 = vld [vmem:[%s2626 + $0x8c] sm:$0xf]
      %v2651 = vld [vmem:[%s2626 + $0x90] sm:$0xff]
      %v2652 = vld [vmem:[%s2626 + $0x98] sm:$0xf]
      %v2653 = vld [vmem:[%s2626 + $0x9c] sm:$0xff]
      %v2654 = vld [vmem:[%s2626 + $0xa4] sm:$0xf]
      %v2655 = vld [vmem:[%s2626 + $0xa8] sm:$0xff]
      %v2656 = vld [vmem:[%s2626 + $0xb0] sm:$0xf]
      %v2657 = vld [vmem:[%s2626 + $0xb4] sm:$0xff]
      %v2658 = vld [vmem:[%s2626 + $0xbc] sm:$0xf]
      %v2659 = vld [vmem:[%s2626 + $0xc0] sm:$0xff]
      %v2660 = vld [vmem:[%s2626 + $0xc8] sm:$0xf]
      %v2661 = vld [vmem:[%s2626 + $0xcc] sm:$0xff]
      %v2662 = vld [vmem:[%s2626 + $0xd4] sm:$0xf]
      %v2663 = vld [vmem:[%s2626 + $0xd8] sm:$0xff]
      %v2664 = vld [vmem:[%s2626 + $0xe0] sm:$0xf]
      %v2665 = vld [vmem:[%s2626 + $0xe4] sm:$0xff]
      %v2666 = vld [vmem:[%s2626 + $0xec] sm:$0xf]
      %v2667 = vld [vmem:[%s2626 + $0xf0] sm:$0xff]
      %v2668 = vld [vmem:[%s2626 + $0xf8] sm:$0xf]
      %v2669 = vld [vmem:[%s2626 + $0xfc] sm:$0xff]
      %v2670 = vld [vmem:[%s2626 + $0x104] sm:$0xf]
      %v2671 = vld [vmem:[%s2626 + $0x108] sm:$0xff]
      %v2672 = vld [vmem:[%s2626 + $0x110] sm:$0xf]
      %v2673 = vld [vmem:[%s2626 + $0x114] sm:$0xff]
      %v2674 = vld [vmem:[%s2626 + $0x11c] sm:$0xf]
      %v2675 = vld [vmem:[%s2626 + $0x120] sm:$0xff]
      %v2676 = vld [vmem:[%s2626 + $0x128] sm:$0xf]
      %v2677 = vld [vmem:[%s2626 + $0x12c] sm:$0xff]
      %v2678 = vld [vmem:[%s2626 + $0x134] sm:$0xf]
      %v2679 = vld [vmem:[%s2626 + $0x138] sm:$0xff]
      %v2680 = vld [vmem:[%s2626 + $0x140] sm:$0xf]
      %v2681 = vld [vmem:[%s2626 + $0x144] sm:$0xff]
      %v2682 = vld [vmem:[%s2626 + $0x14c] sm:$0xf]
      %v2683 = vld [vmem:[%s2626 + $0x150] sm:$0xff]
      %v2684 = vld [vmem:[%s2626 + $0x158] sm:$0xf]
      %v2685 = vld [vmem:[%s2626 + $0x15c] sm:$0xff]
      %v2686 = vld [vmem:[%s2626 + $0x164] sm:$0xf]
      %v2687 = vld [vmem:[%s2626 + $0x168] sm:$0xff]
      %v2688 = vld [vmem:[%s2626 + $0x170] sm:$0xf]
      %v2689 = vld [vmem:[%s2626 + $0x174] sm:$0xff]
      %v2690 = vld [vmem:[%s2626 + $0x17c] sm:$0xf]
      %v2691 = vld [vmem:[%s2626 + $0x180] sm:$0xff]
      %v2692 = vld [vmem:[%s2626 + $0x188] sm:$0xf]
      %v2693 = vld [vmem:[%s2626 + $0x18c] sm:$0xff]
      %v2694 = vld [vmem:[%s2626 + $0x194] sm:$0xf]
      %v2695 = vld [vmem:[%s2626 + $0x198] sm:$0xff]
      %v2696 = vld [vmem:[%s2626 + $0x1a0] sm:$0xf]
      %v2697 = vld [vmem:[%s2626 + $0x1a4] sm:$0xff]
      %v2698 = vld [vmem:[%s2626 + $0x1ac] sm:$0xf]
      %v2699 = vld [vmem:[%s2626 + $0x1b0] sm:$0xff]
      %v2700 = vld [vmem:[%s2626 + $0x1b8] sm:$0xf]
      %v2701 = vld [vmem:[%s2626 + $0x1bc] sm:$0xff]
      %v2702 = vld [vmem:[%s2626 + $0x1c4] sm:$0xf]
      %v2703 = vld [vmem:[%s2626 + $0x1c8] sm:$0xff]
      %v2704 = vld [vmem:[%s2626 + $0x1d0] sm:$0xf]
      %v2705 = vld [vmem:[%s2626 + $0x1d4] sm:$0xff]
      %v2706 = vld [vmem:[%s2626 + $0x1dc] sm:$0xf]
      %v2707 = vld [vmem:[%s2626 + $0x1e0] sm:$0xff]
      %v2708 = vld [vmem:[%s2626 + $0x1e8] sm:$0xf]
      %v2709 = vld [vmem:[%s2626 + $0x1ec] sm:$0xff]
      %v2710 = vld [vmem:[%s2626 + $0x1f4] sm:$0xf]
      %v2711 = vld [vmem:[%s2626 + $0x1f8] sm:$0xff]
      %v2712 = vld [vmem:[%s2626 + $0x200] sm:$0xf]
      %v2713 = vld [vmem:[%s2626 + $0x204] sm:$0xff]
      %v2714 = vld [vmem:[%s2626 + $0x20c] sm:$0xf]
      %v2721 = vrot.slane %v1355, 1
      %v2722 = vrot.slane %v1358, 1
      %v2723 = vsel %vm1223, %v2721, %v2722
      %v2724 = vrot.slane %v1356, 1
      %v2725 = vrot.slane %v1359, 1
      %v2726 = vsel %vm1223, %v2724, %v2725
      %v2727 = vrot.slane %v1357, 1
      %v2728 = vrot.slane %v1360, 1
      %v2729 = vsel %vm1223, %v2727, %v2728
      %v2822 = vunpack.c.l.b16 %v2627
      %v2823 = vunpack.c.h.b16 %v2627
      %v2824 = vunpack.c.l.b16 %v2628
      %v2825 = vunpack.c.l.b16 %v2629
      %v2826 = vunpack.c.h.b16 %v2629
      %v2827 = vunpack.c.l.b16 %v2630
      %v2828 = vunpack.c.l.b16 %v2631
      %v2829 = vunpack.c.h.b16 %v2631
      %v2830 = vunpack.c.l.b16 %v2632
      %v2831 = vunpack.c.l.b16 %v2633
      %v2832 = vunpack.c.h.b16 %v2633
      %v2833 = vunpack.c.l.b16 %v2634
      %v2834 = vunpack.c.l.b16 %v2635
      %v2835 = vunpack.c.h.b16 %v2635
      %v2836 = vunpack.c.l.b16 %v2636
      %v2837 = vunpack.c.l.b16 %v2637
      %v2838 = vunpack.c.h.b16 %v2637
      %v2839 = vunpack.c.l.b16 %v2638
      %v2840 = vunpack.c.l.b16 %v2639
      %v2841 = vunpack.c.h.b16 %v2639
      %v2842 = vunpack.c.l.b16 %v2640
      %v2843 = vunpack.c.l.b16 %v2641
      %v2844 = vunpack.c.h.b16 %v2641
      %v2845 = vunpack.c.l.b16 %v2642
      %v2846 = vunpack.c.l.b16 %v2643
      %v2847 = vunpack.c.h.b16 %v2643
      %v2848 = vunpack.c.l.b16 %v2644
      %v2849 = vunpack.c.l.b16 %v2645
      %v2850 = vunpack.c.h.b16 %v2645
      %v2851 = vunpack.c.l.b16 %v2646
      %v2852 = vunpack.c.l.b16 %v2647
      %v2853 = vunpack.c.h.b16 %v2647
      %v2854 = vunpack.c.l.b16 %v2648
      %v2855 = vunpack.c.l.b16 %v2649
      %v2856 = vunpack.c.h.b16 %v2649
      %v2857 = vunpack.c.l.b16 %v2650
      %v2858 = vunpack.c.l.b16 %v2651
      %v2859 = vunpack.c.h.b16 %v2651
      %v2860 = vunpack.c.l.b16 %v2652
      %v2861 = vunpack.c.l.b16 %v2653
      %v2862 = vunpack.c.h.b16 %v2653
      %v2863 = vunpack.c.l.b16 %v2654
      %v2864 = vunpack.c.l.b16 %v2655
      %v2865 = vunpack.c.h.b16 %v2655
      %v2866 = vunpack.c.l.b16 %v2656
      %v2867 = vunpack.c.l.b16 %v2657
      %v2868 = vunpack.c.h.b16 %v2657
      %v2869 = vunpack.c.l.b16 %v2658
      %v2870 = vunpack.c.l.b16 %v2659
      %v2871 = vunpack.c.h.b16 %v2659
      %v2872 = vunpack.c.l.b16 %v2660
      %v2873 = vunpack.c.l.b16 %v2661
      %v2874 = vunpack.c.h.b16 %v2661
      %v2875 = vunpack.c.l.b16 %v2662
      %v2876 = vunpack.c.l.b16 %v2663
      %v2877 = vunpack.c.h.b16 %v2663
      %v2878 = vunpack.c.l.b16 %v2664
      %v2879 = vunpack.c.l.b16 %v2665
      %v2880 = vunpack.c.h.b16 %v2665
      %v2881 = vunpack.c.l.b16 %v2666
      %v2882 = vunpack.c.l.b16 %v2667
      %v2883 = vunpack.c.h.b16 %v2667
      %v2884 = vunpack.c.l.b16 %v2668
      %v2885 = vunpack.c.l.b16 %v2669
      %v2886 = vunpack.c.h.b16 %v2669
      %v2887 = vunpack.c.l.b16 %v2670
      %v2888 = vunpack.c.l.b16 %v2671
      %v2889 = vunpack.c.h.b16 %v2671
      %v2890 = vunpack.c.l.b16 %v2672
      %v2891 = vunpack.c.l.b16 %v2673
      %v2892 = vunpack.c.h.b16 %v2673
      %v2893 = vunpack.c.l.b16 %v2674
      %v2894 = vunpack.c.l.b16 %v2675
      %v2895 = vunpack.c.h.b16 %v2675
      %v2896 = vunpack.c.l.b16 %v2676
      %v2897 = vunpack.c.l.b16 %v2677
      %v2898 = vunpack.c.h.b16 %v2677
      %v2899 = vunpack.c.l.b16 %v2678
      %v2900 = vunpack.c.l.b16 %v2679
      %v2901 = vunpack.c.h.b16 %v2679
      %v2902 = vunpack.c.l.b16 %v2680
      %v2903 = vunpack.c.l.b16 %v2681
      %v2904 = vunpack.c.h.b16 %v2681
      %v2905 = vunpack.c.l.b16 %v2682
      %v2906 = vunpack.c.l.b16 %v2683
      %v2907 = vunpack.c.h.b16 %v2683
      %v2908 = vunpack.c.l.b16 %v2684
      %v2909 = vunpack.c.l.b16 %v2685
      %v2910 = vunpack.c.h.b16 %v2685
      %v2911 = vunpack.c.l.b16 %v2686
      %v2912 = vunpack.c.l.b16 %v2687
      %v2913 = vunpack.c.h.b16 %v2687
      %v2914 = vunpack.c.l.b16 %v2688
      %v2915 = vunpack.c.l.b16 %v2689
      %v2916 = vunpack.c.h.b16 %v2689
      %v2917 = vunpack.c.l.b16 %v2690
      %v2918 = vunpack.c.l.b16 %v2691
      %v2919 = vunpack.c.h.b16 %v2691
      %v2920 = vunpack.c.l.b16 %v2692
      %v2921 = vunpack.c.l.b16 %v2693
      %v2922 = vunpack.c.h.b16 %v2693
      %v2923 = vunpack.c.l.b16 %v2694
      %v2924 = vunpack.c.l.b16 %v2695
      %v2925 = vunpack.c.h.b16 %v2695
      %v2926 = vunpack.c.l.b16 %v2696
      %v2927 = vunpack.c.l.b16 %v2697
      %v2928 = vunpack.c.h.b16 %v2697
      %v2929 = vunpack.c.l.b16 %v2698
      %v2930 = vunpack.c.l.b16 %v2699
      %v2931 = vunpack.c.h.b16 %v2699
      %v2932 = vunpack.c.l.b16 %v2700
      %v2933 = vunpack.c.l.b16 %v2701
      %v2934 = vunpack.c.h.b16 %v2701
      %v2935 = vunpack.c.l.b16 %v2702
      %v2936 = vunpack.c.l.b16 %v2703
      %v2937 = vunpack.c.h.b16 %v2703
      %v2938 = vunpack.c.l.b16 %v2704
      %v2939 = vunpack.c.l.b16 %v2705
      %v2940 = vunpack.c.h.b16 %v2705
      %v2941 = vunpack.c.l.b16 %v2706
      %v2942 = vunpack.c.l.b16 %v2707
      %v2943 = vunpack.c.h.b16 %v2707
      %v2944 = vunpack.c.l.b16 %v2708
      %v2945 = vunpack.c.l.b16 %v2709
      %v2946 = vunpack.c.h.b16 %v2709
      %v2947 = vunpack.c.l.b16 %v2710
      %v2948 = vunpack.c.l.b16 %v2711
      %v2949 = vunpack.c.h.b16 %v2711
      %v2950 = vunpack.c.l.b16 %v2712
      %v2951 = vunpack.c.l.b16 %v2713
      %v2952 = vunpack.c.h.b16 %v2713
      %v2953 = vunpack.c.l.b16 %v2714
      %v2954 = vpack.c.b16 %v2825, %v2822
      %v2955 = vpack.c.b16 %v2826, %v2823
      %v2956 = vpack.c.b16 %v2827, %v2824
      %v2957 = vpack.c.b16 %v2831, %v2828
      %v2958 = vpack.c.b16 %v2832, %v2829
      %v2959 = vpack.c.b16 %v2833, %v2830
      %v2960 = vpack.c.b16 %v2837, %v2834
      %v2961 = vpack.c.b16 %v2838, %v2835
      %v2962 = vpack.c.b16 %v2839, %v2836
      %v2963 = vpack.c.b16 %v2843, %v2840
      %v2964 = vpack.c.b16 %v2844, %v2841
      %v2965 = vpack.c.b16 %v2845, %v2842
      %v2966 = vpack.c.b16 %v2849, %v2846
      %v2967 = vpack.c.b16 %v2850, %v2847
      %v2968 = vpack.c.b16 %v2851, %v2848
      %v2969 = vpack.c.b16 %v2855, %v2852
      %v2970 = vpack.c.b16 %v2856, %v2853
      %v2971 = vpack.c.b16 %v2857, %v2854
      %v2972 = vpack.c.b16 %v2861, %v2858
      %v2973 = vpack.c.b16 %v2862, %v2859
      %v2974 = vpack.c.b16 %v2863, %v2860
      %v2975 = vpack.c.b16 %v2867, %v2864
      %v2976 = vpack.c.b16 %v2868, %v2865
      %v2977 = vpack.c.b16 %v2869, %v2866
      %v2978 = vpack.c.b16 %v2873, %v2870
      %v2979 = vpack.c.b16 %v2874, %v2871
      %v2980 = vpack.c.b16 %v2875, %v2872
      %v2981 = vpack.c.b16 %v2879, %v2876
      %v2982 = vpack.c.b16 %v2880, %v2877
      %v2983 = vpack.c.b16 %v2881, %v2878
      %v2984 = vpack.c.b16 %v2885, %v2882
      %v2985 = vpack.c.b16 %v2886, %v2883
      %v2986 = vpack.c.b16 %v2887, %v2884
      %v2987 = vpack.c.b16 %v2891, %v2888
      %v2988 = vpack.c.b16 %v2892, %v2889
      %v2989 = vpack.c.b16 %v2893, %v2890
      %v2990 = vpack.c.b16 %v2897, %v2894
      %v2991 = vpack.c.b16 %v2898, %v2895
      %v2992 = vpack.c.b16 %v2899, %v2896
      %v2993 = vpack.c.b16 %v2903, %v2900
      %v2994 = vpack.c.b16 %v2904, %v2901
      %v2995 = vpack.c.b16 %v2905, %v2902
      %v2996 = vpack.c.b16 %v2909, %v2906
      %v2997 = vpack.c.b16 %v2910, %v2907
      %v2998 = vpack.c.b16 %v2911, %v2908
      %v2999 = vpack.c.b16 %v2915, %v2912
      %v3000 = vpack.c.b16 %v2916, %v2913
      %v3001 = vpack.c.b16 %v2917, %v2914
      %v3002 = vpack.c.b16 %v2921, %v2918
      %v3003 = vpack.c.b16 %v2922, %v2919
      %v3004 = vpack.c.b16 %v2923, %v2920
      %v3005 = vpack.c.b16 %v2927, %v2924
      %v3006 = vpack.c.b16 %v2928, %v2925
      %v3007 = vpack.c.b16 %v2929, %v2926
      %v3008 = vpack.c.b16 %v2933, %v2930
      %v3009 = vpack.c.b16 %v2934, %v2931
      %v3010 = vpack.c.b16 %v2935, %v2932
      %v3011 = vpack.c.b16 %v2939, %v2936
      %v3012 = vpack.c.b16 %v2940, %v2937
      %v3013 = vpack.c.b16 %v2941, %v2938
      %v3014 = vpack.c.b16 %v2945, %v2942
      %v3015 = vpack.c.b16 %v2946, %v2943
      %v3016 = vpack.c.b16 %v2947, %v2944
      %v3017 = vpack.c.b16 %v2951, %v2948
      %v3018 = vpack.c.b16 %v2952, %v2949
      %v3019 = vpack.c.b16 %v2953, %v2950
      %v3087 = vsel %vm1939, %v2729, 0
      %v3090 = vsel %vm1939, %v2728, 0
      %3092 = vmatpush.bf16.msra.mxu0 %v2975
      %3093 = vmatpush.bf16.msra.mxu0 %v2972
      %3094 = vmatpush.bf16.msra.mxu0 %v2969
      %3095 = vmatpush.bf16.msra.mxu0 %v2966
      %3096 = vmatpush.bf16.msra.mxu0 %v2963
      %3097 = vmatpush.bf16.msra.mxu0 %v2960
      %3098 = vmatpush.bf16.msra.mxu0 %v2957
      %3099 = vmatpush.bf16.msra.mxu0 %v2954
      %3100 = vmatmul.bf16.gmra.mxu0 %v2723
      %v3101 = vpop.f32.mrf.mxu0
      %v3102 = vadd.f32 0.0, %v3101
      %v3103 = vpop.f32.mrf.mxu0
      %v3104 = vadd.f32 0.0, %v3103
      %3105 = vmatmul.bf16.gmra.mxu0 %v2722
      %v3106 = vpop.f32.mrf.mxu0
      %v3107 = vadd.f32 0.0, %v3106
      %v3108 = vpop.f32.mrf.mxu0
      %3109 = vdwg.mxu0
      %3110 = vmatpush.bf16.msra.mxu0 %v2999
      %3111 = vmatpush.bf16.msra.mxu0 %v2996
      %3112 = vmatpush.bf16.msra.mxu0 %v2993
      %3113 = vmatpush.bf16.msra.mxu0 %v2990
      %3114 = vmatpush.bf16.msra.mxu0 %v2987
      %3115 = vmatpush.bf16.msra.mxu0 %v2984
      %3116 = vmatpush.bf16.msra.mxu0 %v2981
      %3117 = vmatpush.bf16.msra.mxu0 %v2978
      %3118 = vmatmul.bf16.gmra.mxu0 %v2726
      %v3119 = vpop.f32.mrf.mxu0
      %v3120 = vadd.f32 %v3102, %v3119
      %v3121 = vpop.f32.mrf.mxu0
      %v3122 = vadd.f32 %v3104, %v3121
      %3123 = vmatmul.bf16.gmra.mxu0 %v2725
      %v3124 = vpop.f32.mrf.mxu0
      %v3125 = vadd.f32 %v3107, %v3124
      %v3126 = vpop.f32.mrf.mxu0
      %3127 = vdwg.mxu0
      %3128 = vmatpush.bf16.msra.mxu0 0
      %3129 = vmatpush.bf16.msra.mxu0 0
      %3130 = vmatpush.bf16.msra.mxu0 %v3017
      %3131 = vmatpush.bf16.msra.mxu0 %v3014
      %3132 = vmatpush.bf16.msra.mxu0 %v3011
      %3133 = vmatpush.bf16.msra.mxu0 %v3008
      %3134 = vmatpush.bf16.msra.mxu0 %v3005
      %3135 = vmatpush.bf16.msra.mxu0 %v3002
      %3136 = vmatmul.bf16.gmra.mxu0 %v3087
      %v3137 = vpop.f32.mrf.mxu0
      %v3138 = vadd.f32 %v3120, %v3137
      %v3139 = vpop.f32.mrf.mxu0
      %v3140 = vadd.f32 %v3122, %v3139
      %3141 = vmatmul.bf16.gmra.mxu0 %v3090
      %v3142 = vpop.f32.mrf.mxu0
      %v3143 = vadd.f32 %v3125, %v3142
      %v3144 = vpop.f32.mrf.mxu0
      %3145 = vdwg.mxu0
      %3146 = vmatpush.bf16.msra.mxu0 %v2976
      %3147 = vmatpush.bf16.msra.mxu0 %v2973
      %3148 = vmatpush.bf16.msra.mxu0 %v2970
      %3149 = vmatpush.bf16.msra.mxu0 %v2967
      %3150 = vmatpush.bf16.msra.mxu0 %v2964
      %3151 = vmatpush.bf16.msra.mxu0 %v2961
      %3152 = vmatpush.bf16.msra.mxu0 %v2958
      %3153 = vmatpush.bf16.msra.mxu0 %v2955
      %3154 = vmatmul.bf16.gmra.mxu0 %v2723
      %v3155 = vpop.f32.mrf.mxu0
      %v3156 = vadd.f32 0.0, %v3155
      %v3157 = vpop.f32.mrf.mxu0
      %v3158 = vadd.f32 0.0, %v3157
      %3159 = vmatmul.bf16.gmra.mxu0 %v2722
      %v3160 = vpop.f32.mrf.mxu0
      %v3161 = vadd.f32 0.0, %v3160
      %v3162 = vpop.f32.mrf.mxu0
      %3163 = vdwg.mxu0
      %3164 = vmatpush.bf16.msra.mxu0 %v3000
      %3165 = vmatpush.bf16.msra.mxu0 %v2997
      %3166 = vmatpush.bf16.msra.mxu0 %v2994
      %3167 = vmatpush.bf16.msra.mxu0 %v2991
      %3168 = vmatpush.bf16.msra.mxu0 %v2988
      %3169 = vmatpush.bf16.msra.mxu0 %v2985
      %3170 = vmatpush.bf16.msra.mxu0 %v2982
      %3171 = vmatpush.bf16.msra.mxu0 %v2979
      %3172 = vmatmul.bf16.gmra.mxu0 %v2726
      %v3173 = vpop.f32.mrf.mxu0
      %v3174 = vadd.f32 %v3156, %v3173
      %v3175 = vpop.f32.mrf.mxu0
      %v3176 = vadd.f32 %v3158, %v3175
      %3177 = vmatmul.bf16.gmra.mxu0 %v2725
      %v3178 = vpop.f32.mrf.mxu0
      %v3179 = vadd.f32 %v3161, %v3178
      %v3180 = vpop.f32.mrf.mxu0
      %3181 = vdwg.mxu0
      %3182 = vmatpush.bf16.msra.mxu0 0
      %3183 = vmatpush.bf16.msra.mxu0 0
      %3184 = vmatpush.bf16.msra.mxu0 %v3018
      %3185 = vmatpush.bf16.msra.mxu0 %v3015
      %3186 = vmatpush.bf16.msra.mxu0 %v3012
      %3187 = vmatpush.bf16.msra.mxu0 %v3009
      %3188 = vmatpush.bf16.msra.mxu0 %v3006
      %3189 = vmatpush.bf16.msra.mxu0 %v3003
      %3190 = vmatmul.bf16.gmra.mxu0 %v3087
      %v3191 = vpop.f32.mrf.mxu0
      %v3192 = vadd.f32 %v3174, %v3191
      %v3193 = vpop.f32.mrf.mxu0
      %v3194 = vadd.f32 %v3176, %v3193
      %3195 = vmatmul.bf16.gmra.mxu0 %v3090
      %v3196 = vpop.f32.mrf.mxu0
      %v3197 = vadd.f32 %v3179, %v3196
      %v3198 = vpop.f32.mrf.mxu0
      %3199 = vdwg.mxu0
      %3200 = vmatpush.bf16.msra.mxu0 %v2977
      %3201 = vmatpush.bf16.msra.mxu0 %v2974
      %3202 = vmatpush.bf16.msra.mxu0 %v2971
      %3203 = vmatpush.bf16.msra.mxu0 %v2968
      %3204 = vmatpush.bf16.msra.mxu0 %v2965
      %3205 = vmatpush.bf16.msra.mxu0 %v2962
      %3206 = vmatpush.bf16.msra.mxu0 %v2959
      %3207 = vmatpush.bf16.msra.mxu0 %v2956
      %3208 = vmatmul.bf16.gmra.mxu0 %v2723
      %v3209 = vpop.f32.mrf.mxu0
      %v3210 = vadd.f32 0.0, %v3209
      %v3211 = vpop.f32.mrf.mxu0
      %v3212 = vadd.f32 0.0, %v3211
      %3213 = vmatmul.bf16.gmra.mxu0 %v2722
      %v3214 = vpop.f32.mrf.mxu0
      %v3215 = vadd.f32 0.0, %v3214
      %v3216 = vpop.f32.mrf.mxu0
      %3217 = vdwg.mxu0
      %3218 = vmatpush.bf16.msra.mxu0 %v3001
      %3219 = vmatpush.bf16.msra.mxu0 %v2998
      %3220 = vmatpush.bf16.msra.mxu0 %v2995
      %3221 = vmatpush.bf16.msra.mxu0 %v2992
      %3222 = vmatpush.bf16.msra.mxu0 %v2989
      %3223 = vmatpush.bf16.msra.mxu0 %v2986
      %3224 = vmatpush.bf16.msra.mxu0 %v2983
      %3225 = vmatpush.bf16.msra.mxu0 %v2980
      %3226 = vmatmul.bf16.gmra.mxu0 %v2726
      %v3227 = vpop.f32.mrf.mxu0
      %v3228 = vadd.f32 %v3210, %v3227
      %v3229 = vpop.f32.mrf.mxu0
      %v3230 = vadd.f32 %v3212, %v3229
      %3231 = vmatmul.bf16.gmra.mxu0 %v2725
      %v3232 = vpop.f32.mrf.mxu0
      %v3233 = vadd.f32 %v3215, %v3232
      %v3234 = vpop.f32.mrf.mxu0
      %3235 = vdwg.mxu0
      %3236 = vmatpush.bf16.msra.mxu0 0
      %3237 = vmatpush.bf16.msra.mxu0 0
      %3238 = vmatpush.bf16.msra.mxu0 %v3019
      %3239 = vmatpush.bf16.msra.mxu0 %v3016
      %3240 = vmatpush.bf16.msra.mxu0 %v3013
      %3241 = vmatpush.bf16.msra.mxu0 %v3010
      %3242 = vmatpush.bf16.msra.mxu0 %v3007
      %3243 = vmatpush.bf16.msra.mxu0 %v3004
      %3244 = vmatmul.bf16.gmra.mxu0 %v3087
      %v3245 = vpop.f32.mrf.mxu0
      %v3246 = vadd.f32 %v3228, %v3245
      %v3247 = vpop.f32.mrf.mxu0
      %v3248 = vadd.f32 %v3230, %v3247
      %3249 = vmatmul.bf16.gmra.mxu0 %v3090
      %v3250 = vpop.f32.mrf.mxu0
      %v3251 = vadd.f32 %v3233, %v3250
      %v3252 = vpop.f32.mrf.mxu0
      %3253 = vdwg.mxu0
      %v3254 = vadd.f32 %v2510, %v3138
      %v3255 = vadd.f32 %v2564, %v3192
      %v3256 = vadd.f32 %v2618, %v3246
      %v3257 = vadd.f32 %v2512, %v3140
      %v3258 = vadd.f32 %v2566, %v3194
      %v3259 = vadd.f32 %v2620, %v3248
      %v3260 = vadd.f32 %v2515, %v3143
      %v3261 = vadd.f32 %v2569, %v3197
      %v3262 = vadd.f32 %v2623, %v3251
      %v3263 = vld [vmem:[%s953] sm:$0x7]
      %v3265 = vperm.slane %v3263, 0
      %v3266 = vperm.slane %v3263, 1
      %v3267 = vperm.slane %v3263, 2
      %v3271 = vadd.f32 %v3254, %v3265
      %v3272 = vadd.f32 %v3255, %v3266
      %v3273 = vadd.f32 %v3256, %v3267
      %v3274 = vadd.f32 %v3257, %v3265
      %v3275 = vadd.f32 %v3258, %v3266
      %v3276 = vadd.f32 %v3259, %v3267
      %v3277 = vadd.f32 %v3260, %v3265
      %v3278 = vadd.f32 %v3261, %v3266
      %v3279 = vadd.f32 %v3262, %v3267
      %v3280 = vmax.f32 %v3271, 0.0
      %v3281 = vmax.f32 %v3272, 0.0
      %v3282 = vmax.f32 %v3273, 0.0
      %v3283 = vmax.f32 %v3274, 0.0
      %v3284 = vmax.f32 %v3275, 0.0
      %v3285 = vmax.f32 %v3276, 0.0
      %v3286 = vmax.f32 %v3277, 0.0
      %v3287 = vmax.f32 %v3278, 0.0
      %v3288 = vmax.f32 %v3279, 0.0
      %v3289 = vld [vmem:[%s13] sm:$0xff]
      %v3290 = vld [vmem:[%s13 + $0x8] sm:$0x3]
      %vm3291 = vcmask 162816
      %v3293 = vsel %vm3291, %v3289, 0
      %v3296 = vsel %vm3291, %v3290, 0
      %v3299 = vsel %vm1059, %v3286, 0
      %v3302 = vsel %vm1059, %v3287, 0
      %v3305 = vsel %vm1059, %v3288, 0
      %3307 = vmatpush.msra.mxu0 0.0
      %3308 = vmatpush.msra.mxu0 0.0
      %3309 = vmatpush.msra.mxu0 0.0
      %3310 = vmatpush.msra.mxu0 0.0
      %3311 = vmatpush.msra.mxu0 0.0
      %3312 = vmatpush.msra.mxu0 0.0
      %3313 = vmatpush.msra.mxu0 0.0
      %3314 = vmatpush.msra.mxu0 0.0
      %3315 = vmatpush.msra.mxu0 0.0
      %3316 = vmatpush.msra.mxu0 0.0
      %3317 = vmatpush.msra.mxu0 0.0
      %3318 = vmatpush.msra.mxu0 0.0
      %3319 = vmatpush.msra.mxu0 0.0
      %3320 = vmatpush.msra.mxu0 %v3299
      %3321 = vmatpush.msra.mxu0 %v3283
      %3322 = vmatpush.msra.mxu0 %v3280
      %3323 = vmatmul.f32.gmra.mxu0 %v3293
      %v3324 = vpop.f32.mrf.mxu0
      %v3325 = vadd.f32 0.0, %v3324
      %3326 = vmatmul.f32.gmra.mxu0 %v3296
      %v3327 = vpop.f32.mrf.mxu0
      %v3328 = vadd.f32 0.0, %v3327
      %3329 = vdwg.mxu0
      %3330 = vmatpush.msra.mxu0 0.0
      %3331 = vmatpush.msra.mxu0 0.0
      %3332 = vmatpush.msra.mxu0 0.0
      %3333 = vmatpush.msra.mxu0 0.0
      %3334 = vmatpush.msra.mxu0 0.0
      %3335 = vmatpush.msra.mxu0 0.0
      %3336 = vmatpush.msra.mxu0 0.0
      %3337 = vmatpush.msra.mxu0 0.0
      %3338 = vmatpush.msra.mxu0 0.0
      %3339 = vmatpush.msra.mxu0 0.0
      %3340 = vmatpush.msra.mxu0 0.0
      %3341 = vmatpush.msra.mxu0 0.0
      %3342 = vmatpush.msra.mxu0 0.0
      %3343 = vmatpush.msra.mxu0 %v3302
      %3344 = vmatpush.msra.mxu0 %v3284
      %3345 = vmatpush.msra.mxu0 %v3281
      %3346 = vmatmul.f32.gmra.mxu0 %v3293
      %v3347 = vpop.f32.mrf.mxu0
      %v3348 = vadd.f32 0.0, %v3347
      %3349 = vmatmul.f32.gmra.mxu0 %v3296
      %v3350 = vpop.f32.mrf.mxu0
      %v3351 = vadd.f32 0.0, %v3350
      %3352 = vdwg.mxu0
      %3353 = vmatpush.msra.mxu0 0.0
      %3354 = vmatpush.msra.mxu0 0.0
      %3355 = vmatpush.msra.mxu0 0.0
      %3356 = vmatpush.msra.mxu0 0.0
      %3357 = vmatpush.msra.mxu0 0.0
      %3358 = vmatpush.msra.mxu0 0.0
      %3359 = vmatpush.msra.mxu0 0.0
      %3360 = vmatpush.msra.mxu0 0.0
      %3361 = vmatpush.msra.mxu0 0.0
      %3362 = vmatpush.msra.mxu0 0.0
      %3363 = vmatpush.msra.mxu0 0.0
      %3364 = vmatpush.msra.mxu0 0.0
      %3365 = vmatpush.msra.mxu0 0.0
      %3366 = vmatpush.msra.mxu0 %v3305
      %3367 = vmatpush.msra.mxu0 %v3285
      %3368 = vmatpush.msra.mxu0 %v3282
      %3369 = vmatmul.f32.gmra.mxu0 %v3293
      %v3370 = vpop.f32.mrf.mxu0
      %v3371 = vadd.f32 0.0, %v3370
      %3372 = vmatmul.f32.gmra.mxu0 %v3296
      %v3373 = vpop.f32.mrf.mxu0
      %v3374 = vadd.f32 0.0, %v3373
      %3375 = vdwg.mxu0
      %v3376 = vld [vmem:[%s14] sm:$0xff]
      %v3377 = vld [vmem:[%s14 + $0x8] sm:$0x3]
      %v3379 = vsel %vm3291, %v3376, 0
      %v3382 = vsel %vm3291, %v3377, 0
      %3384 = vmatpush.msra.mxu0 0.0
      %3385 = vmatpush.msra.mxu0 0.0
      %3386 = vmatpush.msra.mxu0 0.0
      %3387 = vmatpush.msra.mxu0 0.0
      %3388 = vmatpush.msra.mxu0 0.0
      %3389 = vmatpush.msra.mxu0 0.0
      %3390 = vmatpush.msra.mxu0 0.0
      %3391 = vmatpush.msra.mxu0 0.0
      %3392 = vmatpush.msra.mxu0 0.0
      %3393 = vmatpush.msra.mxu0 0.0
      %3394 = vmatpush.msra.mxu0 0.0
      %3395 = vmatpush.msra.mxu0 0.0
      %3396 = vmatpush.msra.mxu0 0.0
      %3397 = vmatpush.msra.mxu0 %v3299
      %3398 = vmatpush.msra.mxu0 %v3283
      %3399 = vmatpush.msra.mxu0 %v3280
      %3400 = vmatmul.f32.gmra.mxu0 %v3379
      %v3401 = vpop.f32.mrf.mxu0
      %v3402 = vadd.f32 0.0, %v3401
      %3403 = vmatmul.f32.gmra.mxu0 %v3382
      %v3404 = vpop.f32.mrf.mxu0
      %v3405 = vadd.f32 0.0, %v3404
      %3406 = vdwg.mxu0
      %3407 = vmatpush.msra.mxu0 0.0
      %3408 = vmatpush.msra.mxu0 0.0
      %3409 = vmatpush.msra.mxu0 0.0
      %3410 = vmatpush.msra.mxu0 0.0
      %3411 = vmatpush.msra.mxu0 0.0
      %3412 = vmatpush.msra.mxu0 0.0
      %3413 = vmatpush.msra.mxu0 0.0
      %3414 = vmatpush.msra.mxu0 0.0
      %3415 = vmatpush.msra.mxu0 0.0
      %3416 = vmatpush.msra.mxu0 0.0
      %3417 = vmatpush.msra.mxu0 0.0
      %3418 = vmatpush.msra.mxu0 0.0
      %3419 = vmatpush.msra.mxu0 0.0
      %3420 = vmatpush.msra.mxu0 %v3302
      %3421 = vmatpush.msra.mxu0 %v3284
      %3422 = vmatpush.msra.mxu0 %v3281
      %3423 = vmatmul.f32.gmra.mxu0 %v3379
      %v3424 = vpop.f32.mrf.mxu0
      %v3425 = vadd.f32 0.0, %v3424
      %3426 = vmatmul.f32.gmra.mxu0 %v3382
      %v3427 = vpop.f32.mrf.mxu0
      %v3428 = vadd.f32 0.0, %v3427
      %3429 = vdwg.mxu0
      %3430 = vmatpush.msra.mxu0 0.0
      %3431 = vmatpush.msra.mxu0 0.0
      %3432 = vmatpush.msra.mxu0 0.0
      %3433 = vmatpush.msra.mxu0 0.0
      %3434 = vmatpush.msra.mxu0 0.0
      %3435 = vmatpush.msra.mxu0 0.0
      %3436 = vmatpush.msra.mxu0 0.0
      %3437 = vmatpush.msra.mxu0 0.0
      %3438 = vmatpush.msra.mxu0 0.0
      %3439 = vmatpush.msra.mxu0 0.0
      %3440 = vmatpush.msra.mxu0 0.0
      %3441 = vmatpush.msra.mxu0 0.0
      %3442 = vmatpush.msra.mxu0 0.0
      %3443 = vmatpush.msra.mxu0 %v3305
      %3444 = vmatpush.msra.mxu0 %v3285
      %3445 = vmatpush.msra.mxu0 %v3282
      %3446 = vmatmul.f32.gmra.mxu0 %v3379
      %v3447 = vpop.f32.mrf.mxu0
      %v3448 = vadd.f32 0.0, %v3447
      %3449 = vmatmul.f32.gmra.mxu0 %v3382
      %v3450 = vpop.f32.mrf.mxu0
      %v3451 = vadd.f32 0.0, %v3450
      %3452 = vdwg.mxu0
      %v3453 = vmax.f32 %v3325, %v3402
      %v3454 = vmax.f32 %v3348, %v3425
      %v3455 = vmax.f32 %v3371, %v3448
      %v3456 = vmax.f32 %v3328, %v3405
      %v3457 = vmax.f32 %v3351, %v3428
      %v3458 = vmax.f32 %v3374, %v3451
      %v3459 = vld [vmem:[%s15] sm:$0xff]
      %v3460 = vld [vmem:[%s15 + $0x8] sm:$0xff]
      %v3461 = vld [vmem:[%s15 + $0x10] sm:$0xff]
      %v3462 = vld [vmem:[%s15 + $0x18] sm:$0xff]
      %v3463 = vld [vmem:[%s15 + $0x20] sm:$0xff]
      %v3464 = vld [vmem:[%s15 + $0x28] sm:$0xff]
      %v3465 = vld [vmem:[%s15 + $0x30] sm:$0xff]
      %v3466 = vld [vmem:[%s15 + $0x38] sm:$0xff]
      %v3467 = vld [vmem:[%s15 + $0x40] sm:$0xff]
      %v3468 = vld [vmem:[%s15 + $0x48] sm:$0xff]
      %v3469 = vld [vmem:[%s15 + $0x50] sm:$0xff]
      %v3470 = vld [vmem:[%s15 + $0x58] sm:$0xff]
      %v3471 = vld [vmem:[%s15 + $0x60] sm:$0xff]
      %v3472 = vld [vmem:[%s15 + $0x68] sm:$0xff]
      %v3473 = vld [vmem:[%s15 + $0x70] sm:$0xff]
      %v3474 = vld [vmem:[%s15 + $0x78] sm:$0xff]
      %v3475 = vld [vmem:[%s15 + $0x80] sm:$0xff]
      %v3476 = vld [vmem:[%s15 + $0x88] sm:$0xff]
      %v3477 = vld [vmem:[%s15 + $0x90] sm:$0xff]
      %v3478 = vld [vmem:[%s15 + $0x98] sm:$0xff]
      %v3479 = vld [vmem:[%s15 + $0xa0] sm:$0xff]
      %v3480 = vld [vmem:[%s15 + $0xa8] sm:$0xff]
      %v3481 = vld [vmem:[%s15 + $0xb0] sm:$0xff]
      %v3482 = vld [vmem:[%s15 + $0xb8] sm:$0xff]
      %v3483 = vld [vmem:[%s15 + $0xc0] sm:$0xff]
      %v3484 = vld [vmem:[%s15 + $0xc8] sm:$0xff]
      %v3485 = vld [vmem:[%s15 + $0xd0] sm:$0xff]
      %v3486 = vld [vmem:[%s15 + $0xd8] sm:$0xff]
      %v3487 = vld [vmem:[%s15 + $0xe0] sm:$0xff]
      %v3488 = vld [vmem:[%s15 + $0xe8] sm:$0xff]
      %v3489 = vld [vmem:[%s15 + $0xf0] sm:$0xff]
      %v3490 = vld [vmem:[%s15 + $0xf8] sm:$0xff]
      %v3491 = vld [vmem:[%s15 + $0x100] sm:$0xff]
      %v3492 = vld [vmem:[%s15 + $0x108] sm:$0xff]
      %v3493 = vld [vmem:[%s15 + $0x110] sm:$0xff]
      %v3494 = vld [vmem:[%s15 + $0x118] sm:$0xff]
      %v3495 = vld [vmem:[%s15 + $0x120] sm:$0xff]
      %v3496 = vld [vmem:[%s15 + $0x128] sm:$0xff]
      %v3497 = vld [vmem:[%s15 + $0x130] sm:$0xff]
      %v3498 = vld [vmem:[%s15 + $0x138] sm:$0xff]
      %v3499 = vld [vmem:[%s15 + $0x140] sm:$0xff]
      %v3500 = vld [vmem:[%s15 + $0x148] sm:$0xff]
      %v3501 = vld [vmem:[%s15 + $0x150] sm:$0xff]
      %v3502 = vld [vmem:[%s15 + $0x158] sm:$0xff]
      %v3503 = vld [vmem:[%s15 + $0x160] sm:$0xff]
      %v3504 = vld [vmem:[%s15 + $0x168] sm:$0xff]
      %v3505 = vld [vmem:[%s15 + $0x170] sm:$0xff]
      %v3506 = vld [vmem:[%s15 + $0x178] sm:$0xff]
      %v3507 = vld [vmem:[%s15 + $0x180] sm:$0xff]
      %v3508 = vld [vmem:[%s15 + $0x188] sm:$0xff]
      %v3509 = vld [vmem:[%s15 + $0x190] sm:$0xff]
      %v3510 = vld [vmem:[%s15 + $0x198] sm:$0xff]
      %v3511 = vld [vmem:[%s15 + $0x1a0] sm:$0xff]
      %v3512 = vld [vmem:[%s15 + $0x1a8] sm:$0xff]
      %v3513 = vld [vmem:[%s15 + $0x1b0] sm:$0xff]
      %v3514 = vld [vmem:[%s15 + $0x1b8] sm:$0xff]
      %v3515 = vld [vmem:[%s15 + $0x1c0] sm:$0xff]
      %v3516 = vld [vmem:[%s15 + $0x1c8] sm:$0xff]
      %v3517 = vld [vmem:[%s15 + $0x1d0] sm:$0xff]
      %v3518 = vld [vmem:[%s15 + $0x1d8] sm:$0xff]
      %v3519 = vld [vmem:[%s15 + $0x1e0] sm:$0xff]
      %v3520 = vld [vmem:[%s15 + $0x1e8] sm:$0xff]
      %v3521 = vld [vmem:[%s15 + $0x1f0] sm:$0xff]
      %v3522 = vld [vmem:[%s15 + $0x1f8] sm:$0xff]
      %v3523 = vld [vmem:[%s15 + $0x200] sm:$0xff]
      %v3524 = vld [vmem:[%s15 + $0x208] sm:$0xff]
      %v3525 = vld [vmem:[%s15 + $0x210] sm:$0xff]
      %v3526 = vld [vmem:[%s15 + $0x218] sm:$0xff]
      %v3527 = vld [vmem:[%s15 + $0x220] sm:$0xff]
      %v3528 = vld [vmem:[%s15 + $0x228] sm:$0xff]
      %v3529 = vld [vmem:[%s15 + $0x230] sm:$0xff]
      %v3530 = vld [vmem:[%s15 + $0x238] sm:$0xff]
      %v3531 = vld [vmem:[%s15 + $0x240] sm:$0xff]
      %v3532 = vld [vmem:[%s15 + $0x248] sm:$0xff]
      %v3533 = vld [vmem:[%s15 + $0x250] sm:$0xff]
      %v3534 = vld [vmem:[%s15 + $0x258] sm:$0xff]
      %v3535 = vld [vmem:[%s15 + $0x260] sm:$0xff]
      %v3536 = vld [vmem:[%s15 + $0x268] sm:$0xff]
      %v3537 = vld [vmem:[%s15 + $0x270] sm:$0xff]
      %v3538 = vld [vmem:[%s15 + $0x278] sm:$0xff]
      %vm3539 = vcmask 523264
      %v3541 = vsel %vm3539, %v3455, 0
      %v3544 = vsel %vm3539, %v3458, 0
      %3546 = vmatpush.msra.mxu0 %v3489
      %3547 = vmatpush.msra.mxu0 %v3487
      %3548 = vmatpush.msra.mxu0 %v3485
      %3549 = vmatpush.msra.mxu0 %v3483
      %3550 = vmatpush.msra.mxu0 %v3481
      %3551 = vmatpush.msra.mxu0 %v3479
      %3552 = vmatpush.msra.mxu0 %v3477
      %3553 = vmatpush.msra.mxu0 %v3475
      %3554 = vmatpush.msra.mxu0 %v3473
      %3555 = vmatpush.msra.mxu0 %v3471
      %3556 = vmatpush.msra.mxu0 %v3469
      %3557 = vmatpush.msra.mxu0 %v3467
      %3558 = vmatpush.msra.mxu0 %v3465
      %3559 = vmatpush.msra.mxu0 %v3463
      %3560 = vmatpush.msra.mxu0 %v3461
      %3561 = vmatpush.msra.mxu0 %v3459
      %3562 = vmatmul.f32.gmra.mxu0 %v3453
      %v3563 = vpop.f32.mrf.mxu0
      %v3564 = vadd.f32 0.0, %v3563
      %3565 = vmatmul.f32.gmra.mxu0 %v3456
      %v3566 = vpop.f32.mrf.mxu0
      %v3567 = vadd.f32 0.0, %v3566
      %3568 = vdwg.mxu0
      %3569 = vmatpush.msra.mxu0 %v3521
      %3570 = vmatpush.msra.mxu0 %v3519
      %3571 = vmatpush.msra.mxu0 %v3517
      %3572 = vmatpush.msra.mxu0 %v3515
      %3573 = vmatpush.msra.mxu0 %v3513
      %3574 = vmatpush.msra.mxu0 %v3511
      %3575 = vmatpush.msra.mxu0 %v3509
      %3576 = vmatpush.msra.mxu0 %v3507
      %3577 = vmatpush.msra.mxu0 %v3505
      %3578 = vmatpush.msra.mxu0 %v3503
      %3579 = vmatpush.msra.mxu0 %v3501
      %3580 = vmatpush.msra.mxu0 %v3499
      %3581 = vmatpush.msra.mxu0 %v3497
      %3582 = vmatpush.msra.mxu0 %v3495
      %3583 = vmatpush.msra.mxu0 %v3493
      %3584 = vmatpush.msra.mxu0 %v3491
      %3585 = vmatmul.f32.gmra.mxu0 %v3454
      %v3586 = vpop.f32.mrf.mxu0
      %v3587 = vadd.f32 %v3564, %v3586
      %3588 = vmatmul.f32.gmra.mxu0 %v3457
      %v3589 = vpop.f32.mrf.mxu0
      %v3590 = vadd.f32 %v3567, %v3589
      %3591 = vdwg.mxu0
      %3592 = vmatpush.msra.mxu0 0.0
      %3593 = vmatpush.msra.mxu0 0.0
      %3594 = vmatpush.msra.mxu0 0.0
      %3595 = vmatpush.msra.mxu0 0.0
      %3596 = vmatpush.msra.mxu0 0.0
      %3597 = vmatpush.msra.mxu0 0.0
      %3598 = vmatpush.msra.mxu0 0.0
      %3599 = vmatpush.msra.mxu0 0.0
      %3600 = vmatpush.msra.mxu0 %v3537
      %3601 = vmatpush.msra.mxu0 %v3535
      %3602 = vmatpush.msra.mxu0 %v3533
      %3603 = vmatpush.msra.mxu0 %v3531
      %3604 = vmatpush.msra.mxu0 %v3529
      %3605 = vmatpush.msra.mxu0 %v3527
      %3606 = vmatpush.msra.mxu0 %v3525
      %3607 = vmatpush.msra.mxu0 %v3523
      %3608 = vmatmul.f32.gmra.mxu0 %v3541
      %v3609 = vpop.f32.mrf.mxu0
      %v3610 = vadd.f32 %v3587, %v3609
      %3611 = vmatmul.f32.gmra.mxu0 %v3544
      %v3612 = vpop.f32.mrf.mxu0
      %v3613 = vadd.f32 %v3590, %v3612
      %3614 = vdwg.mxu0
      %3615 = vmatpush.msra.mxu0 %v3490
      %3616 = vmatpush.msra.mxu0 %v3488
      %3617 = vmatpush.msra.mxu0 %v3486
      %3618 = vmatpush.msra.mxu0 %v3484
      %3619 = vmatpush.msra.mxu0 %v3482
      %3620 = vmatpush.msra.mxu0 %v3480
      %3621 = vmatpush.msra.mxu0 %v3478
      %3622 = vmatpush.msra.mxu0 %v3476
      %3623 = vmatpush.msra.mxu0 %v3474
      %3624 = vmatpush.msra.mxu0 %v3472
      %3625 = vmatpush.msra.mxu0 %v3470
      %3626 = vmatpush.msra.mxu0 %v3468
      %3627 = vmatpush.msra.mxu0 %v3466
      %3628 = vmatpush.msra.mxu0 %v3464
      %3629 = vmatpush.msra.mxu0 %v3462
      %3630 = vmatpush.msra.mxu0 %v3460
      %3631 = vmatmul.f32.gmra.mxu0 %v3453
      %v3632 = vpop.f32.mrf.mxu0
      %v3633 = vadd.f32 0.0, %v3632
      %3634 = vmatmul.f32.gmra.mxu0 %v3456
      %v3635 = vpop.f32.mrf.mxu0
      %v3636 = vadd.f32 0.0, %v3635
      %3637 = vdwg.mxu0
      %3638 = vmatpush.msra.mxu0 %v3522
      %3639 = vmatpush.msra.mxu0 %v3520
      %3640 = vmatpush.msra.mxu0 %v3518
      %3641 = vmatpush.msra.mxu0 %v3516
      %3642 = vmatpush.msra.mxu0 %v3514
      %3643 = vmatpush.msra.mxu0 %v3512
      %3644 = vmatpush.msra.mxu0 %v3510
      %3645 = vmatpush.msra.mxu0 %v3508
      %3646 = vmatpush.msra.mxu0 %v3506
      %3647 = vmatpush.msra.mxu0 %v3504
      %3648 = vmatpush.msra.mxu0 %v3502
      %3649 = vmatpush.msra.mxu0 %v3500
      %3650 = vmatpush.msra.mxu0 %v3498
      %3651 = vmatpush.msra.mxu0 %v3496
      %3652 = vmatpush.msra.mxu0 %v3494
      %3653 = vmatpush.msra.mxu0 %v3492
      %3654 = vmatmul.f32.gmra.mxu0 %v3454
      %v3655 = vpop.f32.mrf.mxu0
      %v3656 = vadd.f32 %v3633, %v3655
      %3657 = vmatmul.f32.gmra.mxu0 %v3457
      %v3658 = vpop.f32.mrf.mxu0
      %v3659 = vadd.f32 %v3636, %v3658
      %3660 = vdwg.mxu0
      %3661 = vmatpush.msra.mxu0 0.0
      %3662 = vmatpush.msra.mxu0 0.0
      %3663 = vmatpush.msra.mxu0 0.0
      %3664 = vmatpush.msra.mxu0 0.0
      %3665 = vmatpush.msra.mxu0 0.0
      %3666 = vmatpush.msra.mxu0 0.0
      %3667 = vmatpush.msra.mxu0 0.0
      %3668 = vmatpush.msra.mxu0 0.0
      %3669 = vmatpush.msra.mxu0 %v3538
      %3670 = vmatpush.msra.mxu0 %v3536
      %3671 = vmatpush.msra.mxu0 %v3534
      %3672 = vmatpush.msra.mxu0 %v3532
      %3673 = vmatpush.msra.mxu0 %v3530
      %3674 = vmatpush.msra.mxu0 %v3528
      %3675 = vmatpush.msra.mxu0 %v3526
      %3676 = vmatpush.msra.mxu0 %v3524
      %3677 = vmatmul.f32.gmra.mxu0 %v3541
      %v3678 = vpop.f32.mrf.mxu0
      %v3679 = vadd.f32 %v3656, %v3678
      %3680 = vmatmul.f32.gmra.mxu0 %v3544
      %v3681 = vpop.f32.mrf.mxu0
      %v3682 = vadd.f32 %v3659, %v3681
      %3683 = vdwg.mxu0
      %v3684 = vld [vmem:[%s16] sm:$0xff]
      %v3685 = vld [vmem:[%s16 + $0x8] sm:$0xff]
      %v3686 = vld [vmem:[%s16 + $0x10] sm:$0xff]
      %v3687 = vld [vmem:[%s16 + $0x18] sm:$0xff]
      %v3688 = vld [vmem:[%s16 + $0x20] sm:$0xff]
      %v3689 = vld [vmem:[%s16 + $0x28] sm:$0xff]
      %v3690 = vld [vmem:[%s16 + $0x30] sm:$0xff]
      %v3691 = vld [vmem:[%s16 + $0x38] sm:$0xff]
      %v3692 = vld [vmem:[%s16 + $0x40] sm:$0xff]
      %v3693 = vld [vmem:[%s16 + $0x48] sm:$0xff]
      %v3694 = vld [vmem:[%s16 + $0x50] sm:$0xff]
      %v3695 = vld [vmem:[%s16 + $0x58] sm:$0xff]
      %v3696 = vld [vmem:[%s16 + $0x60] sm:$0xff]
      %v3697 = vld [vmem:[%s16 + $0x68] sm:$0xff]
      %v3698 = vld [vmem:[%s16 + $0x70] sm:$0xff]
      %v3699 = vld [vmem:[%s16 + $0x78] sm:$0xff]
      %v3700 = vld [vmem:[%s16 + $0x80] sm:$0xff]
      %v3701 = vld [vmem:[%s16 + $0x88] sm:$0xff]
      %v3702 = vld [vmem:[%s16 + $0x90] sm:$0xff]
      %v3703 = vld [vmem:[%s16 + $0x98] sm:$0xff]
      %v3704 = vld [vmem:[%s16 + $0xa0] sm:$0xff]
      %v3705 = vld [vmem:[%s16 + $0xa8] sm:$0xff]
      %v3706 = vld [vmem:[%s16 + $0xb0] sm:$0xff]
      %v3707 = vld [vmem:[%s16 + $0xb8] sm:$0xff]
      %v3708 = vld [vmem:[%s16 + $0xc0] sm:$0xff]
      %v3709 = vld [vmem:[%s16 + $0xc8] sm:$0xff]
      %v3710 = vld [vmem:[%s16 + $0xd0] sm:$0xff]
      %v3711 = vld [vmem:[%s16 + $0xd8] sm:$0xff]
      %v3712 = vld [vmem:[%s16 + $0xe0] sm:$0xff]
      %v3713 = vld [vmem:[%s16 + $0xe8] sm:$0xff]
      %v3714 = vld [vmem:[%s16 + $0xf0] sm:$0xff]
      %v3715 = vld [vmem:[%s16 + $0xf8] sm:$0xff]
      %v3716 = vld [vmem:[%s16 + $0x100] sm:$0xff]
      %v3717 = vld [vmem:[%s16 + $0x108] sm:$0xff]
      %v3718 = vld [vmem:[%s16 + $0x110] sm:$0xff]
      %v3719 = vld [vmem:[%s16 + $0x118] sm:$0xff]
      %v3720 = vld [vmem:[%s16 + $0x120] sm:$0xff]
      %v3721 = vld [vmem:[%s16 + $0x128] sm:$0xff]
      %v3722 = vld [vmem:[%s16 + $0x130] sm:$0xff]
      %v3723 = vld [vmem:[%s16 + $0x138] sm:$0xff]
      %v3724 = vld [vmem:[%s16 + $0x140] sm:$0xff]
      %v3725 = vld [vmem:[%s16 + $0x148] sm:$0xff]
      %v3726 = vld [vmem:[%s16 + $0x150] sm:$0xff]
      %v3727 = vld [vmem:[%s16 + $0x158] sm:$0xff]
      %v3728 = vld [vmem:[%s16 + $0x160] sm:$0xff]
      %v3729 = vld [vmem:[%s16 + $0x168] sm:$0xff]
      %v3730 = vld [vmem:[%s16 + $0x170] sm:$0xff]
      %v3731 = vld [vmem:[%s16 + $0x178] sm:$0xff]
      %v3732 = vld [vmem:[%s16 + $0x180] sm:$0xff]
      %v3733 = vld [vmem:[%s16 + $0x188] sm:$0xff]
      %v3734 = vld [vmem:[%s16 + $0x190] sm:$0xff]
      %v3735 = vld [vmem:[%s16 + $0x198] sm:$0xff]
      %v3736 = vld [vmem:[%s16 + $0x1a0] sm:$0xff]
      %v3737 = vld [vmem:[%s16 + $0x1a8] sm:$0xff]
      %v3738 = vld [vmem:[%s16 + $0x1b0] sm:$0xff]
      %v3739 = vld [vmem:[%s16 + $0x1b8] sm:$0xff]
      %v3740 = vld [vmem:[%s16 + $0x1c0] sm:$0xff]
      %v3741 = vld [vmem:[%s16 + $0x1c8] sm:$0xff]
      %v3742 = vld [vmem:[%s16 + $0x1d0] sm:$0xff]
      %v3743 = vld [vmem:[%s16 + $0x1d8] sm:$0xff]
      %v3744 = vld [vmem:[%s16 + $0x1e0] sm:$0xff]
      %v3745 = vld [vmem:[%s16 + $0x1e8] sm:$0xff]
      %v3746 = vld [vmem:[%s16 + $0x1f0] sm:$0xff]
      %v3747 = vld [vmem:[%s16 + $0x1f8] sm:$0xff]
      %v3748 = vld [vmem:[%s16 + $0x200] sm:$0xff]
      %v3749 = vld [vmem:[%s16 + $0x208] sm:$0xff]
      %v3750 = vld [vmem:[%s16 + $0x210] sm:$0xff]
      %v3751 = vld [vmem:[%s16 + $0x218] sm:$0xff]
      %v3752 = vld [vmem:[%s16 + $0x220] sm:$0xff]
      %v3753 = vld [vmem:[%s16 + $0x228] sm:$0xff]
      %v3754 = vld [vmem:[%s16 + $0x230] sm:$0xff]
      %v3755 = vld [vmem:[%s16 + $0x238] sm:$0xff]
      %v3756 = vld [vmem:[%s16 + $0x240] sm:$0xff]
      %v3757 = vld [vmem:[%s16 + $0x248] sm:$0xff]
      %v3758 = vld [vmem:[%s16 + $0x250] sm:$0xff]
      %v3759 = vld [vmem:[%s16 + $0x258] sm:$0xff]
      %v3760 = vld [vmem:[%s16 + $0x260] sm:$0xff]
      %v3761 = vld [vmem:[%s16 + $0x268] sm:$0xff]
      %v3762 = vld [vmem:[%s16 + $0x270] sm:$0xff]
      %v3763 = vld [vmem:[%s16 + $0x278] sm:$0xff]
      %3764 = vmatpush.msra.mxu0 %v3714
      %3765 = vmatpush.msra.mxu0 %v3712
      %3766 = vmatpush.msra.mxu0 %v3710
      %3767 = vmatpush.msra.mxu0 %v3708
      %3768 = vmatpush.msra.mxu0 %v3706
      %3769 = vmatpush.msra.mxu0 %v3704
      %3770 = vmatpush.msra.mxu0 %v3702
      %3771 = vmatpush.msra.mxu0 %v3700
      %3772 = vmatpush.msra.mxu0 %v3698
      %3773 = vmatpush.msra.mxu0 %v3696
      %3774 = vmatpush.msra.mxu0 %v3694
      %3775 = vmatpush.msra.mxu0 %v3692
      %3776 = vmatpush.msra.mxu0 %v3690
      %3777 = vmatpush.msra.mxu0 %v3688
      %3778 = vmatpush.msra.mxu0 %v3686
      %3779 = vmatpush.msra.mxu0 %v3684
      %3780 = vmatmul.f32.gmra.mxu0 %v3453
      %v3781 = vpop.f32.mrf.mxu0
      %v3782 = vadd.f32 0.0, %v3781
      %3783 = vmatmul.f32.gmra.mxu0 %v3456
      %v3784 = vpop.f32.mrf.mxu0
      %v3785 = vadd.f32 0.0, %v3784
      %3786 = vdwg.mxu0
      %3787 = vmatpush.msra.mxu0 %v3746
      %3788 = vmatpush.msra.mxu0 %v3744
      %3789 = vmatpush.msra.mxu0 %v3742
      %3790 = vmatpush.msra.mxu0 %v3740
      %3791 = vmatpush.msra.mxu0 %v3738
      %3792 = vmatpush.msra.mxu0 %v3736
      %3793 = vmatpush.msra.mxu0 %v3734
      %3794 = vmatpush.msra.mxu0 %v3732
      %3795 = vmatpush.msra.mxu0 %v3730
      %3796 = vmatpush.msra.mxu0 %v3728
      %3797 = vmatpush.msra.mxu0 %v3726
      %3798 = vmatpush.msra.mxu0 %v3724
      %3799 = vmatpush.msra.mxu0 %v3722
      %3800 = vmatpush.msra.mxu0 %v3720
      %3801 = vmatpush.msra.mxu0 %v3718
      %3802 = vmatpush.msra.mxu0 %v3716
      %3803 = vmatmul.f32.gmra.mxu0 %v3454
      %v3804 = vpop.f32.mrf.mxu0
      %v3805 = vadd.f32 %v3782, %v3804
      %3806 = vmatmul.f32.gmra.mxu0 %v3457
      %v3807 = vpop.f32.mrf.mxu0
      %v3808 = vadd.f32 %v3785, %v3807
      %3809 = vdwg.mxu0
      %3810 = vmatpush.msra.mxu0 0.0
      %3811 = vmatpush.msra.mxu0 0.0
      %3812 = vmatpush.msra.mxu0 0.0
      %3813 = vmatpush.msra.mxu0 0.0
      %3814 = vmatpush.msra.mxu0 0.0
      %3815 = vmatpush.msra.mxu0 0.0
      %3816 = vmatpush.msra.mxu0 0.0
      %3817 = vmatpush.msra.mxu0 0.0
      %3818 = vmatpush.msra.mxu0 %v3762
      %3819 = vmatpush.msra.mxu0 %v3760
      %3820 = vmatpush.msra.mxu0 %v3758
      %3821 = vmatpush.msra.mxu0 %v3756
      %3822 = vmatpush.msra.mxu0 %v3754
      %3823 = vmatpush.msra.mxu0 %v3752
      %3824 = vmatpush.msra.mxu0 %v3750
      %3825 = vmatpush.msra.mxu0 %v3748
      %3826 = vmatmul.f32.gmra.mxu0 %v3541
      %v3827 = vpop.f32.mrf.mxu0
      %v3828 = vadd.f32 %v3805, %v3827
      %3829 = vmatmul.f32.gmra.mxu0 %v3544
      %v3830 = vpop.f32.mrf.mxu0
      %v3831 = vadd.f32 %v3808, %v3830
      %3832 = vdwg.mxu0
      %3833 = vmatpush.msra.mxu0 %v3715
      %3834 = vmatpush.msra.mxu0 %v3713
      %3835 = vmatpush.msra.mxu0 %v3711
      %3836 = vmatpush.msra.mxu0 %v3709
      %3837 = vmatpush.msra.mxu0 %v3707
      %3838 = vmatpush.msra.mxu0 %v3705
      %3839 = vmatpush.msra.mxu0 %v3703
      %3840 = vmatpush.msra.mxu0 %v3701
      %3841 = vmatpush.msra.mxu0 %v3699
      %3842 = vmatpush.msra.mxu0 %v3697
      %3843 = vmatpush.msra.mxu0 %v3695
      %3844 = vmatpush.msra.mxu0 %v3693
      %3845 = vmatpush.msra.mxu0 %v3691
      %3846 = vmatpush.msra.mxu0 %v3689
      %3847 = vmatpush.msra.mxu0 %v3687
      %3848 = vmatpush.msra.mxu0 %v3685
      %3849 = vmatmul.f32.gmra.mxu0 %v3453
      %v3850 = vpop.f32.mrf.mxu0
      %v3851 = vadd.f32 0.0, %v3850
      %3852 = vmatmul.f32.gmra.mxu0 %v3456
      %v3853 = vpop.f32.mrf.mxu0
      %v3854 = vadd.f32 0.0, %v3853
      %3855 = vdwg.mxu0
      %3856 = vmatpush.msra.mxu0 %v3747
      %3857 = vmatpush.msra.mxu0 %v3745
      %3858 = vmatpush.msra.mxu0 %v3743
      %3859 = vmatpush.msra.mxu0 %v3741
      %3860 = vmatpush.msra.mxu0 %v3739
      %3861 = vmatpush.msra.mxu0 %v3737
      %3862 = vmatpush.msra.mxu0 %v3735
      %3863 = vmatpush.msra.mxu0 %v3733
      %3864 = vmatpush.msra.mxu0 %v3731
      %3865 = vmatpush.msra.mxu0 %v3729
      %3866 = vmatpush.msra.mxu0 %v3727
      %3867 = vmatpush.msra.mxu0 %v3725
      %3868 = vmatpush.msra.mxu0 %v3723
      %3869 = vmatpush.msra.mxu0 %v3721
      %3870 = vmatpush.msra.mxu0 %v3719
      %3871 = vmatpush.msra.mxu0 %v3717
      %3872 = vmatmul.f32.gmra.mxu0 %v3454
      %v3873 = vpop.f32.mrf.mxu0
      %v3874 = vadd.f32 %v3851, %v3873
      %3875 = vmatmul.f32.gmra.mxu0 %v3457
      %v3876 = vpop.f32.mrf.mxu0
      %v3877 = vadd.f32 %v3854, %v3876
      %3878 = vdwg.mxu0
      %3879 = vmatpush.msra.mxu0 0.0
      %3880 = vmatpush.msra.mxu0 0.0
      %3881 = vmatpush.msra.mxu0 0.0
      %3882 = vmatpush.msra.mxu0 0.0
      %3883 = vmatpush.msra.mxu0 0.0
      %3884 = vmatpush.msra.mxu0 0.0
      %3885 = vmatpush.msra.mxu0 0.0
      %3886 = vmatpush.msra.mxu0 0.0
      %3887 = vmatpush.msra.mxu0 %v3763
      %3888 = vmatpush.msra.mxu0 %v3761
      %3889 = vmatpush.msra.mxu0 %v3759
      %3890 = vmatpush.msra.mxu0 %v3757
      %3891 = vmatpush.msra.mxu0 %v3755
      %3892 = vmatpush.msra.mxu0 %v3753
      %3893 = vmatpush.msra.mxu0 %v3751
      %3894 = vmatpush.msra.mxu0 %v3749
      %3895 = vmatmul.f32.gmra.mxu0 %v3541
      %v3896 = vpop.f32.mrf.mxu0
      %v3897 = vadd.f32 %v3874, %v3896
      %3898 = vmatmul.f32.gmra.mxu0 %v3544
      %v3899 = vpop.f32.mrf.mxu0
      %v3900 = vadd.f32 %v3877, %v3899
      %3901 = vdwg.mxu0
      %v3902 = vmax.f32 %v3610, %v3828
      %v3903 = vmax.f32 %v3679, %v3897
      %v3904 = vmax.f32 %v3613, %v3831
      %v3905 = vmax.f32 %v3682, %v3900
      %v3906 = vpack.c.bf16 %v3902, %v3902
      %v3907 = vpack.c.bf16 %v3903, %v3903
      %v3908 = vld [vmem:[%s930] sm:$0xf]
      %v3909 = vld [vmem:[%s930 + $0x4] sm:$0xf]
      %v3910 = vld [vmem:[%s930 + $0x8] sm:$0xf]
      %v3911 = vld [vmem:[%s930 + $0xc] sm:$0xf]
      %v3912 = vld [vmem:[%s930 + $0x10] sm:$0xf]
      %v3913 = vld [vmem:[%s930 + $0x14] sm:$0xf]
      %v3914 = vld [vmem:[%s930 + $0x18] sm:$0xf]
      %v3915 = vld [vmem:[%s930 + $0x1c] sm:$0xf]
      %v3916 = vld [vmem:[%s930 + $0x20] sm:$0xf]
      %v3917 = vld [vmem:[%s930 + $0x24] sm:$0xf]
      %v3918 = vld [vmem:[%s930 + $0x28] sm:$0xf]
      %v3919 = vld [vmem:[%s930 + $0x2c] sm:$0xf]
      %v3920 = vld [vmem:[%s930 + $0x30] sm:$0xf]
      %v3921 = vld [vmem:[%s930 + $0x34] sm:$0xf]
      %v3922 = vld [vmem:[%s930 + $0x38] sm:$0xf]
      %v3923 = vld [vmem:[%s930 + $0x3c] sm:$0xf]
      %v3924 = vld [vmem:[%s930 + $0x40] sm:$0xf]
      %v3925 = vld [vmem:[%s930 + $0x44] sm:$0xf]
      %v3926 = vld [vmem:[%s930 + $0x48] sm:$0xf]
      %v3927 = vld [vmem:[%s930 + $0x4c] sm:$0xf]
      %v3928 = vpack.c.bf16 %v3904, %v3902
      %v3929 = vpack.c.bf16 %v3905, %v3903
      %s3930 = scalar_lea.vmem %s930, 80
      %v3931 = vld [vmem:[%s3930] sm:$0xf]
      %v3932 = vld [vmem:[%s3930 + $0x4] sm:$0xf]
      %v3933 = vld [vmem:[%s3930 + $0x8] sm:$0xf]
      %v3934 = vld [vmem:[%s3930 + $0xc] sm:$0xf]
      %v3935 = vld [vmem:[%s3930 + $0x10] sm:$0xf]
      %v3936 = vld [vmem:[%s3930 + $0x14] sm:$0xf]
      %v3937 = vld [vmem:[%s3930 + $0x18] sm:$0xf]
      %v3938 = vld [vmem:[%s3930 + $0x1c] sm:$0xf]
      %v3939 = vld [vmem:[%s3930 + $0x20] sm:$0xf]
      %v3940 = vld [vmem:[%s3930 + $0x24] sm:$0xf]
      %v3941 = vld [vmem:[%s3930 + $0x28] sm:$0xf]
      %v3942 = vld [vmem:[%s3930 + $0x2c] sm:$0xf]
      %v3943 = vld [vmem:[%s3930 + $0x30] sm:$0xf]
      %v3944 = vld [vmem:[%s3930 + $0x34] sm:$0xf]
      %v3945 = vld [vmem:[%s3930 + $0x38] sm:$0xf]
      %v3946 = vld [vmem:[%s3930 + $0x3c] sm:$0xf]
      %v3947 = vld [vmem:[%s3930 + $0x40] sm:$0xf]
      %v3948 = vld [vmem:[%s3930 + $0x44] sm:$0xf]
      %v3949 = vld [vmem:[%s3930 + $0x48] sm:$0xf]
      %v3950 = vld [vmem:[%s3930 + $0x4c] sm:$0xf]
      %v3952 = vshrl.u32 %v3928, 16
      %v3954 = vshll.u32 %v3928, 16
      %v3956 = vrot.slane %v3954, 1
      %v3957 = vor.u32 %v3952, %v3956
      %v3959 = vshrl.u32 %v3929, 16
      %v3961 = vshll.u32 %v3929, 16
      %v3963 = vrot.slane %v3961, 1
      %v3964 = vor.u32 %v3959, %v3963
      %v3986 = vunpack.c.l.b16 %v3931
      %v3987 = vunpack.c.l.b16 %v3932
      %v3988 = vunpack.c.l.b16 %v3933
      %v3989 = vunpack.c.l.b16 %v3934
      %v3990 = vunpack.c.l.b16 %v3935
      %v3991 = vunpack.c.l.b16 %v3936
      %v3992 = vunpack.c.l.b16 %v3937
      %v3993 = vunpack.c.l.b16 %v3938
      %v3994 = vunpack.c.l.b16 %v3939
      %v3995 = vunpack.c.l.b16 %v3940
      %v3996 = vunpack.c.l.b16 %v3941
      %v3997 = vunpack.c.l.b16 %v3942
      %v3998 = vunpack.c.l.b16 %v3943
      %v3999 = vunpack.c.l.b16 %v3944
      %v4000 = vunpack.c.l.b16 %v3945
      %v4001 = vunpack.c.l.b16 %v3946
      %v4002 = vunpack.c.l.b16 %v3947
      %v4003 = vunpack.c.l.b16 %v3948
      %v4004 = vunpack.c.l.b16 %v3949
      %v4005 = vunpack.c.l.b16 %v3950
      %v4006 = vpack.c.b16 %v3987, %v3986
      %v4007 = vpack.c.b16 %v3989, %v3988
      %v4008 = vpack.c.b16 %v3991, %v3990
      %v4009 = vpack.c.b16 %v3993, %v3992
      %v4010 = vpack.c.b16 %v3995, %v3994
      %v4011 = vpack.c.b16 %v3997, %v3996
      %v4012 = vpack.c.b16 %v3999, %v3998
      %v4013 = vpack.c.b16 %v4001, %v4000
      %v4014 = vpack.c.b16 %v4003, %v4002
      %v4015 = vpack.c.b16 %v4005, %v4004
      %vm4026 = vcmask 261120
      %v4028 = vsel %vm4026, %v3964, 0
      %4030 = vmatpush.bf16.msra.mxu0 %v4013
      %4031 = vmatpush.bf16.msra.mxu0 %v4012
      %4032 = vmatpush.bf16.msra.mxu0 %v4011
      %4033 = vmatpush.bf16.msra.mxu0 %v4010
      %4034 = vmatpush.bf16.msra.mxu0 %v4009
      %4035 = vmatpush.bf16.msra.mxu0 %v4008
      %4036 = vmatpush.bf16.msra.mxu0 %v4007
      %4037 = vmatpush.bf16.msra.mxu0 %v4006
      %4038 = vmatmul.bf16.gmra.mxu0 %v3957
      %v4039 = vpop.f32.mrf.mxu0
      %v4040 = vadd.f32 0.0, %v4039
      %v4041 = vpop.f32.mrf.mxu0
      %4042 = vdwg.mxu0
      %4043 = vmatpush.bf16.msra.mxu0 0
      %4044 = vmatpush.bf16.msra.mxu0 0
      %4045 = vmatpush.bf16.msra.mxu0 0
      %4046 = vmatpush.bf16.msra.mxu0 0
      %4047 = vmatpush.bf16.msra.mxu0 0
      %4048 = vmatpush.bf16.msra.mxu0 0
      %4049 = vmatpush.bf16.msra.mxu0 %v4015
      %4050 = vmatpush.bf16.msra.mxu0 %v4014
      %4051 = vmatmul.bf16.gmra.mxu0 %v4028
      %v4052 = vpop.f32.mrf.mxu0
      %v4053 = vadd.f32 %v4040, %v4052
      %v4054 = vpop.f32.mrf.mxu0
      %4055 = vdwg.mxu0
      %v4076 = vunpack.c.l.b16 %v3908
      %v4077 = vunpack.c.l.b16 %v3909
      %v4078 = vunpack.c.l.b16 %v3910
      %v4079 = vunpack.c.l.b16 %v3911
      %v4080 = vunpack.c.l.b16 %v3912
      %v4081 = vunpack.c.l.b16 %v3913
      %v4082 = vunpack.c.l.b16 %v3914
      %v4083 = vunpack.c.l.b16 %v3915
      %v4084 = vunpack.c.l.b16 %v3916
      %v4085 = vunpack.c.l.b16 %v3917
      %v4086 = vunpack.c.l.b16 %v3918
      %v4087 = vunpack.c.l.b16 %v3919
      %v4088 = vunpack.c.l.b16 %v3920
      %v4089 = vunpack.c.l.b16 %v3921
      %v4090 = vunpack.c.l.b16 %v3922
      %v4091 = vunpack.c.l.b16 %v3923
      %v4092 = vunpack.c.l.b16 %v3924
      %v4093 = vunpack.c.l.b16 %v3925
      %v4094 = vunpack.c.l.b16 %v3926
      %v4095 = vunpack.c.l.b16 %v3927
      %v4096 = vpack.c.b16 %v4077, %v4076
      %v4097 = vpack.c.b16 %v4079, %v4078
      %v4098 = vpack.c.b16 %v4081, %v4080
      %v4099 = vpack.c.b16 %v4083, %v4082
      %v4100 = vpack.c.b16 %v4085, %v4084
      %v4101 = vpack.c.b16 %v4087, %v4086
      %v4102 = vpack.c.b16 %v4089, %v4088
      %v4103 = vpack.c.b16 %v4091, %v4090
      %v4104 = vpack.c.b16 %v4093, %v4092
      %v4105 = vpack.c.b16 %v4095, %v4094
      %v4117 = vsel %vm4026, %v3907, 0
      %4119 = vmatpush.bf16.msra.mxu0 %v4103
      %4120 = vmatpush.bf16.msra.mxu0 %v4102
      %4121 = vmatpush.bf16.msra.mxu0 %v4101
      %4122 = vmatpush.bf16.msra.mxu0 %v4100
      %4123 = vmatpush.bf16.msra.mxu0 %v4099
      %4124 = vmatpush.bf16.msra.mxu0 %v4098
      %4125 = vmatpush.bf16.msra.mxu0 %v4097
      %4126 = vmatpush.bf16.msra.mxu0 %v4096
      %4127 = vmatmul.bf16.gmra.mxu0 %v3906
      %v4128 = vpop.f32.mrf.mxu0
      %v4129 = vadd.f32 %v4053, %v4128
      %v4130 = vpop.f32.mrf.mxu0
      %4131 = vdwg.mxu0
      %4132 = vmatpush.bf16.msra.mxu0 0
      %4133 = vmatpush.bf16.msra.mxu0 0
      %4134 = vmatpush.bf16.msra.mxu0 0
      %4135 = vmatpush.bf16.msra.mxu0 0
      %4136 = vmatpush.bf16.msra.mxu0 0
      %4137 = vmatpush.bf16.msra.mxu0 0
      %4138 = vmatpush.bf16.msra.mxu0 %v4105
      %4139 = vmatpush.bf16.msra.mxu0 %v4104
      %4140 = vmatmul.bf16.gmra.mxu0 %v4117
      %v4141 = vpop.f32.mrf.mxu0
      %v4142 = vadd.f32 %v4129, %v4141
      %v4143 = vpop.f32.mrf.mxu0
      %4144 = vdwg.mxu0
      %s4145 = scalar_lea.vmem %s930, 160
      %v4146 = vld [vmem:[%s4145] sm:$0xf]
      %v4147 = vld [vmem:[%s4145 + $0x4] sm:$0xf]
      %v4148 = vld [vmem:[%s4145 + $0x8] sm:$0xf]
      %v4149 = vld [vmem:[%s4145 + $0xc] sm:$0xf]
      %v4150 = vld [vmem:[%s4145 + $0x10] sm:$0xf]
      %v4151 = vld [vmem:[%s4145 + $0x14] sm:$0xf]
      %v4152 = vld [vmem:[%s4145 + $0x18] sm:$0xf]
      %v4153 = vld [vmem:[%s4145 + $0x1c] sm:$0xf]
      %v4154 = vld [vmem:[%s4145 + $0x20] sm:$0xf]
      %v4155 = vld [vmem:[%s4145 + $0x24] sm:$0xf]
      %v4156 = vld [vmem:[%s4145 + $0x28] sm:$0xf]
      %v4157 = vld [vmem:[%s4145 + $0x2c] sm:$0xf]
      %v4158 = vld [vmem:[%s4145 + $0x30] sm:$0xf]
      %v4159 = vld [vmem:[%s4145 + $0x34] sm:$0xf]
      %v4160 = vld [vmem:[%s4145 + $0x38] sm:$0xf]
      %v4161 = vld [vmem:[%s4145 + $0x3c] sm:$0xf]
      %v4162 = vld [vmem:[%s4145 + $0x40] sm:$0xf]
      %v4163 = vld [vmem:[%s4145 + $0x44] sm:$0xf]
      %v4164 = vld [vmem:[%s4145 + $0x48] sm:$0xf]
      %v4165 = vld [vmem:[%s4145 + $0x4c] sm:$0xf]
      %v4168 = vrot.slane %v3928, 1
      %v4169 = vrot.slane %v3929, 1
      %v4191 = vunpack.c.l.b16 %v4146
      %v4192 = vunpack.c.l.b16 %v4147
      %v4193 = vunpack.c.l.b16 %v4148
      %v4194 = vunpack.c.l.b16 %v4149
      %v4195 = vunpack.c.l.b16 %v4150
      %v4196 = vunpack.c.l.b16 %v4151
      %v4197 = vunpack.c.l.b16 %v4152
      %v4198 = vunpack.c.l.b16 %v4153
      %v4199 = vunpack.c.l.b16 %v4154
      %v4200 = vunpack.c.l.b16 %v4155
      %v4201 = vunpack.c.l.b16 %v4156
      %v4202 = vunpack.c.l.b16 %v4157
      %v4203 = vunpack.c.l.b16 %v4158
      %v4204 = vunpack.c.l.b16 %v4159
      %v4205 = vunpack.c.l.b16 %v4160
      %v4206 = vunpack.c.l.b16 %v4161
      %v4207 = vunpack.c.l.b16 %v4162
      %v4208 = vunpack.c.l.b16 %v4163
      %v4209 = vunpack.c.l.b16 %v4164
      %v4210 = vunpack.c.l.b16 %v4165
      %v4211 = vpack.c.b16 %v4192, %v4191
      %v4212 = vpack.c.b16 %v4194, %v4193
      %v4213 = vpack.c.b16 %v4196, %v4195
      %v4214 = vpack.c.b16 %v4198, %v4197
      %v4215 = vpack.c.b16 %v4200, %v4199
      %v4216 = vpack.c.b16 %v4202, %v4201
      %v4217 = vpack.c.b16 %v4204, %v4203
      %v4218 = vpack.c.b16 %v4206, %v4205
      %v4219 = vpack.c.b16 %v4208, %v4207
      %v4220 = vpack.c.b16 %v4210, %v4209
      %v4232 = vsel %vm4026, %v4169, 0
      %4234 = vmatpush.bf16.msra.mxu0 %v4218
      %4235 = vmatpush.bf16.msra.mxu0 %v4217
      %4236 = vmatpush.bf16.msra.mxu0 %v4216
      %4237 = vmatpush.bf16.msra.mxu0 %v4215
      %4238 = vmatpush.bf16.msra.mxu0 %v4214
      %4239 = vmatpush.bf16.msra.mxu0 %v4213
      %4240 = vmatpush.bf16.msra.mxu0 %v4212
      %4241 = vmatpush.bf16.msra.mxu0 %v4211
      %4242 = vmatmul.bf16.gmra.mxu0 %v4168
      %v4243 = vpop.f32.mrf.mxu0
      %v4244 = vadd.f32 0.0, %v4243
      %v4245 = vpop.f32.mrf.mxu0
      %4246 = vdwg.mxu0
      %4247 = vmatpush.bf16.msra.mxu0 0
      %4248 = vmatpush.bf16.msra.mxu0 0
      %4249 = vmatpush.bf16.msra.mxu0 0
      %4250 = vmatpush.bf16.msra.mxu0 0
      %4251 = vmatpush.bf16.msra.mxu0 0
      %4252 = vmatpush.bf16.msra.mxu0 0
      %4253 = vmatpush.bf16.msra.mxu0 %v4220
      %4254 = vmatpush.bf16.msra.mxu0 %v4219
      %4255 = vmatmul.bf16.gmra.mxu0 %v4232
      %v4256 = vpop.f32.mrf.mxu0
      %v4257 = vadd.f32 %v4244, %v4256
      %v4258 = vpop.f32.mrf.mxu0
      %4259 = vdwg.mxu0
      %v4260 = vadd.f32 %v4142, %v4257
      %v4261 = vld [vmem:[%s956] sm:$0x1]
      %v4263 = vperm.slane %v4261, 0
      %v4265 = vadd.f32 %v4260, %v4263
      %v4266 = vmax.f32 %v4265, 0.0
      %v4267 = vpack.c.bf16 %v4266, %v4266
      %v4268 = vld [vmem:[%s935] sm:$0xf]
      %v4269 = vld [vmem:[%s935 + $0x4] sm:$0xf]
      %v4270 = vld [vmem:[%s935 + $0x8] sm:$0xf]
      %v4271 = vld [vmem:[%s935 + $0xc] sm:$0xf]
      %v4272 = vld [vmem:[%s935 + $0x10] sm:$0xf]
      %v4273 = vld [vmem:[%s935 + $0x14] sm:$0xf]
      %v4274 = vld [vmem:[%s935 + $0x18] sm:$0xf]
      %v4275 = vld [vmem:[%s935 + $0x1c] sm:$0xf]
      %v4276 = vld [vmem:[%s935 + $0x20] sm:$0xf]
      %v4277 = vld [vmem:[%s935 + $0x24] sm:$0xf]
      %v4278 = vld [vmem:[%s935 + $0x28] sm:$0xf]
      %v4279 = vld [vmem:[%s935 + $0x2c] sm:$0xf]
      %v4280 = vld [vmem:[%s935 + $0x30] sm:$0xf]
      %v4281 = vld [vmem:[%s935 + $0x34] sm:$0xf]
      %v4282 = vld [vmem:[%s935 + $0x38] sm:$0xf]
      %v4283 = vld [vmem:[%s935 + $0x3c] sm:$0xf]
      %s4284 = scalar_lea.vmem %s935, 64
      %v4285 = vld [vmem:[%s4284] sm:$0xf]
      %v4286 = vld [vmem:[%s4284 + $0x4] sm:$0xf]
      %v4287 = vld [vmem:[%s4284 + $0x8] sm:$0xf]
      %v4288 = vld [vmem:[%s4284 + $0xc] sm:$0xf]
      %v4289 = vld [vmem:[%s4284 + $0x10] sm:$0xf]
      %v4290 = vld [vmem:[%s4284 + $0x14] sm:$0xf]
      %v4291 = vld [vmem:[%s4284 + $0x18] sm:$0xf]
      %v4292 = vld [vmem:[%s4284 + $0x1c] sm:$0xf]
      %v4293 = vld [vmem:[%s4284 + $0x20] sm:$0xf]
      %v4294 = vld [vmem:[%s4284 + $0x24] sm:$0xf]
      %v4295 = vld [vmem:[%s4284 + $0x28] sm:$0xf]
      %v4296 = vld [vmem:[%s4284 + $0x2c] sm:$0xf]
      %v4297 = vld [vmem:[%s4284 + $0x30] sm:$0xf]
      %v4298 = vld [vmem:[%s4284 + $0x34] sm:$0xf]
      %v4299 = vld [vmem:[%s4284 + $0x38] sm:$0xf]
      %v4300 = vld [vmem:[%s4284 + $0x3c] sm:$0xf]
      %v4302 = vshrl.u32 %v4267, 16
      %v4304 = vshll.u32 %v4267, 16
      %v4306 = vrot.slane %v4304, 1
      %v4307 = vor.u32 %v4302, %v4306
      %v4325 = vunpack.c.l.b16 %v4285
      %v4326 = vunpack.c.l.b16 %v4286
      %v4327 = vunpack.c.l.b16 %v4287
      %v4328 = vunpack.c.l.b16 %v4288
      %v4329 = vunpack.c.l.b16 %v4289
      %v4330 = vunpack.c.l.b16 %v4290
      %v4331 = vunpack.c.l.b16 %v4291
      %v4332 = vunpack.c.l.b16 %v4292
      %v4333 = vunpack.c.l.b16 %v4293
      %v4334 = vunpack.c.l.b16 %v4294
      %v4335 = vunpack.c.l.b16 %v4295
      %v4336 = vunpack.c.l.b16 %v4296
      %v4337 = vunpack.c.l.b16 %v4297
      %v4338 = vunpack.c.l.b16 %v4298
      %v4339 = vunpack.c.l.b16 %v4299
      %v4340 = vunpack.c.l.b16 %v4300
      %v4341 = vpack.c.b16 %v4326, %v4325
      %v4342 = vpack.c.b16 %v4328, %v4327
      %v4343 = vpack.c.b16 %v4330, %v4329
      %v4344 = vpack.c.b16 %v4332, %v4331
      %v4345 = vpack.c.b16 %v4334, %v4333
      %v4346 = vpack.c.b16 %v4336, %v4335
      %v4347 = vpack.c.b16 %v4338, %v4337
      %v4348 = vpack.c.b16 %v4340, %v4339
      %4357 = vmatpush.bf16.msra.mxu0 %v4348
      %4358 = vmatpush.bf16.msra.mxu0 %v4347
      %4359 = vmatpush.bf16.msra.mxu0 %v4346
      %4360 = vmatpush.bf16.msra.mxu0 %v4345
      %4361 = vmatpush.bf16.msra.mxu0 %v4344
      %4362 = vmatpush.bf16.msra.mxu0 %v4343
      %4363 = vmatpush.bf16.msra.mxu0 %v4342
      %4364 = vmatpush.bf16.msra.mxu0 %v4341
      %4365 = vmatmul.bf16.gmra.mxu0 %v4307
      %v4366 = vpop.f32.mrf.mxu0
      %v4367 = vadd.f32 0.0, %v4366
      %v4368 = vpop.f32.mrf.mxu0
      %4369 = vdwg.mxu0
      %v4386 = vunpack.c.l.b16 %v4268
      %v4387 = vunpack.c.l.b16 %v4269
      %v4388 = vunpack.c.l.b16 %v4270
      %v4389 = vunpack.c.l.b16 %v4271
      %v4390 = vunpack.c.l.b16 %v4272
      %v4391 = vunpack.c.l.b16 %v4273
      %v4392 = vunpack.c.l.b16 %v4274
      %v4393 = vunpack.c.l.b16 %v4275
      %v4394 = vunpack.c.l.b16 %v4276
      %v4395 = vunpack.c.l.b16 %v4277
      %v4396 = vunpack.c.l.b16 %v4278
      %v4397 = vunpack.c.l.b16 %v4279
      %v4398 = vunpack.c.l.b16 %v4280
      %v4399 = vunpack.c.l.b16 %v4281
      %v4400 = vunpack.c.l.b16 %v4282
      %v4401 = vunpack.c.l.b16 %v4283
      %v4402 = vpack.c.b16 %v4387, %v4386
      %v4403 = vpack.c.b16 %v4389, %v4388
      %v4404 = vpack.c.b16 %v4391, %v4390
      %v4405 = vpack.c.b16 %v4393, %v4392
      %v4406 = vpack.c.b16 %v4395, %v4394
      %v4407 = vpack.c.b16 %v4397, %v4396
      %v4408 = vpack.c.b16 %v4399, %v4398
      %v4409 = vpack.c.b16 %v4401, %v4400
      %4418 = vmatpush.bf16.msra.mxu0 %v4409
      %4419 = vmatpush.bf16.msra.mxu0 %v4408
      %4420 = vmatpush.bf16.msra.mxu0 %v4407
      %4421 = vmatpush.bf16.msra.mxu0 %v4406
      %4422 = vmatpush.bf16.msra.mxu0 %v4405
      %4423 = vmatpush.bf16.msra.mxu0 %v4404
      %4424 = vmatpush.bf16.msra.mxu0 %v4403
      %4425 = vmatpush.bf16.msra.mxu0 %v4402
      %4426 = vmatmul.bf16.gmra.mxu0 %v4267
      %v4427 = vpop.f32.mrf.mxu0
      %v4428 = vadd.f32 %v4367, %v4427
      %v4429 = vpop.f32.mrf.mxu0
      %4430 = vdwg.mxu0
      %s4431 = scalar_lea.vmem %s935, 128
      %v4432 = vld [vmem:[%s4431] sm:$0xf]
      %v4433 = vld [vmem:[%s4431 + $0x4] sm:$0xf]
      %v4434 = vld [vmem:[%s4431 + $0x8] sm:$0xf]
      %v4435 = vld [vmem:[%s4431 + $0xc] sm:$0xf]
      %v4436 = vld [vmem:[%s4431 + $0x10] sm:$0xf]
      %v4437 = vld [vmem:[%s4431 + $0x14] sm:$0xf]
      %v4438 = vld [vmem:[%s4431 + $0x18] sm:$0xf]
      %v4439 = vld [vmem:[%s4431 + $0x1c] sm:$0xf]
      %v4440 = vld [vmem:[%s4431 + $0x20] sm:$0xf]
      %v4441 = vld [vmem:[%s4431 + $0x24] sm:$0xf]
      %v4442 = vld [vmem:[%s4431 + $0x28] sm:$0xf]
      %v4443 = vld [vmem:[%s4431 + $0x2c] sm:$0xf]
      %v4444 = vld [vmem:[%s4431 + $0x30] sm:$0xf]
      %v4445 = vld [vmem:[%s4431 + $0x34] sm:$0xf]
      %v4446 = vld [vmem:[%s4431 + $0x38] sm:$0xf]
      %v4447 = vld [vmem:[%s4431 + $0x3c] sm:$0xf]
      %v4449 = vrot.slane %v4267, 1
      %v4467 = vunpack.c.l.b16 %v4432
      %v4468 = vunpack.c.l.b16 %v4433
      %v4469 = vunpack.c.l.b16 %v4434
      %v4470 = vunpack.c.l.b16 %v4435
      %v4471 = vunpack.c.l.b16 %v4436
      %v4472 = vunpack.c.l.b16 %v4437
      %v4473 = vunpack.c.l.b16 %v4438
      %v4474 = vunpack.c.l.b16 %v4439
      %v4475 = vunpack.c.l.b16 %v4440
      %v4476 = vunpack.c.l.b16 %v4441
      %v4477 = vunpack.c.l.b16 %v4442
      %v4478 = vunpack.c.l.b16 %v4443
      %v4479 = vunpack.c.l.b16 %v4444
      %v4480 = vunpack.c.l.b16 %v4445
      %v4481 = vunpack.c.l.b16 %v4446
      %v4482 = vunpack.c.l.b16 %v4447
      %v4483 = vpack.c.b16 %v4468, %v4467
      %v4484 = vpack.c.b16 %v4470, %v4469
      %v4485 = vpack.c.b16 %v4472, %v4471
      %v4486 = vpack.c.b16 %v4474, %v4473
      %v4487 = vpack.c.b16 %v4476, %v4475
      %v4488 = vpack.c.b16 %v4478, %v4477
      %v4489 = vpack.c.b16 %v4480, %v4479
      %v4490 = vpack.c.b16 %v4482, %v4481
      %4499 = vmatpush.bf16.msra.mxu0 %v4490
      %4500 = vmatpush.bf16.msra.mxu0 %v4489
      %4501 = vmatpush.bf16.msra.mxu0 %v4488
      %4502 = vmatpush.bf16.msra.mxu0 %v4487
      %4503 = vmatpush.bf16.msra.mxu0 %v4486
      %4504 = vmatpush.bf16.msra.mxu0 %v4485
      %4505 = vmatpush.bf16.msra.mxu0 %v4484
      %4506 = vmatpush.bf16.msra.mxu0 %v4483
      %4507 = vmatmul.bf16.gmra.mxu0 %v4449
      %v4508 = vpop.f32.mrf.mxu0
      %v4509 = vadd.f32 0.0, %v4508
      %v4510 = vpop.f32.mrf.mxu0
      %4511 = vdwg.mxu0
      %v4512 = vadd.f32 %v4428, %v4509
      %v4513 = vld [vmem:[%s959] sm:$0x1]
      %v4515 = vperm.slane %v4513, 0
      %v4517 = vadd.f32 %v4512, %v4515
      %v4518 = vmax.f32 %v4517, 0.0
      %v4519 = vpack.c.bf16 %v4518, %v4518
      %v4520 = vld [vmem:[%s940] sm:$0xf]
      %v4521 = vld [vmem:[%s940 + $0x4] sm:$0xf]
      %v4522 = vld [vmem:[%s940 + $0x8] sm:$0xf]
      %v4523 = vld [vmem:[%s940 + $0xc] sm:$0xf]
      %v4524 = vld [vmem:[%s940 + $0x10] sm:$0xf]
      %v4525 = vld [vmem:[%s940 + $0x14] sm:$0xf]
      %v4526 = vld [vmem:[%s940 + $0x18] sm:$0xf]
      %v4527 = vld [vmem:[%s940 + $0x1c] sm:$0xf]
      %v4528 = vld [vmem:[%s940 + $0x20] sm:$0xf]
      %v4529 = vld [vmem:[%s940 + $0x24] sm:$0xf]
      %v4530 = vld [vmem:[%s940 + $0x28] sm:$0xf]
      %v4531 = vld [vmem:[%s940 + $0x2c] sm:$0xf]
      %s4532 = scalar_lea.vmem %s940, 48
      %v4533 = vld [vmem:[%s4532] sm:$0xf]
      %v4534 = vld [vmem:[%s4532 + $0x4] sm:$0xf]
      %v4535 = vld [vmem:[%s4532 + $0x8] sm:$0xf]
      %v4536 = vld [vmem:[%s4532 + $0xc] sm:$0xf]
      %v4537 = vld [vmem:[%s4532 + $0x10] sm:$0xf]
      %v4538 = vld [vmem:[%s4532 + $0x14] sm:$0xf]
      %v4539 = vld [vmem:[%s4532 + $0x18] sm:$0xf]
      %v4540 = vld [vmem:[%s4532 + $0x1c] sm:$0xf]
      %v4541 = vld [vmem:[%s4532 + $0x20] sm:$0xf]
      %v4542 = vld [vmem:[%s4532 + $0x24] sm:$0xf]
      %v4543 = vld [vmem:[%s4532 + $0x28] sm:$0xf]
      %v4544 = vld [vmem:[%s4532 + $0x2c] sm:$0xf]
      %v4546 = vshrl.u32 %v4519, 16
      %v4548 = vshll.u32 %v4519, 16
      %v4550 = vrot.slane %v4548, 1
      %v4551 = vor.u32 %v4546, %v4550
      %v4564 = vunpack.c.l.b16 %v4533
      %v4565 = vunpack.c.l.b16 %v4534
      %v4566 = vunpack.c.l.b16 %v4535
      %v4567 = vunpack.c.l.b16 %v4536
      %v4568 = vunpack.c.l.b16 %v4537
      %v4569 = vunpack.c.l.b16 %v4538
      %v4570 = vunpack.c.l.b16 %v4539
      %v4571 = vunpack.c.l.b16 %v4540
      %v4572 = vunpack.c.l.b16 %v4541
      %v4573 = vunpack.c.l.b16 %v4542
      %v4574 = vunpack.c.l.b16 %v4543
      %v4575 = vunpack.c.l.b16 %v4544
      %v4576 = vpack.c.b16 %v4565, %v4564
      %v4577 = vpack.c.b16 %v4567, %v4566
      %v4578 = vpack.c.b16 %v4569, %v4568
      %v4579 = vpack.c.b16 %v4571, %v4570
      %v4580 = vpack.c.b16 %v4573, %v4572
      %v4581 = vpack.c.b16 %v4575, %v4574
      %v4589 = vsel %vm1939, %v4551, 0
      %4591 = vmatpush.bf16.msra.mxu0 0
      %4592 = vmatpush.bf16.msra.mxu0 0
      %4593 = vmatpush.bf16.msra.mxu0 %v4581
      %4594 = vmatpush.bf16.msra.mxu0 %v4580
      %4595 = vmatpush.bf16.msra.mxu0 %v4579
      %4596 = vmatpush.bf16.msra.mxu0 %v4578
      %4597 = vmatpush.bf16.msra.mxu0 %v4577
      %4598 = vmatpush.bf16.msra.mxu0 %v4576
      %4599 = vmatmul.bf16.gmra.mxu0 %v4589
      %v4600 = vpop.f32.mrf.mxu0
      %v4601 = vadd.f32 0.0, %v4600
      %v4602 = vpop.f32.mrf.mxu0
      %4603 = vdwg.mxu0
      %v4616 = vunpack.c.l.b16 %v4520
      %v4617 = vunpack.c.l.b16 %v4521
      %v4618 = vunpack.c.l.b16 %v4522
      %v4619 = vunpack.c.l.b16 %v4523
      %v4620 = vunpack.c.l.b16 %v4524
      %v4621 = vunpack.c.l.b16 %v4525
      %v4622 = vunpack.c.l.b16 %v4526
      %v4623 = vunpack.c.l.b16 %v4527
      %v4624 = vunpack.c.l.b16 %v4528
      %v4625 = vunpack.c.l.b16 %v4529
      %v4626 = vunpack.c.l.b16 %v4530
      %v4627 = vunpack.c.l.b16 %v4531
      %v4628 = vpack.c.b16 %v4617, %v4616
      %v4629 = vpack.c.b16 %v4619, %v4618
      %v4630 = vpack.c.b16 %v4621, %v4620
      %v4631 = vpack.c.b16 %v4623, %v4622
      %v4632 = vpack.c.b16 %v4625, %v4624
      %v4633 = vpack.c.b16 %v4627, %v4626
      %v4640 = vsel %vm1939, %v4519, 0
      %4642 = vmatpush.bf16.msra.mxu0 0
      %4643 = vmatpush.bf16.msra.mxu0 0
      %4644 = vmatpush.bf16.msra.mxu0 %v4633
      %4645 = vmatpush.bf16.msra.mxu0 %v4632
      %4646 = vmatpush.bf16.msra.mxu0 %v4631
      %4647 = vmatpush.bf16.msra.mxu0 %v4630
      %4648 = vmatpush.bf16.msra.mxu0 %v4629
      %4649 = vmatpush.bf16.msra.mxu0 %v4628
      %4650 = vmatmul.bf16.gmra.mxu0 %v4640
      %v4651 = vpop.f32.mrf.mxu0
      %v4652 = vadd.f32 %v4601, %v4651
      %v4653 = vpop.f32.mrf.mxu0
      %4654 = vdwg.mxu0
      %s4655 = scalar_lea.vmem %s940, 96
      %v4656 = vld [vmem:[%s4655] sm:$0xf]
      %v4657 = vld [vmem:[%s4655 + $0x4] sm:$0xf]
      %v4658 = vld [vmem:[%s4655 + $0x8] sm:$0xf]
      %v4659 = vld [vmem:[%s4655 + $0xc] sm:$0xf]
      %v4660 = vld [vmem:[%s4655 + $0x10] sm:$0xf]
      %v4661 = vld [vmem:[%s4655 + $0x14] sm:$0xf]
      %v4662 = vld [vmem:[%s4655 + $0x18] sm:$0xf]
      %v4663 = vld [vmem:[%s4655 + $0x1c] sm:$0xf]
      %v4664 = vld [vmem:[%s4655 + $0x20] sm:$0xf]
      %v4665 = vld [vmem:[%s4655 + $0x24] sm:$0xf]
      %v4666 = vld [vmem:[%s4655 + $0x28] sm:$0xf]
      %v4667 = vld [vmem:[%s4655 + $0x2c] sm:$0xf]
      %v4669 = vrot.slane %v4519, 1
      %v4682 = vunpack.c.l.b16 %v4656
      %v4683 = vunpack.c.l.b16 %v4657
      %v4684 = vunpack.c.l.b16 %v4658
      %v4685 = vunpack.c.l.b16 %v4659
      %v4686 = vunpack.c.l.b16 %v4660
      %v4687 = vunpack.c.l.b16 %v4661
      %v4688 = vunpack.c.l.b16 %v4662
      %v4689 = vunpack.c.l.b16 %v4663
      %v4690 = vunpack.c.l.b16 %v4664
      %v4691 = vunpack.c.l.b16 %v4665
      %v4692 = vunpack.c.l.b16 %v4666
      %v4693 = vunpack.c.l.b16 %v4667
      %v4694 = vpack.c.b16 %v4683, %v4682
      %v4695 = vpack.c.b16 %v4685, %v4684
      %v4696 = vpack.c.b16 %v4687, %v4686
      %v4697 = vpack.c.b16 %v4689, %v4688
      %v4698 = vpack.c.b16 %v4691, %v4690
      %v4699 = vpack.c.b16 %v4693, %v4692
      %v4707 = vsel %vm1939, %v4669, 0
      %4709 = vmatpush.bf16.msra.mxu0 0
      %4710 = vmatpush.bf16.msra.mxu0 0
      %4711 = vmatpush.bf16.msra.mxu0 %v4699
      %4712 = vmatpush.bf16.msra.mxu0 %v4698
      %4713 = vmatpush.bf16.msra.mxu0 %v4697
      %4714 = vmatpush.bf16.msra.mxu0 %v4696
      %4715 = vmatpush.bf16.msra.mxu0 %v4695
      %4716 = vmatpush.bf16.msra.mxu0 %v4694
      %4717 = vmatmul.bf16.gmra.mxu0 %v4707
      %v4718 = vpop.f32.mrf.mxu0
      %v4719 = vadd.f32 0.0, %v4718
      %v4720 = vpop.f32.mrf.mxu0
      %4721 = vdwg.mxu0
      %v4722 = vadd.f32 %v4652, %v4719
      %v4723 = vld [vmem:[%s962] sm:$0x1]
      %v4725 = vperm.slane %v4723, 0
      %v4727 = vadd.f32 %v4722, %v4725
      %v4728 = vmax.f32 %v4727, 0.0
      %v4729 = vpack.c.bf16 %v4728, %v4728
      %v4730 = vld [vmem:[%s945] sm:$0xf]
      %v4731 = vld [vmem:[%s945 + $0x4] sm:$0xf]
      %v4732 = vld [vmem:[%s945 + $0x8] sm:$0xf]
      %v4733 = vld [vmem:[%s945 + $0xc] sm:$0xf]
      %v4734 = vld [vmem:[%s945 + $0x10] sm:$0xf]
      %v4735 = vld [vmem:[%s945 + $0x14] sm:$0xf]
      %v4736 = vld [vmem:[%s945 + $0x18] sm:$0xf]
      %v4737 = vld [vmem:[%s945 + $0x1c] sm:$0xf]
      %s4738 = scalar_lea.vmem %s945, 32
      %v4739 = vld [vmem:[%s4738] sm:$0xf]
      %v4740 = vld [vmem:[%s4738 + $0x4] sm:$0xf]
      %v4741 = vld [vmem:[%s4738 + $0x8] sm:$0xf]
      %v4742 = vld [vmem:[%s4738 + $0xc] sm:$0xf]
      %v4743 = vld [vmem:[%s4738 + $0x10] sm:$0xf]
      %v4744 = vld [vmem:[%s4738 + $0x14] sm:$0xf]
      %v4745 = vld [vmem:[%s4738 + $0x18] sm:$0xf]
      %v4746 = vld [vmem:[%s4738 + $0x1c] sm:$0xf]
      %v4748 = vshrl.u32 %v4729, 16
      %v4750 = vshll.u32 %v4729, 16
      %v4752 = vrot.slane %v4750, 1
      %v4753 = vor.u32 %v4748, %v4752
      %v4762 = vunpack.c.l.b16 %v4739
      %v4763 = vunpack.c.l.b16 %v4740
      %v4764 = vunpack.c.l.b16 %v4741
      %v4765 = vunpack.c.l.b16 %v4742
      %v4766 = vunpack.c.l.b16 %v4743
      %v4767 = vunpack.c.l.b16 %v4744
      %v4768 = vunpack.c.l.b16 %v4745
      %v4769 = vunpack.c.l.b16 %v4746
      %v4770 = vpack.c.b16 %v4763, %v4762
      %v4771 = vpack.c.b16 %v4765, %v4764
      %v4772 = vpack.c.b16 %v4767, %v4766
      %v4773 = vpack.c.b16 %v4769, %v4768
      %v4779 = vsel %vm3539, %v4753, 0
      %4781 = vmatpush.bf16.msra.mxu0 0
      %4782 = vmatpush.bf16.msra.mxu0 0
      %4783 = vmatpush.bf16.msra.mxu0 0
      %4784 = vmatpush.bf16.msra.mxu0 0
      %4785 = vmatpush.bf16.msra.mxu0 %v4773
      %4786 = vmatpush.bf16.msra.mxu0 %v4772
      %4787 = vmatpush.bf16.msra.mxu0 %v4771
      %4788 = vmatpush.bf16.msra.mxu0 %v4770
      %4789 = vmatmul.bf16.gmra.mxu0 %v4779
      %v4790 = vpop.f32.mrf.mxu0
      %v4791 = vadd.f32 0.0, %v4790
      %v4792 = vpop.f32.mrf.mxu0
      %4793 = vdwg.mxu0
      %v4802 = vunpack.c.l.b16 %v4730
      %v4803 = vunpack.c.l.b16 %v4731
      %v4804 = vunpack.c.l.b16 %v4732
      %v4805 = vunpack.c.l.b16 %v4733
      %v4806 = vunpack.c.l.b16 %v4734
      %v4807 = vunpack.c.l.b16 %v4735
      %v4808 = vunpack.c.l.b16 %v4736
      %v4809 = vunpack.c.l.b16 %v4737
      %v4810 = vpack.c.b16 %v4803, %v4802
      %v4811 = vpack.c.b16 %v4805, %v4804
      %v4812 = vpack.c.b16 %v4807, %v4806
      %v4813 = vpack.c.b16 %v4809, %v4808
      %v4818 = vsel %vm3539, %v4729, 0
      %4820 = vmatpush.bf16.msra.mxu0 0
      %4821 = vmatpush.bf16.msra.mxu0 0
      %4822 = vmatpush.bf16.msra.mxu0 0
      %4823 = vmatpush.bf16.msra.mxu0 0
      %4824 = vmatpush.bf16.msra.mxu0 %v4813
      %4825 = vmatpush.bf16.msra.mxu0 %v4812
      %4826 = vmatpush.bf16.msra.mxu0 %v4811
      %4827 = vmatpush.bf16.msra.mxu0 %v4810
      %4828 = vmatmul.bf16.gmra.mxu0 %v4818
      %v4829 = vpop.f32.mrf.mxu0
      %v4830 = vadd.f32 %v4791, %v4829
      %v4831 = vpop.f32.mrf.mxu0
      %4832 = vdwg.mxu0
      %s4833 = scalar_lea.vmem %s945, 64
      %v4834 = vld [vmem:[%s4833] sm:$0xf]
      %v4835 = vld [vmem:[%s4833 + $0x4] sm:$0xf]
      %v4836 = vld [vmem:[%s4833 + $0x8] sm:$0xf]
      %v4837 = vld [vmem:[%s4833 + $0xc] sm:$0xf]
      %v4838 = vld [vmem:[%s4833 + $0x10] sm:$0xf]
      %v4839 = vld [vmem:[%s4833 + $0x14] sm:$0xf]
      %v4840 = vld [vmem:[%s4833 + $0x18] sm:$0xf]
      %v4841 = vld [vmem:[%s4833 + $0x1c] sm:$0xf]
      %v4843 = vrot.slane %v4729, 1
      %v4852 = vunpack.c.l.b16 %v4834
      %v4853 = vunpack.c.l.b16 %v4835
      %v4854 = vunpack.c.l.b16 %v4836
      %v4855 = vunpack.c.l.b16 %v4837
      %v4856 = vunpack.c.l.b16 %v4838
      %v4857 = vunpack.c.l.b16 %v4839
      %v4858 = vunpack.c.l.b16 %v4840
      %v4859 = vunpack.c.l.b16 %v4841
      %v4860 = vpack.c.b16 %v4853, %v4852
      %v4861 = vpack.c.b16 %v4855, %v4854
      %v4862 = vpack.c.b16 %v4857, %v4856
      %v4863 = vpack.c.b16 %v4859, %v4858
      %v4869 = vsel %vm3539, %v4843, 0
      %4871 = vmatpush.bf16.msra.mxu0 0
      %4872 = vmatpush.bf16.msra.mxu0 0
      %4873 = vmatpush.bf16.msra.mxu0 0
      %4874 = vmatpush.bf16.msra.mxu0 0
      %4875 = vmatpush.bf16.msra.mxu0 %v4863
      %4876 = vmatpush.bf16.msra.mxu0 %v4862
      %4877 = vmatpush.bf16.msra.mxu0 %v4861
      %4878 = vmatpush.bf16.msra.mxu0 %v4860
      %4879 = vmatmul.bf16.gmra.mxu0 %v4869
      %v4880 = vpop.f32.mrf.mxu0
      %v4881 = vadd.f32 0.0, %v4880
      %v4882 = vpop.f32.mrf.mxu0
      %4883 = vdwg.mxu0
      %v4884 = vadd.f32 %v4830, %v4881
      %vm4885 = vcmask 254976
      %v4886 = vsel %vm4885, %v4884, 0.0
      %v4887 = vrot.slane %v4886, 4
      %v4888 = vadd.f32 %v4886, %v4887
      %v4889 = vrot.slane %v4888, 2
      %v4890 = vadd.f32 %v4888, %v4889
      %v4891 = vrot.slane %v4890, 1
      %v4892 = vadd.f32 %v4890, %v4891
      %4894 = vrot.lane.b32.xlu0 %v4892, 112
      %v4895 = vpop.permute.xlu0 %4894
      %v4897 = vadd.f32 %v4892, %v4895
      %v4898 = vmul.f32 %v4897, 0.25
      %s4899 = scalar_lea.vmem %s0, 24
      %v4900 = vld [vmem:[%s4899] sm:$0xff]
      %v4901 = vld [vmem:[%s4899 + $0x8] sm:$0xff]
      %v4902 = vld [vmem:[%s4899 + $0x10] sm:$0xff]
      %v4903 = vpack.c.bf16 %v4901, %v4900
      %v4904 = vpack.c.bf16 %v4902, %v4902
      %v4906 = vshrl.u32 %v4903, 16
      %v4908 = vshll.u32 %v4903, 16
      %v4910 = vrot.slane %v4908, 1
      %v4911 = vor.u32 %v4906, %v4910
      %v4913 = vshll.u32 %v4904, 16
      %v4915 = vrot.slane %v4913, 1
      %v4916 = vsel %vm1012, %v4911, %v4915
      %v4917 = vshrl.u32 %v4904, 16
      %v4919 = vor.u32 %v4917, %v4915
      %v4921 = vsel %vm1052, %v4916, 0
      %v4924 = vsel %vm1052, %v4919, 0
      %4926 = vmatpush.bf16.msra.mxu0 0
      %4927 = vmatpush.bf16.msra.mxu0 0
      %4928 = vmatpush.bf16.msra.mxu0 0
      %4929 = vmatpush.bf16.msra.mxu0 0
      %4930 = vmatpush.bf16.msra.mxu0 0
      %4931 = vmatpush.bf16.msra.mxu0 0
      %4932 = vmatpush.bf16.msra.mxu0 %v1061
      %4933 = vmatpush.bf16.msra.mxu0 %v1043
      %4934 = vmatmul.bf16.gmra.mxu0 %v4921
      %v4935 = vpop.f32.mrf.mxu0
      %v4936 = vadd.f32 0.0, %v4935
      %v4937 = vpop.f32.mrf.mxu0
      %v4938 = vadd.f32 0.0, %v4937
      %4939 = vmatmul.bf16.gmra.mxu0 %v4924
      %v4940 = vpop.f32.mrf.mxu0
      %v4941 = vadd.f32 0.0, %v4940
      %v4942 = vpop.f32.mrf.mxu0
      %4943 = vdwg.mxu0
      %4944 = vmatpush.bf16.msra.mxu0 0
      %4945 = vmatpush.bf16.msra.mxu0 0
      %4946 = vmatpush.bf16.msra.mxu0 0
      %4947 = vmatpush.bf16.msra.mxu0 0
      %4948 = vmatpush.bf16.msra.mxu0 0
      %4949 = vmatpush.bf16.msra.mxu0 0
      %4950 = vmatpush.bf16.msra.mxu0 %v1064
      %4951 = vmatpush.bf16.msra.mxu0 %v1044
      %4952 = vmatmul.bf16.gmra.mxu0 %v4921
      %v4953 = vpop.f32.mrf.mxu0
      %v4954 = vadd.f32 0.0, %v4953
      %v4955 = vpop.f32.mrf.mxu0
      %v4956 = vadd.f32 0.0, %v4955
      %4957 = vmatmul.bf16.gmra.mxu0 %v4924
      %v4958 = vpop.f32.mrf.mxu0
      %v4959 = vadd.f32 0.0, %v4958
      %v4960 = vpop.f32.mrf.mxu0
      %4961 = vdwg.mxu0
      %4962 = vmatpush.bf16.msra.mxu0 0
      %4963 = vmatpush.bf16.msra.mxu0 0
      %4964 = vmatpush.bf16.msra.mxu0 0
      %4965 = vmatpush.bf16.msra.mxu0 0
      %4966 = vmatpush.bf16.msra.mxu0 0
      %4967 = vmatpush.bf16.msra.mxu0 0
      %4968 = vmatpush.bf16.msra.mxu0 %v1067
      %4969 = vmatpush.bf16.msra.mxu0 %v1045
      %4970 = vmatmul.bf16.gmra.mxu0 %v4921
      %v4971 = vpop.f32.mrf.mxu0
      %v4972 = vadd.f32 0.0, %v4971
      %v4973 = vpop.f32.mrf.mxu0
      %v4974 = vadd.f32 0.0, %v4973
      %4975 = vmatmul.bf16.gmra.mxu0 %v4924
      %v4976 = vpop.f32.mrf.mxu0
      %v4977 = vadd.f32 0.0, %v4976
      %v4978 = vpop.f32.mrf.mxu0
      %4979 = vdwg.mxu0
      %v4980 = vsel %vm1052, %v4903, 0
      %v4982 = vsel %vm1052, %v4904, 0
      %4984 = vmatpush.bf16.msra.mxu0 0
      %4985 = vmatpush.bf16.msra.mxu0 0
      %4986 = vmatpush.bf16.msra.mxu0 0
      %4987 = vmatpush.bf16.msra.mxu0 0
      %4988 = vmatpush.bf16.msra.mxu0 0
      %4989 = vmatpush.bf16.msra.mxu0 0
      %4990 = vmatpush.bf16.msra.mxu0 %v1152
      %4991 = vmatpush.bf16.msra.mxu0 %v1138
      %4992 = vmatmul.bf16.gmra.mxu0 %v4980
      %v4993 = vpop.f32.mrf.mxu0
      %v4994 = vadd.f32 %v4936, %v4993
      %v4995 = vpop.f32.mrf.mxu0
      %v4996 = vadd.f32 %v4938, %v4995
      %4997 = vmatmul.bf16.gmra.mxu0 %v4982
      %v4998 = vpop.f32.mrf.mxu0
      %v4999 = vadd.f32 %v4941, %v4998
      %v5000 = vpop.f32.mrf.mxu0
      %5001 = vdwg.mxu0
      %5002 = vmatpush.bf16.msra.mxu0 0
      %5003 = vmatpush.bf16.msra.mxu0 0
      %5004 = vmatpush.bf16.msra.mxu0 0
      %5005 = vmatpush.bf16.msra.mxu0 0
      %5006 = vmatpush.bf16.msra.mxu0 0
      %5007 = vmatpush.bf16.msra.mxu0 0
      %5008 = vmatpush.bf16.msra.mxu0 %v1155
      %5009 = vmatpush.bf16.msra.mxu0 %v1139
      %5010 = vmatmul.bf16.gmra.mxu0 %v4980
      %v5011 = vpop.f32.mrf.mxu0
      %v5012 = vadd.f32 %v4954, %v5011
      %v5013 = vpop.f32.mrf.mxu0
      %v5014 = vadd.f32 %v4956, %v5013
      %5015 = vmatmul.bf16.gmra.mxu0 %v4982
      %v5016 = vpop.f32.mrf.mxu0
      %v5017 = vadd.f32 %v4959, %v5016
      %v5018 = vpop.f32.mrf.mxu0
      %5019 = vdwg.mxu0
      %5020 = vmatpush.bf16.msra.mxu0 0
      %5021 = vmatpush.bf16.msra.mxu0 0
      %5022 = vmatpush.bf16.msra.mxu0 0
      %5023 = vmatpush.bf16.msra.mxu0 0
      %5024 = vmatpush.bf16.msra.mxu0 0
      %5025 = vmatpush.bf16.msra.mxu0 0
      %5026 = vmatpush.bf16.msra.mxu0 %v1158
      %5027 = vmatpush.bf16.msra.mxu0 %v1140
      %5028 = vmatmul.bf16.gmra.mxu0 %v4980
      %v5029 = vpop.f32.mrf.mxu0
      %v5030 = vadd.f32 %v4972, %v5029
      %v5031 = vpop.f32.mrf.mxu0
      %v5032 = vadd.f32 %v4974, %v5031
      %5033 = vmatmul.bf16.gmra.mxu0 %v4982
      %v5034 = vpop.f32.mrf.mxu0
      %v5035 = vadd.f32 %v4977, %v5034
      %v5036 = vpop.f32.mrf.mxu0
      %5037 = vdwg.mxu0
      %v5040 = vrot.slane %v4903, 1
      %v5041 = vrot.slane %v4904, 1
      %v5042 = vsel %vm1223, %v5040, %v5041
      %v5044 = vsel %vm1052, %v5042, 0
      %v5047 = vsel %vm1052, %v5041, 0
      %5049 = vmatpush.bf16.msra.mxu0 0
      %5050 = vmatpush.bf16.msra.mxu0 0
      %5051 = vmatpush.bf16.msra.mxu0 0
      %5052 = vmatpush.bf16.msra.mxu0 0
      %5053 = vmatpush.bf16.msra.mxu0 0
      %5054 = vmatpush.bf16.msra.mxu0 0
      %5055 = vmatpush.bf16.msra.mxu0 %v1258
      %5056 = vmatpush.bf16.msra.mxu0 %v1242
      %5057 = vmatmul.bf16.gmra.mxu0 %v5044
      %v5058 = vpop.f32.mrf.mxu0
      %v5059 = vadd.f32 0.0, %v5058
      %v5060 = vpop.f32.mrf.mxu0
      %v5061 = vadd.f32 0.0, %v5060
      %5062 = vmatmul.bf16.gmra.mxu0 %v5047
      %v5063 = vpop.f32.mrf.mxu0
      %v5064 = vadd.f32 0.0, %v5063
      %v5065 = vpop.f32.mrf.mxu0
      %5066 = vdwg.mxu0
      %5067 = vmatpush.bf16.msra.mxu0 0
      %5068 = vmatpush.bf16.msra.mxu0 0
      %5069 = vmatpush.bf16.msra.mxu0 0
      %5070 = vmatpush.bf16.msra.mxu0 0
      %5071 = vmatpush.bf16.msra.mxu0 0
      %5072 = vmatpush.bf16.msra.mxu0 0
      %5073 = vmatpush.bf16.msra.mxu0 %v1261
      %5074 = vmatpush.bf16.msra.mxu0 %v1243
      %5075 = vmatmul.bf16.gmra.mxu0 %v5044
      %v5076 = vpop.f32.mrf.mxu0
      %v5077 = vadd.f32 0.0, %v5076
      %v5078 = vpop.f32.mrf.mxu0
      %v5079 = vadd.f32 0.0, %v5078
      %5080 = vmatmul.bf16.gmra.mxu0 %v5047
      %v5081 = vpop.f32.mrf.mxu0
      %v5082 = vadd.f32 0.0, %v5081
      %v5083 = vpop.f32.mrf.mxu0
      %5084 = vdwg.mxu0
      %5085 = vmatpush.bf16.msra.mxu0 0
      %5086 = vmatpush.bf16.msra.mxu0 0
      %5087 = vmatpush.bf16.msra.mxu0 0
      %5088 = vmatpush.bf16.msra.mxu0 0
      %5089 = vmatpush.bf16.msra.mxu0 0
      %5090 = vmatpush.bf16.msra.mxu0 0
      %5091 = vmatpush.bf16.msra.mxu0 %v1264
      %5092 = vmatpush.bf16.msra.mxu0 %v1244
      %5093 = vmatmul.bf16.gmra.mxu0 %v5044
      %v5094 = vpop.f32.mrf.mxu0
      %v5095 = vadd.f32 0.0, %v5094
      %v5096 = vpop.f32.mrf.mxu0
      %v5097 = vadd.f32 0.0, %v5096
      %5098 = vmatmul.bf16.gmra.mxu0 %v5047
      %v5099 = vpop.f32.mrf.mxu0
      %v5100 = vadd.f32 0.0, %v5099
      %v5101 = vpop.f32.mrf.mxu0
      %5102 = vdwg.mxu0
      %v5103 = vadd.f32 %v4994, %v5059
      %v5104 = vadd.f32 %v5012, %v5077
      %v5105 = vadd.f32 %v5030, %v5095
      %v5106 = vadd.f32 %v4996, %v5061
      %v5107 = vadd.f32 %v5014, %v5079
      %v5108 = vadd.f32 %v5032, %v5097
      %v5109 = vadd.f32 %v4999, %v5064
      %v5110 = vadd.f32 %v5017, %v5082
      %v5111 = vadd.f32 %v5035, %v5100
      %v5112 = vadd.f32 %v5103, %v1331
      %v5113 = vadd.f32 %v5104, %v1332
      %v5114 = vadd.f32 %v5105, %v1333
      %v5115 = vadd.f32 %v5106, %v1331
      %v5116 = vadd.f32 %v5107, %v1332
      %v5117 = vadd.f32 %v5108, %v1333
      %v5118 = vadd.f32 %v5109, %v1331
      %v5119 = vadd.f32 %v5110, %v1332
      %v5120 = vadd.f32 %v5111, %v1333
      %v5121 = vmax.f32 %v5112, 0.0
      %v5122 = vmax.f32 %v5113, 0.0
      %v5123 = vmax.f32 %v5114, 0.0
      %v5124 = vmax.f32 %v5115, 0.0
      %v5125 = vmax.f32 %v5116, 0.0
      %v5126 = vmax.f32 %v5117, 0.0
      %v5127 = vmax.f32 %v5118, 0.0
      %v5128 = vmax.f32 %v5119, 0.0
      %v5129 = vmax.f32 %v5120, 0.0
      %v5130 = vpack.c.bf16 %v5124, %v5121
      %v5131 = vpack.c.bf16 %v5125, %v5122
      %v5132 = vpack.c.bf16 %v5126, %v5123
      %v5133 = vpack.c.bf16 %v5127, %v5127
      %v5134 = vpack.c.bf16 %v5128, %v5128
      %v5135 = vpack.c.bf16 %v5129, %v5129
      %v5137 = vshrl.u32 %v5130, 16
      %v5139 = vshll.u32 %v5130, 16
      %v5141 = vrot.slane %v5139, 1
      %v5142 = vor.u32 %v5137, %v5141
      %v5144 = vshll.u32 %v5133, 16
      %v5146 = vrot.slane %v5144, 1
      %v5147 = vsel %vm1012, %v5142, %v5146
      %v5149 = vshrl.u32 %v5131, 16
      %v5151 = vshll.u32 %v5131, 16
      %v5153 = vrot.slane %v5151, 1
      %v5154 = vor.u32 %v5149, %v5153
      %v5156 = vshll.u32 %v5134, 16
      %v5158 = vrot.slane %v5156, 1
      %v5159 = vsel %vm1012, %v5154, %v5158
      %v5161 = vshrl.u32 %v5132, 16
      %v5163 = vshll.u32 %v5132, 16
      %v5165 = vrot.slane %v5163, 1
      %v5166 = vor.u32 %v5161, %v5165
      %v5168 = vshll.u32 %v5135, 16
      %v5170 = vrot.slane %v5168, 1
      %v5171 = vsel %vm1012, %v5166, %v5170
      %v5172 = vshrl.u32 %v5133, 16
      %v5174 = vor.u32 %v5172, %v5146
      %v5175 = vshrl.u32 %v5134, 16
      %v5177 = vor.u32 %v5175, %v5158
      %v5178 = vshrl.u32 %v5135, 16
      %v5180 = vor.u32 %v5178, %v5170
      %v5186 = vsel %vm1939, %v5171, 0
      %v5189 = vsel %vm1939, %v5180, 0
      %5191 = vmatpush.bf16.msra.mxu0 %v1828
      %5192 = vmatpush.bf16.msra.mxu0 %v1825
      %5193 = vmatpush.bf16.msra.mxu0 %v1822
      %5194 = vmatpush.bf16.msra.mxu0 %v1819
      %5195 = vmatpush.bf16.msra.mxu0 %v1816
      %5196 = vmatpush.bf16.msra.mxu0 %v1813
      %5197 = vmatpush.bf16.msra.mxu0 %v1810
      %5198 = vmatpush.bf16.msra.mxu0 %v1807
      %5199 = vmatmul.bf16.gmra.mxu0 %v5147
      %v5200 = vpop.f32.mrf.mxu0
      %v5201 = vadd.f32 0.0, %v5200
      %v5202 = vpop.f32.mrf.mxu0
      %v5203 = vadd.f32 0.0, %v5202
      %5204 = vmatmul.bf16.gmra.mxu0 %v5174
      %v5205 = vpop.f32.mrf.mxu0
      %v5206 = vadd.f32 0.0, %v5205
      %v5207 = vpop.f32.mrf.mxu0
      %5208 = vdwg.mxu0
      %5209 = vmatpush.bf16.msra.mxu0 %v1852
      %5210 = vmatpush.bf16.msra.mxu0 %v1849
      %5211 = vmatpush.bf16.msra.mxu0 %v1846
      %5212 = vmatpush.bf16.msra.mxu0 %v1843
      %5213 = vmatpush.bf16.msra.mxu0 %v1840
      %5214 = vmatpush.bf16.msra.mxu0 %v1837
      %5215 = vmatpush.bf16.msra.mxu0 %v1834
      %5216 = vmatpush.bf16.msra.mxu0 %v1831
      %5217 = vmatmul.bf16.gmra.mxu0 %v5159
      %v5218 = vpop.f32.mrf.mxu0
      %v5219 = vadd.f32 %v5201, %v5218
      %v5220 = vpop.f32.mrf.mxu0
      %v5221 = vadd.f32 %v5203, %v5220
      %5222 = vmatmul.bf16.gmra.mxu0 %v5177
      %v5223 = vpop.f32.mrf.mxu0
      %v5224 = vadd.f32 %v5206, %v5223
      %v5225 = vpop.f32.mrf.mxu0
      %5226 = vdwg.mxu0
      %5227 = vmatpush.bf16.msra.mxu0 0
      %5228 = vmatpush.bf16.msra.mxu0 0
      %5229 = vmatpush.bf16.msra.mxu0 %v1870
      %5230 = vmatpush.bf16.msra.mxu0 %v1867
      %5231 = vmatpush.bf16.msra.mxu0 %v1864
      %5232 = vmatpush.bf16.msra.mxu0 %v1861
      %5233 = vmatpush.bf16.msra.mxu0 %v1858
      %5234 = vmatpush.bf16.msra.mxu0 %v1855
      %5235 = vmatmul.bf16.gmra.mxu0 %v5186
      %v5236 = vpop.f32.mrf.mxu0
      %v5237 = vadd.f32 %v5219, %v5236
      %v5238 = vpop.f32.mrf.mxu0
      %v5239 = vadd.f32 %v5221, %v5238
      %5240 = vmatmul.bf16.gmra.mxu0 %v5189
      %v5241 = vpop.f32.mrf.mxu0
      %v5242 = vadd.f32 %v5224, %v5241
      %v5243 = vpop.f32.mrf.mxu0
      %5244 = vdwg.mxu0
      %5245 = vmatpush.bf16.msra.mxu0 %v1829
      %5246 = vmatpush.bf16.msra.mxu0 %v1826
      %5247 = vmatpush.bf16.msra.mxu0 %v1823
      %5248 = vmatpush.bf16.msra.mxu0 %v1820
      %5249 = vmatpush.bf16.msra.mxu0 %v1817
      %5250 = vmatpush.bf16.msra.mxu0 %v1814
      %5251 = vmatpush.bf16.msra.mxu0 %v1811
      %5252 = vmatpush.bf16.msra.mxu0 %v1808
      %5253 = vmatmul.bf16.gmra.mxu0 %v5147
      %v5254 = vpop.f32.mrf.mxu0
      %v5255 = vadd.f32 0.0, %v5254
      %v5256 = vpop.f32.mrf.mxu0
      %v5257 = vadd.f32 0.0, %v5256
      %5258 = vmatmul.bf16.gmra.mxu0 %v5174
      %v5259 = vpop.f32.mrf.mxu0
      %v5260 = vadd.f32 0.0, %v5259
      %v5261 = vpop.f32.mrf.mxu0
      %5262 = vdwg.mxu0
      %5263 = vmatpush.bf16.msra.mxu0 %v1853
      %5264 = vmatpush.bf16.msra.mxu0 %v1850
      %5265 = vmatpush.bf16.msra.mxu0 %v1847
      %5266 = vmatpush.bf16.msra.mxu0 %v1844
      %5267 = vmatpush.bf16.msra.mxu0 %v1841
      %5268 = vmatpush.bf16.msra.mxu0 %v1838
      %5269 = vmatpush.bf16.msra.mxu0 %v1835
      %5270 = vmatpush.bf16.msra.mxu0 %v1832
      %5271 = vmatmul.bf16.gmra.mxu0 %v5159
      %v5272 = vpop.f32.mrf.mxu0
      %v5273 = vadd.f32 %v5255, %v5272
      %v5274 = vpop.f32.mrf.mxu0
      %v5275 = vadd.f32 %v5257, %v5274
      %5276 = vmatmul.bf16.gmra.mxu0 %v5177
      %v5277 = vpop.f32.mrf.mxu0
      %v5278 = vadd.f32 %v5260, %v5277
      %v5279 = vpop.f32.mrf.mxu0
      %5280 = vdwg.mxu0
      %5281 = vmatpush.bf16.msra.mxu0 0
      %5282 = vmatpush.bf16.msra.mxu0 0
      %5283 = vmatpush.bf16.msra.mxu0 %v1871
      %5284 = vmatpush.bf16.msra.mxu0 %v1868
      %5285 = vmatpush.bf16.msra.mxu0 %v1865
      %5286 = vmatpush.bf16.msra.mxu0 %v1862
      %5287 = vmatpush.bf16.msra.mxu0 %v1859
      %5288 = vmatpush.bf16.msra.mxu0 %v1856
      %5289 = vmatmul.bf16.gmra.mxu0 %v5186
      %v5290 = vpop.f32.mrf.mxu0
      %v5291 = vadd.f32 %v5273, %v5290
      %v5292 = vpop.f32.mrf.mxu0
      %v5293 = vadd.f32 %v5275, %v5292
      %5294 = vmatmul.bf16.gmra.mxu0 %v5189
      %v5295 = vpop.f32.mrf.mxu0
      %v5296 = vadd.f32 %v5278, %v5295
      %v5297 = vpop.f32.mrf.mxu0
      %5298 = vdwg.mxu0
      %5299 = vmatpush.bf16.msra.mxu0 %v1830
      %5300 = vmatpush.bf16.msra.mxu0 %v1827
      %5301 = vmatpush.bf16.msra.mxu0 %v1824
      %5302 = vmatpush.bf16.msra.mxu0 %v1821
      %5303 = vmatpush.bf16.msra.mxu0 %v1818
      %5304 = vmatpush.bf16.msra.mxu0 %v1815
      %5305 = vmatpush.bf16.msra.mxu0 %v1812
      %5306 = vmatpush.bf16.msra.mxu0 %v1809
      %5307 = vmatmul.bf16.gmra.mxu0 %v5147
      %v5308 = vpop.f32.mrf.mxu0
      %v5309 = vadd.f32 0.0, %v5308
      %v5310 = vpop.f32.mrf.mxu0
      %v5311 = vadd.f32 0.0, %v5310
      %5312 = vmatmul.bf16.gmra.mxu0 %v5174
      %v5313 = vpop.f32.mrf.mxu0
      %v5314 = vadd.f32 0.0, %v5313
      %v5315 = vpop.f32.mrf.mxu0
      %5316 = vdwg.mxu0
      %5317 = vmatpush.bf16.msra.mxu0 %v1854
      %5318 = vmatpush.bf16.msra.mxu0 %v1851
      %5319 = vmatpush.bf16.msra.mxu0 %v1848
      %5320 = vmatpush.bf16.msra.mxu0 %v1845
      %5321 = vmatpush.bf16.msra.mxu0 %v1842
      %5322 = vmatpush.bf16.msra.mxu0 %v1839
      %5323 = vmatpush.bf16.msra.mxu0 %v1836
      %5324 = vmatpush.bf16.msra.mxu0 %v1833
      %5325 = vmatmul.bf16.gmra.mxu0 %v5159
      %v5326 = vpop.f32.mrf.mxu0
      %v5327 = vadd.f32 %v5309, %v5326
      %v5328 = vpop.f32.mrf.mxu0
      %v5329 = vadd.f32 %v5311, %v5328
      %5330 = vmatmul.bf16.gmra.mxu0 %v5177
      %v5331 = vpop.f32.mrf.mxu0
      %v5332 = vadd.f32 %v5314, %v5331
      %v5333 = vpop.f32.mrf.mxu0
      %5334 = vdwg.mxu0
      %5335 = vmatpush.bf16.msra.mxu0 0
      %5336 = vmatpush.bf16.msra.mxu0 0
      %5337 = vmatpush.bf16.msra.mxu0 %v1872
      %5338 = vmatpush.bf16.msra.mxu0 %v1869
      %5339 = vmatpush.bf16.msra.mxu0 %v1866
      %5340 = vmatpush.bf16.msra.mxu0 %v1863
      %5341 = vmatpush.bf16.msra.mxu0 %v1860
      %5342 = vmatpush.bf16.msra.mxu0 %v1857
      %5343 = vmatmul.bf16.gmra.mxu0 %v5186
      %v5344 = vpop.f32.mrf.mxu0
      %v5345 = vadd.f32 %v5327, %v5344
      %v5346 = vpop.f32.mrf.mxu0
      %v5347 = vadd.f32 %v5329, %v5346
      %5348 = vmatmul.bf16.gmra.mxu0 %v5189
      %v5349 = vpop.f32.mrf.mxu0
      %v5350 = vadd.f32 %v5332, %v5349
      %v5351 = vpop.f32.mrf.mxu0
      %5352 = vdwg.mxu0
      %v5353 = vsel %vm1939, %v5132, 0
      %v5355 = vsel %vm1939, %v5135, 0
      %5357 = vmatpush.bf16.msra.mxu0 %v2349
      %5358 = vmatpush.bf16.msra.mxu0 %v2346
      %5359 = vmatpush.bf16.msra.mxu0 %v2343
      %5360 = vmatpush.bf16.msra.mxu0 %v2340
      %5361 = vmatpush.bf16.msra.mxu0 %v2337
      %5362 = vmatpush.bf16.msra.mxu0 %v2334
      %5363 = vmatpush.bf16.msra.mxu0 %v2331
      %5364 = vmatpush.bf16.msra.mxu0 %v2328
      %5365 = vmatmul.bf16.gmra.mxu0 %v5130
      %v5366 = vpop.f32.mrf.mxu0
      %v5367 = vadd.f32 %v5237, %v5366
      %v5368 = vpop.f32.mrf.mxu0
      %v5369 = vadd.f32 %v5239, %v5368
      %5370 = vmatmul.bf16.gmra.mxu0 %v5133
      %v5371 = vpop.f32.mrf.mxu0
      %v5372 = vadd.f32 %v5242, %v5371
      %v5373 = vpop.f32.mrf.mxu0
      %5374 = vdwg.mxu0
      %5375 = vmatpush.bf16.msra.mxu0 %v2373
      %5376 = vmatpush.bf16.msra.mxu0 %v2370
      %5377 = vmatpush.bf16.msra.mxu0 %v2367
      %5378 = vmatpush.bf16.msra.mxu0 %v2364
      %5379 = vmatpush.bf16.msra.mxu0 %v2361
      %5380 = vmatpush.bf16.msra.mxu0 %v2358
      %5381 = vmatpush.bf16.msra.mxu0 %v2355
      %5382 = vmatpush.bf16.msra.mxu0 %v2352
      %5383 = vmatmul.bf16.gmra.mxu0 %v5131
      %v5384 = vpop.f32.mrf.mxu0
      %v5385 = vadd.f32 %v5367, %v5384
      %v5386 = vpop.f32.mrf.mxu0
      %v5387 = vadd.f32 %v5369, %v5386
      %5388 = vmatmul.bf16.gmra.mxu0 %v5134
      %v5389 = vpop.f32.mrf.mxu0
      %v5390 = vadd.f32 %v5372, %v5389
      %v5391 = vpop.f32.mrf.mxu0
      %5392 = vdwg.mxu0
      %5393 = vmatpush.bf16.msra.mxu0 0
      %5394 = vmatpush.bf16.msra.mxu0 0
      %5395 = vmatpush.bf16.msra.mxu0 %v2391
      %5396 = vmatpush.bf16.msra.mxu0 %v2388
      %5397 = vmatpush.bf16.msra.mxu0 %v2385
      %5398 = vmatpush.bf16.msra.mxu0 %v2382
      %5399 = vmatpush.bf16.msra.mxu0 %v2379
      %5400 = vmatpush.bf16.msra.mxu0 %v2376
      %5401 = vmatmul.bf16.gmra.mxu0 %v5353
      %v5402 = vpop.f32.mrf.mxu0
      %v5403 = vadd.f32 %v5385, %v5402
      %v5404 = vpop.f32.mrf.mxu0
      %v5405 = vadd.f32 %v5387, %v5404
      %5406 = vmatmul.bf16.gmra.mxu0 %v5355
      %v5407 = vpop.f32.mrf.mxu0
      %v5408 = vadd.f32 %v5390, %v5407
      %v5409 = vpop.f32.mrf.mxu0
      %5410 = vdwg.mxu0
      %5411 = vmatpush.bf16.msra.mxu0 %v2350
      %5412 = vmatpush.bf16.msra.mxu0 %v2347
      %5413 = vmatpush.bf16.msra.mxu0 %v2344
      %5414 = vmatpush.bf16.msra.mxu0 %v2341
      %5415 = vmatpush.bf16.msra.mxu0 %v2338
      %5416 = vmatpush.bf16.msra.mxu0 %v2335
      %5417 = vmatpush.bf16.msra.mxu0 %v2332
      %5418 = vmatpush.bf16.msra.mxu0 %v2329
      %5419 = vmatmul.bf16.gmra.mxu0 %v5130
      %v5420 = vpop.f32.mrf.mxu0
      %v5421 = vadd.f32 %v5291, %v5420
      %v5422 = vpop.f32.mrf.mxu0
      %v5423 = vadd.f32 %v5293, %v5422
      %5424 = vmatmul.bf16.gmra.mxu0 %v5133
      %v5425 = vpop.f32.mrf.mxu0
      %v5426 = vadd.f32 %v5296, %v5425
      %v5427 = vpop.f32.mrf.mxu0
      %5428 = vdwg.mxu0
      %5429 = vmatpush.bf16.msra.mxu0 %v2374
      %5430 = vmatpush.bf16.msra.mxu0 %v2371
      %5431 = vmatpush.bf16.msra.mxu0 %v2368
      %5432 = vmatpush.bf16.msra.mxu0 %v2365
      %5433 = vmatpush.bf16.msra.mxu0 %v2362
      %5434 = vmatpush.bf16.msra.mxu0 %v2359
      %5435 = vmatpush.bf16.msra.mxu0 %v2356
      %5436 = vmatpush.bf16.msra.mxu0 %v2353
      %5437 = vmatmul.bf16.gmra.mxu0 %v5131
      %v5438 = vpop.f32.mrf.mxu0
      %v5439 = vadd.f32 %v5421, %v5438
      %v5440 = vpop.f32.mrf.mxu0
      %v5441 = vadd.f32 %v5423, %v5440
      %5442 = vmatmul.bf16.gmra.mxu0 %v5134
      %v5443 = vpop.f32.mrf.mxu0
      %v5444 = vadd.f32 %v5426, %v5443
      %v5445 = vpop.f32.mrf.mxu0
      %5446 = vdwg.mxu0
      %5447 = vmatpush.bf16.msra.mxu0 0
      %5448 = vmatpush.bf16.msra.mxu0 0
      %5449 = vmatpush.bf16.msra.mxu0 %v2392
      %5450 = vmatpush.bf16.msra.mxu0 %v2389
      %5451 = vmatpush.bf16.msra.mxu0 %v2386
      %5452 = vmatpush.bf16.msra.mxu0 %v2383
      %5453 = vmatpush.bf16.msra.mxu0 %v2380
      %5454 = vmatpush.bf16.msra.mxu0 %v2377
      %5455 = vmatmul.bf16.gmra.mxu0 %v5353
      %v5456 = vpop.f32.mrf.mxu0
      %v5457 = vadd.f32 %v5439, %v5456
      %v5458 = vpop.f32.mrf.mxu0
      %v5459 = vadd.f32 %v5441, %v5458
      %5460 = vmatmul.bf16.gmra.mxu0 %v5355
      %v5461 = vpop.f32.mrf.mxu0
      %v5462 = vadd.f32 %v5444, %v5461
      %v5463 = vpop.f32.mrf.mxu0
      %5464 = vdwg.mxu0
      %5465 = vmatpush.bf16.msra.mxu0 %v2351
      %5466 = vmatpush.bf16.msra.mxu0 %v2348
      %5467 = vmatpush.bf16.msra.mxu0 %v2345
      %5468 = vmatpush.bf16.msra.mxu0 %v2342
      %5469 = vmatpush.bf16.msra.mxu0 %v2339
      %5470 = vmatpush.bf16.msra.mxu0 %v2336
      %5471 = vmatpush.bf16.msra.mxu0 %v2333
      %5472 = vmatpush.bf16.msra.mxu0 %v2330
      %5473 = vmatmul.bf16.gmra.mxu0 %v5130
      %v5474 = vpop.f32.mrf.mxu0
      %v5475 = vadd.f32 %v5345, %v5474
      %v5476 = vpop.f32.mrf.mxu0
      %v5477 = vadd.f32 %v5347, %v5476
      %5478 = vmatmul.bf16.gmra.mxu0 %v5133
      %v5479 = vpop.f32.mrf.mxu0
      %v5480 = vadd.f32 %v5350, %v5479
      %v5481 = vpop.f32.mrf.mxu0
      %5482 = vdwg.mxu0
      %5483 = vmatpush.bf16.msra.mxu0 %v2375
      %5484 = vmatpush.bf16.msra.mxu0 %v2372
      %5485 = vmatpush.bf16.msra.mxu0 %v2369
      %5486 = vmatpush.bf16.msra.mxu0 %v2366
      %5487 = vmatpush.bf16.msra.mxu0 %v2363
      %5488 = vmatpush.bf16.msra.mxu0 %v2360
      %5489 = vmatpush.bf16.msra.mxu0 %v2357
      %5490 = vmatpush.bf16.msra.mxu0 %v2354
      %5491 = vmatmul.bf16.gmra.mxu0 %v5131
      %v5492 = vpop.f32.mrf.mxu0
      %v5493 = vadd.f32 %v5475, %v5492
      %v5494 = vpop.f32.mrf.mxu0
      %v5495 = vadd.f32 %v5477, %v5494
      %5496 = vmatmul.bf16.gmra.mxu0 %v5134
      %v5497 = vpop.f32.mrf.mxu0
      %v5498 = vadd.f32 %v5480, %v5497
      %v5499 = vpop.f32.mrf.mxu0
      %5500 = vdwg.mxu0
      %5501 = vmatpush.bf16.msra.mxu0 0
      %5502 = vmatpush.bf16.msra.mxu0 0
      %5503 = vmatpush.bf16.msra.mxu0 %v2393
      %5504 = vmatpush.bf16.msra.mxu0 %v2390
      %5505 = vmatpush.bf16.msra.mxu0 %v2387
      %5506 = vmatpush.bf16.msra.mxu0 %v2384
      %5507 = vmatpush.bf16.msra.mxu0 %v2381
      %5508 = vmatpush.bf16.msra.mxu0 %v2378
      %5509 = vmatmul.bf16.gmra.mxu0 %v5353
      %v5510 = vpop.f32.mrf.mxu0
      %v5511 = vadd.f32 %v5493, %v5510
      %v5512 = vpop.f32.mrf.mxu0
      %v5513 = vadd.f32 %v5495, %v5512
      %5514 = vmatmul.bf16.gmra.mxu0 %v5355
      %v5515 = vpop.f32.mrf.mxu0
      %v5516 = vadd.f32 %v5498, %v5515
      %v5517 = vpop.f32.mrf.mxu0
      %5518 = vdwg.mxu0
      %v5525 = vrot.slane %v5130, 1
      %v5526 = vrot.slane %v5133, 1
      %v5527 = vsel %vm1223, %v5525, %v5526
      %v5528 = vrot.slane %v5131, 1
      %v5529 = vrot.slane %v5134, 1
      %v5530 = vsel %vm1223, %v5528, %v5529
      %v5531 = vrot.slane %v5132, 1
      %v5532 = vrot.slane %v5135, 1
      %v5533 = vsel %vm1223, %v5531, %v5532
      %v5539 = vsel %vm1939, %v5533, 0
      %v5542 = vsel %vm1939, %v5532, 0
      %5544 = vmatpush.bf16.msra.mxu0 %v2975
      %5545 = vmatpush.bf16.msra.mxu0 %v2972
      %5546 = vmatpush.bf16.msra.mxu0 %v2969
      %5547 = vmatpush.bf16.msra.mxu0 %v2966
      %5548 = vmatpush.bf16.msra.mxu0 %v2963
      %5549 = vmatpush.bf16.msra.mxu0 %v2960
      %5550 = vmatpush.bf16.msra.mxu0 %v2957
      %5551 = vmatpush.bf16.msra.mxu0 %v2954
      %5552 = vmatmul.bf16.gmra.mxu0 %v5527
      %v5553 = vpop.f32.mrf.mxu0
      %v5554 = vadd.f32 0.0, %v5553
      %v5555 = vpop.f32.mrf.mxu0
      %v5556 = vadd.f32 0.0, %v5555
      %5557 = vmatmul.bf16.gmra.mxu0 %v5526
      %v5558 = vpop.f32.mrf.mxu0
      %v5559 = vadd.f32 0.0, %v5558
      %v5560 = vpop.f32.mrf.mxu0
      %5561 = vdwg.mxu0
      %5562 = vmatpush.bf16.msra.mxu0 %v2999
      %5563 = vmatpush.bf16.msra.mxu0 %v2996
      %5564 = vmatpush.bf16.msra.mxu0 %v2993
      %5565 = vmatpush.bf16.msra.mxu0 %v2990
      %5566 = vmatpush.bf16.msra.mxu0 %v2987
      %5567 = vmatpush.bf16.msra.mxu0 %v2984
      %5568 = vmatpush.bf16.msra.mxu0 %v2981
      %5569 = vmatpush.bf16.msra.mxu0 %v2978
      %5570 = vmatmul.bf16.gmra.mxu0 %v5530
      %v5571 = vpop.f32.mrf.mxu0
      %v5572 = vadd.f32 %v5554, %v5571
      %v5573 = vpop.f32.mrf.mxu0
      %v5574 = vadd.f32 %v5556, %v5573
      %5575 = vmatmul.bf16.gmra.mxu0 %v5529
      %v5576 = vpop.f32.mrf.mxu0
      %v5577 = vadd.f32 %v5559, %v5576
      %v5578 = vpop.f32.mrf.mxu0
      %5579 = vdwg.mxu0
      %5580 = vmatpush.bf16.msra.mxu0 0
      %5581 = vmatpush.bf16.msra.mxu0 0
      %5582 = vmatpush.bf16.msra.mxu0 %v3017
      %5583 = vmatpush.bf16.msra.mxu0 %v3014
      %5584 = vmatpush.bf16.msra.mxu0 %v3011
      %5585 = vmatpush.bf16.msra.mxu0 %v3008
      %5586 = vmatpush.bf16.msra.mxu0 %v3005
      %5587 = vmatpush.bf16.msra.mxu0 %v3002
      %5588 = vmatmul.bf16.gmra.mxu0 %v5539
      %v5589 = vpop.f32.mrf.mxu0
      %v5590 = vadd.f32 %v5572, %v5589
      %v5591 = vpop.f32.mrf.mxu0
      %v5592 = vadd.f32 %v5574, %v5591
      %5593 = vmatmul.bf16.gmra.mxu0 %v5542
      %v5594 = vpop.f32.mrf.mxu0
      %v5595 = vadd.f32 %v5577, %v5594
      %v5596 = vpop.f32.mrf.mxu0
      %5597 = vdwg.mxu0
      %5598 = vmatpush.bf16.msra.mxu0 %v2976
      %5599 = vmatpush.bf16.msra.mxu0 %v2973
      %5600 = vmatpush.bf16.msra.mxu0 %v2970
      %5601 = vmatpush.bf16.msra.mxu0 %v2967
      %5602 = vmatpush.bf16.msra.mxu0 %v2964
      %5603 = vmatpush.bf16.msra.mxu0 %v2961
      %5604 = vmatpush.bf16.msra.mxu0 %v2958
      %5605 = vmatpush.bf16.msra.mxu0 %v2955
      %5606 = vmatmul.bf16.gmra.mxu0 %v5527
      %v5607 = vpop.f32.mrf.mxu0
      %v5608 = vadd.f32 0.0, %v5607
      %v5609 = vpop.f32.mrf.mxu0
      %v5610 = vadd.f32 0.0, %v5609
      %5611 = vmatmul.bf16.gmra.mxu0 %v5526
      %v5612 = vpop.f32.mrf.mxu0
      %v5613 = vadd.f32 0.0, %v5612
      %v5614 = vpop.f32.mrf.mxu0
      %5615 = vdwg.mxu0
      %5616 = vmatpush.bf16.msra.mxu0 %v3000
      %5617 = vmatpush.bf16.msra.mxu0 %v2997
      %5618 = vmatpush.bf16.msra.mxu0 %v2994
      %5619 = vmatpush.bf16.msra.mxu0 %v2991
      %5620 = vmatpush.bf16.msra.mxu0 %v2988
      %5621 = vmatpush.bf16.msra.mxu0 %v2985
      %5622 = vmatpush.bf16.msra.mxu0 %v2982
      %5623 = vmatpush.bf16.msra.mxu0 %v2979
      %5624 = vmatmul.bf16.gmra.mxu0 %v5530
      %v5625 = vpop.f32.mrf.mxu0
      %v5626 = vadd.f32 %v5608, %v5625
      %v5627 = vpop.f32.mrf.mxu0
      %v5628 = vadd.f32 %v5610, %v5627
      %5629 = vmatmul.bf16.gmra.mxu0 %v5529
      %v5630 = vpop.f32.mrf.mxu0
      %v5631 = vadd.f32 %v5613, %v5630
      %v5632 = vpop.f32.mrf.mxu0
      %5633 = vdwg.mxu0
      %5634 = vmatpush.bf16.msra.mxu0 0
      %5635 = vmatpush.bf16.msra.mxu0 0
      %5636 = vmatpush.bf16.msra.mxu0 %v3018
      %5637 = vmatpush.bf16.msra.mxu0 %v3015
      %5638 = vmatpush.bf16.msra.mxu0 %v3012
      %5639 = vmatpush.bf16.msra.mxu0 %v3009
      %5640 = vmatpush.bf16.msra.mxu0 %v3006
      %5641 = vmatpush.bf16.msra.mxu0 %v3003
      %5642 = vmatmul.bf16.gmra.mxu0 %v5539
      %v5643 = vpop.f32.mrf.mxu0
      %v5644 = vadd.f32 %v5626, %v5643
      %v5645 = vpop.f32.mrf.mxu0
      %v5646 = vadd.f32 %v5628, %v5645
      %5647 = vmatmul.bf16.gmra.mxu0 %v5542
      %v5648 = vpop.f32.mrf.mxu0
      %v5649 = vadd.f32 %v5631, %v5648
      %v5650 = vpop.f32.mrf.mxu0
      %5651 = vdwg.mxu0
      %5652 = vmatpush.bf16.msra.mxu0 %v2977
      %5653 = vmatpush.bf16.msra.mxu0 %v2974
      %5654 = vmatpush.bf16.msra.mxu0 %v2971
      %5655 = vmatpush.bf16.msra.mxu0 %v2968
      %5656 = vmatpush.bf16.msra.mxu0 %v2965
      %5657 = vmatpush.bf16.msra.mxu0 %v2962
      %5658 = vmatpush.bf16.msra.mxu0 %v2959
      %5659 = vmatpush.bf16.msra.mxu0 %v2956
      %5660 = vmatmul.bf16.gmra.mxu0 %v5527
      %v5661 = vpop.f32.mrf.mxu0
      %v5662 = vadd.f32 0.0, %v5661
      %v5663 = vpop.f32.mrf.mxu0
      %v5664 = vadd.f32 0.0, %v5663
      %5665 = vmatmul.bf16.gmra.mxu0 %v5526
      %v5666 = vpop.f32.mrf.mxu0
      %v5667 = vadd.f32 0.0, %v5666
      %v5668 = vpop.f32.mrf.mxu0
      %5669 = vdwg.mxu0
      %5670 = vmatpush.bf16.msra.mxu0 %v3001
      %5671 = vmatpush.bf16.msra.mxu0 %v2998
      %5672 = vmatpush.bf16.msra.mxu0 %v2995
      %5673 = vmatpush.bf16.msra.mxu0 %v2992
      %5674 = vmatpush.bf16.msra.mxu0 %v2989
      %5675 = vmatpush.bf16.msra.mxu0 %v2986
      %5676 = vmatpush.bf16.msra.mxu0 %v2983
      %5677 = vmatpush.bf16.msra.mxu0 %v2980
      %5678 = vmatmul.bf16.gmra.mxu0 %v5530
      %v5679 = vpop.f32.mrf.mxu0
      %v5680 = vadd.f32 %v5662, %v5679
      %v5681 = vpop.f32.mrf.mxu0
      %v5682 = vadd.f32 %v5664, %v5681
      %5683 = vmatmul.bf16.gmra.mxu0 %v5529
      %v5684 = vpop.f32.mrf.mxu0
      %v5685 = vadd.f32 %v5667, %v5684
      %v5686 = vpop.f32.mrf.mxu0
      %5687 = vdwg.mxu0
      %5688 = vmatpush.bf16.msra.mxu0 0
      %5689 = vmatpush.bf16.msra.mxu0 0
      %5690 = vmatpush.bf16.msra.mxu0 %v3019
      %5691 = vmatpush.bf16.msra.mxu0 %v3016
      %5692 = vmatpush.bf16.msra.mxu0 %v3013
      %5693 = vmatpush.bf16.msra.mxu0 %v3010
      %5694 = vmatpush.bf16.msra.mxu0 %v3007
      %5695 = vmatpush.bf16.msra.mxu0 %v3004
      %5696 = vmatmul.bf16.gmra.mxu0 %v5539
      %v5697 = vpop.f32.mrf.mxu0
      %v5698 = vadd.f32 %v5680, %v5697
      %v5699 = vpop.f32.mrf.mxu0
      %v5700 = vadd.f32 %v5682, %v5699
      %5701 = vmatmul.bf16.gmra.mxu0 %v5542
      %v5702 = vpop.f32.mrf.mxu0
      %v5703 = vadd.f32 %v5685, %v5702
      %v5704 = vpop.f32.mrf.mxu0
      %5705 = vdwg.mxu0
      %v5706 = vadd.f32 %v5403, %v5590
      %v5707 = vadd.f32 %v5457, %v5644
      %v5708 = vadd.f32 %v5511, %v5698
      %v5709 = vadd.f32 %v5405, %v5592
      %v5710 = vadd.f32 %v5459, %v5646
      %v5711 = vadd.f32 %v5513, %v5700
      %v5712 = vadd.f32 %v5408, %v5595
      %v5713 = vadd.f32 %v5462, %v5649
      %v5714 = vadd.f32 %v5516, %v5703
      %v5715 = vadd.f32 %v5706, %v3265
      %v5716 = vadd.f32 %v5707, %v3266
      %v5717 = vadd.f32 %v5708, %v3267
      %v5718 = vadd.f32 %v5709, %v3265
      %v5719 = vadd.f32 %v5710, %v3266
      %v5720 = vadd.f32 %v5711, %v3267
      %v5721 = vadd.f32 %v5712, %v3265
      %v5722 = vadd.f32 %v5713, %v3266
      %v5723 = vadd.f32 %v5714, %v3267
      %v5724 = vmax.f32 %v5715, 0.0
      %v5725 = vmax.f32 %v5716, 0.0
      %v5726 = vmax.f32 %v5717, 0.0
      %v5727 = vmax.f32 %v5718, 0.0
      %v5728 = vmax.f32 %v5719, 0.0
      %v5729 = vmax.f32 %v5720, 0.0
      %v5730 = vmax.f32 %v5721, 0.0
      %v5731 = vmax.f32 %v5722, 0.0
      %v5732 = vmax.f32 %v5723, 0.0
      %v5734 = vsel %vm1059, %v5730, 0
      %v5737 = vsel %vm1059, %v5731, 0
      %v5740 = vsel %vm1059, %v5732, 0
      %5742 = vmatpush.msra.mxu0 0.0
      %5743 = vmatpush.msra.mxu0 0.0
      %5744 = vmatpush.msra.mxu0 0.0
      %5745 = vmatpush.msra.mxu0 0.0
      %5746 = vmatpush.msra.mxu0 0.0
      %5747 = vmatpush.msra.mxu0 0.0
      %5748 = vmatpush.msra.mxu0 0.0
      %5749 = vmatpush.msra.mxu0 0.0
      %5750 = vmatpush.msra.mxu0 0.0
      %5751 = vmatpush.msra.mxu0 0.0
      %5752 = vmatpush.msra.mxu0 0.0
      %5753 = vmatpush.msra.mxu0 0.0
      %5754 = vmatpush.msra.mxu0 0.0
      %5755 = vmatpush.msra.mxu0 %v5734
      %5756 = vmatpush.msra.mxu0 %v5727
      %5757 = vmatpush.msra.mxu0 %v5724
      %5758 = vmatmul.f32.gmra.mxu0 %v3293
      %v5759 = vpop.f32.mrf.mxu0
      %v5760 = vadd.f32 0.0, %v5759
      %5761 = vmatmul.f32.gmra.mxu0 %v3296
      %v5762 = vpop.f32.mrf.mxu0
      %v5763 = vadd.f32 0.0, %v5762
      %5764 = vdwg.mxu0
      %5765 = vmatpush.msra.mxu0 0.0
      %5766 = vmatpush.msra.mxu0 0.0
      %5767 = vmatpush.msra.mxu0 0.0
      %5768 = vmatpush.msra.mxu0 0.0
      %5769 = vmatpush.msra.mxu0 0.0
      %5770 = vmatpush.msra.mxu0 0.0
      %5771 = vmatpush.msra.mxu0 0.0
      %5772 = vmatpush.msra.mxu0 0.0
      %5773 = vmatpush.msra.mxu0 0.0
      %5774 = vmatpush.msra.mxu0 0.0
      %5775 = vmatpush.msra.mxu0 0.0
      %5776 = vmatpush.msra.mxu0 0.0
      %5777 = vmatpush.msra.mxu0 0.0
      %5778 = vmatpush.msra.mxu0 %v5737
      %5779 = vmatpush.msra.mxu0 %v5728
      %5780 = vmatpush.msra.mxu0 %v5725
      %5781 = vmatmul.f32.gmra.mxu0 %v3293
      %v5782 = vpop.f32.mrf.mxu0
      %v5783 = vadd.f32 0.0, %v5782
      %5784 = vmatmul.f32.gmra.mxu0 %v3296
      %v5785 = vpop.f32.mrf.mxu0
      %v5786 = vadd.f32 0.0, %v5785
      %5787 = vdwg.mxu0
      %5788 = vmatpush.msra.mxu0 0.0
      %5789 = vmatpush.msra.mxu0 0.0
      %5790 = vmatpush.msra.mxu0 0.0
      %5791 = vmatpush.msra.mxu0 0.0
      %5792 = vmatpush.msra.mxu0 0.0
      %5793 = vmatpush.msra.mxu0 0.0
      %5794 = vmatpush.msra.mxu0 0.0
      %5795 = vmatpush.msra.mxu0 0.0
      %5796 = vmatpush.msra.mxu0 0.0
      %5797 = vmatpush.msra.mxu0 0.0
      %5798 = vmatpush.msra.mxu0 0.0
      %5799 = vmatpush.msra.mxu0 0.0
      %5800 = vmatpush.msra.mxu0 0.0
      %5801 = vmatpush.msra.mxu0 %v5740
      %5802 = vmatpush.msra.mxu0 %v5729
      %5803 = vmatpush.msra.mxu0 %v5726
      %5804 = vmatmul.f32.gmra.mxu0 %v3293
      %v5805 = vpop.f32.mrf.mxu0
      %v5806 = vadd.f32 0.0, %v5805
      %5807 = vmatmul.f32.gmra.mxu0 %v3296
      %v5808 = vpop.f32.mrf.mxu0
      %v5809 = vadd.f32 0.0, %v5808
      %5810 = vdwg.mxu0
      %5811 = vmatpush.msra.mxu0 0.0
      %5812 = vmatpush.msra.mxu0 0.0
      %5813 = vmatpush.msra.mxu0 0.0
      %5814 = vmatpush.msra.mxu0 0.0
      %5815 = vmatpush.msra.mxu0 0.0
      %5816 = vmatpush.msra.mxu0 0.0
      %5817 = vmatpush.msra.mxu0 0.0
      %5818 = vmatpush.msra.mxu0 0.0
      %5819 = vmatpush.msra.mxu0 0.0
      %5820 = vmatpush.msra.mxu0 0.0
      %5821 = vmatpush.msra.mxu0 0.0
      %5822 = vmatpush.msra.mxu0 0.0
      %5823 = vmatpush.msra.mxu0 0.0
      %5824 = vmatpush.msra.mxu0 %v5734
      %5825 = vmatpush.msra.mxu0 %v5727
      %5826 = vmatpush.msra.mxu0 %v5724
      %5827 = vmatmul.f32.gmra.mxu0 %v3379
      %v5828 = vpop.f32.mrf.mxu0
      %v5829 = vadd.f32 0.0, %v5828
      %5830 = vmatmul.f32.gmra.mxu0 %v3382
      %v5831 = vpop.f32.mrf.mxu0
      %v5832 = vadd.f32 0.0, %v5831
      %5833 = vdwg.mxu0
      %5834 = vmatpush.msra.mxu0 0.0
      %5835 = vmatpush.msra.mxu0 0.0
      %5836 = vmatpush.msra.mxu0 0.0
      %5837 = vmatpush.msra.mxu0 0.0
      %5838 = vmatpush.msra.mxu0 0.0
      %5839 = vmatpush.msra.mxu0 0.0
      %5840 = vmatpush.msra.mxu0 0.0
      %5841 = vmatpush.msra.mxu0 0.0
      %5842 = vmatpush.msra.mxu0 0.0
      %5843 = vmatpush.msra.mxu0 0.0
      %5844 = vmatpush.msra.mxu0 0.0
      %5845 = vmatpush.msra.mxu0 0.0
      %5846 = vmatpush.msra.mxu0 0.0
      %5847 = vmatpush.msra.mxu0 %v5737
      %5848 = vmatpush.msra.mxu0 %v5728
      %5849 = vmatpush.msra.mxu0 %v5725
      %5850 = vmatmul.f32.gmra.mxu0 %v3379
      %v5851 = vpop.f32.mrf.mxu0
      %v5852 = vadd.f32 0.0, %v5851
      %5853 = vmatmul.f32.gmra.mxu0 %v3382
      %v5854 = vpop.f32.mrf.mxu0
      %v5855 = vadd.f32 0.0, %v5854
      %5856 = vdwg.mxu0
      %5857 = vmatpush.msra.mxu0 0.0
      %5858 = vmatpush.msra.mxu0 0.0
      %5859 = vmatpush.msra.mxu0 0.0
      %5860 = vmatpush.msra.mxu0 0.0
      %5861 = vmatpush.msra.mxu0 0.0
      %5862 = vmatpush.msra.mxu0 0.0
      %5863 = vmatpush.msra.mxu0 0.0
      %5864 = vmatpush.msra.mxu0 0.0
      %5865 = vmatpush.msra.mxu0 0.0
      %5866 = vmatpush.msra.mxu0 0.0
      %5867 = vmatpush.msra.mxu0 0.0
      %5868 = vmatpush.msra.mxu0 0.0
      %5869 = vmatpush.msra.mxu0 0.0
      %5870 = vmatpush.msra.mxu0 %v5740
      %5871 = vmatpush.msra.mxu0 %v5729
      %5872 = vmatpush.msra.mxu0 %v5726
      %5873 = vmatmul.f32.gmra.mxu0 %v3379
      %v5874 = vpop.f32.mrf.mxu0
      %v5875 = vadd.f32 0.0, %v5874
      %5876 = vmatmul.f32.gmra.mxu0 %v3382
      %v5877 = vpop.f32.mrf.mxu0
      %v5878 = vadd.f32 0.0, %v5877
      %5879 = vdwg.mxu0
      %v5880 = vmax.f32 %v5760, %v5829
      %v5881 = vmax.f32 %v5783, %v5852
      %v5882 = vmax.f32 %v5806, %v5875
      %v5883 = vmax.f32 %v5763, %v5832
      %v5884 = vmax.f32 %v5786, %v5855
      %v5885 = vmax.f32 %v5809, %v5878
      %v5887 = vsel %vm3539, %v5882, 0
      %v5890 = vsel %vm3539, %v5885, 0
      %5892 = vmatpush.msra.mxu0 %v3489
      %5893 = vmatpush.msra.mxu0 %v3487
      %5894 = vmatpush.msra.mxu0 %v3485
      %5895 = vmatpush.msra.mxu0 %v3483
      %5896 = vmatpush.msra.mxu0 %v3481
      %5897 = vmatpush.msra.mxu0 %v3479
      %5898 = vmatpush.msra.mxu0 %v3477
      %5899 = vmatpush.msra.mxu0 %v3475
      %5900 = vmatpush.msra.mxu0 %v3473
      %5901 = vmatpush.msra.mxu0 %v3471
      %5902 = vmatpush.msra.mxu0 %v3469
      %5903 = vmatpush.msra.mxu0 %v3467
      %5904 = vmatpush.msra.mxu0 %v3465
      %5905 = vmatpush.msra.mxu0 %v3463
      %5906 = vmatpush.msra.mxu0 %v3461
      %5907 = vmatpush.msra.mxu0 %v3459
      %5908 = vmatmul.f32.gmra.mxu0 %v5880
      %v5909 = vpop.f32.mrf.mxu0
      %v5910 = vadd.f32 0.0, %v5909
      %5911 = vmatmul.f32.gmra.mxu0 %v5883
      %v5912 = vpop.f32.mrf.mxu0
      %v5913 = vadd.f32 0.0, %v5912
      %5914 = vdwg.mxu0
      %5915 = vmatpush.msra.mxu0 %v3521
      %5916 = vmatpush.msra.mxu0 %v3519
      %5917 = vmatpush.msra.mxu0 %v3517
      %5918 = vmatpush.msra.mxu0 %v3515
      %5919 = vmatpush.msra.mxu0 %v3513
      %5920 = vmatpush.msra.mxu0 %v3511
      %5921 = vmatpush.msra.mxu0 %v3509
      %5922 = vmatpush.msra.mxu0 %v3507
      %5923 = vmatpush.msra.mxu0 %v3505
      %5924 = vmatpush.msra.mxu0 %v3503
      %5925 = vmatpush.msra.mxu0 %v3501
      %5926 = vmatpush.msra.mxu0 %v3499
      %5927 = vmatpush.msra.mxu0 %v3497
      %5928 = vmatpush.msra.mxu0 %v3495
      %5929 = vmatpush.msra.mxu0 %v3493
      %5930 = vmatpush.msra.mxu0 %v3491
      %5931 = vmatmul.f32.gmra.mxu0 %v5881
      %v5932 = vpop.f32.mrf.mxu0
      %v5933 = vadd.f32 %v5910, %v5932
      %5934 = vmatmul.f32.gmra.mxu0 %v5884
      %v5935 = vpop.f32.mrf.mxu0
      %v5936 = vadd.f32 %v5913, %v5935
      %5937 = vdwg.mxu0
      %5938 = vmatpush.msra.mxu0 0.0
      %5939 = vmatpush.msra.mxu0 0.0
      %5940 = vmatpush.msra.mxu0 0.0
      %5941 = vmatpush.msra.mxu0 0.0
      %5942 = vmatpush.msra.mxu0 0.0
      %5943 = vmatpush.msra.mxu0 0.0
      %5944 = vmatpush.msra.mxu0 0.0
      %5945 = vmatpush.msra.mxu0 0.0
      %5946 = vmatpush.msra.mxu0 %v3537
      %5947 = vmatpush.msra.mxu0 %v3535
      %5948 = vmatpush.msra.mxu0 %v3533
      %5949 = vmatpush.msra.mxu0 %v3531
      %5950 = vmatpush.msra.mxu0 %v3529
      %5951 = vmatpush.msra.mxu0 %v3527
      %5952 = vmatpush.msra.mxu0 %v3525
      %5953 = vmatpush.msra.mxu0 %v3523
      %5954 = vmatmul.f32.gmra.mxu0 %v5887
      %v5955 = vpop.f32.mrf.mxu0
      %v5956 = vadd.f32 %v5933, %v5955
      %5957 = vmatmul.f32.gmra.mxu0 %v5890
      %v5958 = vpop.f32.mrf.mxu0
      %v5959 = vadd.f32 %v5936, %v5958
      %5960 = vdwg.mxu0
      %5961 = vmatpush.msra.mxu0 %v3490
      %5962 = vmatpush.msra.mxu0 %v3488
      %5963 = vmatpush.msra.mxu0 %v3486
      %5964 = vmatpush.msra.mxu0 %v3484
      %5965 = vmatpush.msra.mxu0 %v3482
      %5966 = vmatpush.msra.mxu0 %v3480
      %5967 = vmatpush.msra.mxu0 %v3478
      %5968 = vmatpush.msra.mxu0 %v3476
      %5969 = vmatpush.msra.mxu0 %v3474
      %5970 = vmatpush.msra.mxu0 %v3472
      %5971 = vmatpush.msra.mxu0 %v3470
      %5972 = vmatpush.msra.mxu0 %v3468
      %5973 = vmatpush.msra.mxu0 %v3466
      %5974 = vmatpush.msra.mxu0 %v3464
      %5975 = vmatpush.msra.mxu0 %v3462
      %5976 = vmatpush.msra.mxu0 %v3460
      %5977 = vmatmul.f32.gmra.mxu0 %v5880
      %v5978 = vpop.f32.mrf.mxu0
      %v5979 = vadd.f32 0.0, %v5978
      %5980 = vmatmul.f32.gmra.mxu0 %v5883
      %v5981 = vpop.f32.mrf.mxu0
      %v5982 = vadd.f32 0.0, %v5981
      %5983 = vdwg.mxu0
      %5984 = vmatpush.msra.mxu0 %v3522
      %5985 = vmatpush.msra.mxu0 %v3520
      %5986 = vmatpush.msra.mxu0 %v3518
      %5987 = vmatpush.msra.mxu0 %v3516
      %5988 = vmatpush.msra.mxu0 %v3514
      %5989 = vmatpush.msra.mxu0 %v3512
      %5990 = vmatpush.msra.mxu0 %v3510
      %5991 = vmatpush.msra.mxu0 %v3508
      %5992 = vmatpush.msra.mxu0 %v3506
      %5993 = vmatpush.msra.mxu0 %v3504
      %5994 = vmatpush.msra.mxu0 %v3502
      %5995 = vmatpush.msra.mxu0 %v3500
      %5996 = vmatpush.msra.mxu0 %v3498
      %5997 = vmatpush.msra.mxu0 %v3496
      %5998 = vmatpush.msra.mxu0 %v3494
      %5999 = vmatpush.msra.mxu0 %v3492
      %6000 = vmatmul.f32.gmra.mxu0 %v5881
      %v6001 = vpop.f32.mrf.mxu0
      %v6002 = vadd.f32 %v5979, %v6001
      %6003 = vmatmul.f32.gmra.mxu0 %v5884
      %v6004 = vpop.f32.mrf.mxu0
      %v6005 = vadd.f32 %v5982, %v6004
      %6006 = vdwg.mxu0
      %6007 = vmatpush.msra.mxu0 0.0
      %6008 = vmatpush.msra.mxu0 0.0
      %6009 = vmatpush.msra.mxu0 0.0
      %6010 = vmatpush.msra.mxu0 0.0
      %6011 = vmatpush.msra.mxu0 0.0
      %6012 = vmatpush.msra.mxu0 0.0
      %6013 = vmatpush.msra.mxu0 0.0
      %6014 = vmatpush.msra.mxu0 0.0
      %6015 = vmatpush.msra.mxu0 %v3538
      %6016 = vmatpush.msra.mxu0 %v3536
      %6017 = vmatpush.msra.mxu0 %v3534
      %6018 = vmatpush.msra.mxu0 %v3532
      %6019 = vmatpush.msra.mxu0 %v3530
      %6020 = vmatpush.msra.mxu0 %v3528
      %6021 = vmatpush.msra.mxu0 %v3526
      %6022 = vmatpush.msra.mxu0 %v3524
      %6023 = vmatmul.f32.gmra.mxu0 %v5887
      %v6024 = vpop.f32.mrf.mxu0
      %v6025 = vadd.f32 %v6002, %v6024
      %6026 = vmatmul.f32.gmra.mxu0 %v5890
      %v6027 = vpop.f32.mrf.mxu0
      %v6028 = vadd.f32 %v6005, %v6027
      %6029 = vdwg.mxu0
      %6030 = vmatpush.msra.mxu0 %v3714
      %6031 = vmatpush.msra.mxu0 %v3712
      %6032 = vmatpush.msra.mxu0 %v3710
      %6033 = vmatpush.msra.mxu0 %v3708
      %6034 = vmatpush.msra.mxu0 %v3706
      %6035 = vmatpush.msra.mxu0 %v3704
      %6036 = vmatpush.msra.mxu0 %v3702
      %6037 = vmatpush.msra.mxu0 %v3700
      %6038 = vmatpush.msra.mxu0 %v3698
      %6039 = vmatpush.msra.mxu0 %v3696
      %6040 = vmatpush.msra.mxu0 %v3694
      %6041 = vmatpush.msra.mxu0 %v3692
      %6042 = vmatpush.msra.mxu0 %v3690
      %6043 = vmatpush.msra.mxu0 %v3688
      %6044 = vmatpush.msra.mxu0 %v3686
      %6045 = vmatpush.msra.mxu0 %v3684
      %6046 = vmatmul.f32.gmra.mxu0 %v5880
      %v6047 = vpop.f32.mrf.mxu0
      %v6048 = vadd.f32 0.0, %v6047
      %6049 = vmatmul.f32.gmra.mxu0 %v5883
      %v6050 = vpop.f32.mrf.mxu0
      %v6051 = vadd.f32 0.0, %v6050
      %6052 = vdwg.mxu0
      %6053 = vmatpush.msra.mxu0 %v3746
      %6054 = vmatpush.msra.mxu0 %v3744
      %6055 = vmatpush.msra.mxu0 %v3742
      %6056 = vmatpush.msra.mxu0 %v3740
      %6057 = vmatpush.msra.mxu0 %v3738
      %6058 = vmatpush.msra.mxu0 %v3736
      %6059 = vmatpush.msra.mxu0 %v3734
      %6060 = vmatpush.msra.mxu0 %v3732
      %6061 = vmatpush.msra.mxu0 %v3730
      %6062 = vmatpush.msra.mxu0 %v3728
      %6063 = vmatpush.msra.mxu0 %v3726
      %6064 = vmatpush.msra.mxu0 %v3724
      %6065 = vmatpush.msra.mxu0 %v3722
      %6066 = vmatpush.msra.mxu0 %v3720
      %6067 = vmatpush.msra.mxu0 %v3718
      %6068 = vmatpush.msra.mxu0 %v3716
      %6069 = vmatmul.f32.gmra.mxu0 %v5881
      %v6070 = vpop.f32.mrf.mxu0
      %v6071 = vadd.f32 %v6048, %v6070
      %6072 = vmatmul.f32.gmra.mxu0 %v5884
      %v6073 = vpop.f32.mrf.mxu0
      %v6074 = vadd.f32 %v6051, %v6073
      %6075 = vdwg.mxu0
      %6076 = vmatpush.msra.mxu0 0.0
      %6077 = vmatpush.msra.mxu0 0.0
      %6078 = vmatpush.msra.mxu0 0.0
      %6079 = vmatpush.msra.mxu0 0.0
      %6080 = vmatpush.msra.mxu0 0.0
      %6081 = vmatpush.msra.mxu0 0.0
      %6082 = vmatpush.msra.mxu0 0.0
      %6083 = vmatpush.msra.mxu0 0.0
      %6084 = vmatpush.msra.mxu0 %v3762
      %6085 = vmatpush.msra.mxu0 %v3760
      %6086 = vmatpush.msra.mxu0 %v3758
      %6087 = vmatpush.msra.mxu0 %v3756
      %6088 = vmatpush.msra.mxu0 %v3754
      %6089 = vmatpush.msra.mxu0 %v3752
      %6090 = vmatpush.msra.mxu0 %v3750
      %6091 = vmatpush.msra.mxu0 %v3748
      %6092 = vmatmul.f32.gmra.mxu0 %v5887
      %v6093 = vpop.f32.mrf.mxu0
      %v6094 = vadd.f32 %v6071, %v6093
      %6095 = vmatmul.f32.gmra.mxu0 %v5890
      %v6096 = vpop.f32.mrf.mxu0
      %v6097 = vadd.f32 %v6074, %v6096
      %6098 = vdwg.mxu0
      %6099 = vmatpush.msra.mxu0 %v3715
      %6100 = vmatpush.msra.mxu0 %v3713
      %6101 = vmatpush.msra.mxu0 %v3711
      %6102 = vmatpush.msra.mxu0 %v3709
      %6103 = vmatpush.msra.mxu0 %v3707
      %6104 = vmatpush.msra.mxu0 %v3705
      %6105 = vmatpush.msra.mxu0 %v3703
      %6106 = vmatpush.msra.mxu0 %v3701
      %6107 = vmatpush.msra.mxu0 %v3699
      %6108 = vmatpush.msra.mxu0 %v3697
      %6109 = vmatpush.msra.mxu0 %v3695
      %6110 = vmatpush.msra.mxu0 %v3693
      %6111 = vmatpush.msra.mxu0 %v3691
      %6112 = vmatpush.msra.mxu0 %v3689
      %6113 = vmatpush.msra.mxu0 %v3687
      %6114 = vmatpush.msra.mxu0 %v3685
      %6115 = vmatmul.f32.gmra.mxu0 %v5880
      %v6116 = vpop.f32.mrf.mxu0
      %v6117 = vadd.f32 0.0, %v6116
      %6118 = vmatmul.f32.gmra.mxu0 %v5883
      %v6119 = vpop.f32.mrf.mxu0
      %v6120 = vadd.f32 0.0, %v6119
      %6121 = vdwg.mxu0
      %6122 = vmatpush.msra.mxu0 %v3747
      %6123 = vmatpush.msra.mxu0 %v3745
      %6124 = vmatpush.msra.mxu0 %v3743
      %6125 = vmatpush.msra.mxu0 %v3741
      %6126 = vmatpush.msra.mxu0 %v3739
      %6127 = vmatpush.msra.mxu0 %v3737
      %6128 = vmatpush.msra.mxu0 %v3735
      %6129 = vmatpush.msra.mxu0 %v3733
      %6130 = vmatpush.msra.mxu0 %v3731
      %6131 = vmatpush.msra.mxu0 %v3729
      %6132 = vmatpush.msra.mxu0 %v3727
      %6133 = vmatpush.msra.mxu0 %v3725
      %6134 = vmatpush.msra.mxu0 %v3723
      %6135 = vmatpush.msra.mxu0 %v3721
      %6136 = vmatpush.msra.mxu0 %v3719
      %6137 = vmatpush.msra.mxu0 %v3717
      %6138 = vmatmul.f32.gmra.mxu0 %v5881
      %v6139 = vpop.f32.mrf.mxu0
      %v6140 = vadd.f32 %v6117, %v6139
      %6141 = vmatmul.f32.gmra.mxu0 %v5884
      %v6142 = vpop.f32.mrf.mxu0
      %v6143 = vadd.f32 %v6120, %v6142
      %6144 = vdwg.mxu0
      %6145 = vmatpush.msra.mxu0 0.0
      %6146 = vmatpush.msra.mxu0 0.0
      %6147 = vmatpush.msra.mxu0 0.0
      %6148 = vmatpush.msra.mxu0 0.0
      %6149 = vmatpush.msra.mxu0 0.0
      %6150 = vmatpush.msra.mxu0 0.0
      %6151 = vmatpush.msra.mxu0 0.0
      %6152 = vmatpush.msra.mxu0 0.0
      %6153 = vmatpush.msra.mxu0 %v3763
      %6154 = vmatpush.msra.mxu0 %v3761
      %6155 = vmatpush.msra.mxu0 %v3759
      %6156 = vmatpush.msra.mxu0 %v3757
      %6157 = vmatpush.msra.mxu0 %v3755
      %6158 = vmatpush.msra.mxu0 %v3753
      %6159 = vmatpush.msra.mxu0 %v3751
      %6160 = vmatpush.msra.mxu0 %v3749
      %6161 = vmatmul.f32.gmra.mxu0 %v5887
      %v6162 = vpop.f32.mrf.mxu0
      %v6163 = vadd.f32 %v6140, %v6162
      %6164 = vmatmul.f32.gmra.mxu0 %v5890
      %v6165 = vpop.f32.mrf.mxu0
      %v6166 = vadd.f32 %v6143, %v6165
      %6167 = vdwg.mxu0
      %v6168 = vmax.f32 %v5956, %v6094
      %v6169 = vmax.f32 %v6025, %v6163
      %v6170 = vmax.f32 %v5959, %v6097
      %v6171 = vmax.f32 %v6028, %v6166
      %v6172 = vpack.c.bf16 %v6168, %v6168
      %v6173 = vpack.c.bf16 %v6169, %v6169
      %v6174 = vpack.c.bf16 %v6170, %v6168
      %v6175 = vpack.c.bf16 %v6171, %v6169
      %v6177 = vshrl.u32 %v6174, 16
      %v6179 = vshll.u32 %v6174, 16
      %v6181 = vrot.slane %v6179, 1
      %v6182 = vor.u32 %v6177, %v6181
      %v6184 = vshrl.u32 %v6175, 16
      %v6186 = vshll.u32 %v6175, 16
      %v6188 = vrot.slane %v6186, 1
      %v6189 = vor.u32 %v6184, %v6188
      %v6192 = vsel %vm4026, %v6189, 0
      %6194 = vmatpush.bf16.msra.mxu0 %v4013
      %6195 = vmatpush.bf16.msra.mxu0 %v4012
      %6196 = vmatpush.bf16.msra.mxu0 %v4011
      %6197 = vmatpush.bf16.msra.mxu0 %v4010
      %6198 = vmatpush.bf16.msra.mxu0 %v4009
      %6199 = vmatpush.bf16.msra.mxu0 %v4008
      %6200 = vmatpush.bf16.msra.mxu0 %v4007
      %6201 = vmatpush.bf16.msra.mxu0 %v4006
      %6202 = vmatmul.bf16.gmra.mxu0 %v6182
      %v6203 = vpop.f32.mrf.mxu0
      %v6204 = vadd.f32 0.0, %v6203
      %v6205 = vpop.f32.mrf.mxu0
      %6206 = vdwg.mxu0
      %6207 = vmatpush.bf16.msra.mxu0 0
      %6208 = vmatpush.bf16.msra.mxu0 0
      %6209 = vmatpush.bf16.msra.mxu0 0
      %6210 = vmatpush.bf16.msra.mxu0 0
      %6211 = vmatpush.bf16.msra.mxu0 0
      %6212 = vmatpush.bf16.msra.mxu0 0
      %6213 = vmatpush.bf16.msra.mxu0 %v4015
      %6214 = vmatpush.bf16.msra.mxu0 %v4014
      %6215 = vmatmul.bf16.gmra.mxu0 %v6192
      %v6216 = vpop.f32.mrf.mxu0
      %v6217 = vadd.f32 %v6204, %v6216
      %v6218 = vpop.f32.mrf.mxu0
      %6219 = vdwg.mxu0
      %v6221 = vsel %vm4026, %v6173, 0
      %6223 = vmatpush.bf16.msra.mxu0 %v4103
      %6224 = vmatpush.bf16.msra.mxu0 %v4102
      %6225 = vmatpush.bf16.msra.mxu0 %v4101
      %6226 = vmatpush.bf16.msra.mxu0 %v4100
      %6227 = vmatpush.bf16.msra.mxu0 %v4099
      %6228 = vmatpush.bf16.msra.mxu0 %v4098
      %6229 = vmatpush.bf16.msra.mxu0 %v4097
      %6230 = vmatpush.bf16.msra.mxu0 %v4096
      %6231 = vmatmul.bf16.gmra.mxu0 %v6172
      %v6232 = vpop.f32.mrf.mxu0
      %v6233 = vadd.f32 %v6217, %v6232
      %v6234 = vpop.f32.mrf.mxu0
      %6235 = vdwg.mxu0
      %6236 = vmatpush.bf16.msra.mxu0 0
      %6237 = vmatpush.bf16.msra.mxu0 0
      %6238 = vmatpush.bf16.msra.mxu0 0
      %6239 = vmatpush.bf16.msra.mxu0 0
      %6240 = vmatpush.bf16.msra.mxu0 0
      %6241 = vmatpush.bf16.msra.mxu0 0
      %6242 = vmatpush.bf16.msra.mxu0 %v4105
      %6243 = vmatpush.bf16.msra.mxu0 %v4104
      %6244 = vmatmul.bf16.gmra.mxu0 %v6221
      %v6245 = vpop.f32.mrf.mxu0
      %v6246 = vadd.f32 %v6233, %v6245
      %v6247 = vpop.f32.mrf.mxu0
      %6248 = vdwg.mxu0
      %v6251 = vrot.slane %v6174, 1
      %v6252 = vrot.slane %v6175, 1
      %v6255 = vsel %vm4026, %v6252, 0
      %6257 = vmatpush.bf16.msra.mxu0 %v4218
      %6258 = vmatpush.bf16.msra.mxu0 %v4217
      %6259 = vmatpush.bf16.msra.mxu0 %v4216
      %6260 = vmatpush.bf16.msra.mxu0 %v4215
      %6261 = vmatpush.bf16.msra.mxu0 %v4214
      %6262 = vmatpush.bf16.msra.mxu0 %v4213
      %6263 = vmatpush.bf16.msra.mxu0 %v4212
      %6264 = vmatpush.bf16.msra.mxu0 %v4211
      %6265 = vmatmul.bf16.gmra.mxu0 %v6251
      %v6266 = vpop.f32.mrf.mxu0
      %v6267 = vadd.f32 0.0, %v6266
      %v6268 = vpop.f32.mrf.mxu0
      %6269 = vdwg.mxu0
      %6270 = vmatpush.bf16.msra.mxu0 0
      %6271 = vmatpush.bf16.msra.mxu0 0
      %6272 = vmatpush.bf16.msra.mxu0 0
      %6273 = vmatpush.bf16.msra.mxu0 0
      %6274 = vmatpush.bf16.msra.mxu0 0
      %6275 = vmatpush.bf16.msra.mxu0 0
      %6276 = vmatpush.bf16.msra.mxu0 %v4220
      %6277 = vmatpush.bf16.msra.mxu0 %v4219
      %6278 = vmatmul.bf16.gmra.mxu0 %v6255
      %v6279 = vpop.f32.mrf.mxu0
      %v6280 = vadd.f32 %v6267, %v6279
      %v6281 = vpop.f32.mrf.mxu0
      %6282 = vdwg.mxu0
      %v6283 = vadd.f32 %v6246, %v6280
      %v6284 = vadd.f32 %v6283, %v4263
      %v6285 = vmax.f32 %v6284, 0.0
      %v6286 = vpack.c.bf16 %v6285, %v6285
      %v6288 = vshrl.u32 %v6286, 16
      %v6290 = vshll.u32 %v6286, 16
      %v6292 = vrot.slane %v6290, 1
      %v6293 = vor.u32 %v6288, %v6292
      %6295 = vmatpush.bf16.msra.mxu0 %v4348
      %6296 = vmatpush.bf16.msra.mxu0 %v4347
      %6297 = vmatpush.bf16.msra.mxu0 %v4346
      %6298 = vmatpush.bf16.msra.mxu0 %v4345
      %6299 = vmatpush.bf16.msra.mxu0 %v4344
      %6300 = vmatpush.bf16.msra.mxu0 %v4343
      %6301 = vmatpush.bf16.msra.mxu0 %v4342
      %6302 = vmatpush.bf16.msra.mxu0 %v4341
      %6303 = vmatmul.bf16.gmra.mxu0 %v6293
      %v6304 = vpop.f32.mrf.mxu0
      %v6305 = vadd.f32 0.0, %v6304
      %v6306 = vpop.f32.mrf.mxu0
      %6307 = vdwg.mxu0
      %6308 = vmatpush.bf16.msra.mxu0 %v4409
      %6309 = vmatpush.bf16.msra.mxu0 %v4408
      %6310 = vmatpush.bf16.msra.mxu0 %v4407
      %6311 = vmatpush.bf16.msra.mxu0 %v4406
      %6312 = vmatpush.bf16.msra.mxu0 %v4405
      %6313 = vmatpush.bf16.msra.mxu0 %v4404
      %6314 = vmatpush.bf16.msra.mxu0 %v4403
      %6315 = vmatpush.bf16.msra.mxu0 %v4402
      %6316 = vmatmul.bf16.gmra.mxu0 %v6286
      %v6317 = vpop.f32.mrf.mxu0
      %v6318 = vadd.f32 %v6305, %v6317
      %v6319 = vpop.f32.mrf.mxu0
      %6320 = vdwg.mxu0
      %v6322 = vrot.slane %v6286, 1
      %6324 = vmatpush.bf16.msra.mxu0 %v4490
      %6325 = vmatpush.bf16.msra.mxu0 %v4489
      %6326 = vmatpush.bf16.msra.mxu0 %v4488
      %6327 = vmatpush.bf16.msra.mxu0 %v4487
      %6328 = vmatpush.bf16.msra.mxu0 %v4486
      %6329 = vmatpush.bf16.msra.mxu0 %v4485
      %6330 = vmatpush.bf16.msra.mxu0 %v4484
      %6331 = vmatpush.bf16.msra.mxu0 %v4483
      %6332 = vmatmul.bf16.gmra.mxu0 %v6322
      %v6333 = vpop.f32.mrf.mxu0
      %v6334 = vadd.f32 0.0, %v6333
      %v6335 = vpop.f32.mrf.mxu0
      %6336 = vdwg.mxu0
      %v6337 = vadd.f32 %v6318, %v6334
      %v6338 = vadd.f32 %v6337, %v4515
      %v6339 = vmax.f32 %v6338, 0.0
      %v6340 = vpack.c.bf16 %v6339, %v6339
      %v6342 = vshrl.u32 %v6340, 16
      %v6344 = vshll.u32 %v6340, 16
      %v6346 = vrot.slane %v6344, 1
      %v6347 = vor.u32 %v6342, %v6346
      %v6349 = vsel %vm1939, %v6347, 0
      %6351 = vmatpush.bf16.msra.mxu0 0
      %6352 = vmatpush.bf16.msra.mxu0 0
      %6353 = vmatpush.bf16.msra.mxu0 %v4581
      %6354 = vmatpush.bf16.msra.mxu0 %v4580
      %6355 = vmatpush.bf16.msra.mxu0 %v4579
      %6356 = vmatpush.bf16.msra.mxu0 %v4578
      %6357 = vmatpush.bf16.msra.mxu0 %v4577
      %6358 = vmatpush.bf16.msra.mxu0 %v4576
      %6359 = vmatmul.bf16.gmra.mxu0 %v6349
      %v6360 = vpop.f32.mrf.mxu0
      %v6361 = vadd.f32 0.0, %v6360
      %v6362 = vpop.f32.mrf.mxu0
      %6363 = vdwg.mxu0
      %v6364 = vsel %vm1939, %v6340, 0
      %6366 = vmatpush.bf16.msra.mxu0 0
      %6367 = vmatpush.bf16.msra.mxu0 0
      %6368 = vmatpush.bf16.msra.mxu0 %v4633
      %6369 = vmatpush.bf16.msra.mxu0 %v4632
      %6370 = vmatpush.bf16.msra.mxu0 %v4631
      %6371 = vmatpush.bf16.msra.mxu0 %v4630
      %6372 = vmatpush.bf16.msra.mxu0 %v4629
      %6373 = vmatpush.bf16.msra.mxu0 %v4628
      %6374 = vmatmul.bf16.gmra.mxu0 %v6364
      %v6375 = vpop.f32.mrf.mxu0
      %v6376 = vadd.f32 %v6361, %v6375
      %v6377 = vpop.f32.mrf.mxu0
      %6378 = vdwg.mxu0
      %v6380 = vrot.slane %v6340, 1
      %v6382 = vsel %vm1939, %v6380, 0
      %6384 = vmatpush.bf16.msra.mxu0 0
      %6385 = vmatpush.bf16.msra.mxu0 0
      %6386 = vmatpush.bf16.msra.mxu0 %v4699
      %6387 = vmatpush.bf16.msra.mxu0 %v4698
      %6388 = vmatpush.bf16.msra.mxu0 %v4697
      %6389 = vmatpush.bf16.msra.mxu0 %v4696
      %6390 = vmatpush.bf16.msra.mxu0 %v4695
      %6391 = vmatpush.bf16.msra.mxu0 %v4694
      %6392 = vmatmul.bf16.gmra.mxu0 %v6382
      %v6393 = vpop.f32.mrf.mxu0
      %v6394 = vadd.f32 0.0, %v6393
      %v6395 = vpop.f32.mrf.mxu0
      %6396 = vdwg.mxu0
      %v6397 = vadd.f32 %v6376, %v6394
      %v6398 = vadd.f32 %v6397, %v4725
      %v6399 = vmax.f32 %v6398, 0.0
      %v6400 = vpack.c.bf16 %v6399, %v6399
      %v6402 = vshrl.u32 %v6400, 16
      %v6404 = vshll.u32 %v6400, 16
      %v6406 = vrot.slane %v6404, 1
      %v6407 = vor.u32 %v6402, %v6406
      %v6409 = vsel %vm3539, %v6407, 0
      %6411 = vmatpush.bf16.msra.mxu0 0
      %6412 = vmatpush.bf16.msra.mxu0 0
      %6413 = vmatpush.bf16.msra.mxu0 0
      %6414 = vmatpush.bf16.msra.mxu0 0
      %6415 = vmatpush.bf16.msra.mxu0 %v4773
      %6416 = vmatpush.bf16.msra.mxu0 %v4772
      %6417 = vmatpush.bf16.msra.mxu0 %v4771
      %6418 = vmatpush.bf16.msra.mxu0 %v4770
      %6419 = vmatmul.bf16.gmra.mxu0 %v6409
      %v6420 = vpop.f32.mrf.mxu0
      %v6421 = vadd.f32 0.0, %v6420
      %v6422 = vpop.f32.mrf.mxu0
      %6423 = vdwg.mxu0
      %v6424 = vsel %vm3539, %v6400, 0
      %6426 = vmatpush.bf16.msra.mxu0 0
      %6427 = vmatpush.bf16.msra.mxu0 0
      %6428 = vmatpush.bf16.msra.mxu0 0
      %6429 = vmatpush.bf16.msra.mxu0 0
      %6430 = vmatpush.bf16.msra.mxu0 %v4813
      %6431 = vmatpush.bf16.msra.mxu0 %v4812
      %6432 = vmatpush.bf16.msra.mxu0 %v4811
      %6433 = vmatpush.bf16.msra.mxu0 %v4810
      %6434 = vmatmul.bf16.gmra.mxu0 %v6424
      %v6435 = vpop.f32.mrf.mxu0
      %v6436 = vadd.f32 %v6421, %v6435
      %v6437 = vpop.f32.mrf.mxu0
      %6438 = vdwg.mxu0
      %v6440 = vrot.slane %v6400, 1
      %v6442 = vsel %vm3539, %v6440, 0
      %6444 = vmatpush.bf16.msra.mxu0 0
      %6445 = vmatpush.bf16.msra.mxu0 0
      %6446 = vmatpush.bf16.msra.mxu0 0
      %6447 = vmatpush.bf16.msra.mxu0 0
      %6448 = vmatpush.bf16.msra.mxu0 %v4863
      %6449 = vmatpush.bf16.msra.mxu0 %v4862
      %6450 = vmatpush.bf16.msra.mxu0 %v4861
      %6451 = vmatpush.bf16.msra.mxu0 %v4860
      %6452 = vmatmul.bf16.gmra.mxu0 %v6442
      %v6453 = vpop.f32.mrf.mxu0
      %v6454 = vadd.f32 0.0, %v6453
      %v6455 = vpop.f32.mrf.mxu0
      %6456 = vdwg.mxu0
      %v6457 = vadd.f32 %v6436, %v6454
      %v6458 = vsel %vm4885, %v6457, 0.0
      %v6459 = vrot.slane %v6458, 4
      %v6460 = vadd.f32 %v6458, %v6459
      %v6461 = vrot.slane %v6460, 2
      %v6462 = vadd.f32 %v6460, %v6461
      %v6463 = vrot.slane %v6462, 1
      %v6464 = vadd.f32 %v6462, %v6463
      %6466 = vrot.lane.b32.xlu0 %v6464, 112
      %v6467 = vpop.permute.xlu0 %6466
      %v6469 = vadd.f32 %v6464, %v6467
      %v6470 = vmul.f32 %v6469, 0.25
      %v6472 = vrot.slane %v6470, 7
      %vm6474 = vcmask 1040384
      %v6475 = vsel %vm6474, %v4898, %v6472
      %v6476 = vld [vmem:[%s1] sm:$0x3]
      %6478 = vrot.lane.b32.xlu0 %v6476, 16
      %v6479 = vpop.permute.xlu0 %6478
      %vm6481 = vcmask 130048
      %v6482 = vsel %vm6481, %v6475, %v6479
      %v6483 = vpack.c.bf16 %v6482, %v6482
      %v6484 = vld [vmem:[%s967] sm:$0xff]
      %v6485 = vld [vmem:[%s967 + $0x8] sm:$0xff]
      %v6486 = vld [vmem:[%s967 + $0x10] sm:$0xff]
      %v6487 = vld [vmem:[%s967 + $0x18] sm:$0xff]
      %v6488 = vld [vmem:[%s967 + $0x20] sm:$0x77]
      %v6489 = vld [vmem:[%s967 + $0x28] sm:$0x77]
      %v6490 = vld [vmem:[%s971] sm:$0xf]
      %v6492 = vperm.slane %v6490, 0
      %v6493 = vperm.slane %v6490, 1
      %v6494 = vperm.slane %v6490, 2
      %v6495 = vperm.slane %v6490, 3
      %v6506 = vunpack.c.l.b16 %v6484
      %v6507 = vunpack.c.h.b16 %v6484
      %v6508 = vunpack.c.l.b16 %v6485
      %v6509 = vunpack.c.h.b16 %v6485
      %v6510 = vunpack.c.l.b16 %v6486
      %v6511 = vunpack.c.h.b16 %v6486
      %v6512 = vunpack.c.l.b16 %v6487
      %v6513 = vunpack.c.h.b16 %v6487
      %v6514 = vunpack.c.l.b16 %v6488
      %v6515 = vunpack.c.h.b16 %v6488
      %v6516 = vunpack.c.l.b16 %v6489
      %v6517 = vunpack.c.h.b16 %v6489
      %v6518 = vpack.c.b16 %v6510, %v6506
      %v6519 = vpack.c.b16 %v6511, %v6507
      %v6520 = vpack.c.b16 %v6512, %v6508
      %v6521 = vpack.c.b16 %v6513, %v6509
      %v6522 = vpack.c.b16 %v6514, %v6514
      %v6523 = vpack.c.b16 %v6515, %v6515
      %v6524 = vpack.c.b16 %v6516, %v6516
      %v6525 = vpack.c.b16 %v6517, %v6517
      %vm6530 = vcmask 179200
      %v6532 = vsel %vm6530, %v6483, 0
      %vm6534 = vcmask 1042432
      %v6536 = vsel %vm6534, %v6522, 0
      %v6539 = vsel %vm6534, %v6523, 0
      %v6542 = vsel %vm6534, %v6524, 0
      %v6545 = vsel %vm6534, %v6525, 0
      %6547 = vmatpush.bf16.msra.mxu0 0
      %6548 = vmatpush.bf16.msra.mxu0 0
      %6549 = vmatpush.bf16.msra.mxu0 0
      %6550 = vmatpush.bf16.msra.mxu0 0
      %6551 = vmatpush.bf16.msra.mxu0 0
      %6552 = vmatpush.bf16.msra.mxu0 0
      %6553 = vmatpush.bf16.msra.mxu0 %v6536
      %6554 = vmatpush.bf16.msra.mxu0 %v6518
      %6555 = vmatmul.bf16.gmra.mxu0 %v6532
      %v6556 = vpop.f32.mrf.mxu0
      %v6557 = vadd.f32 %v6492, %v6556
      %v6558 = vpop.f32.mrf.mxu0
      %6559 = vdwg.mxu0
      %6560 = vmatpush.bf16.msra.mxu0 0
      %6561 = vmatpush.bf16.msra.mxu0 0
      %6562 = vmatpush.bf16.msra.mxu0 0
      %6563 = vmatpush.bf16.msra.mxu0 0
      %6564 = vmatpush.bf16.msra.mxu0 0
      %6565 = vmatpush.bf16.msra.mxu0 0
      %6566 = vmatpush.bf16.msra.mxu0 %v6539
      %6567 = vmatpush.bf16.msra.mxu0 %v6519
      %6568 = vmatmul.bf16.gmra.mxu0 %v6532
      %v6569 = vpop.f32.mrf.mxu0
      %v6570 = vadd.f32 %v6493, %v6569
      %v6571 = vpop.f32.mrf.mxu0
      %6572 = vdwg.mxu0
      %6573 = vmatpush.bf16.msra.mxu0 0
      %6574 = vmatpush.bf16.msra.mxu0 0
      %6575 = vmatpush.bf16.msra.mxu0 0
      %6576 = vmatpush.bf16.msra.mxu0 0
      %6577 = vmatpush.bf16.msra.mxu0 0
      %6578 = vmatpush.bf16.msra.mxu0 0
      %6579 = vmatpush.bf16.msra.mxu0 %v6542
      %6580 = vmatpush.bf16.msra.mxu0 %v6520
      %6581 = vmatmul.bf16.gmra.mxu0 %v6532
      %v6582 = vpop.f32.mrf.mxu0
      %v6583 = vadd.f32 %v6494, %v6582
      %v6584 = vpop.f32.mrf.mxu0
      %6585 = vdwg.mxu0
      %6586 = vmatpush.bf16.msra.mxu0 0
      %6587 = vmatpush.bf16.msra.mxu0 0
      %6588 = vmatpush.bf16.msra.mxu0 0
      %6589 = vmatpush.bf16.msra.mxu0 0
      %6590 = vmatpush.bf16.msra.mxu0 0
      %6591 = vmatpush.bf16.msra.mxu0 0
      %6592 = vmatpush.bf16.msra.mxu0 %v6545
      %6593 = vmatpush.bf16.msra.mxu0 %v6521
      %6594 = vmatmul.bf16.gmra.mxu0 %v6532
      %v6595 = vpop.f32.mrf.mxu0
      %v6596 = vadd.f32 %v6495, %v6595
      %v6597 = vpop.f32.mrf.mxu0
      %6598 = vdwg.mxu0
      %v6599 = vmax.f32 %v6557, 0.0
      %v6600 = vmax.f32 %v6570, 0.0
      %v6601 = vmax.f32 %v6583, 0.0
      %v6602 = vmax.f32 %v6596, 0.0
      %v6603 = vpack.c.bf16 %v6599, %v6599
      %v6604 = vpack.c.bf16 %v6600, %v6600
      %v6605 = vpack.c.bf16 %v6601, %v6601
      %v6606 = vpack.c.bf16 %v6602, %v6602
      %v6607 = vld [vmem:[%s976] sm:$0xff]
      %v6608 = vld [vmem:[%s976 + $0x8] sm:$0xf]
      %v6609 = vld [vmem:[%s976 + $0xc] sm:$0xff]
      %v6610 = vld [vmem:[%s976 + $0x14] sm:$0xf]
      %v6611 = vld [vmem:[%s976 + $0x18] sm:$0xff]
      %v6612 = vld [vmem:[%s976 + $0x20] sm:$0xf]
      %v6613 = vld [vmem:[%s976 + $0x24] sm:$0xff]
      %v6614 = vld [vmem:[%s976 + $0x2c] sm:$0xf]
      %v6615 = vld [vmem:[%s976 + $0x30] sm:$0xff]
      %v6616 = vld [vmem:[%s976 + $0x38] sm:$0xf]
      %v6617 = vld [vmem:[%s976 + $0x3c] sm:$0xff]
      %v6618 = vld [vmem:[%s976 + $0x44] sm:$0xf]
      %v6619 = vld [vmem:[%s976 + $0x48] sm:$0xff]
      %v6620 = vld [vmem:[%s976 + $0x50] sm:$0xf]
      %v6621 = vld [vmem:[%s976 + $0x54] sm:$0xff]
      %v6622 = vld [vmem:[%s976 + $0x5c] sm:$0xf]
      %v6623 = vld [vmem:[%s976 + $0x60] sm:$0xff]
      %v6624 = vld [vmem:[%s976 + $0x68] sm:$0xf]
      %v6625 = vld [vmem:[%s976 + $0x6c] sm:$0xff]
      %v6626 = vld [vmem:[%s976 + $0x74] sm:$0xf]
      %v6627 = vld [vmem:[%s976 + $0x78] sm:$0xff]
      %v6628 = vld [vmem:[%s976 + $0x80] sm:$0xf]
      %v6629 = vld [vmem:[%s976 + $0x84] sm:$0xff]
      %v6630 = vld [vmem:[%s976 + $0x8c] sm:$0xf]
      %v6631 = vld [vmem:[%s976 + $0x90] sm:$0xff]
      %v6632 = vld [vmem:[%s976 + $0x98] sm:$0xf]
      %v6633 = vld [vmem:[%s976 + $0x9c] sm:$0xff]
      %v6634 = vld [vmem:[%s976 + $0xa4] sm:$0xf]
      %v6635 = vld [vmem:[%s976 + $0xa8] sm:$0xff]
      %v6636 = vld [vmem:[%s976 + $0xb0] sm:$0xf]
      %v6637 = vld [vmem:[%s976 + $0xb4] sm:$0xff]
      %v6638 = vld [vmem:[%s976 + $0xbc] sm:$0xf]
      %v6639 = vld [vmem:[%s976 + $0xc0] sm:$0xff]
      %v6640 = vld [vmem:[%s976 + $0xc8] sm:$0xf]
      %v6641 = vld [vmem:[%s976 + $0xcc] sm:$0xff]
      %v6642 = vld [vmem:[%s976 + $0xd4] sm:$0xf]
      %v6643 = vld [vmem:[%s976 + $0xd8] sm:$0xff]
      %v6644 = vld [vmem:[%s976 + $0xe0] sm:$0xf]
      %v6645 = vld [vmem:[%s976 + $0xe4] sm:$0xff]
      %v6646 = vld [vmem:[%s976 + $0xec] sm:$0xf]
      %v6647 = vld [vmem:[%s976 + $0xf0] sm:$0xff]
      %v6648 = vld [vmem:[%s976 + $0xf8] sm:$0xf]
      %v6649 = vld [vmem:[%s976 + $0xfc] sm:$0xff]
      %v6650 = vld [vmem:[%s976 + $0x104] sm:$0xf]
      %v6651 = vld [vmem:[%s976 + $0x108] sm:$0xff]
      %v6652 = vld [vmem:[%s976 + $0x110] sm:$0xf]
      %v6653 = vld [vmem:[%s976 + $0x114] sm:$0xff]
      %v6654 = vld [vmem:[%s976 + $0x11c] sm:$0xf]
      %v6655 = vld [vmem:[%s976 + $0x120] sm:$0xff]
      %v6656 = vld [vmem:[%s976 + $0x128] sm:$0xf]
      %v6657 = vld [vmem:[%s976 + $0x12c] sm:$0xff]
      %v6658 = vld [vmem:[%s976 + $0x134] sm:$0xf]
      %v6659 = vld [vmem:[%s976 + $0x138] sm:$0xff]
      %v6660 = vld [vmem:[%s976 + $0x140] sm:$0xf]
      %v6661 = vld [vmem:[%s976 + $0x144] sm:$0xff]
      %v6662 = vld [vmem:[%s976 + $0x14c] sm:$0xf]
      %v6663 = vld [vmem:[%s976 + $0x150] sm:$0xff]
      %v6664 = vld [vmem:[%s976 + $0x158] sm:$0xf]
      %v6665 = vld [vmem:[%s976 + $0x15c] sm:$0xff]
      %v6666 = vld [vmem:[%s976 + $0x164] sm:$0xf]
      %v6667 = vld [vmem:[%s976 + $0x168] sm:$0xff]
      %v6668 = vld [vmem:[%s976 + $0x170] sm:$0xf]
      %v6669 = vld [vmem:[%s976 + $0x174] sm:$0xff]
      %v6670 = vld [vmem:[%s976 + $0x17c] sm:$0xf]
      %v6671 = vld [vmem:[%s976 + $0x180] sm:$0xff]
      %v6672 = vld [vmem:[%s976 + $0x188] sm:$0xf]
      %v6673 = vld [vmem:[%s976 + $0x18c] sm:$0xff]
      %v6674 = vld [vmem:[%s976 + $0x194] sm:$0xf]
      %v6675 = vld [vmem:[%s976 + $0x198] sm:$0xff]
      %v6676 = vld [vmem:[%s976 + $0x1a0] sm:$0xf]
      %v6677 = vld [vmem:[%s976 + $0x1a4] sm:$0xff]
      %v6678 = vld [vmem:[%s976 + $0x1ac] sm:$0xf]
      %v6679 = vld [vmem:[%s976 + $0x1b0] sm:$0xff]
      %v6680 = vld [vmem:[%s976 + $0x1b8] sm:$0xf]
      %v6681 = vld [vmem:[%s976 + $0x1bc] sm:$0xff]
      %v6682 = vld [vmem:[%s976 + $0x1c4] sm:$0xf]
      %v6683 = vld [vmem:[%s976 + $0x1c8] sm:$0xff]
      %v6684 = vld [vmem:[%s976 + $0x1d0] sm:$0xf]
      %v6685 = vld [vmem:[%s976 + $0x1d4] sm:$0xff]
      %v6686 = vld [vmem:[%s976 + $0x1dc] sm:$0xf]
      %v6687 = vld [vmem:[%s976 + $0x1e0] sm:$0xff]
      %v6688 = vld [vmem:[%s976 + $0x1e8] sm:$0xf]
      %v6689 = vld [vmem:[%s976 + $0x1ec] sm:$0xff]
      %v6690 = vld [vmem:[%s976 + $0x1f4] sm:$0xf]
      %v6691 = vld [vmem:[%s976 + $0x1f8] sm:$0xff]
      %v6692 = vld [vmem:[%s976 + $0x200] sm:$0xf]
      %v6693 = vld [vmem:[%s976 + $0x204] sm:$0xff]
      %v6694 = vld [vmem:[%s976 + $0x20c] sm:$0xf]
      %v6695 = vld [vmem:[%s976 + $0x210] sm:$0xff]
      %v6696 = vld [vmem:[%s976 + $0x218] sm:$0xf]
      %v6697 = vld [vmem:[%s976 + $0x21c] sm:$0xff]
      %v6698 = vld [vmem:[%s976 + $0x224] sm:$0xf]
      %v6699 = vld [vmem:[%s976 + $0x228] sm:$0xff]
      %v6700 = vld [vmem:[%s976 + $0x230] sm:$0xf]
      %v6701 = vld [vmem:[%s976 + $0x234] sm:$0xff]
      %v6702 = vld [vmem:[%s976 + $0x23c] sm:$0xf]
      %v6703 = vld [vmem:[%s976 + $0x240] sm:$0xff]
      %v6704 = vld [vmem:[%s976 + $0x248] sm:$0xf]
      %v6705 = vld [vmem:[%s976 + $0x24c] sm:$0xff]
      %v6706 = vld [vmem:[%s976 + $0x254] sm:$0xf]
      %v6707 = vld [vmem:[%s980] sm:$0x7]
      %v6709 = vperm.slane %v6707, 0
      %v6710 = vperm.slane %v6707, 1
      %v6711 = vperm.slane %v6707, 2
      %v6815 = vunpack.c.l.b16 %v6607
      %v6816 = vunpack.c.h.b16 %v6607
      %v6817 = vunpack.c.l.b16 %v6608
      %v6818 = vunpack.c.l.b16 %v6609
      %v6819 = vunpack.c.h.b16 %v6609
      %v6820 = vunpack.c.l.b16 %v6610
      %v6821 = vunpack.c.l.b16 %v6611
      %v6822 = vunpack.c.h.b16 %v6611
      %v6823 = vunpack.c.l.b16 %v6612
      %v6824 = vunpack.c.l.b16 %v6613
      %v6825 = vunpack.c.h.b16 %v6613
      %v6826 = vunpack.c.l.b16 %v6614
      %v6827 = vunpack.c.l.b16 %v6615
      %v6828 = vunpack.c.h.b16 %v6615
      %v6829 = vunpack.c.l.b16 %v6616
      %v6830 = vunpack.c.l.b16 %v6617
      %v6831 = vunpack.c.h.b16 %v6617
      %v6832 = vunpack.c.l.b16 %v6618
      %v6833 = vunpack.c.l.b16 %v6619
      %v6834 = vunpack.c.h.b16 %v6619
      %v6835 = vunpack.c.l.b16 %v6620
      %v6836 = vunpack.c.l.b16 %v6621
      %v6837 = vunpack.c.h.b16 %v6621
      %v6838 = vunpack.c.l.b16 %v6622
      %v6839 = vunpack.c.l.b16 %v6623
      %v6840 = vunpack.c.h.b16 %v6623
      %v6841 = vunpack.c.l.b16 %v6624
      %v6842 = vunpack.c.l.b16 %v6625
      %v6843 = vunpack.c.h.b16 %v6625
      %v6844 = vunpack.c.l.b16 %v6626
      %v6845 = vunpack.c.l.b16 %v6627
      %v6846 = vunpack.c.h.b16 %v6627
      %v6847 = vunpack.c.l.b16 %v6628
      %v6848 = vunpack.c.l.b16 %v6629
      %v6849 = vunpack.c.h.b16 %v6629
      %v6850 = vunpack.c.l.b16 %v6630
      %v6851 = vunpack.c.l.b16 %v6631
      %v6852 = vunpack.c.h.b16 %v6631
      %v6853 = vunpack.c.l.b16 %v6632
      %v6854 = vunpack.c.l.b16 %v6633
      %v6855 = vunpack.c.h.b16 %v6633
      %v6856 = vunpack.c.l.b16 %v6634
      %v6857 = vunpack.c.l.b16 %v6635
      %v6858 = vunpack.c.h.b16 %v6635
      %v6859 = vunpack.c.l.b16 %v6636
      %v6860 = vunpack.c.l.b16 %v6637
      %v6861 = vunpack.c.h.b16 %v6637
      %v6862 = vunpack.c.l.b16 %v6638
      %v6863 = vunpack.c.l.b16 %v6639
      %v6864 = vunpack.c.h.b16 %v6639
      %v6865 = vunpack.c.l.b16 %v6640
      %v6866 = vunpack.c.l.b16 %v6641
      %v6867 = vunpack.c.h.b16 %v6641
      %v6868 = vunpack.c.l.b16 %v6642
      %v6869 = vunpack.c.l.b16 %v6643
      %v6870 = vunpack.c.h.b16 %v6643
      %v6871 = vunpack.c.l.b16 %v6644
      %v6872 = vunpack.c.l.b16 %v6645
      %v6873 = vunpack.c.h.b16 %v6645
      %v6874 = vunpack.c.l.b16 %v6646
      %v6875 = vunpack.c.l.b16 %v6647
      %v6876 = vunpack.c.h.b16 %v6647
      %v6877 = vunpack.c.l.b16 %v6648
      %v6878 = vunpack.c.l.b16 %v6649
      %v6879 = vunpack.c.h.b16 %v6649
      %v6880 = vunpack.c.l.b16 %v6650
      %v6881 = vunpack.c.l.b16 %v6651
      %v6882 = vunpack.c.h.b16 %v6651
      %v6883 = vunpack.c.l.b16 %v6652
      %v6884 = vunpack.c.l.b16 %v6653
      %v6885 = vunpack.c.h.b16 %v6653
      %v6886 = vunpack.c.l.b16 %v6654
      %v6887 = vunpack.c.l.b16 %v6655
      %v6888 = vunpack.c.h.b16 %v6655
      %v6889 = vunpack.c.l.b16 %v6656
      %v6890 = vunpack.c.l.b16 %v6657
      %v6891 = vunpack.c.h.b16 %v6657
      %v6892 = vunpack.c.l.b16 %v6658
      %v6893 = vunpack.c.l.b16 %v6659
      %v6894 = vunpack.c.h.b16 %v6659
      %v6895 = vunpack.c.l.b16 %v6660
      %v6896 = vunpack.c.l.b16 %v6661
      %v6897 = vunpack.c.h.b16 %v6661
      %v6898 = vunpack.c.l.b16 %v6662
      %v6899 = vunpack.c.l.b16 %v6663
      %v6900 = vunpack.c.h.b16 %v6663
      %v6901 = vunpack.c.l.b16 %v6664
      %v6902 = vunpack.c.l.b16 %v6665
      %v6903 = vunpack.c.h.b16 %v6665
      %v6904 = vunpack.c.l.b16 %v6666
      %v6905 = vunpack.c.l.b16 %v6667
      %v6906 = vunpack.c.h.b16 %v6667
      %v6907 = vunpack.c.l.b16 %v6668
      %v6908 = vunpack.c.l.b16 %v6669
      %v6909 = vunpack.c.h.b16 %v6669
      %v6910 = vunpack.c.l.b16 %v6670
      %v6911 = vunpack.c.l.b16 %v6671
      %v6912 = vunpack.c.h.b16 %v6671
      %v6913 = vunpack.c.l.b16 %v6672
      %v6914 = vunpack.c.l.b16 %v6673
      %v6915 = vunpack.c.h.b16 %v6673
      %v6916 = vunpack.c.l.b16 %v6674
      %v6917 = vunpack.c.l.b16 %v6675
      %v6918 = vunpack.c.h.b16 %v6675
      %v6919 = vunpack.c.l.b16 %v6676
      %v6920 = vunpack.c.l.b16 %v6677
      %v6921 = vunpack.c.h.b16 %v6677
      %v6922 = vunpack.c.l.b16 %v6678
      %v6923 = vunpack.c.l.b16 %v6679
      %v6924 = vunpack.c.h.b16 %v6679
      %v6925 = vunpack.c.l.b16 %v6680
      %v6926 = vunpack.c.l.b16 %v6681
      %v6927 = vunpack.c.h.b16 %v6681
      %v6928 = vunpack.c.l.b16 %v6682
      %v6929 = vunpack.c.l.b16 %v6683
      %v6930 = vunpack.c.h.b16 %v6683
      %v6931 = vunpack.c.l.b16 %v6684
      %v6932 = vunpack.c.l.b16 %v6685
      %v6933 = vunpack.c.h.b16 %v6685
      %v6934 = vunpack.c.l.b16 %v6686
      %v6935 = vunpack.c.l.b16 %v6687
      %v6936 = vunpack.c.h.b16 %v6687
      %v6937 = vunpack.c.l.b16 %v6688
      %v6938 = vunpack.c.l.b16 %v6689
      %v6939 = vunpack.c.h.b16 %v6689
      %v6940 = vunpack.c.l.b16 %v6690
      %v6941 = vunpack.c.l.b16 %v6691
      %v6942 = vunpack.c.h.b16 %v6691
      %v6943 = vunpack.c.l.b16 %v6692
      %v6944 = vunpack.c.l.b16 %v6693
      %v6945 = vunpack.c.h.b16 %v6693
      %v6946 = vunpack.c.l.b16 %v6694
      %v6947 = vunpack.c.l.b16 %v6695
      %v6948 = vunpack.c.h.b16 %v6695
      %v6949 = vunpack.c.l.b16 %v6696
      %v6950 = vunpack.c.l.b16 %v6697
      %v6951 = vunpack.c.h.b16 %v6697
      %v6952 = vunpack.c.l.b16 %v6698
      %v6953 = vunpack.c.l.b16 %v6699
      %v6954 = vunpack.c.h.b16 %v6699
      %v6955 = vunpack.c.l.b16 %v6700
      %v6956 = vunpack.c.l.b16 %v6701
      %v6957 = vunpack.c.h.b16 %v6701
      %v6958 = vunpack.c.l.b16 %v6702
      %v6959 = vunpack.c.l.b16 %v6703
      %v6960 = vunpack.c.h.b16 %v6703
      %v6961 = vunpack.c.l.b16 %v6704
      %v6962 = vunpack.c.l.b16 %v6705
      %v6963 = vunpack.c.h.b16 %v6705
      %v6964 = vunpack.c.l.b16 %v6706
      %v6965 = vpack.c.b16 %v6818, %v6815
      %v6966 = vpack.c.b16 %v6819, %v6816
      %v6967 = vpack.c.b16 %v6820, %v6817
      %v6968 = vpack.c.b16 %v6824, %v6821
      %v6969 = vpack.c.b16 %v6825, %v6822
      %v6970 = vpack.c.b16 %v6826, %v6823
      %v6971 = vpack.c.b16 %v6830, %v6827
      %v6972 = vpack.c.b16 %v6831, %v6828
      %v6973 = vpack.c.b16 %v6832, %v6829
      %v6974 = vpack.c.b16 %v6836, %v6833
      %v6975 = vpack.c.b16 %v6837, %v6834
      %v6976 = vpack.c.b16 %v6838, %v6835
      %v6977 = vpack.c.b16 %v6842, %v6839
      %v6978 = vpack.c.b16 %v6843, %v6840
      %v6979 = vpack.c.b16 %v6844, %v6841
      %v6980 = vpack.c.b16 %v6848, %v6845
      %v6981 = vpack.c.b16 %v6849, %v6846
      %v6982 = vpack.c.b16 %v6850, %v6847
      %v6983 = vpack.c.b16 %v6854, %v6851
      %v6984 = vpack.c.b16 %v6855, %v6852
      %v6985 = vpack.c.b16 %v6856, %v6853
      %v6986 = vpack.c.b16 %v6860, %v6857
      %v6987 = vpack.c.b16 %v6861, %v6858
      %v6988 = vpack.c.b16 %v6862, %v6859
      %v6989 = vpack.c.b16 %v6866, %v6863
      %v6990 = vpack.c.b16 %v6867, %v6864
      %v6991 = vpack.c.b16 %v6868, %v6865
      %v6992 = vpack.c.b16 %v6872, %v6869
      %v6993 = vpack.c.b16 %v6873, %v6870
      %v6994 = vpack.c.b16 %v6874, %v6871
      %v6995 = vpack.c.b16 %v6878, %v6875
      %v6996 = vpack.c.b16 %v6879, %v6876
      %v6997 = vpack.c.b16 %v6880, %v6877
      %v6998 = vpack.c.b16 %v6884, %v6881
      %v6999 = vpack.c.b16 %v6885, %v6882
      %v7000 = vpack.c.b16 %v6886, %v6883
      %v7001 = vpack.c.b16 %v6890, %v6887
      %v7002 = vpack.c.b16 %v6891, %v6888
      %v7003 = vpack.c.b16 %v6892, %v6889
      %v7004 = vpack.c.b16 %v6896, %v6893
      %v7005 = vpack.c.b16 %v6897, %v6894
      %v7006 = vpack.c.b16 %v6898, %v6895
      %v7007 = vpack.c.b16 %v6902, %v6899
      %v7008 = vpack.c.b16 %v6903, %v6900
      %v7009 = vpack.c.b16 %v6904, %v6901
      %v7010 = vpack.c.b16 %v6908, %v6905
      %v7011 = vpack.c.b16 %v6909, %v6906
      %v7012 = vpack.c.b16 %v6910, %v6907
      %v7013 = vpack.c.b16 %v6914, %v6911
      %v7014 = vpack.c.b16 %v6915, %v6912
      %v7015 = vpack.c.b16 %v6916, %v6913
      %v7016 = vpack.c.b16 %v6920, %v6917
      %v7017 = vpack.c.b16 %v6921, %v6918
      %v7018 = vpack.c.b16 %v6922, %v6919
      %v7019 = vpack.c.b16 %v6926, %v6923
      %v7020 = vpack.c.b16 %v6927, %v6924
      %v7021 = vpack.c.b16 %v6928, %v6925
      %v7022 = vpack.c.b16 %v6932, %v6929
      %v7023 = vpack.c.b16 %v6933, %v6930
      %v7024 = vpack.c.b16 %v6934, %v6931
      %v7025 = vpack.c.b16 %v6938, %v6935
      %v7026 = vpack.c.b16 %v6939, %v6936
      %v7027 = vpack.c.b16 %v6940, %v6937
      %v7028 = vpack.c.b16 %v6944, %v6941
      %v7029 = vpack.c.b16 %v6945, %v6942
      %v7030 = vpack.c.b16 %v6946, %v6943
      %v7031 = vpack.c.b16 %v6950, %v6947
      %v7032 = vpack.c.b16 %v6951, %v6948
      %v7033 = vpack.c.b16 %v6952, %v6949
      %v7034 = vpack.c.b16 %v6956, %v6953
      %v7035 = vpack.c.b16 %v6957, %v6954
      %v7036 = vpack.c.b16 %v6958, %v6955
      %v7037 = vpack.c.b16 %v6962, %v6959
      %v7038 = vpack.c.b16 %v6963, %v6960
      %v7039 = vpack.c.b16 %v6964, %v6961
      %v7116 = vsel %vm6481, %v6606, 0
      %7118 = vmatpush.bf16.msra.mxu0 %v6986
      %7119 = vmatpush.bf16.msra.mxu0 %v6983
      %7120 = vmatpush.bf16.msra.mxu0 %v6980
      %7121 = vmatpush.bf16.msra.mxu0 %v6977
      %7122 = vmatpush.bf16.msra.mxu0 %v6974
      %7123 = vmatpush.bf16.msra.mxu0 %v6971
      %7124 = vmatpush.bf16.msra.mxu0 %v6968
      %7125 = vmatpush.bf16.msra.mxu0 %v6965
      %7126 = vmatmul.bf16.gmra.mxu0 %v6603
      %v7127 = vpop.f32.mrf.mxu0
      %v7128 = vadd.f32 %v6709, %v7127
      %v7129 = vpop.f32.mrf.mxu0
      %7130 = vdwg.mxu0
      %7131 = vmatpush.bf16.msra.mxu0 %v7010
      %7132 = vmatpush.bf16.msra.mxu0 %v7007
      %7133 = vmatpush.bf16.msra.mxu0 %v7004
      %7134 = vmatpush.bf16.msra.mxu0 %v7001
      %7135 = vmatpush.bf16.msra.mxu0 %v6998
      %7136 = vmatpush.bf16.msra.mxu0 %v6995
      %7137 = vmatpush.bf16.msra.mxu0 %v6992
      %7138 = vmatpush.bf16.msra.mxu0 %v6989
      %7139 = vmatmul.bf16.gmra.mxu0 %v6604
      %v7140 = vpop.f32.mrf.mxu0
      %v7141 = vadd.f32 %v7128, %v7140
      %v7142 = vpop.f32.mrf.mxu0
      %7143 = vdwg.mxu0
      %7144 = vmatpush.bf16.msra.mxu0 %v7034
      %7145 = vmatpush.bf16.msra.mxu0 %v7031
      %7146 = vmatpush.bf16.msra.mxu0 %v7028
      %7147 = vmatpush.bf16.msra.mxu0 %v7025
      %7148 = vmatpush.bf16.msra.mxu0 %v7022
      %7149 = vmatpush.bf16.msra.mxu0 %v7019
      %7150 = vmatpush.bf16.msra.mxu0 %v7016
      %7151 = vmatpush.bf16.msra.mxu0 %v7013
      %7152 = vmatmul.bf16.gmra.mxu0 %v6605
      %v7153 = vpop.f32.mrf.mxu0
      %v7154 = vadd.f32 %v7141, %v7153
      %v7155 = vpop.f32.mrf.mxu0
      %7156 = vdwg.mxu0
      %7157 = vmatpush.bf16.msra.mxu0 0
      %7158 = vmatpush.bf16.msra.mxu0 0
      %7159 = vmatpush.bf16.msra.mxu0 0
      %7160 = vmatpush.bf16.msra.mxu0 0
      %7161 = vmatpush.bf16.msra.mxu0 0
      %7162 = vmatpush.bf16.msra.mxu0 0
      %7163 = vmatpush.bf16.msra.mxu0 0
      %7164 = vmatpush.bf16.msra.mxu0 %v7037
      %7165 = vmatmul.bf16.gmra.mxu0 %v7116
      %v7166 = vpop.f32.mrf.mxu0
      %v7167 = vadd.f32 %v7154, %v7166
      %v7168 = vpop.f32.mrf.mxu0
      %7169 = vdwg.mxu0
      %7170 = vmatpush.bf16.msra.mxu0 %v6987
      %7171 = vmatpush.bf16.msra.mxu0 %v6984
      %7172 = vmatpush.bf16.msra.mxu0 %v6981
      %7173 = vmatpush.bf16.msra.mxu0 %v6978
      %7174 = vmatpush.bf16.msra.mxu0 %v6975
      %7175 = vmatpush.bf16.msra.mxu0 %v6972
      %7176 = vmatpush.bf16.msra.mxu0 %v6969
      %7177 = vmatpush.bf16.msra.mxu0 %v6966
      %7178 = vmatmul.bf16.gmra.mxu0 %v6603
      %v7179 = vpop.f32.mrf.mxu0
      %v7180 = vadd.f32 %v6710, %v7179
      %v7181 = vpop.f32.mrf.mxu0
      %7182 = vdwg.mxu0
      %7183 = vmatpush.bf16.msra.mxu0 %v7011
      %7184 = vmatpush.bf16.msra.mxu0 %v7008
      %7185 = vmatpush.bf16.msra.mxu0 %v7005
      %7186 = vmatpush.bf16.msra.mxu0 %v7002
      %7187 = vmatpush.bf16.msra.mxu0 %v6999
      %7188 = vmatpush.bf16.msra.mxu0 %v6996
      %7189 = vmatpush.bf16.msra.mxu0 %v6993
      %7190 = vmatpush.bf16.msra.mxu0 %v6990
      %7191 = vmatmul.bf16.gmra.mxu0 %v6604
      %v7192 = vpop.f32.mrf.mxu0
      %v7193 = vadd.f32 %v7180, %v7192
      %v7194 = vpop.f32.mrf.mxu0
      %7195 = vdwg.mxu0
      %7196 = vmatpush.bf16.msra.mxu0 %v7035
      %7197 = vmatpush.bf16.msra.mxu0 %v7032
      %7198 = vmatpush.bf16.msra.mxu0 %v7029
      %7199 = vmatpush.bf16.msra.mxu0 %v7026
      %7200 = vmatpush.bf16.msra.mxu0 %v7023
      %7201 = vmatpush.bf16.msra.mxu0 %v7020
      %7202 = vmatpush.bf16.msra.mxu0 %v7017
      %7203 = vmatpush.bf16.msra.mxu0 %v7014
      %7204 = vmatmul.bf16.gmra.mxu0 %v6605
      %v7205 = vpop.f32.mrf.mxu0
      %v7206 = vadd.f32 %v7193, %v7205
      %v7207 = vpop.f32.mrf.mxu0
      %7208 = vdwg.mxu0
      %7209 = vmatpush.bf16.msra.mxu0 0
      %7210 = vmatpush.bf16.msra.mxu0 0
      %7211 = vmatpush.bf16.msra.mxu0 0
      %7212 = vmatpush.bf16.msra.mxu0 0
      %7213 = vmatpush.bf16.msra.mxu0 0
      %7214 = vmatpush.bf16.msra.mxu0 0
      %7215 = vmatpush.bf16.msra.mxu0 0
      %7216 = vmatpush.bf16.msra.mxu0 %v7038
      %7217 = vmatmul.bf16.gmra.mxu0 %v7116
      %v7218 = vpop.f32.mrf.mxu0
      %v7219 = vadd.f32 %v7206, %v7218
      %v7220 = vpop.f32.mrf.mxu0
      %7221 = vdwg.mxu0
      %7222 = vmatpush.bf16.msra.mxu0 %v6988
      %7223 = vmatpush.bf16.msra.mxu0 %v6985
      %7224 = vmatpush.bf16.msra.mxu0 %v6982
      %7225 = vmatpush.bf16.msra.mxu0 %v6979
      %7226 = vmatpush.bf16.msra.mxu0 %v6976
      %7227 = vmatpush.bf16.msra.mxu0 %v6973
      %7228 = vmatpush.bf16.msra.mxu0 %v6970
      %7229 = vmatpush.bf16.msra.mxu0 %v6967
      %7230 = vmatmul.bf16.gmra.mxu0 %v6603
      %v7231 = vpop.f32.mrf.mxu0
      %v7232 = vadd.f32 %v6711, %v7231
      %v7233 = vpop.f32.mrf.mxu0
      %7234 = vdwg.mxu0
      %7235 = vmatpush.bf16.msra.mxu0 %v7012
      %7236 = vmatpush.bf16.msra.mxu0 %v7009
      %7237 = vmatpush.bf16.msra.mxu0 %v7006
      %7238 = vmatpush.bf16.msra.mxu0 %v7003
      %7239 = vmatpush.bf16.msra.mxu0 %v7000
      %7240 = vmatpush.bf16.msra.mxu0 %v6997
      %7241 = vmatpush.bf16.msra.mxu0 %v6994
      %7242 = vmatpush.bf16.msra.mxu0 %v6991
      %7243 = vmatmul.bf16.gmra.mxu0 %v6604
      %v7244 = vpop.f32.mrf.mxu0
      %v7245 = vadd.f32 %v7232, %v7244
      %v7246 = vpop.f32.mrf.mxu0
      %7247 = vdwg.mxu0
      %7248 = vmatpush.bf16.msra.mxu0 %v7036
      %7249 = vmatpush.bf16.msra.mxu0 %v7033
      %7250 = vmatpush.bf16.msra.mxu0 %v7030
      %7251 = vmatpush.bf16.msra.mxu0 %v7027
      %7252 = vmatpush.bf16.msra.mxu0 %v7024
      %7253 = vmatpush.bf16.msra.mxu0 %v7021
      %7254 = vmatpush.bf16.msra.mxu0 %v7018
      %7255 = vmatpush.bf16.msra.mxu0 %v7015
      %7256 = vmatmul.bf16.gmra.mxu0 %v6605
      %v7257 = vpop.f32.mrf.mxu0
      %v7258 = vadd.f32 %v7245, %v7257
      %v7259 = vpop.f32.mrf.mxu0
      %7260 = vdwg.mxu0
      %7261 = vmatpush.bf16.msra.mxu0 0
      %7262 = vmatpush.bf16.msra.mxu0 0
      %7263 = vmatpush.bf16.msra.mxu0 0
      %7264 = vmatpush.bf16.msra.mxu0 0
      %7265 = vmatpush.bf16.msra.mxu0 0
      %7266 = vmatpush.bf16.msra.mxu0 0
      %7267 = vmatpush.bf16.msra.mxu0 0
      %7268 = vmatpush.bf16.msra.mxu0 %v7039
      %7269 = vmatmul.bf16.gmra.mxu0 %v7116
      %v7270 = vpop.f32.mrf.mxu0
      %v7271 = vadd.f32 %v7258, %v7270
      %v7272 = vpop.f32.mrf.mxu0
      %7273 = vdwg.mxu0
      %v7274 = vmax.f32 %v7167, 0.0
      %v7275 = vmax.f32 %v7219, 0.0
      %v7276 = vmax.f32 %v7271, 0.0
      %v7277 = vpack.c.bf16 %v7274, %v7274
      %v7278 = vpack.c.bf16 %v7275, %v7275
      %v7279 = vpack.c.bf16 %v7276, %v7276
      %v7280 = vld [vmem:[%s985] sm:$0xf]
      %v7281 = vld [vmem:[%s985 + $0x4] sm:$0xf]
      %v7282 = vld [vmem:[%s985 + $0x8] sm:$0xf]
      %v7283 = vld [vmem:[%s985 + $0xc] sm:$0xf]
      %v7284 = vld [vmem:[%s985 + $0x10] sm:$0xf]
      %v7285 = vld [vmem:[%s985 + $0x14] sm:$0xf]
      %v7286 = vld [vmem:[%s985 + $0x18] sm:$0xf]
      %v7287 = vld [vmem:[%s985 + $0x1c] sm:$0xf]
      %v7288 = vld [vmem:[%s985 + $0x20] sm:$0xf]
      %v7289 = vld [vmem:[%s985 + $0x24] sm:$0xf]
      %v7290 = vld [vmem:[%s985 + $0x28] sm:$0xf]
      %v7291 = vld [vmem:[%s985 + $0x2c] sm:$0xf]
      %v7292 = vld [vmem:[%s985 + $0x30] sm:$0xf]
      %v7293 = vld [vmem:[%s985 + $0x34] sm:$0xf]
      %v7294 = vld [vmem:[%s985 + $0x38] sm:$0xf]
      %v7295 = vld [vmem:[%s985 + $0x3c] sm:$0xf]
      %v7296 = vld [vmem:[%s985 + $0x40] sm:$0xf]
      %v7297 = vld [vmem:[%s985 + $0x44] sm:$0xf]
      %v7298 = vld [vmem:[%s985 + $0x48] sm:$0xf]
      %v7299 = vld [vmem:[%s985 + $0x4c] sm:$0xf]
      %v7300 = vld [vmem:[%s985 + $0x50] sm:$0xf]
      %v7301 = vld [vmem:[%s985 + $0x54] sm:$0xf]
      %v7302 = vld [vmem:[%s985 + $0x58] sm:$0xf]
      %v7303 = vld [vmem:[%s985 + $0x5c] sm:$0xf]
      %v7304 = vld [vmem:[%s985 + $0x60] sm:$0xf]
      %v7305 = vld [vmem:[%s985 + $0x64] sm:$0xf]
      %v7306 = vld [vmem:[%s985 + $0x68] sm:$0xf]
      %v7307 = vld [vmem:[%s985 + $0x6c] sm:$0xf]
      %v7308 = vld [vmem:[%s985 + $0x70] sm:$0xf]
      %v7309 = vld [vmem:[%s985 + $0x74] sm:$0xf]
      %v7310 = vld [vmem:[%s985 + $0x78] sm:$0xf]
      %v7311 = vld [vmem:[%s985 + $0x7c] sm:$0xf]
      %v7312 = vld [vmem:[%s985 + $0x80] sm:$0xf]
      %v7313 = vld [vmem:[%s985 + $0x84] sm:$0xf]
      %v7314 = vld [vmem:[%s985 + $0x88] sm:$0xf]
      %v7315 = vld [vmem:[%s985 + $0x8c] sm:$0xf]
      %v7316 = vld [vmem:[%s985 + $0x90] sm:$0xf]
      %v7317 = vld [vmem:[%s985 + $0x94] sm:$0x3]
      %v7318 = vld [vmem:[%s988] sm:$0x1]
      %v7320 = vperm.slane %v7318, 0
      %v7360 = vunpack.c.l.b16 %v7280
      %v7361 = vunpack.c.l.b16 %v7281
      %v7362 = vunpack.c.l.b16 %v7282
      %v7363 = vunpack.c.l.b16 %v7283
      %v7364 = vunpack.c.l.b16 %v7284
      %v7365 = vunpack.c.l.b16 %v7285
      %v7366 = vunpack.c.l.b16 %v7286
      %v7367 = vunpack.c.l.b16 %v7287
      %v7368 = vunpack.c.l.b16 %v7288
      %v7369 = vunpack.c.l.b16 %v7289
      %v7370 = vunpack.c.l.b16 %v7290
      %v7371 = vunpack.c.l.b16 %v7291
      %v7372 = vunpack.c.l.b16 %v7292
      %v7373 = vunpack.c.l.b16 %v7293
      %v7374 = vunpack.c.l.b16 %v7294
      %v7375 = vunpack.c.l.b16 %v7295
      %v7376 = vunpack.c.l.b16 %v7296
      %v7377 = vunpack.c.l.b16 %v7297
      %v7378 = vunpack.c.l.b16 %v7298
      %v7379 = vunpack.c.l.b16 %v7299
      %v7380 = vunpack.c.l.b16 %v7300
      %v7381 = vunpack.c.l.b16 %v7301
      %v7382 = vunpack.c.l.b16 %v7302
      %v7383 = vunpack.c.l.b16 %v7303
      %v7384 = vunpack.c.l.b16 %v7304
      %v7385 = vunpack.c.l.b16 %v7305
      %v7386 = vunpack.c.l.b16 %v7306
      %v7387 = vunpack.c.l.b16 %v7307
      %v7388 = vunpack.c.l.b16 %v7308
      %v7389 = vunpack.c.l.b16 %v7309
      %v7390 = vunpack.c.l.b16 %v7310
      %v7391 = vunpack.c.l.b16 %v7311
      %v7392 = vunpack.c.l.b16 %v7312
      %v7393 = vunpack.c.l.b16 %v7313
      %v7394 = vunpack.c.l.b16 %v7314
      %v7395 = vunpack.c.l.b16 %v7315
      %v7396 = vunpack.c.l.b16 %v7316
      %v7397 = vunpack.c.l.b16 %v7317
      %v7398 = vpack.c.b16 %v7361, %v7360
      %v7399 = vpack.c.b16 %v7363, %v7362
      %v7400 = vpack.c.b16 %v7365, %v7364
      %v7401 = vpack.c.b16 %v7367, %v7366
      %v7402 = vpack.c.b16 %v7369, %v7368
      %v7403 = vpack.c.b16 %v7371, %v7370
      %v7404 = vpack.c.b16 %v7373, %v7372
      %v7405 = vpack.c.b16 %v7375, %v7374
      %v7406 = vpack.c.b16 %v7377, %v7376
      %v7407 = vpack.c.b16 %v7379, %v7378
      %v7408 = vpack.c.b16 %v7381, %v7380
      %v7409 = vpack.c.b16 %v7383, %v7382
      %v7410 = vpack.c.b16 %v7385, %v7384
      %v7411 = vpack.c.b16 %v7387, %v7386
      %v7412 = vpack.c.b16 %v7389, %v7388
      %v7413 = vpack.c.b16 %v7391, %v7390
      %v7414 = vpack.c.b16 %v7393, %v7392
      %v7415 = vpack.c.b16 %v7395, %v7394
      %v7416 = vpack.c.b16 %v7397, %v7396
      %vm7435 = vcmask 359424
      %v7437 = vsel %vm7435, %v7279, 0
      %vm7439 = vcmask 1045504
      %v7441 = vsel %vm7439, %v7416, 0
      %7443 = vmatpush.bf16.msra.mxu0 %v7405
      %7444 = vmatpush.bf16.msra.mxu0 %v7404
      %7445 = vmatpush.bf16.msra.mxu0 %v7403
      %7446 = vmatpush.bf16.msra.mxu0 %v7402
      %7447 = vmatpush.bf16.msra.mxu0 %v7401
      %7448 = vmatpush.bf16.msra.mxu0 %v7400
      %7449 = vmatpush.bf16.msra.mxu0 %v7399
      %7450 = vmatpush.bf16.msra.mxu0 %v7398
      %7451 = vmatmul.bf16.gmra.mxu0 %v7277
      %v7452 = vpop.f32.mrf.mxu0
      %v7453 = vadd.f32 %v7320, %v7452
      %v7454 = vpop.f32.mrf.mxu0
      %7455 = vdwg.mxu0
      %7456 = vmatpush.bf16.msra.mxu0 %v7413
      %7457 = vmatpush.bf16.msra.mxu0 %v7412
      %7458 = vmatpush.bf16.msra.mxu0 %v7411
      %7459 = vmatpush.bf16.msra.mxu0 %v7410
      %7460 = vmatpush.bf16.msra.mxu0 %v7409
      %7461 = vmatpush.bf16.msra.mxu0 %v7408
      %7462 = vmatpush.bf16.msra.mxu0 %v7407
      %7463 = vmatpush.bf16.msra.mxu0 %v7406
      %7464 = vmatmul.bf16.gmra.mxu0 %v7278
      %v7465 = vpop.f32.mrf.mxu0
      %v7466 = vadd.f32 %v7453, %v7465
      %v7467 = vpop.f32.mrf.mxu0
      %7468 = vdwg.mxu0
      %7469 = vmatpush.bf16.msra.mxu0 0
      %7470 = vmatpush.bf16.msra.mxu0 0
      %7471 = vmatpush.bf16.msra.mxu0 0
      %7472 = vmatpush.bf16.msra.mxu0 0
      %7473 = vmatpush.bf16.msra.mxu0 0
      %7474 = vmatpush.bf16.msra.mxu0 %v7441
      %7475 = vmatpush.bf16.msra.mxu0 %v7415
      %7476 = vmatpush.bf16.msra.mxu0 %v7414
      %7477 = vmatmul.bf16.gmra.mxu0 %v7437
      %v7478 = vpop.f32.mrf.mxu0
      %v7479 = vadd.f32 %v7466, %v7478
      %v7480 = vpop.f32.mrf.mxu0
      %7481 = vdwg.mxu0
      %7483 = vset.pattern.permute.xlu0 0
      %7484 = vperm.xlu0 %7483, %v7479
      %v7485 = vpop.permute.xlu0 %7484
      %7487 = vst [vmem:[%s992] sm:$0x3] %v7485
      %p7488 = scmp.lt.s32.totalorder %s34, 1
      %s7489 = scalar_select %p7488, %s34, 1
      %s7490 = smul.addr %s7489, 2
      %s7491 = scalar_lea.vmem %s23, %s7490
      // Predicated region
      $region113: #{critic_forward.1} parent=111 // pred_check
        %p7492 = pneg %p620
      $region114: #{critic_forward.1} parent=111 // pred_check_branch
        %7494 = sbr.rel (%p7492) target = $region116
      $region115: #{critic_forward.1} parent=111 // pred_region
        _
      $region116: #{critic_forward.1} parent=111 // pred_fallthru
        _
    $region112: #{critic_forward.1} parent=5 // pred_fallthru
      _
    %p7495 = scmp.le.s32.totalorder 2, %s29
    // Predicated region
    $region117: #{critic_forward.1} parent=5 // pred_check
      %p7496 = pneg %p7495
    $region118: #{critic_forward.1} parent=5 // pred_check_branch
      %7498 = sbr.rel (%p7496) target = $region120
    $region119: #{critic_forward.1} parent=5 // pred_region
      %s7499 = ssub.s32 %s29, 2
      // Predicated region
      $region121: #{critic_forward.1} parent=119 // pred_check
        %p7500 = pneg %p626
      $region122: #{critic_forward.1} parent=119 // pred_check_branch
        %7502 = sbr.rel (%p7500) target = $region124
      $region123: #{critic_forward.1} parent=119 // pred_region
        %p7503 = scmp.lt.s32.totalorder %s35, 1
        %s7504 = scalar_select %p7503, %s35, 1
        %s7505 = smul.addr %s7504, 2
        %s7506 = scalar_lea.vmem %s23, %s7505
      $region124: #{critic_forward.1} parent=119 // pred_fallthru
        _
    $region120: #{critic_forward.1} parent=5 // pred_fallthru
      _
  $region6: #{critic_forward.1} parent=0 // loop_footer
    %s33 = sadd.s32 1, %s29
  $region7: #{critic_forward.1} parent=0 // loop_footer_branch
    %28 = sbr.rel target = $region3
  $region8: #{critic_forward.1} parent=0 // loop_exit
    _

</llo_original>
